<compile_context>
chip_gen: v7x
topology: tpu7x:2x2x1
jax: 0.10.0
libtpu: 0.0.40
codegen_flags: <defaults>
</compile_context>

<pallas_src>
import functools

import jax
import jax.numpy as jnp
from jax.experimental import pallas as pl
from jax.experimental.pallas import tpu as pltpu

LANE = 128


# ----------------------------------------------------------------------------
# Kernel: conv3x3 -> BN -> ReLU -> conv3x3 -> BN -> (+ fused shortcut) -> ReLU
# One grid step processes B images (NHWC, spatially padded input supplied).
# ----------------------------------------------------------------------------
def _basic_block_kernel(xpad_ref, w1_ref, s1_ref, b1_ref, w2_ref, s2_ref,
                        b2_ref, out_ref, p1_ref, hpad_ref, p2_ref,
                        *, B, H, W, Cin, Cp, compute_dtype, out_dtype):
    M = B * H * W

    # ---- conv1 im2col: write each 3x3 tap straight into its K-offset column
    #      block of the persistent patch scratch (no temps + concatenate).
    for k in range(9):
        ky, kx = divmod(k, 3)
        p1_ref[:, k * Cin:(k + 1) * Cin] = (
            xpad_ref[:, ky:ky + H, kx:kx + W, :].reshape(M, Cin))

    # ---- conv1 + fused shortcut: ONE MXU matmul, N = 2*Cp output columns
    #      (lane-dense, fills the wide MXU on v6e/v7x), f32 accumulation.
    acc1 = jnp.dot(p1_ref[...], w1_ref[...],
                   preferred_element_type=jnp.float32)          # (M, 2*Cp)
    aff1 = acc1 * s1_ref[...] + b1_ref[...]                     # bn1 | bn_sc
    h1 = jnp.maximum(aff1[:, :Cp], 0.0)                         # relu(bn1(conv1))
    sc = aff1[:, Cp:]                                           # shortcut (f32)

    # ---- h1 -> padded VMEM scratch. Zero columns are concatenated in
    #      registers so the interior store is full-width / aligned; only the
    #      top & bottom halo rows are stored separately.
    zcol = jnp.zeros((B, H, 1, Cp), compute_dtype)
    zrow = jnp.zeros((B, 1, W + 2, Cp), compute_dtype)
    h1w = jnp.concatenate(
        [zcol, h1.astype(compute_dtype).reshape(B, H, W, Cp), zcol], axis=2)
    hpad_ref[:, 0:1, :, :] = zrow
    hpad_ref[:, H + 1:H + 2, :, :] = zrow
    hpad_ref[:, 1:H + 1, :, :] = h1w

    # ---- conv2 im2col: tap stores are lane-aligned (Cp is a 128 multiple).
    for k in range(9):
        ky, kx = divmod(k, 3)
        p2_ref[:, k * Cp:(k + 1) * Cp] = (
            hpad_ref[:, ky:ky + H, kx:kx + W, :].reshape(M, Cp))

    # ---- conv2 -> bn2 -> + shortcut -> relu; lane-dense bf16 store.
    acc2 = jnp.dot(p2_ref[...], w2_ref[...],
                   preferred_element_type=jnp.float32)          # (M, Cp)
    out = jnp.maximum(acc2 * s2_ref[...] + b2_ref[...] + sc, 0.0)
    out_ref[...] = out.reshape(B, H, W, Cp).astype(out_dtype)


# ----------------------------------------------------------------------------
# Parameter init (mirrors BasicBlock.__init__): xavier_uniform conv weights,
# BatchNorm gamma=1, beta=0, running_mean=0, running_var=1.
# ----------------------------------------------------------------------------
def init_basic_block_params(key, in_dim, out_dim, stride=1, eps=1e-5):
    assert stride == 1, "stride > 1 not supported by this kernel"
    k1, k2, k3 = jax.random.split(key, 3)

    def xavier(k, cout, cin, kh, kw):
        fan_in, fan_out = cin * kh * kw, cout * kh * kw
        bound = (6.0 / (fan_in + fan_out)) ** 0.5
        return jax.random.uniform(k, (cout, cin, kh, kw), jnp.float32,
                                  -bound, bound)

    def bn(c):
        return dict(gamma=jnp.ones((c,), jnp.float32),
                    beta=jnp.zeros((c,), jnp.float32),
                    mean=jnp.zeros((c,), jnp.float32),
                    var=jnp.ones((c,), jnp.float32),
                    eps=eps)

    params = {
        "w1": xavier(k1, out_dim, in_dim, 3, 3),    # OIHW like PyTorch
        "bn1": bn(out_dim),
        "w2": xavier(k2, out_dim, out_dim, 3, 3),
        "bn2": bn(out_dim),
    }
    if stride != 1 or in_dim != out_dim:
        params["ws"] = xavier(k3, out_dim, in_dim, 1, 1)
        params["bns"] = bn(out_dim)
    return params


def _bn_affine(bn, cp=None):
    scale = bn["gamma"] / jnp.sqrt(bn["var"] + bn["eps"])
    bias = bn["beta"] - bn["mean"] * scale
    if cp is not None and cp > scale.shape[0]:
        scale = jnp.pad(scale, (0, cp - scale.shape[0]), constant_values=1.0)
        bias = jnp.pad(bias, (0, cp - bias.shape[0]))
    return scale.reshape(1, -1), bias.reshape(1, -1)


def _pick_images_per_step(N, H, W, max_rows=2048):
    """Largest B dividing N with B*H*W <= max_rows, keeping >=2 grid steps
    when N >= 2 so 2-TC parts (v7x) still get a parallel axis."""
    best = 1
    for b in range(1, N + 1):
        if N % b:
            continue
        if b * H * W > max_rows:
            continue
        if N >= 2 and N // b < 2:
            continue
        best = b
    return best


# ----------------------------------------------------------------------------
# Wrapper: NCHW in / NCHW out, calls the Pallas kernel in NHWC with channels
# padded to Cp (multiple of 128) for lane-dense MXU / store traffic.
# (In a full NHWC bf16 network the transposes / padding ops would be dropped.)
# ----------------------------------------------------------------------------
def basic_block_forward(x_nchw, params, *, compute_dtype=jnp.bfloat16,
                        out_dtype=jnp.bfloat16, images_per_step=None):
    N, Cin, H, W = x_nchw.shape
    Cout = params["w1"].shape[0]
    Cp = ((Cout + LANE - 1) // LANE) * LANE       # pad N dim to lane width

    B = images_per_step or _pick_images_per_step(N, H, W)
    assert N % B == 0, (N, B)
    M = B * H * W

    x = jnp.transpose(x_nchw, (0, 2, 3, 1))                          # NHWC
    xpad = jnp.pad(x, ((0, 0), (1, 1), (1, 1), (0, 0))).astype(compute_dtype)

    # conv1 weights: OIHW -> (ky, kx, ci, co) -> (9*Cin, Cout) -> pad to Cp.
    # Row order (ky, kx, ci) matches the kernel-side tap column order.
    w1 = jnp.transpose(params["w1"], (2, 3, 1, 0)).reshape(9 * Cin, Cout)
    w1 = jnp.pad(w1, ((0, 0), (0, Cp - Cout)))
    s1, b1 = _bn_affine(params["bn1"], Cp)

    # Shortcut fused into conv1's matmul as Cp extra output columns whose rows
    # are zero except the centre tap (ky=1, kx=1) -> rows [4*Cin, 5*Cin).
    if "ws" in params:                                   # projection shortcut
        ws = jnp.transpose(params["ws"], (2, 3, 1, 0)).reshape(Cin, Cout)
        ws = jnp.pad(ws, ((0, 0), (0, Cp - Cout)))
        ssc, bsc = _bn_affine(params["bns"], Cp)
    else:                                                # identity shortcut
        ws = jnp.pad(jnp.eye(Cin, dtype=jnp.float32), ((0, 0), (0, Cp - Cin)))
        ssc = jnp.ones((1, Cp), jnp.float32)
        bsc = jnp.zeros((1, Cp), jnp.float32)
    wsc = jnp.zeros((9 * Cin, Cp), jnp.float32).at[4 * Cin:5 * Cin].set(ws)
    w1f = jnp.concatenate([w1, wsc], axis=1).astype(compute_dtype)  # (9*Cin, 2*Cp)
    s1f = jnp.concatenate([s1, ssc], axis=1)
    b1f = jnp.concatenate([b1, bsc], axis=1)

    # conv2 weights: pad both input- and output-channel dims to Cp.
    w2 = jnp.transpose(params["w2"], (2, 3, 1, 0))        # (3, 3, Cout, Cout)
    w2 = jnp.pad(w2, ((0, 0), (0, 0), (0, Cp - Cout), (0, Cp - Cout)))
    w2 = w2.reshape(9 * Cp, Cp).astype(compute_dtype)
    s2, b2 = _bn_affine(params["bn2"], Cp)

    const2 = lambda n: (0, 0)
    kernel = functools.partial(
        _basic_block_kernel, B=B, H=H, W=W, Cin=Cin, Cp=Cp,
        compute_dtype=compute_dtype, out_dtype=out_dtype)

    out = pl.pallas_call(
        kernel,
        out_shape=jax.ShapeDtypeStruct((N, H, W, Cp), out_dtype),
        grid=(N // B,),
        in_specs=[
            pl.BlockSpec((B, H + 2, W + 2, Cin), lambda n: (n, 0, 0, 0)),
            pl.BlockSpec((9 * Cin, 2 * Cp), const2),
            pl.BlockSpec((1, 2 * Cp), const2),
            pl.BlockSpec((1, 2 * Cp), const2),
            pl.BlockSpec((9 * Cp, Cp), const2),
            pl.BlockSpec((1, Cp), const2),
            pl.BlockSpec((1, Cp), const2),
        ],
        out_specs=pl.BlockSpec((B, H, W, Cp), lambda n: (n, 0, 0, 0)),
        scratch_shapes=[
            pltpu.VMEM((M, 9 * Cin), compute_dtype),           # conv1 patches
            pltpu.VMEM((B, H + 2, W + 2, Cp), compute_dtype),  # padded h1
            pltpu.VMEM((M, 9 * Cp), compute_dtype),            # conv2 patches
        ],
        compiler_params=pltpu.CompilerParams(
            dimension_semantics=("parallel",)),
    )(xpad, w1f, s1f, b1f, w2, s2, b2)

    # Drop channel padding, back to NCHW (plain XLA ops outside the kernel).
    return jnp.transpose(out[:, :, :, :Cout], (0, 3, 1, 2))


# ----------------------------------------------------------------------------
# Pure-JAX reference (NCHW, lax.conv, f32) for correctness checking.
# ----------------------------------------------------------------------------
def reference_forward(x, params):
    dn = ("NCHW", "OIHW", "NCHW")

    def conv(h, w, pad):
        return jax.lax.conv_general_dilated(h, w, (1, 1), ((pad, pad),) * 2,
                                            dimension_numbers=dn)

    def bn(h, b):
        s, t = _bn_affine(b)
        return h * s.reshape(1, -1, 1, 1) + t.reshape(1, -1, 1, 1)

    out = jax.nn.relu(bn(conv(x, params["w1"], 1), params["bn1"]))
    out = bn(conv(out, params["w2"], 1), params["bn2"])
    if "ws" in params:
        sc = bn(conv(x, params["ws"], 0), params["bns"])
    else:
        sc = x
    return jax.nn.relu(out + sc)


if __name__ == "__main__":
    key = jax.random.PRNGKey(0)
    kx1, kp1, kx2, kp2 = jax.random.split(key, 4)

    # bf16 matmul operands + bf16 activations/output vs f32 reference.
    ATOL, RTOL = 1e-1, 5e-2

    # --- Projection-shortcut block (in_dim != out_dim), 1 image per step. ---
    N, Cin, H, W, Cout = 2, 4, 16, 16, 8
    x = jax.random.normal(kx1, (N, Cin, H, W), jnp.float32)
    params = init_basic_block_params(kp1, Cin, Cout, stride=1)
    out = jax.block_until_ready(basic_block_forward(x, params))
    ref = reference_forward(x, params)
    assert out.shape == (N, Cout, H, W), out.shape
    assert jnp.allclose(out.astype(jnp.float32), ref, atol=ATOL, rtol=RTOL), (
        float(jnp.max(jnp.abs(out.astype(jnp.float32) - ref))))

    # --- Identity-shortcut block (in_dim == out_dim), 2 images per step. ---
    N2, C2 = 4, 8
    x2 = jax.random.normal(kx2, (N2, C2, H, W), jnp.float32)
    params2 = init_basic_block_params(kp2, C2, C2, stride=1)
    out2 = jax.block_until_ready(basic_block_forward(x2, params2))
    ref2 = reference_forward(x2, params2)
    assert out2.shape == (N2, C2, H, W), out2.shape
    assert jnp.allclose(out2.astype(jnp.float32), ref2, atol=ATOL, rtol=RTOL), (
        float(jnp.max(jnp.abs(out2.astype(jnp.float32) - ref2))))

    print("KERNEL_OK")
</pallas_src>

<mosaic_0001>
module attributes {stable_mosaic.version = 11 : i64} {
  func.func @_basic_block_kernel(%arg0: i32, %arg1: memref<1x18x18x4xbf16, #tpu.memory_space<vmem>>, %arg2: memref<36x256xbf16, #tpu.memory_space<vmem>>, %arg3: memref<1x256xf32, #tpu.memory_space<vmem>>, %arg4: memref<1x256xf32, #tpu.memory_space<vmem>>, %arg5: memref<1152x128xbf16, #tpu.memory_space<vmem>>, %arg6: memref<1x128xf32, #tpu.memory_space<vmem>>, %arg7: memref<1x128xf32, #tpu.memory_space<vmem>>, %arg8: memref<1x16x16x128xbf16, #tpu.memory_space<vmem>>, %arg9: memref<256x36xbf16, #tpu.memory_space<vmem>>, %arg10: memref<1x18x18x128xbf16, #tpu.memory_space<vmem>>, %arg11: memref<256x1152xbf16, #tpu.memory_space<vmem>>) attributes {dimension_semantics = [#tpu.dimension_semantics<parallel>], iteration_bounds = array<i64: 2>, scalar_prefetch = 0 : i64, scratch_operands = 3 : i64, tpu.core_type = #tpu.core_type<tc>, window_params = [{transform_indices = @transform_0, window_bounds = array<i64: 1, 18, 18, 4>}, {pipeline_mode = #tpu.pipeline_mode<synchronous>, transform_indices = @transform_1, window_bounds = array<i64: 36, 256>}, {pipeline_mode = #tpu.pipeline_mode<synchronous>, transform_indices = @transform_2, window_bounds = array<i64: 1, 256>}, {pipeline_mode = #tpu.pipeline_mode<synchronous>, transform_indices = @transform_3, window_bounds = array<i64: 1, 256>}, {pipeline_mode = #tpu.pipeline_mode<synchronous>, transform_indices = @transform_4, window_bounds = array<i64: 1152, 128>}, {pipeline_mode = #tpu.pipeline_mode<synchronous>, transform_indices = @transform_5, window_bounds = array<i64: 1, 128>}, {pipeline_mode = #tpu.pipeline_mode<synchronous>, transform_indices = @transform_6, window_bounds = array<i64: 1, 128>}, {transform_indices = @transform_7, window_bounds = array<i64: 1, 16, 16, 128>}]} {
    %c0 = arith.constant 0 : index
    %c0_0 = arith.constant 0 : index
    %c0_1 = arith.constant 0 : index
    %c0_2 = arith.constant 0 : index
    %0 = vector.load %arg1[%c0, %c0_0, %c0_1, %c0_2] : memref<1x18x18x4xbf16, #tpu.memory_space<vmem>>, vector<1x16x16x4xbf16>
    %1 = vector.shape_cast %0 : vector<1x16x16x4xbf16> to vector<256x4xbf16>
    %c0_3 = arith.constant 0 : index
    %c0_4 = arith.constant 0 : index
    %2 = vector.load %arg9[%c0_3, %c0_4] : memref<256x36xbf16, #tpu.memory_space<vmem>>, vector<256x4xbf16>
    tpu.vector_store %arg9[%c0_3, %c0_4], %1 {strides = array<i32>} : memref<256x36xbf16, #tpu.memory_space<vmem>>, vector<256x4xbf16>,
    %c0_5 = arith.constant 0 : index
    %c0_6 = arith.constant 0 : index
    %c1 = arith.constant 1 : index
    %c0_7 = arith.constant 0 : index
    %3 = vector.load %arg1[%c0_5, %c0_6, %c1, %c0_7] : memref<1x18x18x4xbf16, #tpu.memory_space<vmem>>, vector<1x16x16x4xbf16>
    %4 = vector.shape_cast %3 : vector<1x16x16x4xbf16> to vector<256x4xbf16>
    %c0_8 = arith.constant 0 : index
    %c4 = arith.constant 4 : index
    %5 = vector.load %arg9[%c0_8, %c4] : memref<256x36xbf16, #tpu.memory_space<vmem>>, vector<256x4xbf16>
    tpu.vector_store %arg9[%c0_8, %c4], %4 {strides = array<i32>} : memref<256x36xbf16, #tpu.memory_space<vmem>>, vector<256x4xbf16>,
    %c0_9 = arith.constant 0 : index
    %c0_10 = arith.constant 0 : index
    %c2 = arith.constant 2 : index
    %c0_11 = arith.constant 0 : index
    %6 = vector.load %arg1[%c0_9, %c0_10, %c2, %c0_11] : memref<1x18x18x4xbf16, #tpu.memory_space<vmem>>, vector<1x16x16x4xbf16>
    %7 = vector.shape_cast %6 : vector<1x16x16x4xbf16> to vector<256x4xbf16>
    %c0_12 = arith.constant 0 : index
    %c8 = arith.constant 8 : index
    %8 = vector.load %arg9[%c0_12, %c8] : memref<256x36xbf16, #tpu.memory_space<vmem>>, vector<256x4xbf16>
    tpu.vector_store %arg9[%c0_12, %c8], %7 {strides = array<i32>} : memref<256x36xbf16, #tpu.memory_space<vmem>>, vector<256x4xbf16>,
    %c0_13 = arith.constant 0 : index
    %c1_14 = arith.constant 1 : index
    %c0_15 = arith.constant 0 : index
    %c0_16 = arith.constant 0 : index
    %9 = vector.load %arg1[%c0_13, %c1_14, %c0_15, %c0_16] : memref<1x18x18x4xbf16, #tpu.memory_space<vmem>>, vector<1x16x16x4xbf16>
    %10 = vector.shape_cast %9 : vector<1x16x16x4xbf16> to vector<256x4xbf16>
    %c0_17 = arith.constant 0 : index
    %c12 = arith.constant 12 : index
    %11 = vector.load %arg9[%c0_17, %c12] : memref<256x36xbf16, #tpu.memory_space<vmem>>, vector<256x4xbf16>
    tpu.vector_store %arg9[%c0_17, %c12], %10 {strides = array<i32>} : memref<256x36xbf16, #tpu.memory_space<vmem>>, vector<256x4xbf16>,
    %c0_18 = arith.constant 0 : index
    %c1_19 = arith.constant 1 : index
    %c1_20 = arith.constant 1 : index
    %c0_21 = arith.constant 0 : index
    %12 = vector.load %arg1[%c0_18, %c1_19, %c1_20, %c0_21] : memref<1x18x18x4xbf16, #tpu.memory_space<vmem>>, vector<1x16x16x4xbf16>
    %13 = vector.shape_cast %12 : vector<1x16x16x4xbf16> to vector<256x4xbf16>
    %c0_22 = arith.constant 0 : index
    %c16 = arith.constant 16 : index
    %14 = vector.load %arg9[%c0_22, %c16] : memref<256x36xbf16, #tpu.memory_space<vmem>>, vector<256x4xbf16>
    tpu.vector_store %arg9[%c0_22, %c16], %13 {strides = array<i32>} : memref<256x36xbf16, #tpu.memory_space<vmem>>, vector<256x4xbf16>,
    %c0_23 = arith.constant 0 : index
    %c1_24 = arith.constant 1 : index
    %c2_25 = arith.constant 2 : index
    %c0_26 = arith.constant 0 : index
    %15 = vector.load %arg1[%c0_23, %c1_24, %c2_25, %c0_26] : memref<1x18x18x4xbf16, #tpu.memory_space<vmem>>, vector<1x16x16x4xbf16>
    %16 = vector.shape_cast %15 : vector<1x16x16x4xbf16> to vector<256x4xbf16>
    %c0_27 = arith.constant 0 : index
    %c20 = arith.constant 20 : index
    %17 = vector.load %arg9[%c0_27, %c20] : memref<256x36xbf16, #tpu.memory_space<vmem>>, vector<256x4xbf16>
    tpu.vector_store %arg9[%c0_27, %c20], %16 {strides = array<i32>} : memref<256x36xbf16, #tpu.memory_space<vmem>>, vector<256x4xbf16>,
    %c0_28 = arith.constant 0 : index
    %c2_29 = arith.constant 2 : index
    %c0_30 = arith.constant 0 : index
    %c0_31 = arith.constant 0 : index
    %18 = vector.load %arg1[%c0_28, %c2_29, %c0_30, %c0_31] : memref<1x18x18x4xbf16, #tpu.memory_space<vmem>>, vector<1x16x16x4xbf16>
    %19 = vector.shape_cast %18 : vector<1x16x16x4xbf16> to vector<256x4xbf16>
    %c0_32 = arith.constant 0 : index
    %c24 = arith.constant 24 : index
    %20 = vector.load %arg9[%c0_32, %c24] : memref<256x36xbf16, #tpu.memory_space<vmem>>, vector<256x4xbf16>
    tpu.vector_store %arg9[%c0_32, %c24], %19 {strides = array<i32>} : memref<256x36xbf16, #tpu.memory_space<vmem>>, vector<256x4xbf16>,
    %c0_33 = arith.constant 0 : index
    %c2_34 = arith.constant 2 : index
    %c1_35 = arith.constant 1 : index
    %c0_36 = arith.constant 0 : index
    %21 = vector.load %arg1[%c0_33, %c2_34, %c1_35, %c0_36] : memref<1x18x18x4xbf16, #tpu.memory_space<vmem>>, vector<1x16x16x4xbf16>
    %22 = vector.shape_cast %21 : vector<1x16x16x4xbf16> to vector<256x4xbf16>
    %c0_37 = arith.constant 0 : index
    %c28 = arith.constant 28 : index
    %23 = vector.load %arg9[%c0_37, %c28] : memref<256x36xbf16, #tpu.memory_space<vmem>>, vector<256x4xbf16>
    tpu.vector_store %arg9[%c0_37, %c28], %22 {strides = array<i32>} : memref<256x36xbf16, #tpu.memory_space<vmem>>, vector<256x4xbf16>,
    %c0_38 = arith.constant 0 : index
    %c2_39 = arith.constant 2 : index
    %c2_40 = arith.constant 2 : index
    %c0_41 = arith.constant 0 : index
    %24 = vector.load %arg1[%c0_38, %c2_39, %c2_40, %c0_41] : memref<1x18x18x4xbf16, #tpu.memory_space<vmem>>, vector<1x16x16x4xbf16>
    %25 = vector.shape_cast %24 : vector<1x16x16x4xbf16> to vector<256x4xbf16>
    %c0_42 = arith.constant 0 : index
    %c32 = arith.constant 32 : index
    %26 = vector.load %arg9[%c0_42, %c32] : memref<256x36xbf16, #tpu.memory_space<vmem>>, vector<256x4xbf16>
    tpu.vector_store %arg9[%c0_42, %c32], %25 {strides = array<i32>} : memref<256x36xbf16, #tpu.memory_space<vmem>>, vector<256x4xbf16>,
    %c0_43 = arith.constant 0 : index
    %c0_44 = arith.constant 0 : index
    %27 = vector.load %arg9[%c0_43, %c0_44] : memref<256x36xbf16, #tpu.memory_space<vmem>>, vector<256x36xbf16>
    %c0_45 = arith.constant 0 : index
    %c0_46 = arith.constant 0 : index
    %28 = vector.load %arg2[%c0_45, %c0_46] : memref<36x256xbf16, #tpu.memory_space<vmem>>, vector<36x256xbf16>
    %cst = arith.constant dense<0.000000e+00> : vector<256x256xf32>
    %29 = tpu.matmul %27, %28, %cst {dimension_numbers = #tpu.dot_dimension_numbers<[1], [0], [0], [1], [0, 0, 1, 1], [], []>} : vector<256x36xbf16>, vector<36x256xbf16>, vector<256x256xf32> -> vector<256x256xf32>
    %c0_47 = arith.constant 0 : index
    %c0_48 = arith.constant 0 : index
    %30 = vector.load %arg3[%c0_47, %c0_48] : memref<1x256xf32, #tpu.memory_space<vmem>>, vector<1x256xf32>
    %31 = vector.broadcast %30 : vector<1x256xf32> to vector<256x256xf32>
    %32 = arith.mulf %29, %31 : vector<256x256xf32>
    %c0_49 = arith.constant 0 : index
    %c0_50 = arith.constant 0 : index
    %33 = vector.load %arg4[%c0_49, %c0_50] : memref<1x256xf32, #tpu.memory_space<vmem>>, vector<1x256xf32>
    %34 = vector.broadcast %33 : vector<1x256xf32> to vector<256x256xf32>
    %35 = arith.addf %32, %34 : vector<256x256xf32>
    %36 = vector.extract_strided_slice %35 {offsets = [0, 0], sizes = [256, 128], strides = [1, 1]} : vector<256x256xf32> to vector<256x128xf32>
    %cst_51 = arith.constant 0.000000e+00 : f32
    %37 = vector.broadcast %cst_51 : f32 to vector<256x128xf32>
    %38 = arith.maximumf %36, %37 : vector<256x128xf32>
    %39 = vector.extract_strided_slice %35 {offsets = [0, 128], sizes = [256, 128], strides = [1, 1]} : vector<256x256xf32> to vector<256x128xf32>
    %cst_52 = arith.constant 0.000000e+00 : bf16
    %40 = vector.broadcast %cst_52 : bf16 to vector<1x16x1x128xbf16>
    %cst_53 = arith.constant 0.000000e+00 : bf16
    %41 = vector.broadcast %cst_53 : bf16 to vector<1x1x18x128xbf16>
    %42 = arith.truncf %38 : vector<256x128xf32> to vector<256x128xbf16>
    %43 = vector.shape_cast %42 : vector<256x128xbf16> to vector<1x16x16x128xbf16>
    %44 = tpu.concatenate %40, %43, %40 in 2 : vector<1x16x1x128xbf16>, vector<1x16x16x128xbf16>, vector<1x16x1x128xbf16> -> vector<1x16x18x128xbf16>
    %c0_54 = arith.constant 0 : index
    %c0_55 = arith.constant 0 : index
    %c0_56 = arith.constant 0 : index
    %c0_57 = arith.constant 0 : index
    %45 = vector.load %arg10[%c0_54, %c0_55, %c0_56, %c0_57] : memref<1x18x18x128xbf16, #tpu.memory_space<vmem>>, vector<1x1x18x128xbf16>
    tpu.vector_store %arg10[%c0_54, %c0_55, %c0_56, %c0_57], %41 {strides = array<i32>} : memref<1x18x18x128xbf16, #tpu.memory_space<vmem>>, vector<1x1x18x128xbf16>,
    %c0_58 = arith.constant 0 : index
    %c17 = arith.constant 17 : index
    %c0_59 = arith.constant 0 : index
    %c0_60 = arith.constant 0 : index
    %46 = vector.load %arg10[%c0_58, %c17, %c0_59, %c0_60] : memref<1x18x18x128xbf16, #tpu.memory_space<vmem>>, vector<1x1x18x128xbf16>
    tpu.vector_store %arg10[%c0_58, %c17, %c0_59, %c0_60], %41 {strides = array<i32>} : memref<1x18x18x128xbf16, #tpu.memory_space<vmem>>, vector<1x1x18x128xbf16>,
    %c0_61 = arith.constant 0 : index
    %c1_62 = arith.constant 1 : index
    %c0_63 = arith.constant 0 : index
    %c0_64 = arith.constant 0 : index
    %47 = vector.load %arg10[%c0_61, %c1_62, %c0_63, %c0_64] : memref<1x18x18x128xbf16, #tpu.memory_space<vmem>>, vector<1x16x18x128xbf16>
    tpu.vector_store %arg10[%c0_61, %c1_62, %c0_63, %c0_64], %44 {strides = array<i32>} : memref<1x18x18x128xbf16, #tpu.memory_space<vmem>>, vector<1x16x18x128xbf16>,
    %c0_65 = arith.constant 0 : index
    %c0_66 = arith.constant 0 : index
    %c0_67 = arith.constant 0 : index
    %c0_68 = arith.constant 0 : index
    %48 = vector.load %arg10[%c0_65, %c0_66, %c0_67, %c0_68] : memref<1x18x18x128xbf16, #tpu.memory_space<vmem>>, vector<1x16x16x128xbf16>
    %49 = vector.shape_cast %48 : vector<1x16x16x128xbf16> to vector<256x128xbf16>
    %c0_69 = arith.constant 0 : index
    %c0_70 = arith.constant 0 : index
    %50 = vector.load %arg11[%c0_69, %c0_70] : memref<256x1152xbf16, #tpu.memory_space<vmem>>, vector<256x128xbf16>
    tpu.vector_store %arg11[%c0_69, %c0_70], %49 {strides = array<i32>} : memref<256x1152xbf16, #tpu.memory_space<vmem>>, vector<256x128xbf16>,
    %c0_71 = arith.constant 0 : index
    %c0_72 = arith.constant 0 : index
    %c1_73 = arith.constant 1 : index
    %c0_74 = arith.constant 0 : index
    %51 = vector.load %arg10[%c0_71, %c0_72, %c1_73, %c0_74] : memref<1x18x18x128xbf16, #tpu.memory_space<vmem>>, vector<1x16x16x128xbf16>
    %52 = vector.shape_cast %51 : vector<1x16x16x128xbf16> to vector<256x128xbf16>
    %c0_75 = arith.constant 0 : index
    %c128 = arith.constant 128 : index
    %53 = vector.load %arg11[%c0_75, %c128] : memref<256x1152xbf16, #tpu.memory_space<vmem>>, vector<256x128xbf16>
    tpu.vector_store %arg11[%c0_75, %c128], %52 {strides = array<i32>} : memref<256x1152xbf16, #tpu.memory_space<vmem>>, vector<256x128xbf16>,
    %c0_76 = arith.constant 0 : index
    %c0_77 = arith.constant 0 : index
    %c2_78 = arith.constant 2 : index
    %c0_79 = arith.constant 0 : index
    %54 = vector.load %arg10[%c0_76, %c0_77, %c2_78, %c0_79] : memref<1x18x18x128xbf16, #tpu.memory_space<vmem>>, vector<1x16x16x128xbf16>
    %55 = vector.shape_cast %54 : vector<1x16x16x128xbf16> to vector<256x128xbf16>
    %c0_80 = arith.constant 0 : index
    %c256 = arith.constant 256 : index
    %56 = vector.load %arg11[%c0_80, %c256] : memref<256x1152xbf16, #tpu.memory_space<vmem>>, vector<256x128xbf16>
    tpu.vector_store %arg11[%c0_80, %c256], %55 {strides = array<i32>} : memref<256x1152xbf16, #tpu.memory_space<vmem>>, vector<256x128xbf16>,
    %c0_81 = arith.constant 0 : index
    %c1_82 = arith.constant 1 : index
    %c0_83 = arith.constant 0 : index
    %c0_84 = arith.constant 0 : index
    %57 = vector.load %arg10[%c0_81, %c1_82, %c0_83, %c0_84] : memref<1x18x18x128xbf16, #tpu.memory_space<vmem>>, vector<1x16x16x128xbf16>
    %58 = vector.shape_cast %57 : vector<1x16x16x128xbf16> to vector<256x128xbf16>
    %c0_85 = arith.constant 0 : index
    %c384 = arith.constant 384 : index
    %59 = vector.load %arg11[%c0_85, %c384] : memref<256x1152xbf16, #tpu.memory_space<vmem>>, vector<256x128xbf16>
    tpu.vector_store %arg11[%c0_85, %c384], %58 {strides = array<i32>} : memref<256x1152xbf16, #tpu.memory_space<vmem>>, vector<256x128xbf16>,
    %c0_86 = arith.constant 0 : index
    %c1_87 = arith.constant 1 : index
    %c1_88 = arith.constant 1 : index
    %c0_89 = arith.constant 0 : index
    %60 = vector.load %arg10[%c0_86, %c1_87, %c1_88, %c0_89] : memref<1x18x18x128xbf16, #tpu.memory_space<vmem>>, vector<1x16x16x128xbf16>
    %61 = vector.shape_cast %60 : vector<1x16x16x128xbf16> to vector<256x128xbf16>
    %c0_90 = arith.constant 0 : index
    %c512 = arith.constant 512 : index
    %62 = vector.load %arg11[%c0_90, %c512] : memref<256x1152xbf16, #tpu.memory_space<vmem>>, vector<256x128xbf16>
    tpu.vector_store %arg11[%c0_90, %c512], %61 {strides = array<i32>} : memref<256x1152xbf16, #tpu.memory_space<vmem>>, vector<256x128xbf16>,
    %c0_91 = arith.constant 0 : index
    %c1_92 = arith.constant 1 : index
    %c2_93 = arith.constant 2 : index
    %c0_94 = arith.constant 0 : index
    %63 = vector.load %arg10[%c0_91, %c1_92, %c2_93, %c0_94] : memref<1x18x18x128xbf16, #tpu.memory_space<vmem>>, vector<1x16x16x128xbf16>
    %64 = vector.shape_cast %63 : vector<1x16x16x128xbf16> to vector<256x128xbf16>
    %c0_95 = arith.constant 0 : index
    %c640 = arith.constant 640 : index
    %65 = vector.load %arg11[%c0_95, %c640] : memref<256x1152xbf16, #tpu.memory_space<vmem>>, vector<256x128xbf16>
    tpu.vector_store %arg11[%c0_95, %c640], %64 {strides = array<i32>} : memref<256x1152xbf16, #tpu.memory_space<vmem>>, vector<256x128xbf16>,
    %c0_96 = arith.constant 0 : index
    %c2_97 = arith.constant 2 : index
    %c0_98 = arith.constant 0 : index
    %c0_99 = arith.constant 0 : index
    %66 = vector.load %arg10[%c0_96, %c2_97, %c0_98, %c0_99] : memref<1x18x18x128xbf16, #tpu.memory_space<vmem>>, vector<1x16x16x128xbf16>
    %67 = vector.shape_cast %66 : vector<1x16x16x128xbf16> to vector<256x128xbf16>
    %c0_100 = arith.constant 0 : index
    %c768 = arith.constant 768 : index
    %68 = vector.load %arg11[%c0_100, %c768] : memref<256x1152xbf16, #tpu.memory_space<vmem>>, vector<256x128xbf16>
    tpu.vector_store %arg11[%c0_100, %c768], %67 {strides = array<i32>} : memref<256x1152xbf16, #tpu.memory_space<vmem>>, vector<256x128xbf16>,
    %c0_101 = arith.constant 0 : index
    %c2_102 = arith.constant 2 : index
    %c1_103 = arith.constant 1 : index
    %c0_104 = arith.constant 0 : index
    %69 = vector.load %arg10[%c0_101, %c2_102, %c1_103, %c0_104] : memref<1x18x18x128xbf16, #tpu.memory_space<vmem>>, vector<1x16x16x128xbf16>
    %70 = vector.shape_cast %69 : vector<1x16x16x128xbf16> to vector<256x128xbf16>
    %c0_105 = arith.constant 0 : index
    %c896 = arith.constant 896 : index
    %71 = vector.load %arg11[%c0_105, %c896] : memref<256x1152xbf16, #tpu.memory_space<vmem>>, vector<256x128xbf16>
    tpu.vector_store %arg11[%c0_105, %c896], %70 {strides = array<i32>} : memref<256x1152xbf16, #tpu.memory_space<vmem>>, vector<256x128xbf16>,
    %c0_106 = arith.constant 0 : index
    %c2_107 = arith.constant 2 : index
    %c2_108 = arith.constant 2 : index
    %c0_109 = arith.constant 0 : index
    %72 = vector.load %arg10[%c0_106, %c2_107, %c2_108, %c0_109] : memref<1x18x18x128xbf16, #tpu.memory_space<vmem>>, vector<1x16x16x128xbf16>
    %73 = vector.shape_cast %72 : vector<1x16x16x128xbf16> to vector<256x128xbf16>
    %c0_110 = arith.constant 0 : index
    %c1024 = arith.constant 1024 : index
    %74 = vector.load %arg11[%c0_110, %c1024] : memref<256x1152xbf16, #tpu.memory_space<vmem>>, vector<256x128xbf16>
    tpu.vector_store %arg11[%c0_110, %c1024], %73 {strides = array<i32>} : memref<256x1152xbf16, #tpu.memory_space<vmem>>, vector<256x128xbf16>,
    %c0_111 = arith.constant 0 : index
    %c0_112 = arith.constant 0 : index
    %75 = vector.load %arg11[%c0_111, %c0_112] : memref<256x1152xbf16, #tpu.memory_space<vmem>>, vector<256x1152xbf16>
    %c0_113 = arith.constant 0 : index
    %c0_114 = arith.constant 0 : index
    %76 = vector.load %arg5[%c0_113, %c0_114] : memref<1152x128xbf16, #tpu.memory_space<vmem>>, vector<1152x128xbf16>
    %cst_115 = arith.constant dense<0.000000e+00> : vector<256x128xf32>
    %77 = tpu.matmul %75, %76, %cst_115 {dimension_numbers = #tpu.dot_dimension_numbers<[1], [0], [0], [1], [0, 0, 1, 1], [], []>} : vector<256x1152xbf16>, vector<1152x128xbf16>, vector<256x128xf32> -> vector<256x128xf32>
    %c0_116 = arith.constant 0 : index
    %c0_117 = arith.constant 0 : index
    %78 = vector.load %arg6[%c0_116, %c0_117] : memref<1x128xf32, #tpu.memory_space<vmem>>, vector<1x128xf32>
    %79 = vector.broadcast %78 : vector<1x128xf32> to vector<256x128xf32>
    %80 = arith.mulf %77, %79 : vector<256x128xf32>
    %c0_118 = arith.constant 0 : index
    %c0_119 = arith.constant 0 : index
    %81 = vector.load %arg7[%c0_118, %c0_119] : memref<1x128xf32, #tpu.memory_space<vmem>>, vector<1x128xf32>
    %82 = vector.broadcast %81 : vector<1x128xf32> to vector<256x128xf32>
    %83 = arith.addf %80, %82 : vector<256x128xf32>
    %84 = arith.addf %83, %39 : vector<256x128xf32>
    %cst_120 = arith.constant 0.000000e+00 : f32
    %85 = vector.broadcast %cst_120 : f32 to vector<256x128xf32>
    %86 = arith.maximumf %84, %85 : vector<256x128xf32>
    %87 = vector.shape_cast %86 : vector<256x128xf32> to vector<1x16x16x128xf32>
    %88 = arith.truncf %87 : vector<1x16x16x128xf32> to vector<1x16x16x128xbf16>
    %c0_121 = arith.constant 0 : index
    %c0_122 = arith.constant 0 : index
    %c0_123 = arith.constant 0 : index
    %c0_124 = arith.constant 0 : index
    %89 = vector.load %arg8[%c0_121, %c0_122, %c0_123, %c0_124] : memref<1x16x16x128xbf16, #tpu.memory_space<vmem>>, vector<1x16x16x128xbf16>
    tpu.vector_store %arg8[%c0_121, %c0_122, %c0_123, %c0_124], %88 {strides = array<i32>} : memref<1x16x16x128xbf16, #tpu.memory_space<vmem>>, vector<1x16x16x128xbf16>,
    return
  }
  func.func @transform_0(%arg0: i32) -> (i32, i32, i32, i32) {
    %c0_i32 = arith.constant 0 : i32
    %c0_i32_0 = arith.constant 0 : i32
    %c0_i32_1 = arith.constant 0 : i32
    %c0_i32_2 = arith.constant 0 : i32
    return %arg0, %c0_i32, %c0_i32_0, %c0_i32_1 : i32, i32, i32, i32
  }
  func.func @transform_1(%arg0: i32) -> (i32, i32) {
    %c0_i32 = arith.constant 0 : i32
    %c0_i32_0 = arith.constant 0 : i32
    %c0_i32_1 = arith.constant 0 : i32
    return %c0_i32, %c0_i32_0 : i32, i32
  }
  func.func @transform_2(%arg0: i32) -> (i32, i32) {
    %c0_i32 = arith.constant 0 : i32
    %c0_i32_0 = arith.constant 0 : i32
    %c0_i32_1 = arith.constant 0 : i32
    return %c0_i32, %c0_i32_0 : i32, i32
  }
  func.func @transform_3(%arg0: i32) -> (i32, i32) {
    %c0_i32 = arith.constant 0 : i32
    %c0_i32_0 = arith.constant 0 : i32
    %c0_i32_1 = arith.constant 0 : i32
    return %c0_i32, %c0_i32_0 : i32, i32
  }
  func.func @transform_4(%arg0: i32) -> (i32, i32) {
    %c0_i32 = arith.constant 0 : i32
    %c0_i32_0 = arith.constant 0 : i32
    %c0_i32_1 = arith.constant 0 : i32
    return %c0_i32, %c0_i32_0 : i32, i32
  }
  func.func @transform_5(%arg0: i32) -> (i32, i32) {
    %c0_i32 = arith.constant 0 : i32
    %c0_i32_0 = arith.constant 0 : i32
    %c0_i32_1 = arith.constant 0 : i32
    return %c0_i32, %c0_i32_0 : i32, i32
  }
  func.func @transform_6(%arg0: i32) -> (i32, i32) {
    %c0_i32 = arith.constant 0 : i32
    %c0_i32_0 = arith.constant 0 : i32
    %c0_i32_1 = arith.constant 0 : i32
    return %c0_i32, %c0_i32_0 : i32, i32
  }
  func.func @transform_7(%arg0: i32) -> (i32, i32, i32, i32) {
    %c0_i32 = arith.constant 0 : i32
    %c0_i32_0 = arith.constant 0 : i32
    %c0_i32_1 = arith.constant 0 : i32
    %c0_i32_2 = arith.constant 0 : i32
    return %arg0, %c0_i32, %c0_i32_0, %c0_i32_1 : i32, i32, i32, i32
  }
}

</mosaic_0001>

<llo_original>
// kernel: tpu_custom_call.1
$region0: #{tpu_custom_call.1}
  #allocation0 [shape = 'u32[]', space=smem, size = 0x4, offset = 0x4, fixed_abs, tag = 'smem constant byte address 0x4 - core index']
  #allocation1 [shape = 'u32[144,128]{1,0:T(1,128)}', space=vmem, size = 0x12000, scoped, tag = 'internal scratch']
  #allocation2 [shape = 'bf16[256,36]{1,0:T(16,128)(2,1)}', space=vmem, size = 0x10000, scoped, tag = 'scratch operand']
  #allocation3 [shape = 'bf16[1,18,18,128]{3,2,1,0:T(8,128)(2,1)}', space=vmem, size = 0x1b000, scoped, tag = 'scratch operand']
  #allocation4 [shape = 'bf16[256,1152]{1,0:T(16,128)(2,1)}', space=vmem, size = 0x90000, scoped, tag = 'scratch operand']
  %s0 = inlined_call_operand.vmem [shape: bf16[2,18,18,4], index: 0, kind: input, shape index: {}]
  %s1 = inlined_call_operand.vmem [shape: bf16[36,256], index: 1, kind: input, shape index: {}]
  %s2 = inlined_call_operand.vmem [shape: f32[1,256], index: 2, kind: input, shape index: {}]
  %s3 = inlined_call_operand.vmem [shape: f32[1,256], index: 3, kind: input, shape index: {}]
  %s4 = inlined_call_operand.hbm [shape: bf16[1152,128], index: 4, kind: input, shape index: {}]
  %s5 = inlined_call_operand.vmem [shape: f32[1,128], index: 5, kind: input, shape index: {}]
  %s6 = inlined_call_operand.vmem [shape: f32[1,128], index: 6, kind: input, shape index: {}]
  %s7 = inlined_call_operand.hbm [shape: bf16[2,16,16,128], index: 7, kind: output, shape index: {}]
  %s8 = sld [smem:[#allocation0]]
  $region65: #{tpu_custom_call.1} parent=0
    _
  %s10 = ssub.s32 1, %s8
  %s11 = scalar_select 0, %s10, %s8
  $region1: #{tpu_custom_call.1} parent=0
    #allocation5 [shape = 'u8[294912]{0}', space=vmem, size = 0x48000, scoped, tag = 'input window, operand 4, single buffered']
    #allocation6 [shape = 's32[2]{0}', space=sflag, size = 0x8, scoped, tag = 'scoped memory for tpu_custom_call.1']
    #allocation7 [shape = 's32[2]{0}', space=sflag, size = 0x8, scoped, tag = 'scoped memory for tpu_custom_call.1']
    #allocation8 [shape = 'u8[131072]{0}', space=vmem, size = 0x20000, scoped, tag = 'output window, operand 0']
    %12 = vsyncpa [#allocation6], 0
    %13 = vsyncpa [#allocation7], 0
    %s14 = scalar_lea.sflag [#allocation7], 1
    %15 = vsyncpa %s14, 0
    loop: start=0, step=1, limit=4
    $region2: #{tpu_custom_call.1} parent=1 // loop_pre_header
      _
    $region3: #{tpu_custom_call.1} parent=1 // loop_header
      %s17 = sphi 0, %s21
      %p18 = scmp.ge.s32.totalorder %s17, 4
      %s27 = sphi 0, %s29
      %s30 = sphi 0, %s27
      %s31 = sphi 0, %s30
      %s47 = sphi 0, %s31
      %s51 = sphi 0, %s51
      %s53 = sphi 0, %s51
      %s54 = sphi 0, %s53
      %s68 = sphi 0, %s54
      %s72 = sphi 0, %s72
      %s74 = sphi 0, %s72
      %s75 = sphi 0, %s74
      %s89 = sphi 0, %s75
      %s93 = sphi 0, %s93
      %s95 = sphi 0, %s93
      %s96 = sphi 0, %s95
      %s110 = sphi 0, %s96
      %s114 = sphi 0, %s114
      %s116 = sphi 0, %s114
      %s117 = sphi 0, %s116
      %s131 = sphi 0, %s117
      %s135 = sphi 0, %s135
      %s137 = sphi 0, %s135
      %s138 = sphi 0, %s137
      %s152 = sphi 0, %s138
      %s156 = sphi 0, %s156
      %s158 = sphi 0, %s156
      %s159 = sphi 0, %s158
      %s173 = sphi 0, %s159
      %s179 = sphi 0, %s181
      %s182 = sphi 0, %s179
      %s183 = sphi 0, %s182
      %s199 = sphi 0, %s183
    $region4: #{tpu_custom_call.1} parent=1 // loop_header_branch
      %20 = sbr.rel (%p18) target = $region8
    $region5: #{tpu_custom_call.1} parent=1 // loop_body
      %s22 = ssub.s32 %s17, 1
      %s23 = ssub.s32 %s17, 2
      %s24 = sadd.s32 %s17, 1
      %s25 = ssub.s32 %s17, %s24
      %p26 = scmp.eq.s32.totalorder %s25, 0
      %s28 = sadd.s32 %s27, 1
      %s29 = scalar_select %p26, %s27, %s28
      %p32 = pneg %p26
      %p33 = scmp.eq.s32.totalorder %s17, 1
      %p34 = por %p32, %p33
      %p35 = scmp.ne.s32.totalorder %s27, %s30
      %p36 = scmp.eq.s32.totalorder %s17, 0
      %p37 = por %p35, %p36
      %p38 = scmp.ne.s32.totalorder %s27, %s30
      %p39 = scmp.eq.s32.totalorder %s22, 1
      %p40 = por %p38, %p39
      %p41 = scmp.ne.s32.totalorder %s30, %s31
      %p42 = scmp.eq.s32.totalorder %s22, 0
      %p43 = por %p41, %p42
      %p44 = scmp.ne.s32.totalorder %s30, %s31
      %p45 = scmp.eq.s32.totalorder %s23, 1
      %p46 = por %p44, %p45
      %p48 = scmp.ne.s32.totalorder %s31, %s47
      %p49 = scmp.eq.s32.totalorder %s23, 0
      %p50 = por %p48, %p49
      %s52 = sadd.s32 %s51, 1
      %p55 = scmp.eq.s32.totalorder %s17, 1
      %p56 = scmp.ne.s32.totalorder %s51, %s53
      %p57 = scmp.eq.s32.totalorder %s17, 0
      %p58 = por %p56, %p57
      %p59 = scmp.ne.s32.totalorder %s51, %s53
      %p60 = scmp.eq.s32.totalorder %s22, 1
      %p61 = por %p59, %p60
      %p62 = scmp.ne.s32.totalorder %s53, %s54
      %p63 = scmp.eq.s32.totalorder %s22, 0
      %p64 = por %p62, %p63
      %p65 = scmp.ne.s32.totalorder %s53, %s54
      %p66 = scmp.eq.s32.totalorder %s23, 1
      %p67 = por %p65, %p66
      %p69 = scmp.ne.s32.totalorder %s54, %s68
      %p70 = scmp.eq.s32.totalorder %s23, 0
      %p71 = por %p69, %p70
      %s73 = sadd.s32 %s72, 1
      %p76 = scmp.eq.s32.totalorder %s17, 1
      %p77 = scmp.ne.s32.totalorder %s72, %s74
      %p78 = scmp.eq.s32.totalorder %s17, 0
      %p79 = por %p77, %p78
      %p80 = scmp.ne.s32.totalorder %s72, %s74
      %p81 = scmp.eq.s32.totalorder %s22, 1
      %p82 = por %p80, %p81
      %p83 = scmp.ne.s32.totalorder %s74, %s75
      %p84 = scmp.eq.s32.totalorder %s22, 0
      %p85 = por %p83, %p84
      %p86 = scmp.ne.s32.totalorder %s74, %s75
      %p87 = scmp.eq.s32.totalorder %s23, 1
      %p88 = por %p86, %p87
      %p90 = scmp.ne.s32.totalorder %s75, %s89
      %p91 = scmp.eq.s32.totalorder %s23, 0
      %p92 = por %p90, %p91
      %s94 = sadd.s32 %s93, 1
      %p97 = scmp.eq.s32.totalorder %s17, 1
      %p98 = scmp.ne.s32.totalorder %s93, %s95
      %p99 = scmp.eq.s32.totalorder %s17, 0
      %p100 = por %p98, %p99
      %p101 = scmp.ne.s32.totalorder %s93, %s95
      %p102 = scmp.eq.s32.totalorder %s22, 1
      %p103 = por %p101, %p102
      %p104 = scmp.ne.s32.totalorder %s95, %s96
      %p105 = scmp.eq.s32.totalorder %s22, 0
      %p106 = por %p104, %p105
      %p107 = scmp.ne.s32.totalorder %s95, %s96
      %p108 = scmp.eq.s32.totalorder %s23, 1
      %p109 = por %p107, %p108
      %p111 = scmp.ne.s32.totalorder %s96, %s110
      %p112 = scmp.eq.s32.totalorder %s23, 0
      %p113 = por %p111, %p112
      %s115 = sadd.s32 %s114, 1
      %p118 = scmp.eq.s32.totalorder %s17, 1
      %p119 = scmp.ne.s32.totalorder %s114, %s116
      %p120 = scmp.eq.s32.totalorder %s17, 0
      %p121 = por %p119, %p120
      %p122 = scmp.ne.s32.totalorder %s114, %s116
      %p123 = scmp.eq.s32.totalorder %s22, 1
      %p124 = por %p122, %p123
      %p125 = scmp.ne.s32.totalorder %s116, %s117
      %p126 = scmp.eq.s32.totalorder %s22, 0
      %p127 = por %p125, %p126
      %p128 = scmp.ne.s32.totalorder %s116, %s117
      %p129 = scmp.eq.s32.totalorder %s23, 1
      %p130 = por %p128, %p129
      %p132 = scmp.ne.s32.totalorder %s117, %s131
      %p133 = scmp.eq.s32.totalorder %s23, 0
      %p134 = por %p132, %p133
      %s136 = sadd.s32 %s135, 1
      %p139 = scmp.eq.s32.totalorder %s17, 1
      %p140 = scmp.ne.s32.totalorder %s135, %s137
      %p141 = scmp.eq.s32.totalorder %s17, 0
      %p142 = por %p140, %p141
      %p143 = scmp.ne.s32.totalorder %s135, %s137
      %p144 = scmp.eq.s32.totalorder %s22, 1
      %p145 = por %p143, %p144
      %p146 = scmp.ne.s32.totalorder %s137, %s138
      %p147 = scmp.eq.s32.totalorder %s22, 0
      %p148 = por %p146, %p147
      %p149 = scmp.ne.s32.totalorder %s137, %s138
      %p150 = scmp.eq.s32.totalorder %s23, 1
      %p151 = por %p149, %p150
      %p153 = scmp.ne.s32.totalorder %s138, %s152
      %p154 = scmp.eq.s32.totalorder %s23, 0
      %p155 = por %p153, %p154
      %s157 = sadd.s32 %s156, 1
      %p160 = scmp.eq.s32.totalorder %s17, 1
      %p161 = scmp.ne.s32.totalorder %s156, %s158
      %p162 = scmp.eq.s32.totalorder %s17, 0
      %p163 = por %p161, %p162
      %p164 = scmp.ne.s32.totalorder %s156, %s158
      %p165 = scmp.eq.s32.totalorder %s22, 1
      %p166 = por %p164, %p165
      %p167 = scmp.ne.s32.totalorder %s158, %s159
      %p168 = scmp.eq.s32.totalorder %s22, 0
      %p169 = por %p167, %p168
      %p170 = scmp.ne.s32.totalorder %s158, %s159
      %p171 = scmp.eq.s32.totalorder %s23, 1
      %p172 = por %p170, %p171
      %p174 = scmp.ne.s32.totalorder %s159, %s173
      %p175 = scmp.eq.s32.totalorder %s23, 0
      %p176 = por %p174, %p175
      %s177 = ssub.s32 %s17, %s24
      %p178 = scmp.eq.s32.totalorder %s177, 0
      %s180 = sadd.s32 %s179, 1
      %s181 = scalar_select %p178, %s179, %s180
      %p184 = pneg %p178
      %p185 = scmp.eq.s32.totalorder %s17, 1
      %p186 = por %p184, %p185
      %p187 = scmp.ne.s32.totalorder %s179, %s182
      %p188 = scmp.eq.s32.totalorder %s17, 0
      %p189 = por %p187, %p188
      %p190 = scmp.ne.s32.totalorder %s179, %s182
      %p191 = scmp.eq.s32.totalorder %s22, 1
      %p192 = por %p190, %p191
      %p193 = scmp.ne.s32.totalorder %s182, %s183
      %p194 = scmp.eq.s32.totalorder %s22, 0
      %p195 = por %p193, %p194
      %p196 = scmp.ne.s32.totalorder %s182, %s183
      %p197 = scmp.eq.s32.totalorder %s23, 1
      %p198 = por %p196, %p197
      %p200 = scmp.ne.s32.totalorder %s183, %s199
      %p201 = scmp.eq.s32.totalorder %s23, 0
      %p202 = por %p200, %p201
      %p203 = scmp.le.s32.totalorder 1, %s17
      %p204 = scmp.lt.s32.totalorder %s17, 3
      %p205 = pnand %p203, %p204
      %p206 = pneg %p205
      // Predicated region
      $region9: #{tpu_custom_call.1} parent=5 // pred_check
        _
      $region10: #{tpu_custom_call.1} parent=5 // pred_check_branch
        %208 = sbr.rel (%p205) target = $region12
      $region11: #{tpu_custom_call.1} parent=5 // pred_region
        %s209 = ssub.s32 %s17, 1
        // Predicated region
        $region13: #{tpu_custom_call.1} parent=11 // pred_check
          %p210 = pneg %p64
        $region14: #{tpu_custom_call.1} parent=11 // pred_check_branch
          %212 = sbr.rel (%p210) target = $region16
        $region15: #{tpu_custom_call.1} parent=11 // pred_region
          _
        $region16: #{tpu_custom_call.1} parent=11 // pred_fallthru
          _
        // Predicated region
        $region17: #{tpu_custom_call.1} parent=11 // pred_check
          %p213 = pneg %p85
        $region18: #{tpu_custom_call.1} parent=11 // pred_check_branch
          %215 = sbr.rel (%p213) target = $region20
        $region19: #{tpu_custom_call.1} parent=11 // pred_region
          _
        $region20: #{tpu_custom_call.1} parent=11 // pred_fallthru
          _
        // Predicated region
        $region21: #{tpu_custom_call.1} parent=11 // pred_check
          %p216 = pneg %p106
        $region22: #{tpu_custom_call.1} parent=11 // pred_check_branch
          %218 = sbr.rel (%p216) target = $region24
        $region23: #{tpu_custom_call.1} parent=11 // pred_region
          _
        $region24: #{tpu_custom_call.1} parent=11 // pred_fallthru
          _
        // Predicated region
        $region25: #{tpu_custom_call.1} parent=11 // pred_check
          %p219 = pneg %p127
        $region26: #{tpu_custom_call.1} parent=11 // pred_check_branch
          %221 = sbr.rel (%p219) target = $region28
        $region27: #{tpu_custom_call.1} parent=11 // pred_region
          %s223 = ssub.s32 9216, 9216
          %224 = vsyncadd [#allocation6], %s223
          %s225 = sshll.u32 [#allocation5], 4
          %s226 = int_to_ptr.vmem [resolvable:$true] %s225
          %231 = dma.hbm_to_vmem [thread:$0]  %s4, 9216, %s226, [#allocation6], 64, 64, 4
        $region28: #{tpu_custom_call.1} parent=11 // pred_fallthru
          _
        // Predicated region
        $region29: #{tpu_custom_call.1} parent=11 // pred_check
          %p232 = pneg %p148
        $region30: #{tpu_custom_call.1} parent=11 // pred_check_branch
          %234 = sbr.rel (%p232) target = $region32
        $region31: #{tpu_custom_call.1} parent=11 // pred_region
          _
        $region32: #{tpu_custom_call.1} parent=11 // pred_fallthru
          _
        // Predicated region
        $region33: #{tpu_custom_call.1} parent=11 // pred_check
          %p235 = pneg %p169
        $region34: #{tpu_custom_call.1} parent=11 // pred_check_branch
          %237 = sbr.rel (%p235) target = $region36
        $region35: #{tpu_custom_call.1} parent=11 // pred_region
          _
        $region36: #{tpu_custom_call.1} parent=11 // pred_fallthru
          _
      $region12: #{tpu_custom_call.1} parent=5 // pred_fallthru
        _
      %p238 = scmp.lt.s32.totalorder %s17, 2
      // Predicated region
      $region37: #{tpu_custom_call.1} parent=5 // pred_check
        %p239 = pneg %p238
      $region38: #{tpu_custom_call.1} parent=5 // pred_check_branch
        %241 = sbr.rel (%p239) target = $region40
      $region39: #{tpu_custom_call.1} parent=5 // pred_region
        // Predicated region
        $region41: #{tpu_custom_call.1} parent=39 // pred_check
          %p242 = pneg %p37
        $region42: #{tpu_custom_call.1} parent=39 // pred_check_branch
          %244 = sbr.rel (%p242) target = $region44
        $region43: #{tpu_custom_call.1} parent=39 // pred_region
          %p245 = scmp.lt.s32.totalorder %s17, 1
          %s246 = scalar_select %p245, %s17, 1
          %s247 = smul.addr %s246, 54
          %s248 = smul.addr %s247, 4
          %s249 = scalar_lea.vmem %s0, %s248
        $region44: #{tpu_custom_call.1} parent=39 // pred_fallthru
          _
      $region40: #{tpu_custom_call.1} parent=5 // pred_fallthru
        _
      %p250 = scmp.le.s32.totalorder 1, %s17
      %p251 = scmp.lt.s32.totalorder %s17, 3
      %p252 = pnand %p250, %p251
      %p253 = pneg %p252
      // Predicated region
      $region45: #{tpu_custom_call.1} parent=5 // pred_check
        _
      $region46: #{tpu_custom_call.1} parent=5 // pred_check_branch
        %255 = sbr.rel (%p252) target = $region48
      $region47: #{tpu_custom_call.1} parent=5 // pred_region
        %s256 = ssub.s32 %s17, 1
        // Predicated region
        $region49: #{tpu_custom_call.1} parent=47 // pred_check
          %p257 = pneg %p127
        $region50: #{tpu_custom_call.1} parent=47 // pred_check_branch
          %259 = sbr.rel (%p257) target = $region52
        $region51: #{tpu_custom_call.1} parent=47 // pred_region
          %260 = dma.done [#allocation6], 9216
        $region52: #{tpu_custom_call.1} parent=47 // pred_fallthru
          _
        %p261 = scmp.lt.s32.totalorder %s22, 1
        %s262 = scalar_select %p261, %s22, 1
        %s263 = smul.addr %s262, 54
        %s264 = smul.addr %s263, 4
        %s265 = scalar_lea.vmem %s0, %s264
        %p266 = pneg %p43
        %p267 = pneg %p40
        %p268 = pneg %p64
        %p269 = pneg %p61
        %p270 = pneg %p85
        %p271 = pneg %p82
        %p272 = pneg %p106
        %p273 = pneg %p103
        %p274 = pneg %p127
        %p275 = pneg %p124
        %p276 = pneg %p148
        %p277 = pneg %p145
        %p278 = pneg %p169
        %p279 = pneg %p166
        %p280 = pneg %p195
        %p281 = pneg %p192
        %s282 = sand.u32 %s182, 1
        %s283 = scalar_lea.sflag [#allocation7], %s282
        %s284 = sand.u32 %s182, 1
        %s285 = smul.addr %s284, 128
        %s286 = scalar_lea.vmem [#allocation8], %s285
        %p287 = scmp.lt.s32.totalorder %s22, 1
        %s288 = scalar_select %p287, %s22, 1
        %s289 = smul.addr %s288, 54
        %s290 = smul.addr %s289, 4
        %s291 = scalar_lea.vmem %s0, %s290
        %v293 = vld [vmem:[%s291] sm:$0xf]
        %v294 = vld [vmem:[%s291 + $0x4] sm:$0xf]
        %v295 = vld [vmem:[%s291 + $0xc] sm:$0xf]
        %v296 = vld [vmem:[%s291 + $0x10] sm:$0xf]
        %v297 = vld [vmem:[%s291 + $0x18] sm:$0xf]
        %v298 = vld [vmem:[%s291 + $0x1c] sm:$0xf]
        %v299 = vld [vmem:[%s291 + $0x24] sm:$0xf]
        %v300 = vld [vmem:[%s291 + $0x28] sm:$0xf]
        %v301 = vld [vmem:[%s291 + $0x30] sm:$0xf]
        %v302 = vld [vmem:[%s291 + $0x34] sm:$0xf]
        %v303 = vld [vmem:[%s291 + $0x3c] sm:$0xf]
        %v304 = vld [vmem:[%s291 + $0x40] sm:$0xf]
        %v305 = vld [vmem:[%s291 + $0x48] sm:$0xf]
        %v306 = vld [vmem:[%s291 + $0x4c] sm:$0xf]
        %v307 = vld [vmem:[%s291 + $0x54] sm:$0xf]
        %v308 = vld [vmem:[%s291 + $0x58] sm:$0xf]
        %v309 = vld [vmem:[%s291 + $0x60] sm:$0xf]
        %v310 = vld [vmem:[%s291 + $0x64] sm:$0xf]
        %v311 = vld [vmem:[%s291 + $0x6c] sm:$0xf]
        %v312 = vld [vmem:[%s291 + $0x70] sm:$0xf]
        %v313 = vld [vmem:[%s291 + $0x78] sm:$0xf]
        %v314 = vld [vmem:[%s291 + $0x7c] sm:$0xf]
        %v315 = vld [vmem:[%s291 + $0x84] sm:$0xf]
        %v316 = vld [vmem:[%s291 + $0x88] sm:$0xf]
        %v317 = vld [vmem:[%s291 + $0x90] sm:$0xf]
        %v318 = vld [vmem:[%s291 + $0x94] sm:$0xf]
        %v319 = vld [vmem:[%s291 + $0x9c] sm:$0xf]
        %v320 = vld [vmem:[%s291 + $0xa0] sm:$0xf]
        %v321 = vld [vmem:[%s291 + $0xa8] sm:$0xf]
        %v322 = vld [vmem:[%s291 + $0xac] sm:$0xf]
        %v323 = vld [vmem:[%s291 + $0xb4] sm:$0xf]
        %v324 = vld [vmem:[%s291 + $0xb8] sm:$0xf]
        %v357 = vunpack.c.l.b16 %v293
        %v358 = vunpack.c.l.b16 %v294
        %v359 = vunpack.c.l.b16 %v295
        %v360 = vunpack.c.l.b16 %v296
        %v361 = vunpack.c.l.b16 %v297
        %v362 = vunpack.c.l.b16 %v298
        %v363 = vunpack.c.l.b16 %v299
        %v364 = vunpack.c.l.b16 %v300
        %v365 = vunpack.c.l.b16 %v301
        %v366 = vunpack.c.l.b16 %v302
        %v367 = vunpack.c.l.b16 %v303
        %v368 = vunpack.c.l.b16 %v304
        %v369 = vunpack.c.l.b16 %v305
        %v370 = vunpack.c.l.b16 %v306
        %v371 = vunpack.c.l.b16 %v307
        %v372 = vunpack.c.l.b16 %v308
        %v373 = vunpack.c.l.b16 %v309
        %v374 = vunpack.c.l.b16 %v310
        %v375 = vunpack.c.l.b16 %v311
        %v376 = vunpack.c.l.b16 %v312
        %v377 = vunpack.c.l.b16 %v313
        %v378 = vunpack.c.l.b16 %v314
        %v379 = vunpack.c.l.b16 %v315
        %v380 = vunpack.c.l.b16 %v316
        %v381 = vunpack.c.l.b16 %v317
        %v382 = vunpack.c.l.b16 %v318
        %v383 = vunpack.c.l.b16 %v319
        %v384 = vunpack.c.l.b16 %v320
        %v385 = vunpack.c.l.b16 %v321
        %v386 = vunpack.c.l.b16 %v322
        %v387 = vunpack.c.l.b16 %v323
        %v388 = vunpack.c.l.b16 %v324
        %v389 = vpack.c.b16 %v358, %v357
        %v390 = vpack.c.b16 %v360, %v359
        %v391 = vpack.c.b16 %v362, %v361
        %v392 = vpack.c.b16 %v364, %v363
        %v393 = vpack.c.b16 %v366, %v365
        %v394 = vpack.c.b16 %v368, %v367
        %v395 = vpack.c.b16 %v370, %v369
        %v396 = vpack.c.b16 %v372, %v371
        %v397 = vpack.c.b16 %v374, %v373
        %v398 = vpack.c.b16 %v376, %v375
        %v399 = vpack.c.b16 %v378, %v377
        %v400 = vpack.c.b16 %v380, %v379
        %v401 = vpack.c.b16 %v382, %v381
        %v402 = vpack.c.b16 %v384, %v383
        %v403 = vpack.c.b16 %v386, %v385
        %v404 = vpack.c.b16 %v388, %v387
        %vm421 = vcmask 31744
        %422 = vst.msk [vmem:[#allocation2] sm:$0xff] %vm421, %v389
        %423 = vst.msk [vmem:[#allocation2 + $0x8] sm:$0xff] %vm421, %v390
        %424 = vst.msk [vmem:[#allocation2 + $0x10] sm:$0xff] %vm421, %v391
        %425 = vst.msk [vmem:[#allocation2 + $0x18] sm:$0xff] %vm421, %v392
        %426 = vst.msk [vmem:[#allocation2 + $0x20] sm:$0xff] %vm421, %v393
        %427 = vst.msk [vmem:[#allocation2 + $0x28] sm:$0xff] %vm421, %v394
        %428 = vst.msk [vmem:[#allocation2 + $0x30] sm:$0xff] %vm421, %v395
        %429 = vst.msk [vmem:[#allocation2 + $0x38] sm:$0xff] %vm421, %v396
        %430 = vst.msk [vmem:[#allocation2 + $0x40] sm:$0xff] %vm421, %v397
        %431 = vst.msk [vmem:[#allocation2 + $0x48] sm:$0xff] %vm421, %v398
        %432 = vst.msk [vmem:[#allocation2 + $0x50] sm:$0xff] %vm421, %v399
        %433 = vst.msk [vmem:[#allocation2 + $0x58] sm:$0xff] %vm421, %v400
        %434 = vst.msk [vmem:[#allocation2 + $0x60] sm:$0xff] %vm421, %v401
        %435 = vst.msk [vmem:[#allocation2 + $0x68] sm:$0xff] %vm421, %v402
        %436 = vst.msk [vmem:[#allocation2 + $0x70] sm:$0xff] %vm421, %v403
        %437 = vst.msk [vmem:[#allocation2 + $0x78] sm:$0xff] %vm421, %v404
        %v438 = vld [vmem:[%s291] sm:$0xf]
        %v439 = vld [vmem:[%s291 + $0x4] sm:$0xf]
        %v440 = vld [vmem:[%s291 + $0x8] sm:$0x1]
        %v441 = vld [vmem:[%s291 + $0xc] sm:$0xf]
        %v442 = vld [vmem:[%s291 + $0x10] sm:$0xf]
        %v443 = vld [vmem:[%s291 + $0x14] sm:$0x1]
        %v444 = vld [vmem:[%s291 + $0x18] sm:$0xf]
        %v445 = vld [vmem:[%s291 + $0x1c] sm:$0xf]
        %v446 = vld [vmem:[%s291 + $0x20] sm:$0x1]
        %v447 = vld [vmem:[%s291 + $0x24] sm:$0xf]
        %v448 = vld [vmem:[%s291 + $0x28] sm:$0xf]
        %v449 = vld [vmem:[%s291 + $0x2c] sm:$0x1]
        %v450 = vld [vmem:[%s291 + $0x30] sm:$0xf]
        %v451 = vld [vmem:[%s291 + $0x34] sm:$0xf]
        %v452 = vld [vmem:[%s291 + $0x38] sm:$0x1]
        %v453 = vld [vmem:[%s291 + $0x3c] sm:$0xf]
        %v454 = vld [vmem:[%s291 + $0x40] sm:$0xf]
        %v455 = vld [vmem:[%s291 + $0x44] sm:$0x1]
        %v456 = vld [vmem:[%s291 + $0x48] sm:$0xf]
        %v457 = vld [vmem:[%s291 + $0x4c] sm:$0xf]
        %v458 = vld [vmem:[%s291 + $0x50] sm:$0x1]
        %v459 = vld [vmem:[%s291 + $0x54] sm:$0xf]
        %v460 = vld [vmem:[%s291 + $0x58] sm:$0xf]
        %v461 = vld [vmem:[%s291 + $0x5c] sm:$0x1]
        %v462 = vld [vmem:[%s291 + $0x60] sm:$0xf]
        %v463 = vld [vmem:[%s291 + $0x64] sm:$0xf]
        %v464 = vld [vmem:[%s291 + $0x68] sm:$0x1]
        %v465 = vld [vmem:[%s291 + $0x6c] sm:$0xf]
        %v466 = vld [vmem:[%s291 + $0x70] sm:$0xf]
        %v467 = vld [vmem:[%s291 + $0x74] sm:$0x1]
        %v468 = vld [vmem:[%s291 + $0x78] sm:$0xf]
        %v469 = vld [vmem:[%s291 + $0x7c] sm:$0xf]
        %v470 = vld [vmem:[%s291 + $0x80] sm:$0x1]
        %v471 = vld [vmem:[%s291 + $0x84] sm:$0xf]
        %v472 = vld [vmem:[%s291 + $0x88] sm:$0xf]
        %v473 = vld [vmem:[%s291 + $0x8c] sm:$0x1]
        %v474 = vld [vmem:[%s291 + $0x90] sm:$0xf]
        %v475 = vld [vmem:[%s291 + $0x94] sm:$0xf]
        %v476 = vld [vmem:[%s291 + $0x98] sm:$0x1]
        %v477 = vld [vmem:[%s291 + $0x9c] sm:$0xf]
        %v478 = vld [vmem:[%s291 + $0xa0] sm:$0xf]
        %v479 = vld [vmem:[%s291 + $0xa4] sm:$0x1]
        %v480 = vld [vmem:[%s291 + $0xa8] sm:$0xf]
        %v481 = vld [vmem:[%s291 + $0xac] sm:$0xf]
        %v482 = vld [vmem:[%s291 + $0xb0] sm:$0x1]
        %v483 = vld [vmem:[%s291 + $0xb4] sm:$0xf]
        %v484 = vld [vmem:[%s291 + $0xb8] sm:$0xf]
        %v485 = vld [vmem:[%s291 + $0xbc] sm:$0x1]
        %vm486 = vsmask.f32 3328
        %vm487 = vsmask.f32 7440
        %vm488 = vmor %vm486, %vm487
        %v490 = vshrl.u32 %v438, 16
        %v492 = vrot.slane %v490, 4
        %v493 = vshll.u32 %v438, 16
        %v495 = vrot.slane %v493, 5
        %v496 = vor.u32 %v492, %v495
        %v497 = vrot.slane %v496, 4
        %v499 = vshll.u32 %v439, 16
        %v501 = vrot.slane %v499, 5
        %v502 = vsel %vm488, %v497, %v501
        %v503 = vshrl.u32 %v439, 16
        %v505 = vrot.slane %v503, 4
        %v506 = vor.u32 %v505, %v501
        %v507 = vrot.slane %v506, 4
        %v509 = vshll.u32 %v440, 16
        %v511 = vrot.slane %v509, 5
        %v512 = vsel %vm488, %v507, %v511
        %v514 = vshrl.u32 %v441, 16
        %v516 = vrot.slane %v514, 4
        %v517 = vshll.u32 %v441, 16
        %v519 = vrot.slane %v517, 5
        %v520 = vor.u32 %v516, %v519
        %v521 = vrot.slane %v520, 4
        %v523 = vshll.u32 %v442, 16
        %v525 = vrot.slane %v523, 5
        %v526 = vsel %vm488, %v521, %v525
        %v527 = vshrl.u32 %v442, 16
        %v529 = vrot.slane %v527, 4
        %v530 = vor.u32 %v529, %v525
        %v531 = vrot.slane %v530, 4
        %v533 = vshll.u32 %v443, 16
        %v535 = vrot.slane %v533, 5
        %v536 = vsel %vm488, %v531, %v535
        %v538 = vshrl.u32 %v444, 16
        %v540 = vrot.slane %v538, 4
        %v541 = vshll.u32 %v444, 16
        %v543 = vrot.slane %v541, 5
        %v544 = vor.u32 %v540, %v543
        %v545 = vrot.slane %v544, 4
        %v547 = vshll.u32 %v445, 16
        %v549 = vrot.slane %v547, 5
        %v550 = vsel %vm488, %v545, %v549
        %v551 = vshrl.u32 %v445, 16
        %v553 = vrot.slane %v551, 4
        %v554 = vor.u32 %v553, %v549
        %v555 = vrot.slane %v554, 4
        %v557 = vshll.u32 %v446, 16
        %v559 = vrot.slane %v557, 5
        %v560 = vsel %vm488, %v555, %v559
        %v562 = vshrl.u32 %v447, 16
        %v564 = vrot.slane %v562, 4
        %v565 = vshll.u32 %v447, 16
        %v567 = vrot.slane %v565, 5
        %v568 = vor.u32 %v564, %v567
        %v569 = vrot.slane %v568, 4
        %v571 = vshll.u32 %v448, 16
        %v573 = vrot.slane %v571, 5
        %v574 = vsel %vm488, %v569, %v573
        %v575 = vshrl.u32 %v448, 16
        %v577 = vrot.slane %v575, 4
        %v578 = vor.u32 %v577, %v573
        %v579 = vrot.slane %v578, 4
        %v581 = vshll.u32 %v449, 16
        %v583 = vrot.slane %v581, 5
        %v584 = vsel %vm488, %v579, %v583
        %v586 = vshrl.u32 %v450, 16
        %v588 = vrot.slane %v586, 4
        %v589 = vshll.u32 %v450, 16
        %v591 = vrot.slane %v589, 5
        %v592 = vor.u32 %v588, %v591
        %v593 = vrot.slane %v592, 4
        %v595 = vshll.u32 %v451, 16
        %v597 = vrot.slane %v595, 5
        %v598 = vsel %vm488, %v593, %v597
        %v599 = vshrl.u32 %v451, 16
        %v601 = vrot.slane %v599, 4
        %v602 = vor.u32 %v601, %v597
        %v603 = vrot.slane %v602, 4
        %v605 = vshll.u32 %v452, 16
        %v607 = vrot.slane %v605, 5
        %v608 = vsel %vm488, %v603, %v607
        %v610 = vshrl.u32 %v453, 16
        %v612 = vrot.slane %v610, 4
        %v613 = vshll.u32 %v453, 16
        %v615 = vrot.slane %v613, 5
        %v616 = vor.u32 %v612, %v615
        %v617 = vrot.slane %v616, 4
        %v619 = vshll.u32 %v454, 16
        %v621 = vrot.slane %v619, 5
        %v622 = vsel %vm488, %v617, %v621
        %v623 = vshrl.u32 %v454, 16
        %v625 = vrot.slane %v623, 4
        %v626 = vor.u32 %v625, %v621
        %v627 = vrot.slane %v626, 4
        %v629 = vshll.u32 %v455, 16
        %v631 = vrot.slane %v629, 5
        %v632 = vsel %vm488, %v627, %v631
        %v634 = vshrl.u32 %v456, 16
        %v636 = vrot.slane %v634, 4
        %v637 = vshll.u32 %v456, 16
        %v639 = vrot.slane %v637, 5
        %v640 = vor.u32 %v636, %v639
        %v641 = vrot.slane %v640, 4
        %v643 = vshll.u32 %v457, 16
        %v645 = vrot.slane %v643, 5
        %v646 = vsel %vm488, %v641, %v645
        %v647 = vshrl.u32 %v457, 16
        %v649 = vrot.slane %v647, 4
        %v650 = vor.u32 %v649, %v645
        %v651 = vrot.slane %v650, 4
        %v653 = vshll.u32 %v458, 16
        %v655 = vrot.slane %v653, 5
        %v656 = vsel %vm488, %v651, %v655
        %v658 = vshrl.u32 %v459, 16
        %v660 = vrot.slane %v658, 4
        %v661 = vshll.u32 %v459, 16
        %v663 = vrot.slane %v661, 5
        %v664 = vor.u32 %v660, %v663
        %v665 = vrot.slane %v664, 4
        %v667 = vshll.u32 %v460, 16
        %v669 = vrot.slane %v667, 5
        %v670 = vsel %vm488, %v665, %v669
        %v671 = vshrl.u32 %v460, 16
        %v673 = vrot.slane %v671, 4
        %v674 = vor.u32 %v673, %v669
        %v675 = vrot.slane %v674, 4
        %v677 = vshll.u32 %v461, 16
        %v679 = vrot.slane %v677, 5
        %v680 = vsel %vm488, %v675, %v679
        %v682 = vshrl.u32 %v462, 16
        %v684 = vrot.slane %v682, 4
        %v685 = vshll.u32 %v462, 16
        %v687 = vrot.slane %v685, 5
        %v688 = vor.u32 %v684, %v687
        %v689 = vrot.slane %v688, 4
        %v691 = vshll.u32 %v463, 16
        %v693 = vrot.slane %v691, 5
        %v694 = vsel %vm488, %v689, %v693
        %v695 = vshrl.u32 %v463, 16
        %v697 = vrot.slane %v695, 4
        %v698 = vor.u32 %v697, %v693
        %v699 = vrot.slane %v698, 4
        %v701 = vshll.u32 %v464, 16
        %v703 = vrot.slane %v701, 5
        %v704 = vsel %vm488, %v699, %v703
        %v706 = vshrl.u32 %v465, 16
        %v708 = vrot.slane %v706, 4
        %v709 = vshll.u32 %v465, 16
        %v711 = vrot.slane %v709, 5
        %v712 = vor.u32 %v708, %v711
        %v713 = vrot.slane %v712, 4
        %v715 = vshll.u32 %v466, 16
        %v717 = vrot.slane %v715, 5
        %v718 = vsel %vm488, %v713, %v717
        %v719 = vshrl.u32 %v466, 16
        %v721 = vrot.slane %v719, 4
        %v722 = vor.u32 %v721, %v717
        %v723 = vrot.slane %v722, 4
        %v725 = vshll.u32 %v467, 16
        %v727 = vrot.slane %v725, 5
        %v728 = vsel %vm488, %v723, %v727
        %v730 = vshrl.u32 %v468, 16
        %v732 = vrot.slane %v730, 4
        %v733 = vshll.u32 %v468, 16
        %v735 = vrot.slane %v733, 5
        %v736 = vor.u32 %v732, %v735
        %v737 = vrot.slane %v736, 4
        %v739 = vshll.u32 %v469, 16
        %v741 = vrot.slane %v739, 5
        %v742 = vsel %vm488, %v737, %v741
        %v743 = vshrl.u32 %v469, 16
        %v745 = vrot.slane %v743, 4
        %v746 = vor.u32 %v745, %v741
        %v747 = vrot.slane %v746, 4
        %v749 = vshll.u32 %v470, 16
        %v751 = vrot.slane %v749, 5
        %v752 = vsel %vm488, %v747, %v751
        %v754 = vshrl.u32 %v471, 16
        %v756 = vrot.slane %v754, 4
        %v757 = vshll.u32 %v471, 16
        %v759 = vrot.slane %v757, 5
        %v760 = vor.u32 %v756, %v759
        %v761 = vrot.slane %v760, 4
        %v763 = vshll.u32 %v472, 16
        %v765 = vrot.slane %v763, 5
        %v766 = vsel %vm488, %v761, %v765
        %v767 = vshrl.u32 %v472, 16
        %v769 = vrot.slane %v767, 4
        %v770 = vor.u32 %v769, %v765
        %v771 = vrot.slane %v770, 4
        %v773 = vshll.u32 %v473, 16
        %v775 = vrot.slane %v773, 5
        %v776 = vsel %vm488, %v771, %v775
        %v778 = vshrl.u32 %v474, 16
        %v780 = vrot.slane %v778, 4
        %v781 = vshll.u32 %v474, 16
        %v783 = vrot.slane %v781, 5
        %v784 = vor.u32 %v780, %v783
        %v785 = vrot.slane %v784, 4
        %v787 = vshll.u32 %v475, 16
        %v789 = vrot.slane %v787, 5
        %v790 = vsel %vm488, %v785, %v789
        %v791 = vshrl.u32 %v475, 16
        %v793 = vrot.slane %v791, 4
        %v794 = vor.u32 %v793, %v789
        %v795 = vrot.slane %v794, 4
        %v797 = vshll.u32 %v476, 16
        %v799 = vrot.slane %v797, 5
        %v800 = vsel %vm488, %v795, %v799
        %v802 = vshrl.u32 %v477, 16
        %v804 = vrot.slane %v802, 4
        %v805 = vshll.u32 %v477, 16
        %v807 = vrot.slane %v805, 5
        %v808 = vor.u32 %v804, %v807
        %v809 = vrot.slane %v808, 4
        %v811 = vshll.u32 %v478, 16
        %v813 = vrot.slane %v811, 5
        %v814 = vsel %vm488, %v809, %v813
        %v815 = vshrl.u32 %v478, 16
        %v817 = vrot.slane %v815, 4
        %v818 = vor.u32 %v817, %v813
        %v819 = vrot.slane %v818, 4
        %v821 = vshll.u32 %v479, 16
        %v823 = vrot.slane %v821, 5
        %v824 = vsel %vm488, %v819, %v823
        %v826 = vshrl.u32 %v480, 16
        %v828 = vrot.slane %v826, 4
        %v829 = vshll.u32 %v480, 16
        %v831 = vrot.slane %v829, 5
        %v832 = vor.u32 %v828, %v831
        %v833 = vrot.slane %v832, 4
        %v835 = vshll.u32 %v481, 16
        %v837 = vrot.slane %v835, 5
        %v838 = vsel %vm488, %v833, %v837
        %v839 = vshrl.u32 %v481, 16
        %v841 = vrot.slane %v839, 4
        %v842 = vor.u32 %v841, %v837
        %v843 = vrot.slane %v842, 4
        %v845 = vshll.u32 %v482, 16
        %v847 = vrot.slane %v845, 5
        %v848 = vsel %vm488, %v843, %v847
        %v850 = vshrl.u32 %v483, 16
        %v852 = vrot.slane %v850, 4
        %v853 = vshll.u32 %v483, 16
        %v855 = vrot.slane %v853, 5
        %v856 = vor.u32 %v852, %v855
        %v857 = vrot.slane %v856, 4
        %v859 = vshll.u32 %v484, 16
        %v861 = vrot.slane %v859, 5
        %v862 = vsel %vm488, %v857, %v861
        %v863 = vshrl.u32 %v484, 16
        %v865 = vrot.slane %v863, 4
        %v866 = vor.u32 %v865, %v861
        %v867 = vrot.slane %v866, 4
        %v869 = vshll.u32 %v485, 16
        %v871 = vrot.slane %v869, 5
        %v872 = vsel %vm488, %v867, %v871
        %v873 = vunpack.c.l.b16 %v502
        %v874 = vunpack.c.l.b16 %v512
        %v875 = vunpack.c.l.b16 %v526
        %v876 = vunpack.c.l.b16 %v536
        %v877 = vunpack.c.l.b16 %v550
        %v878 = vunpack.c.l.b16 %v560
        %v879 = vunpack.c.l.b16 %v574
        %v880 = vunpack.c.l.b16 %v584
        %v881 = vunpack.c.l.b16 %v598
        %v882 = vunpack.c.l.b16 %v608
        %v883 = vunpack.c.l.b16 %v622
        %v884 = vunpack.c.l.b16 %v632
        %v885 = vunpack.c.l.b16 %v646
        %v886 = vunpack.c.l.b16 %v656
        %v887 = vunpack.c.l.b16 %v670
        %v888 = vunpack.c.l.b16 %v680
        %v889 = vunpack.c.l.b16 %v694
        %v890 = vunpack.c.l.b16 %v704
        %v891 = vunpack.c.l.b16 %v718
        %v892 = vunpack.c.l.b16 %v728
        %v893 = vunpack.c.l.b16 %v742
        %v894 = vunpack.c.l.b16 %v752
        %v895 = vunpack.c.l.b16 %v766
        %v896 = vunpack.c.l.b16 %v776
        %v897 = vunpack.c.l.b16 %v790
        %v898 = vunpack.c.l.b16 %v800
        %v899 = vunpack.c.l.b16 %v814
        %v900 = vunpack.c.l.b16 %v824
        %v901 = vunpack.c.l.b16 %v838
        %v902 = vunpack.c.l.b16 %v848
        %v903 = vunpack.c.l.b16 %v862
        %v904 = vunpack.c.l.b16 %v872
        %v905 = vpack.c.b16 %v874, %v873
        %v906 = vpack.c.b16 %v876, %v875
        %v907 = vpack.c.b16 %v878, %v877
        %v908 = vpack.c.b16 %v880, %v879
        %v909 = vpack.c.b16 %v882, %v881
        %v910 = vpack.c.b16 %v884, %v883
        %v911 = vpack.c.b16 %v886, %v885
        %v912 = vpack.c.b16 %v888, %v887
        %v913 = vpack.c.b16 %v890, %v889
        %v914 = vpack.c.b16 %v892, %v891
        %v915 = vpack.c.b16 %v894, %v893
        %v916 = vpack.c.b16 %v896, %v895
        %v917 = vpack.c.b16 %v898, %v897
        %v918 = vpack.c.b16 %v900, %v899
        %v919 = vpack.c.b16 %v902, %v901
        %v920 = vpack.c.b16 %v904, %v903
        %921 = vrot.lane.b32.xlu0 %v905, 4
        %v922 = vpop.permute.xlu0 %921
        %923 = vrot.lane.b32.xlu0 %v906, 4
        %v924 = vpop.permute.xlu0 %923
        %925 = vrot.lane.b32.xlu0 %v907, 4
        %v926 = vpop.permute.xlu0 %925
        %927 = vrot.lane.b32.xlu0 %v908, 4
        %v928 = vpop.permute.xlu0 %927
        %929 = vrot.lane.b32.xlu0 %v909, 4
        %v930 = vpop.permute.xlu0 %929
        %931 = vrot.lane.b32.xlu0 %v910, 4
        %v932 = vpop.permute.xlu0 %931
        %933 = vrot.lane.b32.xlu0 %v911, 4
        %v934 = vpop.permute.xlu0 %933
        %935 = vrot.lane.b32.xlu0 %v912, 4
        %v936 = vpop.permute.xlu0 %935
        %937 = vrot.lane.b32.xlu0 %v913, 4
        %v938 = vpop.permute.xlu0 %937
        %939 = vrot.lane.b32.xlu0 %v914, 4
        %v940 = vpop.permute.xlu0 %939
        %941 = vrot.lane.b32.xlu0 %v915, 4
        %v942 = vpop.permute.xlu0 %941
        %943 = vrot.lane.b32.xlu0 %v916, 4
        %v944 = vpop.permute.xlu0 %943
        %945 = vrot.lane.b32.xlu0 %v917, 4
        %v946 = vpop.permute.xlu0 %945
        %947 = vrot.lane.b32.xlu0 %v918, 4
        %v948 = vpop.permute.xlu0 %947
        %949 = vrot.lane.b32.xlu0 %v919, 4
        %v950 = vpop.permute.xlu0 %949
        %951 = vrot.lane.b32.xlu0 %v920, 4
        %v952 = vpop.permute.xlu0 %951
        %vm969 = vcmask 64544
        %970 = vst.msk [vmem:[#allocation2] sm:$0xff] %vm969, %v922
        %971 = vst.msk [vmem:[#allocation2 + $0x8] sm:$0xff] %vm969, %v924
        %972 = vst.msk [vmem:[#allocation2 + $0x10] sm:$0xff] %vm969, %v926
        %973 = vst.msk [vmem:[#allocation2 + $0x18] sm:$0xff] %vm969, %v928
        %974 = vst.msk [vmem:[#allocation2 + $0x20] sm:$0xff] %vm969, %v930
        %975 = vst.msk [vmem:[#allocation2 + $0x28] sm:$0xff] %vm969, %v932
        %976 = vst.msk [vmem:[#allocation2 + $0x30] sm:$0xff] %vm969, %v934
        %977 = vst.msk [vmem:[#allocation2 + $0x38] sm:$0xff] %vm969, %v936
        %978 = vst.msk [vmem:[#allocation2 + $0x40] sm:$0xff] %vm969, %v938
        %979 = vst.msk [vmem:[#allocation2 + $0x48] sm:$0xff] %vm969, %v940
        %980 = vst.msk [vmem:[#allocation2 + $0x50] sm:$0xff] %vm969, %v942
        %981 = vst.msk [vmem:[#allocation2 + $0x58] sm:$0xff] %vm969, %v944
        %982 = vst.msk [vmem:[#allocation2 + $0x60] sm:$0xff] %vm969, %v946
        %983 = vst.msk [vmem:[#allocation2 + $0x68] sm:$0xff] %vm969, %v948
        %984 = vst.msk [vmem:[#allocation2 + $0x70] sm:$0xff] %vm969, %v950
        %985 = vst.msk [vmem:[#allocation2 + $0x78] sm:$0xff] %vm969, %v952
        %v986 = vld [vmem:[%s291] sm:$0xe]
        %v987 = vld [vmem:[%s291 + $0x4] sm:$0xf]
        %v988 = vld [vmem:[%s291 + $0x8] sm:$0x1]
        %v989 = vld [vmem:[%s291 + $0xc] sm:$0xe]
        %v990 = vld [vmem:[%s291 + $0x10] sm:$0xf]
        %v991 = vld [vmem:[%s291 + $0x14] sm:$0x1]
        %v992 = vld [vmem:[%s291 + $0x18] sm:$0xe]
        %v993 = vld [vmem:[%s291 + $0x1c] sm:$0xf]
        %v994 = vld [vmem:[%s291 + $0x20] sm:$0x1]
        %v995 = vld [vmem:[%s291 + $0x24] sm:$0xe]
        %v996 = vld [vmem:[%s291 + $0x28] sm:$0xf]
        %v997 = vld [vmem:[%s291 + $0x2c] sm:$0x1]
        %v998 = vld [vmem:[%s291 + $0x30] sm:$0xe]
        %v999 = vld [vmem:[%s291 + $0x34] sm:$0xf]
        %v1000 = vld [vmem:[%s291 + $0x38] sm:$0x1]
        %v1001 = vld [vmem:[%s291 + $0x3c] sm:$0xe]
        %v1002 = vld [vmem:[%s291 + $0x40] sm:$0xf]
        %v1003 = vld [vmem:[%s291 + $0x44] sm:$0x1]
        %v1004 = vld [vmem:[%s291 + $0x48] sm:$0xe]
        %v1005 = vld [vmem:[%s291 + $0x4c] sm:$0xf]
        %v1006 = vld [vmem:[%s291 + $0x50] sm:$0x1]
        %v1007 = vld [vmem:[%s291 + $0x54] sm:$0xe]
        %v1008 = vld [vmem:[%s291 + $0x58] sm:$0xf]
        %v1009 = vld [vmem:[%s291 + $0x5c] sm:$0x1]
        %v1010 = vld [vmem:[%s291 + $0x60] sm:$0xe]
        %v1011 = vld [vmem:[%s291 + $0x64] sm:$0xf]
        %v1012 = vld [vmem:[%s291 + $0x68] sm:$0x1]
        %v1013 = vld [vmem:[%s291 + $0x6c] sm:$0xe]
        %v1014 = vld [vmem:[%s291 + $0x70] sm:$0xf]
        %v1015 = vld [vmem:[%s291 + $0x74] sm:$0x1]
        %v1016 = vld [vmem:[%s291 + $0x78] sm:$0xe]
        %v1017 = vld [vmem:[%s291 + $0x7c] sm:$0xf]
        %v1018 = vld [vmem:[%s291 + $0x80] sm:$0x1]
        %v1019 = vld [vmem:[%s291 + $0x84] sm:$0xe]
        %v1020 = vld [vmem:[%s291 + $0x88] sm:$0xf]
        %v1021 = vld [vmem:[%s291 + $0x8c] sm:$0x1]
        %v1022 = vld [vmem:[%s291 + $0x90] sm:$0xe]
        %v1023 = vld [vmem:[%s291 + $0x94] sm:$0xf]
        %v1024 = vld [vmem:[%s291 + $0x98] sm:$0x1]
        %v1025 = vld [vmem:[%s291 + $0x9c] sm:$0xe]
        %v1026 = vld [vmem:[%s291 + $0xa0] sm:$0xf]
        %v1027 = vld [vmem:[%s291 + $0xa4] sm:$0x1]
        %v1028 = vld [vmem:[%s291 + $0xa8] sm:$0xe]
        %v1029 = vld [vmem:[%s291 + $0xac] sm:$0xf]
        %v1030 = vld [vmem:[%s291 + $0xb0] sm:$0x1]
        %v1031 = vld [vmem:[%s291 + $0xb4] sm:$0xe]
        %v1032 = vld [vmem:[%s291 + $0xb8] sm:$0xf]
        %v1033 = vld [vmem:[%s291 + $0xbc] sm:$0x1]
        %vm1082 = vcmask 1042432
        %vm1083 = vcmask 1046532
        %vm1084 = vmor %vm1082, %vm1083
        %v1085 = vrot.slane %v986, 5
        %v1086 = vrot.slane %v1085, 4
        %v1087 = vrot.slane %v987, 5
        %v1088 = vsel %vm1084, %v1086, %v1087
        %v1089 = vrot.slane %v1087, 4
        %v1090 = vrot.slane %v988, 5
        %v1091 = vsel %vm1084, %v1089, %v1090
        %v1092 = vrot.slane %v989, 5
        %v1093 = vrot.slane %v1092, 4
        %v1094 = vrot.slane %v990, 5
        %v1095 = vsel %vm1084, %v1093, %v1094
        %v1096 = vrot.slane %v1094, 4
        %v1097 = vrot.slane %v991, 5
        %v1098 = vsel %vm1084, %v1096, %v1097
        %v1099 = vrot.slane %v992, 5
        %v1100 = vrot.slane %v1099, 4
        %v1101 = vrot.slane %v993, 5
        %v1102 = vsel %vm1084, %v1100, %v1101
        %v1103 = vrot.slane %v1101, 4
        %v1104 = vrot.slane %v994, 5
        %v1105 = vsel %vm1084, %v1103, %v1104
        %v1106 = vrot.slane %v995, 5
        %v1107 = vrot.slane %v1106, 4
        %v1108 = vrot.slane %v996, 5
        %v1109 = vsel %vm1084, %v1107, %v1108
        %v1110 = vrot.slane %v1108, 4
        %v1111 = vrot.slane %v997, 5
        %v1112 = vsel %vm1084, %v1110, %v1111
        %v1113 = vrot.slane %v998, 5
        %v1114 = vrot.slane %v1113, 4
        %v1115 = vrot.slane %v999, 5
        %v1116 = vsel %vm1084, %v1114, %v1115
        %v1117 = vrot.slane %v1115, 4
        %v1118 = vrot.slane %v1000, 5
        %v1119 = vsel %vm1084, %v1117, %v1118
        %v1120 = vrot.slane %v1001, 5
        %v1121 = vrot.slane %v1120, 4
        %v1122 = vrot.slane %v1002, 5
        %v1123 = vsel %vm1084, %v1121, %v1122
        %v1124 = vrot.slane %v1122, 4
        %v1125 = vrot.slane %v1003, 5
        %v1126 = vsel %vm1084, %v1124, %v1125
        %v1127 = vrot.slane %v1004, 5
        %v1128 = vrot.slane %v1127, 4
        %v1129 = vrot.slane %v1005, 5
        %v1130 = vsel %vm1084, %v1128, %v1129
        %v1131 = vrot.slane %v1129, 4
        %v1132 = vrot.slane %v1006, 5
        %v1133 = vsel %vm1084, %v1131, %v1132
        %v1134 = vrot.slane %v1007, 5
        %v1135 = vrot.slane %v1134, 4
        %v1136 = vrot.slane %v1008, 5
        %v1137 = vsel %vm1084, %v1135, %v1136
        %v1138 = vrot.slane %v1136, 4
        %v1139 = vrot.slane %v1009, 5
        %v1140 = vsel %vm1084, %v1138, %v1139
        %v1141 = vrot.slane %v1010, 5
        %v1142 = vrot.slane %v1141, 4
        %v1143 = vrot.slane %v1011, 5
        %v1144 = vsel %vm1084, %v1142, %v1143
        %v1145 = vrot.slane %v1143, 4
        %v1146 = vrot.slane %v1012, 5
        %v1147 = vsel %vm1084, %v1145, %v1146
        %v1148 = vrot.slane %v1013, 5
        %v1149 = vrot.slane %v1148, 4
        %v1150 = vrot.slane %v1014, 5
        %v1151 = vsel %vm1084, %v1149, %v1150
        %v1152 = vrot.slane %v1150, 4
        %v1153 = vrot.slane %v1015, 5
        %v1154 = vsel %vm1084, %v1152, %v1153
        %v1155 = vrot.slane %v1016, 5
        %v1156 = vrot.slane %v1155, 4
        %v1157 = vrot.slane %v1017, 5
        %v1158 = vsel %vm1084, %v1156, %v1157
        %v1159 = vrot.slane %v1157, 4
        %v1160 = vrot.slane %v1018, 5
        %v1161 = vsel %vm1084, %v1159, %v1160
        %v1162 = vrot.slane %v1019, 5
        %v1163 = vrot.slane %v1162, 4
        %v1164 = vrot.slane %v1020, 5
        %v1165 = vsel %vm1084, %v1163, %v1164
        %v1166 = vrot.slane %v1164, 4
        %v1167 = vrot.slane %v1021, 5
        %v1168 = vsel %vm1084, %v1166, %v1167
        %v1169 = vrot.slane %v1022, 5
        %v1170 = vrot.slane %v1169, 4
        %v1171 = vrot.slane %v1023, 5
        %v1172 = vsel %vm1084, %v1170, %v1171
        %v1173 = vrot.slane %v1171, 4
        %v1174 = vrot.slane %v1024, 5
        %v1175 = vsel %vm1084, %v1173, %v1174
        %v1176 = vrot.slane %v1025, 5
        %v1177 = vrot.slane %v1176, 4
        %v1178 = vrot.slane %v1026, 5
        %v1179 = vsel %vm1084, %v1177, %v1178
        %v1180 = vrot.slane %v1178, 4
        %v1181 = vrot.slane %v1027, 5
        %v1182 = vsel %vm1084, %v1180, %v1181
        %v1183 = vrot.slane %v1028, 5
        %v1184 = vrot.slane %v1183, 4
        %v1185 = vrot.slane %v1029, 5
        %v1186 = vsel %vm1084, %v1184, %v1185
        %v1187 = vrot.slane %v1185, 4
        %v1188 = vrot.slane %v1030, 5
        %v1189 = vsel %vm1084, %v1187, %v1188
        %v1190 = vrot.slane %v1031, 5
        %v1191 = vrot.slane %v1190, 4
        %v1192 = vrot.slane %v1032, 5
        %v1193 = vsel %vm1084, %v1191, %v1192
        %v1194 = vrot.slane %v1192, 4
        %v1195 = vrot.slane %v1033, 5
        %v1196 = vsel %vm1084, %v1194, %v1195
        %v1197 = vunpack.c.l.b16 %v1088
        %v1198 = vunpack.c.l.b16 %v1091
        %v1199 = vunpack.c.l.b16 %v1095
        %v1200 = vunpack.c.l.b16 %v1098
        %v1201 = vunpack.c.l.b16 %v1102
        %v1202 = vunpack.c.l.b16 %v1105
        %v1203 = vunpack.c.l.b16 %v1109
        %v1204 = vunpack.c.l.b16 %v1112
        %v1205 = vunpack.c.l.b16 %v1116
        %v1206 = vunpack.c.l.b16 %v1119
        %v1207 = vunpack.c.l.b16 %v1123
        %v1208 = vunpack.c.l.b16 %v1126
        %v1209 = vunpack.c.l.b16 %v1130
        %v1210 = vunpack.c.l.b16 %v1133
        %v1211 = vunpack.c.l.b16 %v1137
        %v1212 = vunpack.c.l.b16 %v1140
        %v1213 = vunpack.c.l.b16 %v1144
        %v1214 = vunpack.c.l.b16 %v1147
        %v1215 = vunpack.c.l.b16 %v1151
        %v1216 = vunpack.c.l.b16 %v1154
        %v1217 = vunpack.c.l.b16 %v1158
        %v1218 = vunpack.c.l.b16 %v1161
        %v1219 = vunpack.c.l.b16 %v1165
        %v1220 = vunpack.c.l.b16 %v1168
        %v1221 = vunpack.c.l.b16 %v1172
        %v1222 = vunpack.c.l.b16 %v1175
        %v1223 = vunpack.c.l.b16 %v1179
        %v1224 = vunpack.c.l.b16 %v1182
        %v1225 = vunpack.c.l.b16 %v1186
        %v1226 = vunpack.c.l.b16 %v1189
        %v1227 = vunpack.c.l.b16 %v1193
        %v1228 = vunpack.c.l.b16 %v1196
        %v1229 = vpack.c.b16 %v1198, %v1197
        %v1230 = vpack.c.b16 %v1200, %v1199
        %v1231 = vpack.c.b16 %v1202, %v1201
        %v1232 = vpack.c.b16 %v1204, %v1203
        %v1233 = vpack.c.b16 %v1206, %v1205
        %v1234 = vpack.c.b16 %v1208, %v1207
        %v1235 = vpack.c.b16 %v1210, %v1209
        %v1236 = vpack.c.b16 %v1212, %v1211
        %v1237 = vpack.c.b16 %v1214, %v1213
        %v1238 = vpack.c.b16 %v1216, %v1215
        %v1239 = vpack.c.b16 %v1218, %v1217
        %v1240 = vpack.c.b16 %v1220, %v1219
        %v1241 = vpack.c.b16 %v1222, %v1221
        %v1242 = vpack.c.b16 %v1224, %v1223
        %v1243 = vpack.c.b16 %v1226, %v1225
        %v1244 = vpack.c.b16 %v1228, %v1227
        %1245 = vrot.lane.b32.xlu0 %v1229, 8
        %v1246 = vpop.permute.xlu0 %1245
        %1247 = vrot.lane.b32.xlu0 %v1230, 8
        %v1248 = vpop.permute.xlu0 %1247
        %1249 = vrot.lane.b32.xlu0 %v1231, 8
        %v1250 = vpop.permute.xlu0 %1249
        %1251 = vrot.lane.b32.xlu0 %v1232, 8
        %v1252 = vpop.permute.xlu0 %1251
        %1253 = vrot.lane.b32.xlu0 %v1233, 8
        %v1254 = vpop.permute.xlu0 %1253
        %1255 = vrot.lane.b32.xlu0 %v1234, 8
        %v1256 = vpop.permute.xlu0 %1255
        %1257 = vrot.lane.b32.xlu0 %v1235, 8
        %v1258 = vpop.permute.xlu0 %1257
        %1259 = vrot.lane.b32.xlu0 %v1236, 8
        %v1260 = vpop.permute.xlu0 %1259
        %1261 = vrot.lane.b32.xlu0 %v1237, 8
        %v1262 = vpop.permute.xlu0 %1261
        %1263 = vrot.lane.b32.xlu0 %v1238, 8
        %v1264 = vpop.permute.xlu0 %1263
        %1265 = vrot.lane.b32.xlu0 %v1239, 8
        %v1266 = vpop.permute.xlu0 %1265
        %1267 = vrot.lane.b32.xlu0 %v1240, 8
        %v1268 = vpop.permute.xlu0 %1267
        %1269 = vrot.lane.b32.xlu0 %v1241, 8
        %v1270 = vpop.permute.xlu0 %1269
        %1271 = vrot.lane.b32.xlu0 %v1242, 8
        %v1272 = vpop.permute.xlu0 %1271
        %1273 = vrot.lane.b32.xlu0 %v1243, 8
        %v1274 = vpop.permute.xlu0 %1273
        %1275 = vrot.lane.b32.xlu0 %v1244, 8
        %v1276 = vpop.permute.xlu0 %1275
        %vm1293 = vcmask 97344
        %1294 = vst.msk [vmem:[#allocation2] sm:$0xff] %vm1293, %v1246
        %1295 = vst.msk [vmem:[#allocation2 + $0x8] sm:$0xff] %vm1293, %v1248
        %1296 = vst.msk [vmem:[#allocation2 + $0x10] sm:$0xff] %vm1293, %v1250
        %1297 = vst.msk [vmem:[#allocation2 + $0x18] sm:$0xff] %vm1293, %v1252
        %1298 = vst.msk [vmem:[#allocation2 + $0x20] sm:$0xff] %vm1293, %v1254
        %1299 = vst.msk [vmem:[#allocation2 + $0x28] sm:$0xff] %vm1293, %v1256
        %1300 = vst.msk [vmem:[#allocation2 + $0x30] sm:$0xff] %vm1293, %v1258
        %1301 = vst.msk [vmem:[#allocation2 + $0x38] sm:$0xff] %vm1293, %v1260
        %1302 = vst.msk [vmem:[#allocation2 + $0x40] sm:$0xff] %vm1293, %v1262
        %1303 = vst.msk [vmem:[#allocation2 + $0x48] sm:$0xff] %vm1293, %v1264
        %1304 = vst.msk [vmem:[#allocation2 + $0x50] sm:$0xff] %vm1293, %v1266
        %1305 = vst.msk [vmem:[#allocation2 + $0x58] sm:$0xff] %vm1293, %v1268
        %1306 = vst.msk [vmem:[#allocation2 + $0x60] sm:$0xff] %vm1293, %v1270
        %1307 = vst.msk [vmem:[#allocation2 + $0x68] sm:$0xff] %vm1293, %v1272
        %1308 = vst.msk [vmem:[#allocation2 + $0x70] sm:$0xff] %vm1293, %v1274
        %1309 = vst.msk [vmem:[#allocation2 + $0x78] sm:$0xff] %vm1293, %v1276
        %s1310 = scalar_lea.vmem %s291, 12
        %v1311 = vld [vmem:[%s1310] sm:$0xf]
        %v1312 = vld [vmem:[%s1310 + $0x4] sm:$0xf]
        %v1313 = vld [vmem:[%s1310 + $0xc] sm:$0xf]
        %v1314 = vld [vmem:[%s1310 + $0x10] sm:$0xf]
        %v1315 = vld [vmem:[%s1310 + $0x18] sm:$0xf]
        %v1316 = vld [vmem:[%s1310 + $0x1c] sm:$0xf]
        %v1317 = vld [vmem:[%s1310 + $0x24] sm:$0xf]
        %v1318 = vld [vmem:[%s1310 + $0x28] sm:$0xf]
        %v1319 = vld [vmem:[%s1310 + $0x30] sm:$0xf]
        %v1320 = vld [vmem:[%s1310 + $0x34] sm:$0xf]
        %v1321 = vld [vmem:[%s1310 + $0x3c] sm:$0xf]
        %v1322 = vld [vmem:[%s1310 + $0x40] sm:$0xf]
        %v1323 = vld [vmem:[%s1310 + $0x48] sm:$0xf]
        %v1324 = vld [vmem:[%s1310 + $0x4c] sm:$0xf]
        %v1325 = vld [vmem:[%s1310 + $0x54] sm:$0xf]
        %v1326 = vld [vmem:[%s1310 + $0x58] sm:$0xf]
        %v1327 = vld [vmem:[%s1310 + $0x60] sm:$0xf]
        %v1328 = vld [vmem:[%s1310 + $0x64] sm:$0xf]
        %v1329 = vld [vmem:[%s1310 + $0x6c] sm:$0xf]
        %v1330 = vld [vmem:[%s1310 + $0x70] sm:$0xf]
        %v1331 = vld [vmem:[%s1310 + $0x78] sm:$0xf]
        %v1332 = vld [vmem:[%s1310 + $0x7c] sm:$0xf]
        %v1333 = vld [vmem:[%s1310 + $0x84] sm:$0xf]
        %v1334 = vld [vmem:[%s1310 + $0x88] sm:$0xf]
        %v1335 = vld [vmem:[%s1310 + $0x90] sm:$0xf]
        %v1336 = vld [vmem:[%s1310 + $0x94] sm:$0xf]
        %v1337 = vld [vmem:[%s1310 + $0x9c] sm:$0xf]
        %v1338 = vld [vmem:[%s1310 + $0xa0] sm:$0xf]
        %v1339 = vld [vmem:[%s1310 + $0xa8] sm:$0xf]
        %v1340 = vld [vmem:[%s1310 + $0xac] sm:$0xf]
        %v1341 = vld [vmem:[%s1310 + $0xb4] sm:$0xf]
        %v1342 = vld [vmem:[%s1310 + $0xb8] sm:$0xf]
        %v1375 = vunpack.c.l.b16 %v1311
        %v1376 = vunpack.c.l.b16 %v1312
        %v1377 = vunpack.c.l.b16 %v1313
        %v1378 = vunpack.c.l.b16 %v1314
        %v1379 = vunpack.c.l.b16 %v1315
        %v1380 = vunpack.c.l.b16 %v1316
        %v1381 = vunpack.c.l.b16 %v1317
        %v1382 = vunpack.c.l.b16 %v1318
        %v1383 = vunpack.c.l.b16 %v1319
        %v1384 = vunpack.c.l.b16 %v1320
        %v1385 = vunpack.c.l.b16 %v1321
        %v1386 = vunpack.c.l.b16 %v1322
        %v1387 = vunpack.c.l.b16 %v1323
        %v1388 = vunpack.c.l.b16 %v1324
        %v1389 = vunpack.c.l.b16 %v1325
        %v1390 = vunpack.c.l.b16 %v1326
        %v1391 = vunpack.c.l.b16 %v1327
        %v1392 = vunpack.c.l.b16 %v1328
        %v1393 = vunpack.c.l.b16 %v1329
        %v1394 = vunpack.c.l.b16 %v1330
        %v1395 = vunpack.c.l.b16 %v1331
        %v1396 = vunpack.c.l.b16 %v1332
        %v1397 = vunpack.c.l.b16 %v1333
        %v1398 = vunpack.c.l.b16 %v1334
        %v1399 = vunpack.c.l.b16 %v1335
        %v1400 = vunpack.c.l.b16 %v1336
        %v1401 = vunpack.c.l.b16 %v1337
        %v1402 = vunpack.c.l.b16 %v1338
        %v1403 = vunpack.c.l.b16 %v1339
        %v1404 = vunpack.c.l.b16 %v1340
        %v1405 = vunpack.c.l.b16 %v1341
        %v1406 = vunpack.c.l.b16 %v1342
        %v1407 = vpack.c.b16 %v1376, %v1375
        %v1408 = vpack.c.b16 %v1378, %v1377
        %v1409 = vpack.c.b16 %v1380, %v1379
        %v1410 = vpack.c.b16 %v1382, %v1381
        %v1411 = vpack.c.b16 %v1384, %v1383
        %v1412 = vpack.c.b16 %v1386, %v1385
        %v1413 = vpack.c.b16 %v1388, %v1387
        %v1414 = vpack.c.b16 %v1390, %v1389
        %v1415 = vpack.c.b16 %v1392, %v1391
        %v1416 = vpack.c.b16 %v1394, %v1393
        %v1417 = vpack.c.b16 %v1396, %v1395
        %v1418 = vpack.c.b16 %v1398, %v1397
        %v1419 = vpack.c.b16 %v1400, %v1399
        %v1420 = vpack.c.b16 %v1402, %v1401
        %v1421 = vpack.c.b16 %v1404, %v1403
        %v1422 = vpack.c.b16 %v1406, %v1405
        %1423 = vrot.lane.b32.xlu0 %v1407, 12
        %v1424 = vpop.permute.xlu0 %1423
        %1425 = vrot.lane.b32.xlu0 %v1408, 12
        %v1426 = vpop.permute.xlu0 %1425
        %1427 = vrot.lane.b32.xlu0 %v1409, 12
        %v1428 = vpop.permute.xlu0 %1427
        %1429 = vrot.lane.b32.xlu0 %v1410, 12
        %v1430 = vpop.permute.xlu0 %1429
        %1431 = vrot.lane.b32.xlu0 %v1411, 12
        %v1432 = vpop.permute.xlu0 %1431
        %1433 = vrot.lane.b32.xlu0 %v1412, 12
        %v1434 = vpop.permute.xlu0 %1433
        %1435 = vrot.lane.b32.xlu0 %v1413, 12
        %v1436 = vpop.permute.xlu0 %1435
        %1437 = vrot.lane.b32.xlu0 %v1414, 12
        %v1438 = vpop.permute.xlu0 %1437
        %1439 = vrot.lane.b32.xlu0 %v1415, 12
        %v1440 = vpop.permute.xlu0 %1439
        %1441 = vrot.lane.b32.xlu0 %v1416, 12
        %v1442 = vpop.permute.xlu0 %1441
        %1443 = vrot.lane.b32.xlu0 %v1417, 12
        %v1444 = vpop.permute.xlu0 %1443
        %1445 = vrot.lane.b32.xlu0 %v1418, 12
        %v1446 = vpop.permute.xlu0 %1445
        %1447 = vrot.lane.b32.xlu0 %v1419, 12
        %v1448 = vpop.permute.xlu0 %1447
        %1449 = vrot.lane.b32.xlu0 %v1420, 12
        %v1450 = vpop.permute.xlu0 %1449
        %1451 = vrot.lane.b32.xlu0 %v1421, 12
        %v1452 = vpop.permute.xlu0 %1451
        %1453 = vrot.lane.b32.xlu0 %v1422, 12
        %v1454 = vpop.permute.xlu0 %1453
        %vm1471 = vcmask 130144
        %1472 = vst.msk [vmem:[#allocation2] sm:$0xff] %vm1471, %v1424
        %1473 = vst.msk [vmem:[#allocation2 + $0x8] sm:$0xff] %vm1471, %v1426
        %1474 = vst.msk [vmem:[#allocation2 + $0x10] sm:$0xff] %vm1471, %v1428
        %1475 = vst.msk [vmem:[#allocation2 + $0x18] sm:$0xff] %vm1471, %v1430
        %1476 = vst.msk [vmem:[#allocation2 + $0x20] sm:$0xff] %vm1471, %v1432
        %1477 = vst.msk [vmem:[#allocation2 + $0x28] sm:$0xff] %vm1471, %v1434
        %1478 = vst.msk [vmem:[#allocation2 + $0x30] sm:$0xff] %vm1471, %v1436
        %1479 = vst.msk [vmem:[#allocation2 + $0x38] sm:$0xff] %vm1471, %v1438
        %1480 = vst.msk [vmem:[#allocation2 + $0x40] sm:$0xff] %vm1471, %v1440
        %1481 = vst.msk [vmem:[#allocation2 + $0x48] sm:$0xff] %vm1471, %v1442
        %1482 = vst.msk [vmem:[#allocation2 + $0x50] sm:$0xff] %vm1471, %v1444
        %1483 = vst.msk [vmem:[#allocation2 + $0x58] sm:$0xff] %vm1471, %v1446
        %1484 = vst.msk [vmem:[#allocation2 + $0x60] sm:$0xff] %vm1471, %v1448
        %1485 = vst.msk [vmem:[#allocation2 + $0x68] sm:$0xff] %vm1471, %v1450
        %1486 = vst.msk [vmem:[#allocation2 + $0x70] sm:$0xff] %vm1471, %v1452
        %1487 = vst.msk [vmem:[#allocation2 + $0x78] sm:$0xff] %vm1471, %v1454
        %v1488 = vld [vmem:[%s1310] sm:$0xf]
        %v1489 = vld [vmem:[%s1310 + $0x4] sm:$0xf]
        %v1490 = vld [vmem:[%s1310 + $0x8] sm:$0x1]
        %v1491 = vld [vmem:[%s1310 + $0xc] sm:$0xf]
        %v1492 = vld [vmem:[%s1310 + $0x10] sm:$0xf]
        %v1493 = vld [vmem:[%s1310 + $0x14] sm:$0x1]
        %v1494 = vld [vmem:[%s1310 + $0x18] sm:$0xf]
        %v1495 = vld [vmem:[%s1310 + $0x1c] sm:$0xf]
        %v1496 = vld [vmem:[%s1310 + $0x20] sm:$0x1]
        %v1497 = vld [vmem:[%s1310 + $0x24] sm:$0xf]
        %v1498 = vld [vmem:[%s1310 + $0x28] sm:$0xf]
        %v1499 = vld [vmem:[%s1310 + $0x2c] sm:$0x1]
        %v1500 = vld [vmem:[%s1310 + $0x30] sm:$0xf]
        %v1501 = vld [vmem:[%s1310 + $0x34] sm:$0xf]
        %v1502 = vld [vmem:[%s1310 + $0x38] sm:$0x1]
        %v1503 = vld [vmem:[%s1310 + $0x3c] sm:$0xf]
        %v1504 = vld [vmem:[%s1310 + $0x40] sm:$0xf]
        %v1505 = vld [vmem:[%s1310 + $0x44] sm:$0x1]
        %v1506 = vld [vmem:[%s1310 + $0x48] sm:$0xf]
        %v1507 = vld [vmem:[%s1310 + $0x4c] sm:$0xf]
        %v1508 = vld [vmem:[%s1310 + $0x50] sm:$0x1]
        %v1509 = vld [vmem:[%s1310 + $0x54] sm:$0xf]
        %v1510 = vld [vmem:[%s1310 + $0x58] sm:$0xf]
        %v1511 = vld [vmem:[%s1310 + $0x5c] sm:$0x1]
        %v1512 = vld [vmem:[%s1310 + $0x60] sm:$0xf]
        %v1513 = vld [vmem:[%s1310 + $0x64] sm:$0xf]
        %v1514 = vld [vmem:[%s1310 + $0x68] sm:$0x1]
        %v1515 = vld [vmem:[%s1310 + $0x6c] sm:$0xf]
        %v1516 = vld [vmem:[%s1310 + $0x70] sm:$0xf]
        %v1517 = vld [vmem:[%s1310 + $0x74] sm:$0x1]
        %v1518 = vld [vmem:[%s1310 + $0x78] sm:$0xf]
        %v1519 = vld [vmem:[%s1310 + $0x7c] sm:$0xf]
        %v1520 = vld [vmem:[%s1310 + $0x80] sm:$0x1]
        %v1521 = vld [vmem:[%s1310 + $0x84] sm:$0xf]
        %v1522 = vld [vmem:[%s1310 + $0x88] sm:$0xf]
        %v1523 = vld [vmem:[%s1310 + $0x8c] sm:$0x1]
        %v1524 = vld [vmem:[%s1310 + $0x90] sm:$0xf]
        %v1525 = vld [vmem:[%s1310 + $0x94] sm:$0xf]
        %v1526 = vld [vmem:[%s1310 + $0x98] sm:$0x1]
        %v1527 = vld [vmem:[%s1310 + $0x9c] sm:$0xf]
        %v1528 = vld [vmem:[%s1310 + $0xa0] sm:$0xf]
        %v1529 = vld [vmem:[%s1310 + $0xa4] sm:$0x1]
        %v1530 = vld [vmem:[%s1310 + $0xa8] sm:$0xf]
        %v1531 = vld [vmem:[%s1310 + $0xac] sm:$0xf]
        %v1532 = vld [vmem:[%s1310 + $0xb0] sm:$0x1]
        %v1533 = vld [vmem:[%s1310 + $0xb4] sm:$0xf]
        %v1534 = vld [vmem:[%s1310 + $0xb8] sm:$0xf]
        %v1535 = vld [vmem:[%s1310 + $0xbc] sm:$0x1]
        %v1537 = vshrl.u32 %v1488, 16
        %v1539 = vrot.slane %v1537, 4
        %v1540 = vshll.u32 %v1488, 16
        %v1542 = vrot.slane %v1540, 5
        %v1543 = vor.u32 %v1539, %v1542
        %v1544 = vrot.slane %v1543, 4
        %v1546 = vshll.u32 %v1489, 16
        %v1548 = vrot.slane %v1546, 5
        %v1549 = vsel %vm488, %v1544, %v1548
        %v1550 = vshrl.u32 %v1489, 16
        %v1552 = vrot.slane %v1550, 4
        %v1553 = vor.u32 %v1552, %v1548
        %v1554 = vrot.slane %v1553, 4
        %v1556 = vshll.u32 %v1490, 16
        %v1558 = vrot.slane %v1556, 5
        %v1559 = vsel %vm488, %v1554, %v1558
        %v1561 = vshrl.u32 %v1491, 16
        %v1563 = vrot.slane %v1561, 4
        %v1564 = vshll.u32 %v1491, 16
        %v1566 = vrot.slane %v1564, 5
        %v1567 = vor.u32 %v1563, %v1566
        %v1568 = vrot.slane %v1567, 4
        %v1570 = vshll.u32 %v1492, 16
        %v1572 = vrot.slane %v1570, 5
        %v1573 = vsel %vm488, %v1568, %v1572
        %v1574 = vshrl.u32 %v1492, 16
        %v1576 = vrot.slane %v1574, 4
        %v1577 = vor.u32 %v1576, %v1572
        %v1578 = vrot.slane %v1577, 4
        %v1580 = vshll.u32 %v1493, 16
        %v1582 = vrot.slane %v1580, 5
        %v1583 = vsel %vm488, %v1578, %v1582
        %v1585 = vshrl.u32 %v1494, 16
        %v1587 = vrot.slane %v1585, 4
        %v1588 = vshll.u32 %v1494, 16
        %v1590 = vrot.slane %v1588, 5
        %v1591 = vor.u32 %v1587, %v1590
        %v1592 = vrot.slane %v1591, 4
        %v1594 = vshll.u32 %v1495, 16
        %v1596 = vrot.slane %v1594, 5
        %v1597 = vsel %vm488, %v1592, %v1596
        %v1598 = vshrl.u32 %v1495, 16
        %v1600 = vrot.slane %v1598, 4
        %v1601 = vor.u32 %v1600, %v1596
        %v1602 = vrot.slane %v1601, 4
        %v1604 = vshll.u32 %v1496, 16
        %v1606 = vrot.slane %v1604, 5
        %v1607 = vsel %vm488, %v1602, %v1606
        %v1609 = vshrl.u32 %v1497, 16
        %v1611 = vrot.slane %v1609, 4
        %v1612 = vshll.u32 %v1497, 16
        %v1614 = vrot.slane %v1612, 5
        %v1615 = vor.u32 %v1611, %v1614
        %v1616 = vrot.slane %v1615, 4
        %v1618 = vshll.u32 %v1498, 16
        %v1620 = vrot.slane %v1618, 5
        %v1621 = vsel %vm488, %v1616, %v1620
        %v1622 = vshrl.u32 %v1498, 16
        %v1624 = vrot.slane %v1622, 4
        %v1625 = vor.u32 %v1624, %v1620
        %v1626 = vrot.slane %v1625, 4
        %v1628 = vshll.u32 %v1499, 16
        %v1630 = vrot.slane %v1628, 5
        %v1631 = vsel %vm488, %v1626, %v1630
        %v1633 = vshrl.u32 %v1500, 16
        %v1635 = vrot.slane %v1633, 4
        %v1636 = vshll.u32 %v1500, 16
        %v1638 = vrot.slane %v1636, 5
        %v1639 = vor.u32 %v1635, %v1638
        %v1640 = vrot.slane %v1639, 4
        %v1642 = vshll.u32 %v1501, 16
        %v1644 = vrot.slane %v1642, 5
        %v1645 = vsel %vm488, %v1640, %v1644
        %v1646 = vshrl.u32 %v1501, 16
        %v1648 = vrot.slane %v1646, 4
        %v1649 = vor.u32 %v1648, %v1644
        %v1650 = vrot.slane %v1649, 4
        %v1652 = vshll.u32 %v1502, 16
        %v1654 = vrot.slane %v1652, 5
        %v1655 = vsel %vm488, %v1650, %v1654
        %v1657 = vshrl.u32 %v1503, 16
        %v1659 = vrot.slane %v1657, 4
        %v1660 = vshll.u32 %v1503, 16
        %v1662 = vrot.slane %v1660, 5
        %v1663 = vor.u32 %v1659, %v1662
        %v1664 = vrot.slane %v1663, 4
        %v1666 = vshll.u32 %v1504, 16
        %v1668 = vrot.slane %v1666, 5
        %v1669 = vsel %vm488, %v1664, %v1668
        %v1670 = vshrl.u32 %v1504, 16
        %v1672 = vrot.slane %v1670, 4
        %v1673 = vor.u32 %v1672, %v1668
        %v1674 = vrot.slane %v1673, 4
        %v1676 = vshll.u32 %v1505, 16
        %v1678 = vrot.slane %v1676, 5
        %v1679 = vsel %vm488, %v1674, %v1678
        %v1681 = vshrl.u32 %v1506, 16
        %v1683 = vrot.slane %v1681, 4
        %v1684 = vshll.u32 %v1506, 16
        %v1686 = vrot.slane %v1684, 5
        %v1687 = vor.u32 %v1683, %v1686
        %v1688 = vrot.slane %v1687, 4
        %v1690 = vshll.u32 %v1507, 16
        %v1692 = vrot.slane %v1690, 5
        %v1693 = vsel %vm488, %v1688, %v1692
        %v1694 = vshrl.u32 %v1507, 16
        %v1696 = vrot.slane %v1694, 4
        %v1697 = vor.u32 %v1696, %v1692
        %v1698 = vrot.slane %v1697, 4
        %v1700 = vshll.u32 %v1508, 16
        %v1702 = vrot.slane %v1700, 5
        %v1703 = vsel %vm488, %v1698, %v1702
        %v1705 = vshrl.u32 %v1509, 16
        %v1707 = vrot.slane %v1705, 4
        %v1708 = vshll.u32 %v1509, 16
        %v1710 = vrot.slane %v1708, 5
        %v1711 = vor.u32 %v1707, %v1710
        %v1712 = vrot.slane %v1711, 4
        %v1714 = vshll.u32 %v1510, 16
        %v1716 = vrot.slane %v1714, 5
        %v1717 = vsel %vm488, %v1712, %v1716
        %v1718 = vshrl.u32 %v1510, 16
        %v1720 = vrot.slane %v1718, 4
        %v1721 = vor.u32 %v1720, %v1716
        %v1722 = vrot.slane %v1721, 4
        %v1724 = vshll.u32 %v1511, 16
        %v1726 = vrot.slane %v1724, 5
        %v1727 = vsel %vm488, %v1722, %v1726
        %v1729 = vshrl.u32 %v1512, 16
        %v1731 = vrot.slane %v1729, 4
        %v1732 = vshll.u32 %v1512, 16
        %v1734 = vrot.slane %v1732, 5
        %v1735 = vor.u32 %v1731, %v1734
        %v1736 = vrot.slane %v1735, 4
        %v1738 = vshll.u32 %v1513, 16
        %v1740 = vrot.slane %v1738, 5
        %v1741 = vsel %vm488, %v1736, %v1740
        %v1742 = vshrl.u32 %v1513, 16
        %v1744 = vrot.slane %v1742, 4
        %v1745 = vor.u32 %v1744, %v1740
        %v1746 = vrot.slane %v1745, 4
        %v1748 = vshll.u32 %v1514, 16
        %v1750 = vrot.slane %v1748, 5
        %v1751 = vsel %vm488, %v1746, %v1750
        %v1753 = vshrl.u32 %v1515, 16
        %v1755 = vrot.slane %v1753, 4
        %v1756 = vshll.u32 %v1515, 16
        %v1758 = vrot.slane %v1756, 5
        %v1759 = vor.u32 %v1755, %v1758
        %v1760 = vrot.slane %v1759, 4
        %v1762 = vshll.u32 %v1516, 16
        %v1764 = vrot.slane %v1762, 5
        %v1765 = vsel %vm488, %v1760, %v1764
        %v1766 = vshrl.u32 %v1516, 16
        %v1768 = vrot.slane %v1766, 4
        %v1769 = vor.u32 %v1768, %v1764
        %v1770 = vrot.slane %v1769, 4
        %v1772 = vshll.u32 %v1517, 16
        %v1774 = vrot.slane %v1772, 5
        %v1775 = vsel %vm488, %v1770, %v1774
        %v1777 = vshrl.u32 %v1518, 16
        %v1779 = vrot.slane %v1777, 4
        %v1780 = vshll.u32 %v1518, 16
        %v1782 = vrot.slane %v1780, 5
        %v1783 = vor.u32 %v1779, %v1782
        %v1784 = vrot.slane %v1783, 4
        %v1786 = vshll.u32 %v1519, 16
        %v1788 = vrot.slane %v1786, 5
        %v1789 = vsel %vm488, %v1784, %v1788
        %v1790 = vshrl.u32 %v1519, 16
        %v1792 = vrot.slane %v1790, 4
        %v1793 = vor.u32 %v1792, %v1788
        %v1794 = vrot.slane %v1793, 4
        %v1796 = vshll.u32 %v1520, 16
        %v1798 = vrot.slane %v1796, 5
        %v1799 = vsel %vm488, %v1794, %v1798
        %v1801 = vshrl.u32 %v1521, 16
        %v1803 = vrot.slane %v1801, 4
        %v1804 = vshll.u32 %v1521, 16
        %v1806 = vrot.slane %v1804, 5
        %v1807 = vor.u32 %v1803, %v1806
        %v1808 = vrot.slane %v1807, 4
        %v1810 = vshll.u32 %v1522, 16
        %v1812 = vrot.slane %v1810, 5
        %v1813 = vsel %vm488, %v1808, %v1812
        %v1814 = vshrl.u32 %v1522, 16
        %v1816 = vrot.slane %v1814, 4
        %v1817 = vor.u32 %v1816, %v1812
        %v1818 = vrot.slane %v1817, 4
        %v1820 = vshll.u32 %v1523, 16
        %v1822 = vrot.slane %v1820, 5
        %v1823 = vsel %vm488, %v1818, %v1822
        %v1825 = vshrl.u32 %v1524, 16
        %v1827 = vrot.slane %v1825, 4
        %v1828 = vshll.u32 %v1524, 16
        %v1830 = vrot.slane %v1828, 5
        %v1831 = vor.u32 %v1827, %v1830
        %v1832 = vrot.slane %v1831, 4
        %v1834 = vshll.u32 %v1525, 16
        %v1836 = vrot.slane %v1834, 5
        %v1837 = vsel %vm488, %v1832, %v1836
        %v1838 = vshrl.u32 %v1525, 16
        %v1840 = vrot.slane %v1838, 4
        %v1841 = vor.u32 %v1840, %v1836
        %v1842 = vrot.slane %v1841, 4
        %v1844 = vshll.u32 %v1526, 16
        %v1846 = vrot.slane %v1844, 5
        %v1847 = vsel %vm488, %v1842, %v1846
        %v1849 = vshrl.u32 %v1527, 16
        %v1851 = vrot.slane %v1849, 4
        %v1852 = vshll.u32 %v1527, 16
        %v1854 = vrot.slane %v1852, 5
        %v1855 = vor.u32 %v1851, %v1854
        %v1856 = vrot.slane %v1855, 4
        %v1858 = vshll.u32 %v1528, 16
        %v1860 = vrot.slane %v1858, 5
        %v1861 = vsel %vm488, %v1856, %v1860
        %v1862 = vshrl.u32 %v1528, 16
        %v1864 = vrot.slane %v1862, 4
        %v1865 = vor.u32 %v1864, %v1860
        %v1866 = vrot.slane %v1865, 4
        %v1868 = vshll.u32 %v1529, 16
        %v1870 = vrot.slane %v1868, 5
        %v1871 = vsel %vm488, %v1866, %v1870
        %v1873 = vshrl.u32 %v1530, 16
        %v1875 = vrot.slane %v1873, 4
        %v1876 = vshll.u32 %v1530, 16
        %v1878 = vrot.slane %v1876, 5
        %v1879 = vor.u32 %v1875, %v1878
        %v1880 = vrot.slane %v1879, 4
        %v1882 = vshll.u32 %v1531, 16
        %v1884 = vrot.slane %v1882, 5
        %v1885 = vsel %vm488, %v1880, %v1884
        %v1886 = vshrl.u32 %v1531, 16
        %v1888 = vrot.slane %v1886, 4
        %v1889 = vor.u32 %v1888, %v1884
        %v1890 = vrot.slane %v1889, 4
        %v1892 = vshll.u32 %v1532, 16
        %v1894 = vrot.slane %v1892, 5
        %v1895 = vsel %vm488, %v1890, %v1894
        %v1897 = vshrl.u32 %v1533, 16
        %v1899 = vrot.slane %v1897, 4
        %v1900 = vshll.u32 %v1533, 16
        %v1902 = vrot.slane %v1900, 5
        %v1903 = vor.u32 %v1899, %v1902
        %v1904 = vrot.slane %v1903, 4
        %v1906 = vshll.u32 %v1534, 16
        %v1908 = vrot.slane %v1906, 5
        %v1909 = vsel %vm488, %v1904, %v1908
        %v1910 = vshrl.u32 %v1534, 16
        %v1912 = vrot.slane %v1910, 4
        %v1913 = vor.u32 %v1912, %v1908
        %v1914 = vrot.slane %v1913, 4
        %v1916 = vshll.u32 %v1535, 16
        %v1918 = vrot.slane %v1916, 5
        %v1919 = vsel %vm488, %v1914, %v1918
        %v1920 = vunpack.c.l.b16 %v1549
        %v1921 = vunpack.c.l.b16 %v1559
        %v1922 = vunpack.c.l.b16 %v1573
        %v1923 = vunpack.c.l.b16 %v1583
        %v1924 = vunpack.c.l.b16 %v1597
        %v1925 = vunpack.c.l.b16 %v1607
        %v1926 = vunpack.c.l.b16 %v1621
        %v1927 = vunpack.c.l.b16 %v1631
        %v1928 = vunpack.c.l.b16 %v1645
        %v1929 = vunpack.c.l.b16 %v1655
        %v1930 = vunpack.c.l.b16 %v1669
        %v1931 = vunpack.c.l.b16 %v1679
        %v1932 = vunpack.c.l.b16 %v1693
        %v1933 = vunpack.c.l.b16 %v1703
        %v1934 = vunpack.c.l.b16 %v1717
        %v1935 = vunpack.c.l.b16 %v1727
        %v1936 = vunpack.c.l.b16 %v1741
        %v1937 = vunpack.c.l.b16 %v1751
        %v1938 = vunpack.c.l.b16 %v1765
        %v1939 = vunpack.c.l.b16 %v1775
        %v1940 = vunpack.c.l.b16 %v1789
        %v1941 = vunpack.c.l.b16 %v1799
        %v1942 = vunpack.c.l.b16 %v1813
        %v1943 = vunpack.c.l.b16 %v1823
        %v1944 = vunpack.c.l.b16 %v1837
        %v1945 = vunpack.c.l.b16 %v1847
        %v1946 = vunpack.c.l.b16 %v1861
        %v1947 = vunpack.c.l.b16 %v1871
        %v1948 = vunpack.c.l.b16 %v1885
        %v1949 = vunpack.c.l.b16 %v1895
        %v1950 = vunpack.c.l.b16 %v1909
        %v1951 = vunpack.c.l.b16 %v1919
        %v1952 = vpack.c.b16 %v1921, %v1920
        %v1953 = vpack.c.b16 %v1923, %v1922
        %v1954 = vpack.c.b16 %v1925, %v1924
        %v1955 = vpack.c.b16 %v1927, %v1926
        %v1956 = vpack.c.b16 %v1929, %v1928
        %v1957 = vpack.c.b16 %v1931, %v1930
        %v1958 = vpack.c.b16 %v1933, %v1932
        %v1959 = vpack.c.b16 %v1935, %v1934
        %v1960 = vpack.c.b16 %v1937, %v1936
        %v1961 = vpack.c.b16 %v1939, %v1938
        %v1962 = vpack.c.b16 %v1941, %v1940
        %v1963 = vpack.c.b16 %v1943, %v1942
        %v1964 = vpack.c.b16 %v1945, %v1944
        %v1965 = vpack.c.b16 %v1947, %v1946
        %v1966 = vpack.c.b16 %v1949, %v1948
        %v1967 = vpack.c.b16 %v1951, %v1950
        %1968 = vrot.lane.b32.xlu0 %v1952, 16
        %v1969 = vpop.permute.xlu0 %1968
        %1970 = vrot.lane.b32.xlu0 %v1953, 16
        %v1971 = vpop.permute.xlu0 %1970
        %1972 = vrot.lane.b32.xlu0 %v1954, 16
        %v1973 = vpop.permute.xlu0 %1972
        %1974 = vrot.lane.b32.xlu0 %v1955, 16
        %v1975 = vpop.permute.xlu0 %1974
        %1976 = vrot.lane.b32.xlu0 %v1956, 16
        %v1977 = vpop.permute.xlu0 %1976
        %1978 = vrot.lane.b32.xlu0 %v1957, 16
        %v1979 = vpop.permute.xlu0 %1978
        %1980 = vrot.lane.b32.xlu0 %v1958, 16
        %v1981 = vpop.permute.xlu0 %1980
        %1982 = vrot.lane.b32.xlu0 %v1959, 16
        %v1983 = vpop.permute.xlu0 %1982
        %1984 = vrot.lane.b32.xlu0 %v1960, 16
        %v1985 = vpop.permute.xlu0 %1984
        %1986 = vrot.lane.b32.xlu0 %v1961, 16
        %v1987 = vpop.permute.xlu0 %1986
        %1988 = vrot.lane.b32.xlu0 %v1962, 16
        %v1989 = vpop.permute.xlu0 %1988
        %1990 = vrot.lane.b32.xlu0 %v1963, 16
        %v1991 = vpop.permute.xlu0 %1990
        %1992 = vrot.lane.b32.xlu0 %v1964, 16
        %v1993 = vpop.permute.xlu0 %1992
        %1994 = vrot.lane.b32.xlu0 %v1965, 16
        %v1995 = vpop.permute.xlu0 %1994
        %1996 = vrot.lane.b32.xlu0 %v1966, 16
        %v1997 = vpop.permute.xlu0 %1996
        %1998 = vrot.lane.b32.xlu0 %v1967, 16
        %v1999 = vpop.permute.xlu0 %1998
        %vm2016 = vcmask 162944
        %2017 = vst.msk [vmem:[#allocation2] sm:$0xff] %vm2016, %v1969
        %2018 = vst.msk [vmem:[#allocation2 + $0x8] sm:$0xff] %vm2016, %v1971
        %2019 = vst.msk [vmem:[#allocation2 + $0x10] sm:$0xff] %vm2016, %v1973
        %2020 = vst.msk [vmem:[#allocation2 + $0x18] sm:$0xff] %vm2016, %v1975
        %2021 = vst.msk [vmem:[#allocation2 + $0x20] sm:$0xff] %vm2016, %v1977
        %2022 = vst.msk [vmem:[#allocation2 + $0x28] sm:$0xff] %vm2016, %v1979
        %2023 = vst.msk [vmem:[#allocation2 + $0x30] sm:$0xff] %vm2016, %v1981
        %2024 = vst.msk [vmem:[#allocation2 + $0x38] sm:$0xff] %vm2016, %v1983
        %2025 = vst.msk [vmem:[#allocation2 + $0x40] sm:$0xff] %vm2016, %v1985
        %2026 = vst.msk [vmem:[#allocation2 + $0x48] sm:$0xff] %vm2016, %v1987
        %2027 = vst.msk [vmem:[#allocation2 + $0x50] sm:$0xff] %vm2016, %v1989
        %2028 = vst.msk [vmem:[#allocation2 + $0x58] sm:$0xff] %vm2016, %v1991
        %2029 = vst.msk [vmem:[#allocation2 + $0x60] sm:$0xff] %vm2016, %v1993
        %2030 = vst.msk [vmem:[#allocation2 + $0x68] sm:$0xff] %vm2016, %v1995
        %2031 = vst.msk [vmem:[#allocation2 + $0x70] sm:$0xff] %vm2016, %v1997
        %2032 = vst.msk [vmem:[#allocation2 + $0x78] sm:$0xff] %vm2016, %v1999
        %v2033 = vld [vmem:[%s1310] sm:$0xe]
        %v2034 = vld [vmem:[%s1310 + $0x4] sm:$0xf]
        %v2035 = vld [vmem:[%s1310 + $0x8] sm:$0x1]
        %v2036 = vld [vmem:[%s1310 + $0xc] sm:$0xe]
        %v2037 = vld [vmem:[%s1310 + $0x10] sm:$0xf]
        %v2038 = vld [vmem:[%s1310 + $0x14] sm:$0x1]
        %v2039 = vld [vmem:[%s1310 + $0x18] sm:$0xe]
        %v2040 = vld [vmem:[%s1310 + $0x1c] sm:$0xf]
        %v2041 = vld [vmem:[%s1310 + $0x20] sm:$0x1]
        %v2042 = vld [vmem:[%s1310 + $0x24] sm:$0xe]
        %v2043 = vld [vmem:[%s1310 + $0x28] sm:$0xf]
        %v2044 = vld [vmem:[%s1310 + $0x2c] sm:$0x1]
        %v2045 = vld [vmem:[%s1310 + $0x30] sm:$0xe]
        %v2046 = vld [vmem:[%s1310 + $0x34] sm:$0xf]
        %v2047 = vld [vmem:[%s1310 + $0x38] sm:$0x1]
        %v2048 = vld [vmem:[%s1310 + $0x3c] sm:$0xe]
        %v2049 = vld [vmem:[%s1310 + $0x40] sm:$0xf]
        %v2050 = vld [vmem:[%s1310 + $0x44] sm:$0x1]
        %v2051 = vld [vmem:[%s1310 + $0x48] sm:$0xe]
        %v2052 = vld [vmem:[%s1310 + $0x4c] sm:$0xf]
        %v2053 = vld [vmem:[%s1310 + $0x50] sm:$0x1]
        %v2054 = vld [vmem:[%s1310 + $0x54] sm:$0xe]
        %v2055 = vld [vmem:[%s1310 + $0x58] sm:$0xf]
        %v2056 = vld [vmem:[%s1310 + $0x5c] sm:$0x1]
        %v2057 = vld [vmem:[%s1310 + $0x60] sm:$0xe]
        %v2058 = vld [vmem:[%s1310 + $0x64] sm:$0xf]
        %v2059 = vld [vmem:[%s1310 + $0x68] sm:$0x1]
        %v2060 = vld [vmem:[%s1310 + $0x6c] sm:$0xe]
        %v2061 = vld [vmem:[%s1310 + $0x70] sm:$0xf]
        %v2062 = vld [vmem:[%s1310 + $0x74] sm:$0x1]
        %v2063 = vld [vmem:[%s1310 + $0x78] sm:$0xe]
        %v2064 = vld [vmem:[%s1310 + $0x7c] sm:$0xf]
        %v2065 = vld [vmem:[%s1310 + $0x80] sm:$0x1]
        %v2066 = vld [vmem:[%s1310 + $0x84] sm:$0xe]
        %v2067 = vld [vmem:[%s1310 + $0x88] sm:$0xf]
        %v2068 = vld [vmem:[%s1310 + $0x8c] sm:$0x1]
        %v2069 = vld [vmem:[%s1310 + $0x90] sm:$0xe]
        %v2070 = vld [vmem:[%s1310 + $0x94] sm:$0xf]
        %v2071 = vld [vmem:[%s1310 + $0x98] sm:$0x1]
        %v2072 = vld [vmem:[%s1310 + $0x9c] sm:$0xe]
        %v2073 = vld [vmem:[%s1310 + $0xa0] sm:$0xf]
        %v2074 = vld [vmem:[%s1310 + $0xa4] sm:$0x1]
        %v2075 = vld [vmem:[%s1310 + $0xa8] sm:$0xe]
        %v2076 = vld [vmem:[%s1310 + $0xac] sm:$0xf]
        %v2077 = vld [vmem:[%s1310 + $0xb0] sm:$0x1]
        %v2078 = vld [vmem:[%s1310 + $0xb4] sm:$0xe]
        %v2079 = vld [vmem:[%s1310 + $0xb8] sm:$0xf]
        %v2080 = vld [vmem:[%s1310 + $0xbc] sm:$0x1]
        %v2129 = vrot.slane %v2033, 5
        %v2130 = vrot.slane %v2129, 4
        %v2131 = vrot.slane %v2034, 5
        %v2132 = vsel %vm1084, %v2130, %v2131
        %v2133 = vrot.slane %v2131, 4
        %v2134 = vrot.slane %v2035, 5
        %v2135 = vsel %vm1084, %v2133, %v2134
        %v2136 = vrot.slane %v2036, 5
        %v2137 = vrot.slane %v2136, 4
        %v2138 = vrot.slane %v2037, 5
        %v2139 = vsel %vm1084, %v2137, %v2138
        %v2140 = vrot.slane %v2138, 4
        %v2141 = vrot.slane %v2038, 5
        %v2142 = vsel %vm1084, %v2140, %v2141
        %v2143 = vrot.slane %v2039, 5
        %v2144 = vrot.slane %v2143, 4
        %v2145 = vrot.slane %v2040, 5
        %v2146 = vsel %vm1084, %v2144, %v2145
        %v2147 = vrot.slane %v2145, 4
        %v2148 = vrot.slane %v2041, 5
        %v2149 = vsel %vm1084, %v2147, %v2148
        %v2150 = vrot.slane %v2042, 5
        %v2151 = vrot.slane %v2150, 4
        %v2152 = vrot.slane %v2043, 5
        %v2153 = vsel %vm1084, %v2151, %v2152
        %v2154 = vrot.slane %v2152, 4
        %v2155 = vrot.slane %v2044, 5
        %v2156 = vsel %vm1084, %v2154, %v2155
        %v2157 = vrot.slane %v2045, 5
        %v2158 = vrot.slane %v2157, 4
        %v2159 = vrot.slane %v2046, 5
        %v2160 = vsel %vm1084, %v2158, %v2159
        %v2161 = vrot.slane %v2159, 4
        %v2162 = vrot.slane %v2047, 5
        %v2163 = vsel %vm1084, %v2161, %v2162
        %v2164 = vrot.slane %v2048, 5
        %v2165 = vrot.slane %v2164, 4
        %v2166 = vrot.slane %v2049, 5
        %v2167 = vsel %vm1084, %v2165, %v2166
        %v2168 = vrot.slane %v2166, 4
        %v2169 = vrot.slane %v2050, 5
        %v2170 = vsel %vm1084, %v2168, %v2169
        %v2171 = vrot.slane %v2051, 5
        %v2172 = vrot.slane %v2171, 4
        %v2173 = vrot.slane %v2052, 5
        %v2174 = vsel %vm1084, %v2172, %v2173
        %v2175 = vrot.slane %v2173, 4
        %v2176 = vrot.slane %v2053, 5
        %v2177 = vsel %vm1084, %v2175, %v2176
        %v2178 = vrot.slane %v2054, 5
        %v2179 = vrot.slane %v2178, 4
        %v2180 = vrot.slane %v2055, 5
        %v2181 = vsel %vm1084, %v2179, %v2180
        %v2182 = vrot.slane %v2180, 4
        %v2183 = vrot.slane %v2056, 5
        %v2184 = vsel %vm1084, %v2182, %v2183
        %v2185 = vrot.slane %v2057, 5
        %v2186 = vrot.slane %v2185, 4
        %v2187 = vrot.slane %v2058, 5
        %v2188 = vsel %vm1084, %v2186, %v2187
        %v2189 = vrot.slane %v2187, 4
        %v2190 = vrot.slane %v2059, 5
        %v2191 = vsel %vm1084, %v2189, %v2190
        %v2192 = vrot.slane %v2060, 5
        %v2193 = vrot.slane %v2192, 4
        %v2194 = vrot.slane %v2061, 5
        %v2195 = vsel %vm1084, %v2193, %v2194
        %v2196 = vrot.slane %v2194, 4
        %v2197 = vrot.slane %v2062, 5
        %v2198 = vsel %vm1084, %v2196, %v2197
        %v2199 = vrot.slane %v2063, 5
        %v2200 = vrot.slane %v2199, 4
        %v2201 = vrot.slane %v2064, 5
        %v2202 = vsel %vm1084, %v2200, %v2201
        %v2203 = vrot.slane %v2201, 4
        %v2204 = vrot.slane %v2065, 5
        %v2205 = vsel %vm1084, %v2203, %v2204
        %v2206 = vrot.slane %v2066, 5
        %v2207 = vrot.slane %v2206, 4
        %v2208 = vrot.slane %v2067, 5
        %v2209 = vsel %vm1084, %v2207, %v2208
        %v2210 = vrot.slane %v2208, 4
        %v2211 = vrot.slane %v2068, 5
        %v2212 = vsel %vm1084, %v2210, %v2211
        %v2213 = vrot.slane %v2069, 5
        %v2214 = vrot.slane %v2213, 4
        %v2215 = vrot.slane %v2070, 5
        %v2216 = vsel %vm1084, %v2214, %v2215
        %v2217 = vrot.slane %v2215, 4
        %v2218 = vrot.slane %v2071, 5
        %v2219 = vsel %vm1084, %v2217, %v2218
        %v2220 = vrot.slane %v2072, 5
        %v2221 = vrot.slane %v2220, 4
        %v2222 = vrot.slane %v2073, 5
        %v2223 = vsel %vm1084, %v2221, %v2222
        %v2224 = vrot.slane %v2222, 4
        %v2225 = vrot.slane %v2074, 5
        %v2226 = vsel %vm1084, %v2224, %v2225
        %v2227 = vrot.slane %v2075, 5
        %v2228 = vrot.slane %v2227, 4
        %v2229 = vrot.slane %v2076, 5
        %v2230 = vsel %vm1084, %v2228, %v2229
        %v2231 = vrot.slane %v2229, 4
        %v2232 = vrot.slane %v2077, 5
        %v2233 = vsel %vm1084, %v2231, %v2232
        %v2234 = vrot.slane %v2078, 5
        %v2235 = vrot.slane %v2234, 4
        %v2236 = vrot.slane %v2079, 5
        %v2237 = vsel %vm1084, %v2235, %v2236
        %v2238 = vrot.slane %v2236, 4
        %v2239 = vrot.slane %v2080, 5
        %v2240 = vsel %vm1084, %v2238, %v2239
        %v2241 = vunpack.c.l.b16 %v2132
        %v2242 = vunpack.c.l.b16 %v2135
        %v2243 = vunpack.c.l.b16 %v2139
        %v2244 = vunpack.c.l.b16 %v2142
        %v2245 = vunpack.c.l.b16 %v2146
        %v2246 = vunpack.c.l.b16 %v2149
        %v2247 = vunpack.c.l.b16 %v2153
        %v2248 = vunpack.c.l.b16 %v2156
        %v2249 = vunpack.c.l.b16 %v2160
        %v2250 = vunpack.c.l.b16 %v2163
        %v2251 = vunpack.c.l.b16 %v2167
        %v2252 = vunpack.c.l.b16 %v2170
        %v2253 = vunpack.c.l.b16 %v2174
        %v2254 = vunpack.c.l.b16 %v2177
        %v2255 = vunpack.c.l.b16 %v2181
        %v2256 = vunpack.c.l.b16 %v2184
        %v2257 = vunpack.c.l.b16 %v2188
        %v2258 = vunpack.c.l.b16 %v2191
        %v2259 = vunpack.c.l.b16 %v2195
        %v2260 = vunpack.c.l.b16 %v2198
        %v2261 = vunpack.c.l.b16 %v2202
        %v2262 = vunpack.c.l.b16 %v2205
        %v2263 = vunpack.c.l.b16 %v2209
        %v2264 = vunpack.c.l.b16 %v2212
        %v2265 = vunpack.c.l.b16 %v2216
        %v2266 = vunpack.c.l.b16 %v2219
        %v2267 = vunpack.c.l.b16 %v2223
        %v2268 = vunpack.c.l.b16 %v2226
        %v2269 = vunpack.c.l.b16 %v2230
        %v2270 = vunpack.c.l.b16 %v2233
        %v2271 = vunpack.c.l.b16 %v2237
        %v2272 = vunpack.c.l.b16 %v2240
        %v2273 = vpack.c.b16 %v2242, %v2241
        %v2274 = vpack.c.b16 %v2244, %v2243
        %v2275 = vpack.c.b16 %v2246, %v2245
        %v2276 = vpack.c.b16 %v2248, %v2247
        %v2277 = vpack.c.b16 %v2250, %v2249
        %v2278 = vpack.c.b16 %v2252, %v2251
        %v2279 = vpack.c.b16 %v2254, %v2253
        %v2280 = vpack.c.b16 %v2256, %v2255
        %v2281 = vpack.c.b16 %v2258, %v2257
        %v2282 = vpack.c.b16 %v2260, %v2259
        %v2283 = vpack.c.b16 %v2262, %v2261
        %v2284 = vpack.c.b16 %v2264, %v2263
        %v2285 = vpack.c.b16 %v2266, %v2265
        %v2286 = vpack.c.b16 %v2268, %v2267
        %v2287 = vpack.c.b16 %v2270, %v2269
        %v2288 = vpack.c.b16 %v2272, %v2271
        %2289 = vrot.lane.b32.xlu0 %v2273, 20
        %v2290 = vpop.permute.xlu0 %2289
        %2291 = vrot.lane.b32.xlu0 %v2274, 20
        %v2292 = vpop.permute.xlu0 %2291
        %2293 = vrot.lane.b32.xlu0 %v2275, 20
        %v2294 = vpop.permute.xlu0 %2293
        %2295 = vrot.lane.b32.xlu0 %v2276, 20
        %v2296 = vpop.permute.xlu0 %2295
        %2297 = vrot.lane.b32.xlu0 %v2277, 20
        %v2298 = vpop.permute.xlu0 %2297
        %2299 = vrot.lane.b32.xlu0 %v2278, 20
        %v2300 = vpop.permute.xlu0 %2299
        %2301 = vrot.lane.b32.xlu0 %v2279, 20
        %v2302 = vpop.permute.xlu0 %2301
        %2303 = vrot.lane.b32.xlu0 %v2280, 20
        %v2304 = vpop.permute.xlu0 %2303
        %2305 = vrot.lane.b32.xlu0 %v2281, 20
        %v2306 = vpop.permute.xlu0 %2305
        %2307 = vrot.lane.b32.xlu0 %v2282, 20
        %v2308 = vpop.permute.xlu0 %2307
        %2309 = vrot.lane.b32.xlu0 %v2283, 20
        %v2310 = vpop.permute.xlu0 %2309
        %2311 = vrot.lane.b32.xlu0 %v2284, 20
        %v2312 = vpop.permute.xlu0 %2311
        %2313 = vrot.lane.b32.xlu0 %v2285, 20
        %v2314 = vpop.permute.xlu0 %2313
        %2315 = vrot.lane.b32.xlu0 %v2286, 20
        %v2316 = vpop.permute.xlu0 %2315
        %2317 = vrot.lane.b32.xlu0 %v2287, 20
        %v2318 = vpop.permute.xlu0 %2317
        %2319 = vrot.lane.b32.xlu0 %v2288, 20
        %v2320 = vpop.permute.xlu0 %2319
        %vm2337 = vcmask 195744
        %2338 = vst.msk [vmem:[#allocation2] sm:$0xff] %vm2337, %v2290
        %2339 = vst.msk [vmem:[#allocation2 + $0x8] sm:$0xff] %vm2337, %v2292
        %2340 = vst.msk [vmem:[#allocation2 + $0x10] sm:$0xff] %vm2337, %v2294
        %2341 = vst.msk [vmem:[#allocation2 + $0x18] sm:$0xff] %vm2337, %v2296
        %2342 = vst.msk [vmem:[#allocation2 + $0x20] sm:$0xff] %vm2337, %v2298
        %2343 = vst.msk [vmem:[#allocation2 + $0x28] sm:$0xff] %vm2337, %v2300
        %2344 = vst.msk [vmem:[#allocation2 + $0x30] sm:$0xff] %vm2337, %v2302
        %2345 = vst.msk [vmem:[#allocation2 + $0x38] sm:$0xff] %vm2337, %v2304
        %2346 = vst.msk [vmem:[#allocation2 + $0x40] sm:$0xff] %vm2337, %v2306
        %2347 = vst.msk [vmem:[#allocation2 + $0x48] sm:$0xff] %vm2337, %v2308
        %2348 = vst.msk [vmem:[#allocation2 + $0x50] sm:$0xff] %vm2337, %v2310
        %2349 = vst.msk [vmem:[#allocation2 + $0x58] sm:$0xff] %vm2337, %v2312
        %2350 = vst.msk [vmem:[#allocation2 + $0x60] sm:$0xff] %vm2337, %v2314
        %2351 = vst.msk [vmem:[#allocation2 + $0x68] sm:$0xff] %vm2337, %v2316
        %2352 = vst.msk [vmem:[#allocation2 + $0x70] sm:$0xff] %vm2337, %v2318
        %2353 = vst.msk [vmem:[#allocation2 + $0x78] sm:$0xff] %vm2337, %v2320
        %s2354 = scalar_lea.vmem %s291, 24
        %v2355 = vld [vmem:[%s2354] sm:$0xf]
        %v2356 = vld [vmem:[%s2354 + $0x4] sm:$0xf]
        %v2357 = vld [vmem:[%s2354 + $0xc] sm:$0xf]
        %v2358 = vld [vmem:[%s2354 + $0x10] sm:$0xf]
        %v2359 = vld [vmem:[%s2354 + $0x18] sm:$0xf]
        %v2360 = vld [vmem:[%s2354 + $0x1c] sm:$0xf]
        %v2361 = vld [vmem:[%s2354 + $0x24] sm:$0xf]
        %v2362 = vld [vmem:[%s2354 + $0x28] sm:$0xf]
        %v2363 = vld [vmem:[%s2354 + $0x30] sm:$0xf]
        %v2364 = vld [vmem:[%s2354 + $0x34] sm:$0xf]
        %v2365 = vld [vmem:[%s2354 + $0x3c] sm:$0xf]
        %v2366 = vld [vmem:[%s2354 + $0x40] sm:$0xf]
        %v2367 = vld [vmem:[%s2354 + $0x48] sm:$0xf]
        %v2368 = vld [vmem:[%s2354 + $0x4c] sm:$0xf]
        %v2369 = vld [vmem:[%s2354 + $0x54] sm:$0xf]
        %v2370 = vld [vmem:[%s2354 + $0x58] sm:$0xf]
        %v2371 = vld [vmem:[%s2354 + $0x60] sm:$0xf]
        %v2372 = vld [vmem:[%s2354 + $0x64] sm:$0xf]
        %v2373 = vld [vmem:[%s2354 + $0x6c] sm:$0xf]
        %v2374 = vld [vmem:[%s2354 + $0x70] sm:$0xf]
        %v2375 = vld [vmem:[%s2354 + $0x78] sm:$0xf]
        %v2376 = vld [vmem:[%s2354 + $0x7c] sm:$0xf]
        %v2377 = vld [vmem:[%s2354 + $0x84] sm:$0xf]
        %v2378 = vld [vmem:[%s2354 + $0x88] sm:$0xf]
        %v2379 = vld [vmem:[%s2354 + $0x90] sm:$0xf]
        %v2380 = vld [vmem:[%s2354 + $0x94] sm:$0xf]
        %v2381 = vld [vmem:[%s2354 + $0x9c] sm:$0xf]
        %v2382 = vld [vmem:[%s2354 + $0xa0] sm:$0xf]
        %v2383 = vld [vmem:[%s2354 + $0xa8] sm:$0xf]
        %v2384 = vld [vmem:[%s2354 + $0xac] sm:$0xf]
        %v2385 = vld [vmem:[%s2354 + $0xb4] sm:$0xf]
        %v2386 = vld [vmem:[%s2354 + $0xb8] sm:$0xf]
        %v2419 = vunpack.c.l.b16 %v2355
        %v2420 = vunpack.c.l.b16 %v2356
        %v2421 = vunpack.c.l.b16 %v2357
        %v2422 = vunpack.c.l.b16 %v2358
        %v2423 = vunpack.c.l.b16 %v2359
        %v2424 = vunpack.c.l.b16 %v2360
        %v2425 = vunpack.c.l.b16 %v2361
        %v2426 = vunpack.c.l.b16 %v2362
        %v2427 = vunpack.c.l.b16 %v2363
        %v2428 = vunpack.c.l.b16 %v2364
        %v2429 = vunpack.c.l.b16 %v2365
        %v2430 = vunpack.c.l.b16 %v2366
        %v2431 = vunpack.c.l.b16 %v2367
        %v2432 = vunpack.c.l.b16 %v2368
        %v2433 = vunpack.c.l.b16 %v2369
        %v2434 = vunpack.c.l.b16 %v2370
        %v2435 = vunpack.c.l.b16 %v2371
        %v2436 = vunpack.c.l.b16 %v2372
        %v2437 = vunpack.c.l.b16 %v2373
        %v2438 = vunpack.c.l.b16 %v2374
        %v2439 = vunpack.c.l.b16 %v2375
        %v2440 = vunpack.c.l.b16 %v2376
        %v2441 = vunpack.c.l.b16 %v2377
        %v2442 = vunpack.c.l.b16 %v2378
        %v2443 = vunpack.c.l.b16 %v2379
        %v2444 = vunpack.c.l.b16 %v2380
        %v2445 = vunpack.c.l.b16 %v2381
        %v2446 = vunpack.c.l.b16 %v2382
        %v2447 = vunpack.c.l.b16 %v2383
        %v2448 = vunpack.c.l.b16 %v2384
        %v2449 = vunpack.c.l.b16 %v2385
        %v2450 = vunpack.c.l.b16 %v2386
        %v2451 = vpack.c.b16 %v2420, %v2419
        %v2452 = vpack.c.b16 %v2422, %v2421
        %v2453 = vpack.c.b16 %v2424, %v2423
        %v2454 = vpack.c.b16 %v2426, %v2425
        %v2455 = vpack.c.b16 %v2428, %v2427
        %v2456 = vpack.c.b16 %v2430, %v2429
        %v2457 = vpack.c.b16 %v2432, %v2431
        %v2458 = vpack.c.b16 %v2434, %v2433
        %v2459 = vpack.c.b16 %v2436, %v2435
        %v2460 = vpack.c.b16 %v2438, %v2437
        %v2461 = vpack.c.b16 %v2440, %v2439
        %v2462 = vpack.c.b16 %v2442, %v2441
        %v2463 = vpack.c.b16 %v2444, %v2443
        %v2464 = vpack.c.b16 %v2446, %v2445
        %v2465 = vpack.c.b16 %v2448, %v2447
        %v2466 = vpack.c.b16 %v2450, %v2449
        %2467 = vrot.lane.b32.xlu0 %v2451, 24
        %v2468 = vpop.permute.xlu0 %2467
        %2469 = vrot.lane.b32.xlu0 %v2452, 24
        %v2470 = vpop.permute.xlu0 %2469
        %2471 = vrot.lane.b32.xlu0 %v2453, 24
        %v2472 = vpop.permute.xlu0 %2471
        %2473 = vrot.lane.b32.xlu0 %v2454, 24
        %v2474 = vpop.permute.xlu0 %2473
        %2475 = vrot.lane.b32.xlu0 %v2455, 24
        %v2476 = vpop.permute.xlu0 %2475
        %2477 = vrot.lane.b32.xlu0 %v2456, 24
        %v2478 = vpop.permute.xlu0 %2477
        %2479 = vrot.lane.b32.xlu0 %v2457, 24
        %v2480 = vpop.permute.xlu0 %2479
        %2481 = vrot.lane.b32.xlu0 %v2458, 24
        %v2482 = vpop.permute.xlu0 %2481
        %2483 = vrot.lane.b32.xlu0 %v2459, 24
        %v2484 = vpop.permute.xlu0 %2483
        %2485 = vrot.lane.b32.xlu0 %v2460, 24
        %v2486 = vpop.permute.xlu0 %2485
        %2487 = vrot.lane.b32.xlu0 %v2461, 24
        %v2488 = vpop.permute.xlu0 %2487
        %2489 = vrot.lane.b32.xlu0 %v2462, 24
        %v2490 = vpop.permute.xlu0 %2489
        %2491 = vrot.lane.b32.xlu0 %v2463, 24
        %v2492 = vpop.permute.xlu0 %2491
        %2493 = vrot.lane.b32.xlu0 %v2464, 24
        %v2494 = vpop.permute.xlu0 %2493
        %2495 = vrot.lane.b32.xlu0 %v2465, 24
        %v2496 = vpop.permute.xlu0 %2495
        %2497 = vrot.lane.b32.xlu0 %v2466, 24
        %v2498 = vpop.permute.xlu0 %2497
        %vm2515 = vcmask 228544
        %2516 = vst.msk [vmem:[#allocation2] sm:$0xff] %vm2515, %v2468
        %2517 = vst.msk [vmem:[#allocation2 + $0x8] sm:$0xff] %vm2515, %v2470
        %2518 = vst.msk [vmem:[#allocation2 + $0x10] sm:$0xff] %vm2515, %v2472
        %2519 = vst.msk [vmem:[#allocation2 + $0x18] sm:$0xff] %vm2515, %v2474
        %2520 = vst.msk [vmem:[#allocation2 + $0x20] sm:$0xff] %vm2515, %v2476
        %2521 = vst.msk [vmem:[#allocation2 + $0x28] sm:$0xff] %vm2515, %v2478
        %2522 = vst.msk [vmem:[#allocation2 + $0x30] sm:$0xff] %vm2515, %v2480
        %2523 = vst.msk [vmem:[#allocation2 + $0x38] sm:$0xff] %vm2515, %v2482
        %2524 = vst.msk [vmem:[#allocation2 + $0x40] sm:$0xff] %vm2515, %v2484
        %2525 = vst.msk [vmem:[#allocation2 + $0x48] sm:$0xff] %vm2515, %v2486
        %2526 = vst.msk [vmem:[#allocation2 + $0x50] sm:$0xff] %vm2515, %v2488
        %2527 = vst.msk [vmem:[#allocation2 + $0x58] sm:$0xff] %vm2515, %v2490
        %2528 = vst.msk [vmem:[#allocation2 + $0x60] sm:$0xff] %vm2515, %v2492
        %2529 = vst.msk [vmem:[#allocation2 + $0x68] sm:$0xff] %vm2515, %v2494
        %2530 = vst.msk [vmem:[#allocation2 + $0x70] sm:$0xff] %vm2515, %v2496
        %2531 = vst.msk [vmem:[#allocation2 + $0x78] sm:$0xff] %vm2515, %v2498
        %v2532 = vld [vmem:[%s2354] sm:$0xf]
        %v2533 = vld [vmem:[%s2354 + $0x4] sm:$0xf]
        %v2534 = vld [vmem:[%s2354 + $0x8] sm:$0x1]
        %v2535 = vld [vmem:[%s2354 + $0xc] sm:$0xf]
        %v2536 = vld [vmem:[%s2354 + $0x10] sm:$0xf]
        %v2537 = vld [vmem:[%s2354 + $0x14] sm:$0x1]
        %v2538 = vld [vmem:[%s2354 + $0x18] sm:$0xf]
        %v2539 = vld [vmem:[%s2354 + $0x1c] sm:$0xf]
        %v2540 = vld [vmem:[%s2354 + $0x20] sm:$0x1]
        %v2541 = vld [vmem:[%s2354 + $0x24] sm:$0xf]
        %v2542 = vld [vmem:[%s2354 + $0x28] sm:$0xf]
        %v2543 = vld [vmem:[%s2354 + $0x2c] sm:$0x1]
        %v2544 = vld [vmem:[%s2354 + $0x30] sm:$0xf]
        %v2545 = vld [vmem:[%s2354 + $0x34] sm:$0xf]
        %v2546 = vld [vmem:[%s2354 + $0x38] sm:$0x1]
        %v2547 = vld [vmem:[%s2354 + $0x3c] sm:$0xf]
        %v2548 = vld [vmem:[%s2354 + $0x40] sm:$0xf]
        %v2549 = vld [vmem:[%s2354 + $0x44] sm:$0x1]
        %v2550 = vld [vmem:[%s2354 + $0x48] sm:$0xf]
        %v2551 = vld [vmem:[%s2354 + $0x4c] sm:$0xf]
        %v2552 = vld [vmem:[%s2354 + $0x50] sm:$0x1]
        %v2553 = vld [vmem:[%s2354 + $0x54] sm:$0xf]
        %v2554 = vld [vmem:[%s2354 + $0x58] sm:$0xf]
        %v2555 = vld [vmem:[%s2354 + $0x5c] sm:$0x1]
        %v2556 = vld [vmem:[%s2354 + $0x60] sm:$0xf]
        %v2557 = vld [vmem:[%s2354 + $0x64] sm:$0xf]
        %v2558 = vld [vmem:[%s2354 + $0x68] sm:$0x1]
        %v2559 = vld [vmem:[%s2354 + $0x6c] sm:$0xf]
        %v2560 = vld [vmem:[%s2354 + $0x70] sm:$0xf]
        %v2561 = vld [vmem:[%s2354 + $0x74] sm:$0x1]
        %v2562 = vld [vmem:[%s2354 + $0x78] sm:$0xf]
        %v2563 = vld [vmem:[%s2354 + $0x7c] sm:$0xf]
        %v2564 = vld [vmem:[%s2354 + $0x80] sm:$0x1]
        %v2565 = vld [vmem:[%s2354 + $0x84] sm:$0xf]
        %v2566 = vld [vmem:[%s2354 + $0x88] sm:$0xf]
        %v2567 = vld [vmem:[%s2354 + $0x8c] sm:$0x1]
        %v2568 = vld [vmem:[%s2354 + $0x90] sm:$0xf]
        %v2569 = vld [vmem:[%s2354 + $0x94] sm:$0xf]
        %v2570 = vld [vmem:[%s2354 + $0x98] sm:$0x1]
        %v2571 = vld [vmem:[%s2354 + $0x9c] sm:$0xf]
        %v2572 = vld [vmem:[%s2354 + $0xa0] sm:$0xf]
        %v2573 = vld [vmem:[%s2354 + $0xa4] sm:$0x1]
        %v2574 = vld [vmem:[%s2354 + $0xa8] sm:$0xf]
        %v2575 = vld [vmem:[%s2354 + $0xac] sm:$0xf]
        %v2576 = vld [vmem:[%s2354 + $0xb0] sm:$0x1]
        %v2577 = vld [vmem:[%s2354 + $0xb4] sm:$0xf]
        %v2578 = vld [vmem:[%s2354 + $0xb8] sm:$0xf]
        %v2579 = vld [vmem:[%s2354 + $0xbc] sm:$0x1]
        %v2581 = vshrl.u32 %v2532, 16
        %v2583 = vrot.slane %v2581, 4
        %v2584 = vshll.u32 %v2532, 16
        %v2586 = vrot.slane %v2584, 5
        %v2587 = vor.u32 %v2583, %v2586
        %v2588 = vrot.slane %v2587, 4
        %v2590 = vshll.u32 %v2533, 16
        %v2592 = vrot.slane %v2590, 5
        %v2593 = vsel %vm488, %v2588, %v2592
        %v2594 = vshrl.u32 %v2533, 16
        %v2596 = vrot.slane %v2594, 4
        %v2597 = vor.u32 %v2596, %v2592
        %v2598 = vrot.slane %v2597, 4
        %v2600 = vshll.u32 %v2534, 16
        %v2602 = vrot.slane %v2600, 5
        %v2603 = vsel %vm488, %v2598, %v2602
        %v2605 = vshrl.u32 %v2535, 16
        %v2607 = vrot.slane %v2605, 4
        %v2608 = vshll.u32 %v2535, 16
        %v2610 = vrot.slane %v2608, 5
        %v2611 = vor.u32 %v2607, %v2610
        %v2612 = vrot.slane %v2611, 4
        %v2614 = vshll.u32 %v2536, 16
        %v2616 = vrot.slane %v2614, 5
        %v2617 = vsel %vm488, %v2612, %v2616
        %v2618 = vshrl.u32 %v2536, 16
        %v2620 = vrot.slane %v2618, 4
        %v2621 = vor.u32 %v2620, %v2616
        %v2622 = vrot.slane %v2621, 4
        %v2624 = vshll.u32 %v2537, 16
        %v2626 = vrot.slane %v2624, 5
        %v2627 = vsel %vm488, %v2622, %v2626
        %v2629 = vshrl.u32 %v2538, 16
        %v2631 = vrot.slane %v2629, 4
        %v2632 = vshll.u32 %v2538, 16
        %v2634 = vrot.slane %v2632, 5
        %v2635 = vor.u32 %v2631, %v2634
        %v2636 = vrot.slane %v2635, 4
        %v2638 = vshll.u32 %v2539, 16
        %v2640 = vrot.slane %v2638, 5
        %v2641 = vsel %vm488, %v2636, %v2640
        %v2642 = vshrl.u32 %v2539, 16
        %v2644 = vrot.slane %v2642, 4
        %v2645 = vor.u32 %v2644, %v2640
        %v2646 = vrot.slane %v2645, 4
        %v2648 = vshll.u32 %v2540, 16
        %v2650 = vrot.slane %v2648, 5
        %v2651 = vsel %vm488, %v2646, %v2650
        %v2653 = vshrl.u32 %v2541, 16
        %v2655 = vrot.slane %v2653, 4
        %v2656 = vshll.u32 %v2541, 16
        %v2658 = vrot.slane %v2656, 5
        %v2659 = vor.u32 %v2655, %v2658
        %v2660 = vrot.slane %v2659, 4
        %v2662 = vshll.u32 %v2542, 16
        %v2664 = vrot.slane %v2662, 5
        %v2665 = vsel %vm488, %v2660, %v2664
        %v2666 = vshrl.u32 %v2542, 16
        %v2668 = vrot.slane %v2666, 4
        %v2669 = vor.u32 %v2668, %v2664
        %v2670 = vrot.slane %v2669, 4
        %v2672 = vshll.u32 %v2543, 16
        %v2674 = vrot.slane %v2672, 5
        %v2675 = vsel %vm488, %v2670, %v2674
        %v2677 = vshrl.u32 %v2544, 16
        %v2679 = vrot.slane %v2677, 4
        %v2680 = vshll.u32 %v2544, 16
        %v2682 = vrot.slane %v2680, 5
        %v2683 = vor.u32 %v2679, %v2682
        %v2684 = vrot.slane %v2683, 4
        %v2686 = vshll.u32 %v2545, 16
        %v2688 = vrot.slane %v2686, 5
        %v2689 = vsel %vm488, %v2684, %v2688
        %v2690 = vshrl.u32 %v2545, 16
        %v2692 = vrot.slane %v2690, 4
        %v2693 = vor.u32 %v2692, %v2688
        %v2694 = vrot.slane %v2693, 4
        %v2696 = vshll.u32 %v2546, 16
        %v2698 = vrot.slane %v2696, 5
        %v2699 = vsel %vm488, %v2694, %v2698
        %v2701 = vshrl.u32 %v2547, 16
        %v2703 = vrot.slane %v2701, 4
        %v2704 = vshll.u32 %v2547, 16
        %v2706 = vrot.slane %v2704, 5
        %v2707 = vor.u32 %v2703, %v2706
        %v2708 = vrot.slane %v2707, 4
        %v2710 = vshll.u32 %v2548, 16
        %v2712 = vrot.slane %v2710, 5
        %v2713 = vsel %vm488, %v2708, %v2712
        %v2714 = vshrl.u32 %v2548, 16
        %v2716 = vrot.slane %v2714, 4
        %v2717 = vor.u32 %v2716, %v2712
        %v2718 = vrot.slane %v2717, 4
        %v2720 = vshll.u32 %v2549, 16
        %v2722 = vrot.slane %v2720, 5
        %v2723 = vsel %vm488, %v2718, %v2722
        %v2725 = vshrl.u32 %v2550, 16
        %v2727 = vrot.slane %v2725, 4
        %v2728 = vshll.u32 %v2550, 16
        %v2730 = vrot.slane %v2728, 5
        %v2731 = vor.u32 %v2727, %v2730
        %v2732 = vrot.slane %v2731, 4
        %v2734 = vshll.u32 %v2551, 16
        %v2736 = vrot.slane %v2734, 5
        %v2737 = vsel %vm488, %v2732, %v2736
        %v2738 = vshrl.u32 %v2551, 16
        %v2740 = vrot.slane %v2738, 4
        %v2741 = vor.u32 %v2740, %v2736
        %v2742 = vrot.slane %v2741, 4
        %v2744 = vshll.u32 %v2552, 16
        %v2746 = vrot.slane %v2744, 5
        %v2747 = vsel %vm488, %v2742, %v2746
        %v2749 = vshrl.u32 %v2553, 16
        %v2751 = vrot.slane %v2749, 4
        %v2752 = vshll.u32 %v2553, 16
        %v2754 = vrot.slane %v2752, 5
        %v2755 = vor.u32 %v2751, %v2754
        %v2756 = vrot.slane %v2755, 4
        %v2758 = vshll.u32 %v2554, 16
        %v2760 = vrot.slane %v2758, 5
        %v2761 = vsel %vm488, %v2756, %v2760
        %v2762 = vshrl.u32 %v2554, 16
        %v2764 = vrot.slane %v2762, 4
        %v2765 = vor.u32 %v2764, %v2760
        %v2766 = vrot.slane %v2765, 4
        %v2768 = vshll.u32 %v2555, 16
        %v2770 = vrot.slane %v2768, 5
        %v2771 = vsel %vm488, %v2766, %v2770
        %v2773 = vshrl.u32 %v2556, 16
        %v2775 = vrot.slane %v2773, 4
        %v2776 = vshll.u32 %v2556, 16
        %v2778 = vrot.slane %v2776, 5
        %v2779 = vor.u32 %v2775, %v2778
        %v2780 = vrot.slane %v2779, 4
        %v2782 = vshll.u32 %v2557, 16
        %v2784 = vrot.slane %v2782, 5
        %v2785 = vsel %vm488, %v2780, %v2784
        %v2786 = vshrl.u32 %v2557, 16
        %v2788 = vrot.slane %v2786, 4
        %v2789 = vor.u32 %v2788, %v2784
        %v2790 = vrot.slane %v2789, 4
        %v2792 = vshll.u32 %v2558, 16
        %v2794 = vrot.slane %v2792, 5
        %v2795 = vsel %vm488, %v2790, %v2794
        %v2797 = vshrl.u32 %v2559, 16
        %v2799 = vrot.slane %v2797, 4
        %v2800 = vshll.u32 %v2559, 16
        %v2802 = vrot.slane %v2800, 5
        %v2803 = vor.u32 %v2799, %v2802
        %v2804 = vrot.slane %v2803, 4
        %v2806 = vshll.u32 %v2560, 16
        %v2808 = vrot.slane %v2806, 5
        %v2809 = vsel %vm488, %v2804, %v2808
        %v2810 = vshrl.u32 %v2560, 16
        %v2812 = vrot.slane %v2810, 4
        %v2813 = vor.u32 %v2812, %v2808
        %v2814 = vrot.slane %v2813, 4
        %v2816 = vshll.u32 %v2561, 16
        %v2818 = vrot.slane %v2816, 5
        %v2819 = vsel %vm488, %v2814, %v2818
        %v2821 = vshrl.u32 %v2562, 16
        %v2823 = vrot.slane %v2821, 4
        %v2824 = vshll.u32 %v2562, 16
        %v2826 = vrot.slane %v2824, 5
        %v2827 = vor.u32 %v2823, %v2826
        %v2828 = vrot.slane %v2827, 4
        %v2830 = vshll.u32 %v2563, 16
        %v2832 = vrot.slane %v2830, 5
        %v2833 = vsel %vm488, %v2828, %v2832
        %v2834 = vshrl.u32 %v2563, 16
        %v2836 = vrot.slane %v2834, 4
        %v2837 = vor.u32 %v2836, %v2832
        %v2838 = vrot.slane %v2837, 4
        %v2840 = vshll.u32 %v2564, 16
        %v2842 = vrot.slane %v2840, 5
        %v2843 = vsel %vm488, %v2838, %v2842
        %v2845 = vshrl.u32 %v2565, 16
        %v2847 = vrot.slane %v2845, 4
        %v2848 = vshll.u32 %v2565, 16
        %v2850 = vrot.slane %v2848, 5
        %v2851 = vor.u32 %v2847, %v2850
        %v2852 = vrot.slane %v2851, 4
        %v2854 = vshll.u32 %v2566, 16
        %v2856 = vrot.slane %v2854, 5
        %v2857 = vsel %vm488, %v2852, %v2856
        %v2858 = vshrl.u32 %v2566, 16
        %v2860 = vrot.slane %v2858, 4
        %v2861 = vor.u32 %v2860, %v2856
        %v2862 = vrot.slane %v2861, 4
        %v2864 = vshll.u32 %v2567, 16
        %v2866 = vrot.slane %v2864, 5
        %v2867 = vsel %vm488, %v2862, %v2866
        %v2869 = vshrl.u32 %v2568, 16
        %v2871 = vrot.slane %v2869, 4
        %v2872 = vshll.u32 %v2568, 16
        %v2874 = vrot.slane %v2872, 5
        %v2875 = vor.u32 %v2871, %v2874
        %v2876 = vrot.slane %v2875, 4
        %v2878 = vshll.u32 %v2569, 16
        %v2880 = vrot.slane %v2878, 5
        %v2881 = vsel %vm488, %v2876, %v2880
        %v2882 = vshrl.u32 %v2569, 16
        %v2884 = vrot.slane %v2882, 4
        %v2885 = vor.u32 %v2884, %v2880
        %v2886 = vrot.slane %v2885, 4
        %v2888 = vshll.u32 %v2570, 16
        %v2890 = vrot.slane %v2888, 5
        %v2891 = vsel %vm488, %v2886, %v2890
        %v2893 = vshrl.u32 %v2571, 16
        %v2895 = vrot.slane %v2893, 4
        %v2896 = vshll.u32 %v2571, 16
        %v2898 = vrot.slane %v2896, 5
        %v2899 = vor.u32 %v2895, %v2898
        %v2900 = vrot.slane %v2899, 4
        %v2902 = vshll.u32 %v2572, 16
        %v2904 = vrot.slane %v2902, 5
        %v2905 = vsel %vm488, %v2900, %v2904
        %v2906 = vshrl.u32 %v2572, 16
        %v2908 = vrot.slane %v2906, 4
        %v2909 = vor.u32 %v2908, %v2904
        %v2910 = vrot.slane %v2909, 4
        %v2912 = vshll.u32 %v2573, 16
        %v2914 = vrot.slane %v2912, 5
        %v2915 = vsel %vm488, %v2910, %v2914
        %v2917 = vshrl.u32 %v2574, 16
        %v2919 = vrot.slane %v2917, 4
        %v2920 = vshll.u32 %v2574, 16
        %v2922 = vrot.slane %v2920, 5
        %v2923 = vor.u32 %v2919, %v2922
        %v2924 = vrot.slane %v2923, 4
        %v2926 = vshll.u32 %v2575, 16
        %v2928 = vrot.slane %v2926, 5
        %v2929 = vsel %vm488, %v2924, %v2928
        %v2930 = vshrl.u32 %v2575, 16
        %v2932 = vrot.slane %v2930, 4
        %v2933 = vor.u32 %v2932, %v2928
        %v2934 = vrot.slane %v2933, 4
        %v2936 = vshll.u32 %v2576, 16
        %v2938 = vrot.slane %v2936, 5
        %v2939 = vsel %vm488, %v2934, %v2938
        %v2941 = vshrl.u32 %v2577, 16
        %v2943 = vrot.slane %v2941, 4
        %v2944 = vshll.u32 %v2577, 16
        %v2946 = vrot.slane %v2944, 5
        %v2947 = vor.u32 %v2943, %v2946
        %v2948 = vrot.slane %v2947, 4
        %v2950 = vshll.u32 %v2578, 16
        %v2952 = vrot.slane %v2950, 5
        %v2953 = vsel %vm488, %v2948, %v2952
        %v2954 = vshrl.u32 %v2578, 16
        %v2956 = vrot.slane %v2954, 4
        %v2957 = vor.u32 %v2956, %v2952
        %v2958 = vrot.slane %v2957, 4
        %v2960 = vshll.u32 %v2579, 16
        %v2962 = vrot.slane %v2960, 5
        %v2963 = vsel %vm488, %v2958, %v2962
        %v2964 = vunpack.c.l.b16 %v2593
        %v2965 = vunpack.c.l.b16 %v2603
        %v2966 = vunpack.c.l.b16 %v2617
        %v2967 = vunpack.c.l.b16 %v2627
        %v2968 = vunpack.c.l.b16 %v2641
        %v2969 = vunpack.c.l.b16 %v2651
        %v2970 = vunpack.c.l.b16 %v2665
        %v2971 = vunpack.c.l.b16 %v2675
        %v2972 = vunpack.c.l.b16 %v2689
        %v2973 = vunpack.c.l.b16 %v2699
        %v2974 = vunpack.c.l.b16 %v2713
        %v2975 = vunpack.c.l.b16 %v2723
        %v2976 = vunpack.c.l.b16 %v2737
        %v2977 = vunpack.c.l.b16 %v2747
        %v2978 = vunpack.c.l.b16 %v2761
        %v2979 = vunpack.c.l.b16 %v2771
        %v2980 = vunpack.c.l.b16 %v2785
        %v2981 = vunpack.c.l.b16 %v2795
        %v2982 = vunpack.c.l.b16 %v2809
        %v2983 = vunpack.c.l.b16 %v2819
        %v2984 = vunpack.c.l.b16 %v2833
        %v2985 = vunpack.c.l.b16 %v2843
        %v2986 = vunpack.c.l.b16 %v2857
        %v2987 = vunpack.c.l.b16 %v2867
        %v2988 = vunpack.c.l.b16 %v2881
        %v2989 = vunpack.c.l.b16 %v2891
        %v2990 = vunpack.c.l.b16 %v2905
        %v2991 = vunpack.c.l.b16 %v2915
        %v2992 = vunpack.c.l.b16 %v2929
        %v2993 = vunpack.c.l.b16 %v2939
        %v2994 = vunpack.c.l.b16 %v2953
        %v2995 = vunpack.c.l.b16 %v2963
        %v2996 = vpack.c.b16 %v2965, %v2964
        %v2997 = vpack.c.b16 %v2967, %v2966
        %v2998 = vpack.c.b16 %v2969, %v2968
        %v2999 = vpack.c.b16 %v2971, %v2970
        %v3000 = vpack.c.b16 %v2973, %v2972
        %v3001 = vpack.c.b16 %v2975, %v2974
        %v3002 = vpack.c.b16 %v2977, %v2976
        %v3003 = vpack.c.b16 %v2979, %v2978
        %v3004 = vpack.c.b16 %v2981, %v2980
        %v3005 = vpack.c.b16 %v2983, %v2982
        %v3006 = vpack.c.b16 %v2985, %v2984
        %v3007 = vpack.c.b16 %v2987, %v2986
        %v3008 = vpack.c.b16 %v2989, %v2988
        %v3009 = vpack.c.b16 %v2991, %v2990
        %v3010 = vpack.c.b16 %v2993, %v2992
        %v3011 = vpack.c.b16 %v2995, %v2994
        %3012 = vrot.lane.b32.xlu0 %v2996, 28
        %v3013 = vpop.permute.xlu0 %3012
        %3014 = vrot.lane.b32.xlu0 %v2997, 28
        %v3015 = vpop.permute.xlu0 %3014
        %3016 = vrot.lane.b32.xlu0 %v2998, 28
        %v3017 = vpop.permute.xlu0 %3016
        %3018 = vrot.lane.b32.xlu0 %v2999, 28
        %v3019 = vpop.permute.xlu0 %3018
        %3020 = vrot.lane.b32.xlu0 %v3000, 28
        %v3021 = vpop.permute.xlu0 %3020
        %3022 = vrot.lane.b32.xlu0 %v3001, 28
        %v3023 = vpop.permute.xlu0 %3022
        %3024 = vrot.lane.b32.xlu0 %v3002, 28
        %v3025 = vpop.permute.xlu0 %3024
        %3026 = vrot.lane.b32.xlu0 %v3003, 28
        %v3027 = vpop.permute.xlu0 %3026
        %3028 = vrot.lane.b32.xlu0 %v3004, 28
        %v3029 = vpop.permute.xlu0 %3028
        %3030 = vrot.lane.b32.xlu0 %v3005, 28
        %v3031 = vpop.permute.xlu0 %3030
        %3032 = vrot.lane.b32.xlu0 %v3006, 28
        %v3033 = vpop.permute.xlu0 %3032
        %3034 = vrot.lane.b32.xlu0 %v3007, 28
        %v3035 = vpop.permute.xlu0 %3034
        %3036 = vrot.lane.b32.xlu0 %v3008, 28
        %v3037 = vpop.permute.xlu0 %3036
        %3038 = vrot.lane.b32.xlu0 %v3009, 28
        %v3039 = vpop.permute.xlu0 %3038
        %3040 = vrot.lane.b32.xlu0 %v3010, 28
        %v3041 = vpop.permute.xlu0 %3040
        %3042 = vrot.lane.b32.xlu0 %v3011, 28
        %v3043 = vpop.permute.xlu0 %3042
        %vm3060 = vcmask 261344
        %3061 = vst.msk [vmem:[#allocation2] sm:$0xff] %vm3060, %v3013
        %3062 = vst.msk [vmem:[#allocation2 + $0x8] sm:$0xff] %vm3060, %v3015
        %3063 = vst.msk [vmem:[#allocation2 + $0x10] sm:$0xff] %vm3060, %v3017
        %3064 = vst.msk [vmem:[#allocation2 + $0x18] sm:$0xff] %vm3060, %v3019
        %3065 = vst.msk [vmem:[#allocation2 + $0x20] sm:$0xff] %vm3060, %v3021
        %3066 = vst.msk [vmem:[#allocation2 + $0x28] sm:$0xff] %vm3060, %v3023
        %3067 = vst.msk [vmem:[#allocation2 + $0x30] sm:$0xff] %vm3060, %v3025
        %3068 = vst.msk [vmem:[#allocation2 + $0x38] sm:$0xff] %vm3060, %v3027
        %3069 = vst.msk [vmem:[#allocation2 + $0x40] sm:$0xff] %vm3060, %v3029
        %3070 = vst.msk [vmem:[#allocation2 + $0x48] sm:$0xff] %vm3060, %v3031
        %3071 = vst.msk [vmem:[#allocation2 + $0x50] sm:$0xff] %vm3060, %v3033
        %3072 = vst.msk [vmem:[#allocation2 + $0x58] sm:$0xff] %vm3060, %v3035
        %3073 = vst.msk [vmem:[#allocation2 + $0x60] sm:$0xff] %vm3060, %v3037
        %3074 = vst.msk [vmem:[#allocation2 + $0x68] sm:$0xff] %vm3060, %v3039
        %3075 = vst.msk [vmem:[#allocation2 + $0x70] sm:$0xff] %vm3060, %v3041
        %3076 = vst.msk [vmem:[#allocation2 + $0x78] sm:$0xff] %vm3060, %v3043
        %v3077 = vld [vmem:[%s2354] sm:$0xe]
        %v3078 = vld [vmem:[%s2354 + $0x4] sm:$0xf]
        %v3079 = vld [vmem:[%s2354 + $0x8] sm:$0x1]
        %v3080 = vld [vmem:[%s2354 + $0xc] sm:$0xe]
        %v3081 = vld [vmem:[%s2354 + $0x10] sm:$0xf]
        %v3082 = vld [vmem:[%s2354 + $0x14] sm:$0x1]
        %v3083 = vld [vmem:[%s2354 + $0x18] sm:$0xe]
        %v3084 = vld [vmem:[%s2354 + $0x1c] sm:$0xf]
        %v3085 = vld [vmem:[%s2354 + $0x20] sm:$0x1]
        %v3086 = vld [vmem:[%s2354 + $0x24] sm:$0xe]
        %v3087 = vld [vmem:[%s2354 + $0x28] sm:$0xf]
        %v3088 = vld [vmem:[%s2354 + $0x2c] sm:$0x1]
        %v3089 = vld [vmem:[%s2354 + $0x30] sm:$0xe]
        %v3090 = vld [vmem:[%s2354 + $0x34] sm:$0xf]
        %v3091 = vld [vmem:[%s2354 + $0x38] sm:$0x1]
        %v3092 = vld [vmem:[%s2354 + $0x3c] sm:$0xe]
        %v3093 = vld [vmem:[%s2354 + $0x40] sm:$0xf]
        %v3094 = vld [vmem:[%s2354 + $0x44] sm:$0x1]
        %v3095 = vld [vmem:[%s2354 + $0x48] sm:$0xe]
        %v3096 = vld [vmem:[%s2354 + $0x4c] sm:$0xf]
        %v3097 = vld [vmem:[%s2354 + $0x50] sm:$0x1]
        %v3098 = vld [vmem:[%s2354 + $0x54] sm:$0xe]
        %v3099 = vld [vmem:[%s2354 + $0x58] sm:$0xf]
        %v3100 = vld [vmem:[%s2354 + $0x5c] sm:$0x1]
        %v3101 = vld [vmem:[%s2354 + $0x60] sm:$0xe]
        %v3102 = vld [vmem:[%s2354 + $0x64] sm:$0xf]
        %v3103 = vld [vmem:[%s2354 + $0x68] sm:$0x1]
        %v3104 = vld [vmem:[%s2354 + $0x6c] sm:$0xe]
        %v3105 = vld [vmem:[%s2354 + $0x70] sm:$0xf]
        %v3106 = vld [vmem:[%s2354 + $0x74] sm:$0x1]
        %v3107 = vld [vmem:[%s2354 + $0x78] sm:$0xe]
        %v3108 = vld [vmem:[%s2354 + $0x7c] sm:$0xf]
        %v3109 = vld [vmem:[%s2354 + $0x80] sm:$0x1]
        %v3110 = vld [vmem:[%s2354 + $0x84] sm:$0xe]
        %v3111 = vld [vmem:[%s2354 + $0x88] sm:$0xf]
        %v3112 = vld [vmem:[%s2354 + $0x8c] sm:$0x1]
        %v3113 = vld [vmem:[%s2354 + $0x90] sm:$0xe]
        %v3114 = vld [vmem:[%s2354 + $0x94] sm:$0xf]
        %v3115 = vld [vmem:[%s2354 + $0x98] sm:$0x1]
        %v3116 = vld [vmem:[%s2354 + $0x9c] sm:$0xe]
        %v3117 = vld [vmem:[%s2354 + $0xa0] sm:$0xf]
        %v3118 = vld [vmem:[%s2354 + $0xa4] sm:$0x1]
        %v3119 = vld [vmem:[%s2354 + $0xa8] sm:$0xe]
        %v3120 = vld [vmem:[%s2354 + $0xac] sm:$0xf]
        %v3121 = vld [vmem:[%s2354 + $0xb0] sm:$0x1]
        %v3122 = vld [vmem:[%s2354 + $0xb4] sm:$0xe]
        %v3123 = vld [vmem:[%s2354 + $0xb8] sm:$0xf]
        %v3124 = vld [vmem:[%s2354 + $0xbc] sm:$0x1]
        %v3173 = vrot.slane %v3077, 5
        %v3174 = vrot.slane %v3173, 4
        %v3175 = vrot.slane %v3078, 5
        %v3176 = vsel %vm1084, %v3174, %v3175
        %v3177 = vrot.slane %v3175, 4
        %v3178 = vrot.slane %v3079, 5
        %v3179 = vsel %vm1084, %v3177, %v3178
        %v3180 = vrot.slane %v3080, 5
        %v3181 = vrot.slane %v3180, 4
        %v3182 = vrot.slane %v3081, 5
        %v3183 = vsel %vm1084, %v3181, %v3182
        %v3184 = vrot.slane %v3182, 4
        %v3185 = vrot.slane %v3082, 5
        %v3186 = vsel %vm1084, %v3184, %v3185
        %v3187 = vrot.slane %v3083, 5
        %v3188 = vrot.slane %v3187, 4
        %v3189 = vrot.slane %v3084, 5
        %v3190 = vsel %vm1084, %v3188, %v3189
        %v3191 = vrot.slane %v3189, 4
        %v3192 = vrot.slane %v3085, 5
        %v3193 = vsel %vm1084, %v3191, %v3192
        %v3194 = vrot.slane %v3086, 5
        %v3195 = vrot.slane %v3194, 4
        %v3196 = vrot.slane %v3087, 5
        %v3197 = vsel %vm1084, %v3195, %v3196
        %v3198 = vrot.slane %v3196, 4
        %v3199 = vrot.slane %v3088, 5
        %v3200 = vsel %vm1084, %v3198, %v3199
        %v3201 = vrot.slane %v3089, 5
        %v3202 = vrot.slane %v3201, 4
        %v3203 = vrot.slane %v3090, 5
        %v3204 = vsel %vm1084, %v3202, %v3203
        %v3205 = vrot.slane %v3203, 4
        %v3206 = vrot.slane %v3091, 5
        %v3207 = vsel %vm1084, %v3205, %v3206
        %v3208 = vrot.slane %v3092, 5
        %v3209 = vrot.slane %v3208, 4
        %v3210 = vrot.slane %v3093, 5
        %v3211 = vsel %vm1084, %v3209, %v3210
        %v3212 = vrot.slane %v3210, 4
        %v3213 = vrot.slane %v3094, 5
        %v3214 = vsel %vm1084, %v3212, %v3213
        %v3215 = vrot.slane %v3095, 5
        %v3216 = vrot.slane %v3215, 4
        %v3217 = vrot.slane %v3096, 5
        %v3218 = vsel %vm1084, %v3216, %v3217
        %v3219 = vrot.slane %v3217, 4
        %v3220 = vrot.slane %v3097, 5
        %v3221 = vsel %vm1084, %v3219, %v3220
        %v3222 = vrot.slane %v3098, 5
        %v3223 = vrot.slane %v3222, 4
        %v3224 = vrot.slane %v3099, 5
        %v3225 = vsel %vm1084, %v3223, %v3224
        %v3226 = vrot.slane %v3224, 4
        %v3227 = vrot.slane %v3100, 5
        %v3228 = vsel %vm1084, %v3226, %v3227
        %v3229 = vrot.slane %v3101, 5
        %v3230 = vrot.slane %v3229, 4
        %v3231 = vrot.slane %v3102, 5
        %v3232 = vsel %vm1084, %v3230, %v3231
        %v3233 = vrot.slane %v3231, 4
        %v3234 = vrot.slane %v3103, 5
        %v3235 = vsel %vm1084, %v3233, %v3234
        %v3236 = vrot.slane %v3104, 5
        %v3237 = vrot.slane %v3236, 4
        %v3238 = vrot.slane %v3105, 5
        %v3239 = vsel %vm1084, %v3237, %v3238
        %v3240 = vrot.slane %v3238, 4
        %v3241 = vrot.slane %v3106, 5
        %v3242 = vsel %vm1084, %v3240, %v3241
        %v3243 = vrot.slane %v3107, 5
        %v3244 = vrot.slane %v3243, 4
        %v3245 = vrot.slane %v3108, 5
        %v3246 = vsel %vm1084, %v3244, %v3245
        %v3247 = vrot.slane %v3245, 4
        %v3248 = vrot.slane %v3109, 5
        %v3249 = vsel %vm1084, %v3247, %v3248
        %v3250 = vrot.slane %v3110, 5
        %v3251 = vrot.slane %v3250, 4
        %v3252 = vrot.slane %v3111, 5
        %v3253 = vsel %vm1084, %v3251, %v3252
        %v3254 = vrot.slane %v3252, 4
        %v3255 = vrot.slane %v3112, 5
        %v3256 = vsel %vm1084, %v3254, %v3255
        %v3257 = vrot.slane %v3113, 5
        %v3258 = vrot.slane %v3257, 4
        %v3259 = vrot.slane %v3114, 5
        %v3260 = vsel %vm1084, %v3258, %v3259
        %v3261 = vrot.slane %v3259, 4
        %v3262 = vrot.slane %v3115, 5
        %v3263 = vsel %vm1084, %v3261, %v3262
        %v3264 = vrot.slane %v3116, 5
        %v3265 = vrot.slane %v3264, 4
        %v3266 = vrot.slane %v3117, 5
        %v3267 = vsel %vm1084, %v3265, %v3266
        %v3268 = vrot.slane %v3266, 4
        %v3269 = vrot.slane %v3118, 5
        %v3270 = vsel %vm1084, %v3268, %v3269
        %v3271 = vrot.slane %v3119, 5
        %v3272 = vrot.slane %v3271, 4
        %v3273 = vrot.slane %v3120, 5
        %v3274 = vsel %vm1084, %v3272, %v3273
        %v3275 = vrot.slane %v3273, 4
        %v3276 = vrot.slane %v3121, 5
        %v3277 = vsel %vm1084, %v3275, %v3276
        %v3278 = vrot.slane %v3122, 5
        %v3279 = vrot.slane %v3278, 4
        %v3280 = vrot.slane %v3123, 5
        %v3281 = vsel %vm1084, %v3279, %v3280
        %v3282 = vrot.slane %v3280, 4
        %v3283 = vrot.slane %v3124, 5
        %v3284 = vsel %vm1084, %v3282, %v3283
        %v3285 = vunpack.c.l.b16 %v3176
        %v3286 = vunpack.c.l.b16 %v3179
        %v3287 = vunpack.c.l.b16 %v3183
        %v3288 = vunpack.c.l.b16 %v3186
        %v3289 = vunpack.c.l.b16 %v3190
        %v3290 = vunpack.c.l.b16 %v3193
        %v3291 = vunpack.c.l.b16 %v3197
        %v3292 = vunpack.c.l.b16 %v3200
        %v3293 = vunpack.c.l.b16 %v3204
        %v3294 = vunpack.c.l.b16 %v3207
        %v3295 = vunpack.c.l.b16 %v3211
        %v3296 = vunpack.c.l.b16 %v3214
        %v3297 = vunpack.c.l.b16 %v3218
        %v3298 = vunpack.c.l.b16 %v3221
        %v3299 = vunpack.c.l.b16 %v3225
        %v3300 = vunpack.c.l.b16 %v3228
        %v3301 = vunpack.c.l.b16 %v3232
        %v3302 = vunpack.c.l.b16 %v3235
        %v3303 = vunpack.c.l.b16 %v3239
        %v3304 = vunpack.c.l.b16 %v3242
        %v3305 = vunpack.c.l.b16 %v3246
        %v3306 = vunpack.c.l.b16 %v3249
        %v3307 = vunpack.c.l.b16 %v3253
        %v3308 = vunpack.c.l.b16 %v3256
        %v3309 = vunpack.c.l.b16 %v3260
        %v3310 = vunpack.c.l.b16 %v3263
        %v3311 = vunpack.c.l.b16 %v3267
        %v3312 = vunpack.c.l.b16 %v3270
        %v3313 = vunpack.c.l.b16 %v3274
        %v3314 = vunpack.c.l.b16 %v3277
        %v3315 = vunpack.c.l.b16 %v3281
        %v3316 = vunpack.c.l.b16 %v3284
        %v3317 = vpack.c.b16 %v3286, %v3285
        %v3318 = vpack.c.b16 %v3288, %v3287
        %v3319 = vpack.c.b16 %v3290, %v3289
        %v3320 = vpack.c.b16 %v3292, %v3291
        %v3321 = vpack.c.b16 %v3294, %v3293
        %v3322 = vpack.c.b16 %v3296, %v3295
        %v3323 = vpack.c.b16 %v3298, %v3297
        %v3324 = vpack.c.b16 %v3300, %v3299
        %v3325 = vpack.c.b16 %v3302, %v3301
        %v3326 = vpack.c.b16 %v3304, %v3303
        %v3327 = vpack.c.b16 %v3306, %v3305
        %v3328 = vpack.c.b16 %v3308, %v3307
        %v3329 = vpack.c.b16 %v3310, %v3309
        %v3330 = vpack.c.b16 %v3312, %v3311
        %v3331 = vpack.c.b16 %v3314, %v3313
        %v3332 = vpack.c.b16 %v3316, %v3315
        %3333 = vrot.lane.b32.xlu0 %v3317, 32
        %v3334 = vpop.permute.xlu0 %3333
        %3335 = vrot.lane.b32.xlu0 %v3318, 32
        %v3336 = vpop.permute.xlu0 %3335
        %3337 = vrot.lane.b32.xlu0 %v3319, 32
        %v3338 = vpop.permute.xlu0 %3337
        %3339 = vrot.lane.b32.xlu0 %v3320, 32
        %v3340 = vpop.permute.xlu0 %3339
        %3341 = vrot.lane.b32.xlu0 %v3321, 32
        %v3342 = vpop.permute.xlu0 %3341
        %3343 = vrot.lane.b32.xlu0 %v3322, 32
        %v3344 = vpop.permute.xlu0 %3343
        %3345 = vrot.lane.b32.xlu0 %v3323, 32
        %v3346 = vpop.permute.xlu0 %3345
        %3347 = vrot.lane.b32.xlu0 %v3324, 32
        %v3348 = vpop.permute.xlu0 %3347
        %3349 = vrot.lane.b32.xlu0 %v3325, 32
        %v3350 = vpop.permute.xlu0 %3349
        %3351 = vrot.lane.b32.xlu0 %v3326, 32
        %v3352 = vpop.permute.xlu0 %3351
        %3353 = vrot.lane.b32.xlu0 %v3327, 32
        %v3354 = vpop.permute.xlu0 %3353
        %3355 = vrot.lane.b32.xlu0 %v3328, 32
        %v3356 = vpop.permute.xlu0 %3355
        %3357 = vrot.lane.b32.xlu0 %v3329, 32
        %v3358 = vpop.permute.xlu0 %3357
        %3359 = vrot.lane.b32.xlu0 %v3330, 32
        %v3360 = vpop.permute.xlu0 %3359
        %3361 = vrot.lane.b32.xlu0 %v3331, 32
        %v3362 = vpop.permute.xlu0 %3361
        %3363 = vrot.lane.b32.xlu0 %v3332, 32
        %v3364 = vpop.permute.xlu0 %3363
        %vm3381 = vcmask 294144
        %3382 = vst.msk [vmem:[#allocation2] sm:$0xff] %vm3381, %v3334
        %3383 = vst.msk [vmem:[#allocation2 + $0x8] sm:$0xff] %vm3381, %v3336
        %3384 = vst.msk [vmem:[#allocation2 + $0x10] sm:$0xff] %vm3381, %v3338
        %3385 = vst.msk [vmem:[#allocation2 + $0x18] sm:$0xff] %vm3381, %v3340
        %3386 = vst.msk [vmem:[#allocation2 + $0x20] sm:$0xff] %vm3381, %v3342
        %3387 = vst.msk [vmem:[#allocation2 + $0x28] sm:$0xff] %vm3381, %v3344
        %3388 = vst.msk [vmem:[#allocation2 + $0x30] sm:$0xff] %vm3381, %v3346
        %3389 = vst.msk [vmem:[#allocation2 + $0x38] sm:$0xff] %vm3381, %v3348
        %3390 = vst.msk [vmem:[#allocation2 + $0x40] sm:$0xff] %vm3381, %v3350
        %3391 = vst.msk [vmem:[#allocation2 + $0x48] sm:$0xff] %vm3381, %v3352
        %3392 = vst.msk [vmem:[#allocation2 + $0x50] sm:$0xff] %vm3381, %v3354
        %3393 = vst.msk [vmem:[#allocation2 + $0x58] sm:$0xff] %vm3381, %v3356
        %3394 = vst.msk [vmem:[#allocation2 + $0x60] sm:$0xff] %vm3381, %v3358
        %3395 = vst.msk [vmem:[#allocation2 + $0x68] sm:$0xff] %vm3381, %v3360
        %3396 = vst.msk [vmem:[#allocation2 + $0x70] sm:$0xff] %vm3381, %v3362
        %3397 = vst.msk [vmem:[#allocation2 + $0x78] sm:$0xff] %vm3381, %v3364
        %v3398 = vld [vmem:[#allocation2] sm:$0xff]
        %v3399 = vld [vmem:[#allocation2 + $0x8] sm:$0xff]
        %v3400 = vld [vmem:[#allocation2 + $0x10] sm:$0xff]
        %v3401 = vld [vmem:[#allocation2 + $0x18] sm:$0xff]
        %v3402 = vld [vmem:[#allocation2 + $0x20] sm:$0xff]
        %v3403 = vld [vmem:[#allocation2 + $0x28] sm:$0xff]
        %v3404 = vld [vmem:[#allocation2 + $0x30] sm:$0xff]
        %v3405 = vld [vmem:[#allocation2 + $0x38] sm:$0xff]
        %v3406 = vld [vmem:[#allocation2 + $0x40] sm:$0xff]
        %v3407 = vld [vmem:[#allocation2 + $0x48] sm:$0xff]
        %v3408 = vld [vmem:[#allocation2 + $0x50] sm:$0xff]
        %v3409 = vld [vmem:[#allocation2 + $0x58] sm:$0xff]
        %v3410 = vld [vmem:[#allocation2 + $0x60] sm:$0xff]
        %v3411 = vld [vmem:[#allocation2 + $0x68] sm:$0xff]
        %v3412 = vld [vmem:[#allocation2 + $0x70] sm:$0xff]
        %v3413 = vld [vmem:[#allocation2 + $0x78] sm:$0xff]
        %v3414 = vld [vmem:[%s1] sm:$0xff]
        %v3415 = vld [vmem:[%s1 + $0x8] sm:$0xff]
        %v3416 = vld [vmem:[%s1 + $0x10] sm:$0xff]
        %v3417 = vld [vmem:[%s1 + $0x18] sm:$0xff]
        %v3418 = vld [vmem:[%s1 + $0x20] sm:$0x33]
        %v3424 = vunpack.c.l.b16 %v3414
        %v3425 = vunpack.c.h.b16 %v3414
        %v3426 = vunpack.c.l.b16 %v3415
        %v3427 = vunpack.c.h.b16 %v3415
        %v3428 = vunpack.c.l.b16 %v3416
        %v3429 = vunpack.c.h.b16 %v3416
        %v3430 = vunpack.c.l.b16 %v3417
        %v3431 = vunpack.c.h.b16 %v3417
        %v3432 = vunpack.c.l.b16 %v3418
        %v3433 = vunpack.c.h.b16 %v3418
        %v3434 = vpack.c.b16 %v3426, %v3424
        %v3435 = vpack.c.b16 %v3427, %v3425
        %v3436 = vpack.c.b16 %v3430, %v3428
        %v3437 = vpack.c.b16 %v3431, %v3429
        %v3438 = vpack.c.b16 %v3432, %v3432
        %v3439 = vpack.c.b16 %v3433, %v3433
        %vm3444 = vcmask 293888
        %v3446 = vsel %vm3444, %v3398, 0
        %v3449 = vsel %vm3444, %v3399, 0
        %v3452 = vsel %vm3444, %v3400, 0
        %v3455 = vsel %vm3444, %v3401, 0
        %v3458 = vsel %vm3444, %v3402, 0
        %v3461 = vsel %vm3444, %v3403, 0
        %v3464 = vsel %vm3444, %v3404, 0
        %v3467 = vsel %vm3444, %v3405, 0
        %v3470 = vsel %vm3444, %v3406, 0
        %v3473 = vsel %vm3444, %v3407, 0
        %v3476 = vsel %vm3444, %v3408, 0
        %v3479 = vsel %vm3444, %v3409, 0
        %v3482 = vsel %vm3444, %v3410, 0
        %v3485 = vsel %vm3444, %v3411, 0
        %v3488 = vsel %vm3444, %v3412, 0
        %v3491 = vsel %vm3444, %v3413, 0
        %vm3493 = vcmask 1041408
        %v3495 = vsel %vm3493, %v3438, 0
        %v3498 = vsel %vm3493, %v3439, 0
        %3500 = vmatprep.subr.bf16.mxu0 %v3435
        %3501 = vmatpush1.bf16.msra.mxu0 %v3434
        %3502 = vmatprep.subr.bf16.mxu0 %v3437
        %3503 = vmatpush1.bf16.msra.mxu0 %v3436
        %3504 = vmatprep.subr.bf16.mxu0 %v3498
        %3505 = vmatpush1.bf16.msra.mxu0 %v3495
        %3506 = vmatprep.subr.bf16.mxu0 0
        %3507 = vmatpush1.bf16.msra.mxu0 0
        %3508 = vmatprep.subr.bf16.mxu0 0
        %3509 = vmatpush1.bf16.msra.mxu0 0
        %3510 = vmatprep.subr.bf16.mxu0 0
        %3511 = vmatpush1.bf16.msra.mxu0 0
        %3512 = vmatprep.subr.bf16.mxu0 0
        %3513 = vmatpush1.bf16.msra.mxu0 0
        %3514 = vmatprep.subr.bf16.mxu0 0
        %3515 = vmatpush1.bf16.msra.mxu0 0
        %3516 = vmatprep.subr.bf16.mxu0 0
        %3517 = vmatpush1.bf16.msra.mxu0 0
        %3518 = vmatprep.subr.bf16.mxu0 0
        %3519 = vmatpush1.bf16.msra.mxu0 0
        %3520 = vmatprep.subr.bf16.mxu0 0
        %3521 = vmatpush1.bf16.msra.mxu0 0
        %3522 = vmatprep.subr.bf16.mxu0 0
        %3523 = vmatpush1.bf16.msra.mxu0 0
        %3524 = vmatprep.subr.bf16.mxu0 0
        %3525 = vmatpush1.bf16.msra.mxu0 0
        %3526 = vmatprep.subr.bf16.mxu0 0
        %3527 = vmatpush1.bf16.msra.mxu0 0
        %3528 = vmatprep.subr.bf16.mxu0 0
        %3529 = vmatpush1.bf16.msra.mxu0 0
        %3530 = vmatprep.subr.bf16.mxu0 0
        %3531 = vmatpush1.bf16.msra.mxu0 0
        %3532 = vmatprep.mubr.bf16.mxu0 0
        %3533 = vmatmul.mubr.bf16.gmra.mrb[0].mxu0 %v3446
        %v3534 = vpop.f32.mrb[0].mxu0
        %v3535 = vadd.f32 0.0, %v3534
        %v3536 = vpop.f32.mrb[0].mxu0
        %v3537 = vadd.f32 0.0, %v3536
        %v3538 = vpop.f32.mrb[0].mxu0
        %v3539 = vadd.f32 0.0, %v3538
        %v3540 = vpop.f32.mrb[0].mxu0
        %v3541 = vadd.f32 0.0, %v3540
        %3542 = vmatprep.mubr.bf16.mxu0 0
        %3543 = vmatmul.mubr.bf16.gmra.mrb[0].mxu0 %v3449
        %v3544 = vpop.f32.mrb[0].mxu0
        %v3545 = vadd.f32 0.0, %v3544
        %v3546 = vpop.f32.mrb[0].mxu0
        %v3547 = vadd.f32 0.0, %v3546
        %v3548 = vpop.f32.mrb[0].mxu0
        %v3549 = vadd.f32 0.0, %v3548
        %v3550 = vpop.f32.mrb[0].mxu0
        %v3551 = vadd.f32 0.0, %v3550
        %3552 = vmatprep.mubr.bf16.mxu0 0
        %3553 = vmatmul.mubr.bf16.gmra.mrb[0].mxu0 %v3452
        %v3554 = vpop.f32.mrb[0].mxu0
        %v3555 = vadd.f32 0.0, %v3554
        %v3556 = vpop.f32.mrb[0].mxu0
        %v3557 = vadd.f32 0.0, %v3556
        %v3558 = vpop.f32.mrb[0].mxu0
        %v3559 = vadd.f32 0.0, %v3558
        %v3560 = vpop.f32.mrb[0].mxu0
        %v3561 = vadd.f32 0.0, %v3560
        %3562 = vmatprep.mubr.bf16.mxu0 0
        %3563 = vmatmul.mubr.bf16.gmra.mrb[0].mxu0 %v3455
        %v3564 = vpop.f32.mrb[0].mxu0
        %v3565 = vadd.f32 0.0, %v3564
        %v3566 = vpop.f32.mrb[0].mxu0
        %v3567 = vadd.f32 0.0, %v3566
        %v3568 = vpop.f32.mrb[0].mxu0
        %v3569 = vadd.f32 0.0, %v3568
        %v3570 = vpop.f32.mrb[0].mxu0
        %v3571 = vadd.f32 0.0, %v3570
        %3572 = vmatprep.mubr.bf16.mxu0 0
        %3573 = vmatmul.mubr.bf16.gmra.mrb[0].mxu0 %v3458
        %v3574 = vpop.f32.mrb[0].mxu0
        %v3575 = vadd.f32 0.0, %v3574
        %v3576 = vpop.f32.mrb[0].mxu0
        %v3577 = vadd.f32 0.0, %v3576
        %v3578 = vpop.f32.mrb[0].mxu0
        %v3579 = vadd.f32 0.0, %v3578
        %v3580 = vpop.f32.mrb[0].mxu0
        %v3581 = vadd.f32 0.0, %v3580
        %3582 = vmatprep.mubr.bf16.mxu0 0
        %3583 = vmatmul.mubr.bf16.gmra.mrb[0].mxu0 %v3461
        %v3584 = vpop.f32.mrb[0].mxu0
        %v3585 = vadd.f32 0.0, %v3584
        %v3586 = vpop.f32.mrb[0].mxu0
        %v3587 = vadd.f32 0.0, %v3586
        %v3588 = vpop.f32.mrb[0].mxu0
        %v3589 = vadd.f32 0.0, %v3588
        %v3590 = vpop.f32.mrb[0].mxu0
        %v3591 = vadd.f32 0.0, %v3590
        %3592 = vmatprep.mubr.bf16.mxu0 0
        %3593 = vmatmul.mubr.bf16.gmra.mrb[0].mxu0 %v3464
        %v3594 = vpop.f32.mrb[0].mxu0
        %v3595 = vadd.f32 0.0, %v3594
        %v3596 = vpop.f32.mrb[0].mxu0
        %v3597 = vadd.f32 0.0, %v3596
        %v3598 = vpop.f32.mrb[0].mxu0
        %v3599 = vadd.f32 0.0, %v3598
        %v3600 = vpop.f32.mrb[0].mxu0
        %v3601 = vadd.f32 0.0, %v3600
        %3602 = vmatprep.mubr.bf16.mxu0 0
        %3603 = vmatmul.mubr.bf16.gmra.mrb[0].mxu0 %v3467
        %v3604 = vpop.f32.mrb[0].mxu0
        %v3605 = vadd.f32 0.0, %v3604
        %v3606 = vpop.f32.mrb[0].mxu0
        %v3607 = vadd.f32 0.0, %v3606
        %v3608 = vpop.f32.mrb[0].mxu0
        %v3609 = vadd.f32 0.0, %v3608
        %v3610 = vpop.f32.mrb[0].mxu0
        %v3611 = vadd.f32 0.0, %v3610
        %3612 = vmatprep.mubr.bf16.mxu0 0
        %3613 = vmatmul.mubr.bf16.gmra.mrb[0].mxu0 %v3470
        %v3614 = vpop.f32.mrb[0].mxu0
        %v3615 = vadd.f32 0.0, %v3614
        %v3616 = vpop.f32.mrb[0].mxu0
        %v3617 = vadd.f32 0.0, %v3616
        %v3618 = vpop.f32.mrb[0].mxu0
        %v3619 = vadd.f32 0.0, %v3618
        %v3620 = vpop.f32.mrb[0].mxu0
        %v3621 = vadd.f32 0.0, %v3620
        %3622 = vmatprep.mubr.bf16.mxu0 0
        %3623 = vmatmul.mubr.bf16.gmra.mrb[0].mxu0 %v3473
        %v3624 = vpop.f32.mrb[0].mxu0
        %v3625 = vadd.f32 0.0, %v3624
        %v3626 = vpop.f32.mrb[0].mxu0
        %v3627 = vadd.f32 0.0, %v3626
        %v3628 = vpop.f32.mrb[0].mxu0
        %v3629 = vadd.f32 0.0, %v3628
        %v3630 = vpop.f32.mrb[0].mxu0
        %v3631 = vadd.f32 0.0, %v3630
        %3632 = vmatprep.mubr.bf16.mxu0 0
        %3633 = vmatmul.mubr.bf16.gmra.mrb[0].mxu0 %v3476
        %v3634 = vpop.f32.mrb[0].mxu0
        %v3635 = vadd.f32 0.0, %v3634
        %v3636 = vpop.f32.mrb[0].mxu0
        %v3637 = vadd.f32 0.0, %v3636
        %v3638 = vpop.f32.mrb[0].mxu0
        %v3639 = vadd.f32 0.0, %v3638
        %v3640 = vpop.f32.mrb[0].mxu0
        %v3641 = vadd.f32 0.0, %v3640
        %3642 = vmatprep.mubr.bf16.mxu0 0
        %3643 = vmatmul.mubr.bf16.gmra.mrb[0].mxu0 %v3479
        %v3644 = vpop.f32.mrb[0].mxu0
        %v3645 = vadd.f32 0.0, %v3644
        %v3646 = vpop.f32.mrb[0].mxu0
        %v3647 = vadd.f32 0.0, %v3646
        %v3648 = vpop.f32.mrb[0].mxu0
        %v3649 = vadd.f32 0.0, %v3648
        %v3650 = vpop.f32.mrb[0].mxu0
        %v3651 = vadd.f32 0.0, %v3650
        %3652 = vmatprep.mubr.bf16.mxu0 0
        %3653 = vmatmul.mubr.bf16.gmra.mrb[0].mxu0 %v3482
        %v3654 = vpop.f32.mrb[0].mxu0
        %v3655 = vadd.f32 0.0, %v3654
        %v3656 = vpop.f32.mrb[0].mxu0
        %v3657 = vadd.f32 0.0, %v3656
        %v3658 = vpop.f32.mrb[0].mxu0
        %v3659 = vadd.f32 0.0, %v3658
        %v3660 = vpop.f32.mrb[0].mxu0
        %v3661 = vadd.f32 0.0, %v3660
        %3662 = vmatprep.mubr.bf16.mxu0 0
        %3663 = vmatmul.mubr.bf16.gmra.mrb[0].mxu0 %v3485
        %v3664 = vpop.f32.mrb[0].mxu0
        %v3665 = vadd.f32 0.0, %v3664
        %v3666 = vpop.f32.mrb[0].mxu0
        %v3667 = vadd.f32 0.0, %v3666
        %v3668 = vpop.f32.mrb[0].mxu0
        %v3669 = vadd.f32 0.0, %v3668
        %v3670 = vpop.f32.mrb[0].mxu0
        %v3671 = vadd.f32 0.0, %v3670
        %3672 = vmatprep.mubr.bf16.mxu0 0
        %3673 = vmatmul.mubr.bf16.gmra.mrb[0].mxu0 %v3488
        %v3674 = vpop.f32.mrb[0].mxu0
        %v3675 = vadd.f32 0.0, %v3674
        %v3676 = vpop.f32.mrb[0].mxu0
        %v3677 = vadd.f32 0.0, %v3676
        %v3678 = vpop.f32.mrb[0].mxu0
        %v3679 = vadd.f32 0.0, %v3678
        %v3680 = vpop.f32.mrb[0].mxu0
        %v3681 = vadd.f32 0.0, %v3680
        %3682 = vmatprep.mubr.bf16.mxu0 0
        %3683 = vmatmul.mubr.bf16.gmra.mrb[0].mxu0 %v3491
        %v3684 = vpop.f32.mrb[0].mxu0
        %v3685 = vadd.f32 0.0, %v3684
        %v3686 = vpop.f32.mrb[0].mxu0
        %v3687 = vadd.f32 0.0, %v3686
        %v3688 = vpop.f32.mrb[0].mxu0
        %v3689 = vadd.f32 0.0, %v3688
        %v3690 = vpop.f32.mrb[0].mxu0
        %v3691 = vadd.f32 0.0, %v3690
        %3692 = vdwg.mxu0
        %v3693 = vld [vmem:[%s2] sm:$0x3]
        %v3695 = vlaneseq
        %v3696 = vshrl.u32 %v3695, 7
        %v3697 = vsub.s32 0, %v3696
        %v3698 = vrot.slane %v3693, %v3697
        %v3699 = vlaneseq
        %v3700 = vshrl.u32 %v3699, 7
        %v3701 = vsub.s32 1, %v3700
        %v3702 = vrot.slane %v3693, %v3701
        %v3705 = vmul.f32 %v3535, %v3698
        %v3706 = vmul.f32 %v3537, %v3702
        %v3707 = vmul.f32 %v3539, %v3698
        %v3708 = vmul.f32 %v3541, %v3702
        %v3709 = vmul.f32 %v3545, %v3698
        %v3710 = vmul.f32 %v3547, %v3702
        %v3711 = vmul.f32 %v3549, %v3698
        %v3712 = vmul.f32 %v3551, %v3702
        %v3713 = vmul.f32 %v3555, %v3698
        %v3714 = vmul.f32 %v3557, %v3702
        %v3715 = vmul.f32 %v3559, %v3698
        %v3716 = vmul.f32 %v3561, %v3702
        %v3717 = vmul.f32 %v3565, %v3698
        %v3718 = vmul.f32 %v3567, %v3702
        %v3719 = vmul.f32 %v3569, %v3698
        %v3720 = vmul.f32 %v3571, %v3702
        %v3721 = vmul.f32 %v3575, %v3698
        %v3722 = vmul.f32 %v3577, %v3702
        %v3723 = vmul.f32 %v3579, %v3698
        %v3724 = vmul.f32 %v3581, %v3702
        %v3725 = vmul.f32 %v3585, %v3698
        %v3726 = vmul.f32 %v3587, %v3702
        %v3727 = vmul.f32 %v3589, %v3698
        %v3728 = vmul.f32 %v3591, %v3702
        %v3729 = vmul.f32 %v3595, %v3698
        %v3730 = vmul.f32 %v3597, %v3702
        %v3731 = vmul.f32 %v3599, %v3698
        %v3732 = vmul.f32 %v3601, %v3702
        %v3733 = vmul.f32 %v3605, %v3698
        %v3734 = vmul.f32 %v3607, %v3702
        %v3735 = vmul.f32 %v3609, %v3698
        %v3736 = vmul.f32 %v3611, %v3702
        %v3737 = vmul.f32 %v3615, %v3698
        %v3738 = vmul.f32 %v3617, %v3702
        %v3739 = vmul.f32 %v3619, %v3698
        %v3740 = vmul.f32 %v3621, %v3702
        %v3741 = vmul.f32 %v3625, %v3698
        %v3742 = vmul.f32 %v3627, %v3702
        %v3743 = vmul.f32 %v3629, %v3698
        %v3744 = vmul.f32 %v3631, %v3702
        %v3745 = vmul.f32 %v3635, %v3698
        %v3746 = vmul.f32 %v3637, %v3702
        %v3747 = vmul.f32 %v3639, %v3698
        %v3748 = vmul.f32 %v3641, %v3702
        %v3749 = vmul.f32 %v3645, %v3698
        %v3750 = vmul.f32 %v3647, %v3702
        %v3751 = vmul.f32 %v3649, %v3698
        %v3752 = vmul.f32 %v3651, %v3702
        %v3753 = vmul.f32 %v3655, %v3698
        %v3754 = vmul.f32 %v3657, %v3702
        %v3755 = vmul.f32 %v3659, %v3698
        %v3756 = vmul.f32 %v3661, %v3702
        %v3757 = vmul.f32 %v3665, %v3698
        %v3758 = vmul.f32 %v3667, %v3702
        %v3759 = vmul.f32 %v3669, %v3698
        %v3760 = vmul.f32 %v3671, %v3702
        %v3761 = vmul.f32 %v3675, %v3698
        %v3762 = vmul.f32 %v3677, %v3702
        %v3763 = vmul.f32 %v3679, %v3698
        %v3764 = vmul.f32 %v3681, %v3702
        %v3765 = vmul.f32 %v3685, %v3698
        %v3766 = vmul.f32 %v3687, %v3702
        %v3767 = vmul.f32 %v3689, %v3698
        %v3768 = vmul.f32 %v3691, %v3702
        %v3769 = vld [vmem:[%s3] sm:$0x3]
        %v3771 = vlaneseq
        %v3772 = vshrl.u32 %v3771, 7
        %v3773 = vsub.s32 0, %v3772
        %v3774 = vrot.slane %v3769, %v3773
        %v3775 = vlaneseq
        %v3776 = vshrl.u32 %v3775, 7
        %v3777 = vsub.s32 1, %v3776
        %v3778 = vrot.slane %v3769, %v3777
        %v3781 = vadd.f32 %v3705, %v3774
        %v3782 = vadd.f32 %v3706, %v3778
        %v3783 = vadd.f32 %v3707, %v3774
        %v3784 = vadd.f32 %v3708, %v3778
        %v3785 = vadd.f32 %v3709, %v3774
        %v3786 = vadd.f32 %v3710, %v3778
        %v3787 = vadd.f32 %v3711, %v3774
        %v3788 = vadd.f32 %v3712, %v3778
        %v3789 = vadd.f32 %v3713, %v3774
        %v3790 = vadd.f32 %v3714, %v3778
        %v3791 = vadd.f32 %v3715, %v3774
        %v3792 = vadd.f32 %v3716, %v3778
        %v3793 = vadd.f32 %v3717, %v3774
        %v3794 = vadd.f32 %v3718, %v3778
        %v3795 = vadd.f32 %v3719, %v3774
        %v3796 = vadd.f32 %v3720, %v3778
        %v3797 = vadd.f32 %v3721, %v3774
        %v3798 = vadd.f32 %v3722, %v3778
        %v3799 = vadd.f32 %v3723, %v3774
        %v3800 = vadd.f32 %v3724, %v3778
        %v3801 = vadd.f32 %v3725, %v3774
        %v3802 = vadd.f32 %v3726, %v3778
        %v3803 = vadd.f32 %v3727, %v3774
        %v3804 = vadd.f32 %v3728, %v3778
        %v3805 = vadd.f32 %v3729, %v3774
        %v3806 = vadd.f32 %v3730, %v3778
        %v3807 = vadd.f32 %v3731, %v3774
        %v3808 = vadd.f32 %v3732, %v3778
        %v3809 = vadd.f32 %v3733, %v3774
        %v3810 = vadd.f32 %v3734, %v3778
        %v3811 = vadd.f32 %v3735, %v3774
        %v3812 = vadd.f32 %v3736, %v3778
        %v3813 = vadd.f32 %v3737, %v3774
        %v3814 = vadd.f32 %v3738, %v3778
        %v3815 = vadd.f32 %v3739, %v3774
        %v3816 = vadd.f32 %v3740, %v3778
        %v3817 = vadd.f32 %v3741, %v3774
        %v3818 = vadd.f32 %v3742, %v3778
        %v3819 = vadd.f32 %v3743, %v3774
        %v3820 = vadd.f32 %v3744, %v3778
        %v3821 = vadd.f32 %v3745, %v3774
        %v3822 = vadd.f32 %v3746, %v3778
        %v3823 = vadd.f32 %v3747, %v3774
        %v3824 = vadd.f32 %v3748, %v3778
        %v3825 = vadd.f32 %v3749, %v3774
        %v3826 = vadd.f32 %v3750, %v3778
        %v3827 = vadd.f32 %v3751, %v3774
        %v3828 = vadd.f32 %v3752, %v3778
        %v3829 = vadd.f32 %v3753, %v3774
        %v3830 = vadd.f32 %v3754, %v3778
        %v3831 = vadd.f32 %v3755, %v3774
        %v3832 = vadd.f32 %v3756, %v3778
        %v3833 = vadd.f32 %v3757, %v3774
        %v3834 = vadd.f32 %v3758, %v3778
        %v3835 = vadd.f32 %v3759, %v3774
        %v3836 = vadd.f32 %v3760, %v3778
        %v3837 = vadd.f32 %v3761, %v3774
        %v3838 = vadd.f32 %v3762, %v3778
        %v3839 = vadd.f32 %v3763, %v3774
        %v3840 = vadd.f32 %v3764, %v3778
        %v3841 = vadd.f32 %v3765, %v3774
        %v3842 = vadd.f32 %v3766, %v3778
        %v3843 = vadd.f32 %v3767, %v3774
        %v3844 = vadd.f32 %v3768, %v3778
        %v3845 = vmax.f32 %v3781, 0.0
        %v3846 = vmax.f32 %v3783, 0.0
        %v3847 = vmax.f32 %v3785, 0.0
        %v3848 = vmax.f32 %v3787, 0.0
        %v3849 = vmax.f32 %v3789, 0.0
        %v3850 = vmax.f32 %v3791, 0.0
        %v3851 = vmax.f32 %v3793, 0.0
        %v3852 = vmax.f32 %v3795, 0.0
        %v3853 = vmax.f32 %v3797, 0.0
        %v3854 = vmax.f32 %v3799, 0.0
        %v3855 = vmax.f32 %v3801, 0.0
        %v3856 = vmax.f32 %v3803, 0.0
        %v3857 = vmax.f32 %v3805, 0.0
        %v3858 = vmax.f32 %v3807, 0.0
        %v3859 = vmax.f32 %v3809, 0.0
        %v3860 = vmax.f32 %v3811, 0.0
        %v3861 = vmax.f32 %v3813, 0.0
        %v3862 = vmax.f32 %v3815, 0.0
        %v3863 = vmax.f32 %v3817, 0.0
        %v3864 = vmax.f32 %v3819, 0.0
        %v3865 = vmax.f32 %v3821, 0.0
        %v3866 = vmax.f32 %v3823, 0.0
        %v3867 = vmax.f32 %v3825, 0.0
        %v3868 = vmax.f32 %v3827, 0.0
        %v3869 = vmax.f32 %v3829, 0.0
        %v3870 = vmax.f32 %v3831, 0.0
        %v3871 = vmax.f32 %v3833, 0.0
        %v3872 = vmax.f32 %v3835, 0.0
        %v3873 = vmax.f32 %v3837, 0.0
        %v3874 = vmax.f32 %v3839, 0.0
        %v3875 = vmax.f32 %v3841, 0.0
        %v3876 = vmax.f32 %v3843, 0.0
        %v3877 = vpack.c.bf16 %v3846, %v3845
        %v3878 = vpack.c.bf16 %v3848, %v3847
        %v3879 = vpack.c.bf16 %v3850, %v3849
        %v3880 = vpack.c.bf16 %v3852, %v3851
        %v3881 = vpack.c.bf16 %v3854, %v3853
        %v3882 = vpack.c.bf16 %v3856, %v3855
        %v3883 = vpack.c.bf16 %v3858, %v3857
        %v3884 = vpack.c.bf16 %v3860, %v3859
        %v3885 = vpack.c.bf16 %v3862, %v3861
        %v3886 = vpack.c.bf16 %v3864, %v3863
        %v3887 = vpack.c.bf16 %v3866, %v3865
        %v3888 = vpack.c.bf16 %v3868, %v3867
        %v3889 = vpack.c.bf16 %v3870, %v3869
        %v3890 = vpack.c.bf16 %v3872, %v3871
        %v3891 = vpack.c.bf16 %v3874, %v3873
        %v3892 = vpack.c.bf16 %v3876, %v3875
        %v3894 = vshrl.u32 %v3877, 16
        %v3896 = vrot.slane %v3894, 7
        %v3897 = vshll.u32 %v3877, 16
        %v3899 = vor.u32 %v3896, %v3897
        %v3901 = vshrl.u32 %v3878, 16
        %v3903 = vrot.slane %v3901, 7
        %v3904 = vshll.u32 %v3878, 16
        %v3906 = vor.u32 %v3903, %v3904
        %v3908 = vshrl.u32 %v3879, 16
        %v3910 = vrot.slane %v3908, 7
        %v3911 = vshll.u32 %v3879, 16
        %v3913 = vor.u32 %v3910, %v3911
        %v3915 = vshrl.u32 %v3880, 16
        %v3917 = vrot.slane %v3915, 7
        %v3918 = vshll.u32 %v3880, 16
        %v3920 = vor.u32 %v3917, %v3918
        %v3922 = vshrl.u32 %v3881, 16
        %v3924 = vrot.slane %v3922, 7
        %v3925 = vshll.u32 %v3881, 16
        %v3927 = vor.u32 %v3924, %v3925
        %v3929 = vshrl.u32 %v3882, 16
        %v3931 = vrot.slane %v3929, 7
        %v3932 = vshll.u32 %v3882, 16
        %v3934 = vor.u32 %v3931, %v3932
        %v3936 = vshrl.u32 %v3883, 16
        %v3938 = vrot.slane %v3936, 7
        %v3939 = vshll.u32 %v3883, 16
        %v3941 = vor.u32 %v3938, %v3939
        %v3943 = vshrl.u32 %v3884, 16
        %v3945 = vrot.slane %v3943, 7
        %v3946 = vshll.u32 %v3884, 16
        %v3948 = vor.u32 %v3945, %v3946
        %v3950 = vshrl.u32 %v3885, 16
        %v3952 = vrot.slane %v3950, 7
        %v3953 = vshll.u32 %v3885, 16
        %v3955 = vor.u32 %v3952, %v3953
        %v3957 = vshrl.u32 %v3886, 16
        %v3959 = vrot.slane %v3957, 7
        %v3960 = vshll.u32 %v3886, 16
        %v3962 = vor.u32 %v3959, %v3960
        %v3964 = vshrl.u32 %v3887, 16
        %v3966 = vrot.slane %v3964, 7
        %v3967 = vshll.u32 %v3887, 16
        %v3969 = vor.u32 %v3966, %v3967
        %v3971 = vshrl.u32 %v3888, 16
        %v3973 = vrot.slane %v3971, 7
        %v3974 = vshll.u32 %v3888, 16
        %v3976 = vor.u32 %v3973, %v3974
        %v3978 = vshrl.u32 %v3889, 16
        %v3980 = vrot.slane %v3978, 7
        %v3981 = vshll.u32 %v3889, 16
        %v3983 = vor.u32 %v3980, %v3981
        %v3985 = vshrl.u32 %v3890, 16
        %v3987 = vrot.slane %v3985, 7
        %v3988 = vshll.u32 %v3890, 16
        %v3990 = vor.u32 %v3987, %v3988
        %v3992 = vshrl.u32 %v3891, 16
        %v3994 = vrot.slane %v3992, 7
        %v3995 = vshll.u32 %v3891, 16
        %v3997 = vor.u32 %v3994, %v3995
        %v3999 = vshrl.u32 %v3892, 16
        %v4001 = vrot.slane %v3999, 7
        %v4002 = vshll.u32 %v3892, 16
        %v4004 = vor.u32 %v4001, %v4002
        %vm4037 = vcmask 1040384
        %vm4038 = vsmask.f32 256
        %vm4039 = vmand %vm4037, %vm4038
        %v4040 = vsel %vm4039, 0, %v3899
        %v4041 = vsel %vm4039, 0, %v3906
        %v4042 = vsel %vm4039, 0, %v3913
        %v4043 = vsel %vm4039, 0, %v3920
        %v4044 = vsel %vm4039, 0, %v3927
        %v4045 = vsel %vm4039, 0, %v3934
        %v4046 = vsel %vm4039, 0, %v3941
        %v4047 = vsel %vm4039, 0, %v3948
        %v4048 = vsel %vm4039, 0, %v3955
        %v4049 = vsel %vm4039, 0, %v3962
        %v4050 = vsel %vm4039, 0, %v3969
        %v4051 = vsel %vm4039, 0, %v3976
        %v4052 = vsel %vm4039, 0, %v3983
        %v4053 = vsel %vm4039, 0, %v3990
        %v4054 = vsel %vm4039, 0, %v3997
        %v4055 = vsel %vm4039, 0, %v4004
        %v4056 = vsel %vm4039, %v3896, 0
        %v4057 = vsel %vm4039, %v3903, 0
        %v4058 = vsel %vm4039, %v3910, 0
        %v4059 = vsel %vm4039, %v3917, 0
        %v4060 = vsel %vm4039, %v3924, 0
        %v4061 = vsel %vm4039, %v3931, 0
        %v4062 = vsel %vm4039, %v3938, 0
        %v4063 = vsel %vm4039, %v3945, 0
        %v4064 = vsel %vm4039, %v3952, 0
        %v4065 = vsel %vm4039, %v3959, 0
        %v4066 = vsel %vm4039, %v3966, 0
        %v4067 = vsel %vm4039, %v3973, 0
        %v4068 = vsel %vm4039, %v3980, 0
        %v4069 = vsel %vm4039, %v3987, 0
        %v4070 = vsel %vm4039, %v3994, 0
        %v4071 = vsel %vm4039, %v4001, 0
        %4072 = vst [vmem:[#allocation3] sm:$0xf] 0
        %4073 = vst [vmem:[#allocation3 + $0x4] sm:$0xf] 0
        %4074 = vst [vmem:[#allocation3 + $0x8] sm:$0x1] 0
        %s4075 = scalar_lea.vmem [#allocation3], 204
        %4076 = vst [vmem:[%s4075] sm:$0xf] 0
        %4077 = vst [vmem:[%s4075 + $0x4] sm:$0xf] 0
        %4078 = vst [vmem:[%s4075 + $0x8] sm:$0x1] 0
        %v4111 = vunpack.c.l.b16 %v4040
        %v4112 = vunpack.c.h.b16 %v4040
        %v4113 = vunpack.c.l.b16 %v4056
        %v4114 = vunpack.c.l.b16 %v4041
        %v4115 = vunpack.c.h.b16 %v4041
        %v4116 = vunpack.c.l.b16 %v4057
        %v4117 = vunpack.c.l.b16 %v4042
        %v4118 = vunpack.c.h.b16 %v4042
        %v4119 = vunpack.c.l.b16 %v4058
        %v4120 = vunpack.c.l.b16 %v4043
        %v4121 = vunpack.c.h.b16 %v4043
        %v4122 = vunpack.c.l.b16 %v4059
        %v4123 = vunpack.c.l.b16 %v4044
        %v4124 = vunpack.c.h.b16 %v4044
        %v4125 = vunpack.c.l.b16 %v4060
        %v4126 = vunpack.c.l.b16 %v4045
        %v4127 = vunpack.c.h.b16 %v4045
        %v4128 = vunpack.c.l.b16 %v4061
        %v4129 = vunpack.c.l.b16 %v4046
        %v4130 = vunpack.c.h.b16 %v4046
        %v4131 = vunpack.c.l.b16 %v4062
        %v4132 = vunpack.c.l.b16 %v4047
        %v4133 = vunpack.c.h.b16 %v4047
        %v4134 = vunpack.c.l.b16 %v4063
        %v4135 = vunpack.c.l.b16 %v4048
        %v4136 = vunpack.c.h.b16 %v4048
        %v4137 = vunpack.c.l.b16 %v4064
        %v4138 = vunpack.c.l.b16 %v4049
        %v4139 = vunpack.c.h.b16 %v4049
        %v4140 = vunpack.c.l.b16 %v4065
        %v4141 = vunpack.c.l.b16 %v4050
        %v4142 = vunpack.c.h.b16 %v4050
        %v4143 = vunpack.c.l.b16 %v4066
        %v4144 = vunpack.c.l.b16 %v4051
        %v4145 = vunpack.c.h.b16 %v4051
        %v4146 = vunpack.c.l.b16 %v4067
        %v4147 = vunpack.c.l.b16 %v4052
        %v4148 = vunpack.c.h.b16 %v4052
        %v4149 = vunpack.c.l.b16 %v4068
        %v4150 = vunpack.c.l.b16 %v4053
        %v4151 = vunpack.c.h.b16 %v4053
        %v4152 = vunpack.c.l.b16 %v4069
        %v4153 = vunpack.c.l.b16 %v4054
        %v4154 = vunpack.c.h.b16 %v4054
        %v4155 = vunpack.c.l.b16 %v4070
        %v4156 = vunpack.c.l.b16 %v4055
        %v4157 = vunpack.c.h.b16 %v4055
        %v4158 = vunpack.c.l.b16 %v4071
        %v4159 = vpack.c.b16 %v4111, %v4111
        %v4160 = vpack.c.b16 %v4112, %v4112
        %v4161 = vpack.c.b16 %v4113, %v4113
        %v4162 = vpack.c.b16 %v4114, %v4114
        %v4163 = vpack.c.b16 %v4115, %v4115
        %v4164 = vpack.c.b16 %v4116, %v4116
        %v4165 = vpack.c.b16 %v4117, %v4117
        %v4166 = vpack.c.b16 %v4118, %v4118
        %v4167 = vpack.c.b16 %v4119, %v4119
        %v4168 = vpack.c.b16 %v4120, %v4120
        %v4169 = vpack.c.b16 %v4121, %v4121
        %v4170 = vpack.c.b16 %v4122, %v4122
        %v4171 = vpack.c.b16 %v4123, %v4123
        %v4172 = vpack.c.b16 %v4124, %v4124
        %v4173 = vpack.c.b16 %v4125, %v4125
        %v4174 = vpack.c.b16 %v4126, %v4126
        %v4175 = vpack.c.b16 %v4127, %v4127
        %v4176 = vpack.c.b16 %v4128, %v4128
        %v4177 = vpack.c.b16 %v4129, %v4129
        %v4178 = vpack.c.b16 %v4130, %v4130
        %v4179 = vpack.c.b16 %v4131, %v4131
        %v4180 = vpack.c.b16 %v4132, %v4132
        %v4181 = vpack.c.b16 %v4133, %v4133
        %v4182 = vpack.c.b16 %v4134, %v4134
        %v4183 = vpack.c.b16 %v4135, %v4135
        %v4184 = vpack.c.b16 %v4136, %v4136
        %v4185 = vpack.c.b16 %v4137, %v4137
        %v4186 = vpack.c.b16 %v4138, %v4138
        %v4187 = vpack.c.b16 %v4139, %v4139
        %v4188 = vpack.c.b16 %v4140, %v4140
        %v4189 = vpack.c.b16 %v4141, %v4141
        %v4190 = vpack.c.b16 %v4142, %v4142
        %v4191 = vpack.c.b16 %v4143, %v4143
        %v4192 = vpack.c.b16 %v4144, %v4144
        %v4193 = vpack.c.b16 %v4145, %v4145
        %v4194 = vpack.c.b16 %v4146, %v4146
        %v4195 = vpack.c.b16 %v4147, %v4147
        %v4196 = vpack.c.b16 %v4148, %v4148
        %v4197 = vpack.c.b16 %v4149, %v4149
        %v4198 = vpack.c.b16 %v4150, %v4150
        %v4199 = vpack.c.b16 %v4151, %v4151
        %v4200 = vpack.c.b16 %v4152, %v4152
        %v4201 = vpack.c.b16 %v4153, %v4153
        %v4202 = vpack.c.b16 %v4154, %v4154
        %v4203 = vpack.c.b16 %v4155, %v4155
        %v4204 = vpack.c.b16 %v4156, %v4156
        %v4205 = vpack.c.b16 %v4157, %v4157
        %v4206 = vpack.c.b16 %v4158, %v4158
        %s4255 = scalar_lea.vmem [#allocation3], 12
        %4256 = vst [vmem:[%s4255] sm:$0xf] %v4159
        %4257 = vst [vmem:[%s4255 + $0x4] sm:$0xf] %v4160
        %4258 = vst [vmem:[%s4255 + $0x8] sm:$0x1] %v4161
        %4259 = vst [vmem:[%s4255 + $0xc] sm:$0xf] %v4162
        %4260 = vst [vmem:[%s4255 + $0x10] sm:$0xf] %v4163
        %4261 = vst [vmem:[%s4255 + $0x14] sm:$0x1] %v4164
        %4262 = vst [vmem:[%s4255 + $0x18] sm:$0xf] %v4165
        %4263 = vst [vmem:[%s4255 + $0x1c] sm:$0xf] %v4166
        %4264 = vst [vmem:[%s4255 + $0x20] sm:$0x1] %v4167
        %4265 = vst [vmem:[%s4255 + $0x24] sm:$0xf] %v4168
        %4266 = vst [vmem:[%s4255 + $0x28] sm:$0xf] %v4169
        %4267 = vst [vmem:[%s4255 + $0x2c] sm:$0x1] %v4170
        %4268 = vst [vmem:[%s4255 + $0x30] sm:$0xf] %v4171
        %4269 = vst [vmem:[%s4255 + $0x34] sm:$0xf] %v4172
        %4270 = vst [vmem:[%s4255 + $0x38] sm:$0x1] %v4173
        %4271 = vst [vmem:[%s4255 + $0x3c] sm:$0xf] %v4174
        %4272 = vst [vmem:[%s4255 + $0x40] sm:$0xf] %v4175
        %4273 = vst [vmem:[%s4255 + $0x44] sm:$0x1] %v4176
        %4274 = vst [vmem:[%s4255 + $0x48] sm:$0xf] %v4177
        %4275 = vst [vmem:[%s4255 + $0x4c] sm:$0xf] %v4178
        %4276 = vst [vmem:[%s4255 + $0x50] sm:$0x1] %v4179
        %4277 = vst [vmem:[%s4255 + $0x54] sm:$0xf] %v4180
        %4278 = vst [vmem:[%s4255 + $0x58] sm:$0xf] %v4181
        %4279 = vst [vmem:[%s4255 + $0x5c] sm:$0x1] %v4182
        %4280 = vst [vmem:[%s4255 + $0x60] sm:$0xf] %v4183
        %4281 = vst [vmem:[%s4255 + $0x64] sm:$0xf] %v4184
        %4282 = vst [vmem:[%s4255 + $0x68] sm:$0x1] %v4185
        %4283 = vst [vmem:[%s4255 + $0x6c] sm:$0xf] %v4186
        %4284 = vst [vmem:[%s4255 + $0x70] sm:$0xf] %v4187
        %4285 = vst [vmem:[%s4255 + $0x74] sm:$0x1] %v4188
        %4286 = vst [vmem:[%s4255 + $0x78] sm:$0xf] %v4189
        %4287 = vst [vmem:[%s4255 + $0x7c] sm:$0xf] %v4190
        %4288 = vst [vmem:[%s4255 + $0x80] sm:$0x1] %v4191
        %4289 = vst [vmem:[%s4255 + $0x84] sm:$0xf] %v4192
        %4290 = vst [vmem:[%s4255 + $0x88] sm:$0xf] %v4193
        %4291 = vst [vmem:[%s4255 + $0x8c] sm:$0x1] %v4194
        %4292 = vst [vmem:[%s4255 + $0x90] sm:$0xf] %v4195
        %4293 = vst [vmem:[%s4255 + $0x94] sm:$0xf] %v4196
        %4294 = vst [vmem:[%s4255 + $0x98] sm:$0x1] %v4197
        %4295 = vst [vmem:[%s4255 + $0x9c] sm:$0xf] %v4198
        %4296 = vst [vmem:[%s4255 + $0xa0] sm:$0xf] %v4199
        %4297 = vst [vmem:[%s4255 + $0xa4] sm:$0x1] %v4200
        %4298 = vst [vmem:[%s4255 + $0xa8] sm:$0xf] %v4201
        %4299 = vst [vmem:[%s4255 + $0xac] sm:$0xf] %v4202
        %4300 = vst [vmem:[%s4255 + $0xb0] sm:$0x1] %v4203
        %4301 = vst [vmem:[%s4255 + $0xb4] sm:$0xf] %v4204
        %4302 = vst [vmem:[%s4255 + $0xb8] sm:$0xf] %v4205
        %4303 = vst [vmem:[%s4255 + $0xbc] sm:$0x1] %v4206
        %v4304 = vld [vmem:[#allocation3] sm:$0xf]
        %v4305 = vld [vmem:[#allocation3 + $0x4] sm:$0xf]
        %v4306 = vld [vmem:[#allocation3 + $0xc] sm:$0xf]
        %v4307 = vld [vmem:[#allocation3 + $0x10] sm:$0xf]
        %v4308 = vld [vmem:[#allocation3 + $0x18] sm:$0xf]
        %v4309 = vld [vmem:[#allocation3 + $0x1c] sm:$0xf]
        %v4310 = vld [vmem:[#allocation3 + $0x24] sm:$0xf]
        %v4311 = vld [vmem:[#allocation3 + $0x28] sm:$0xf]
        %v4312 = vld [vmem:[#allocation3 + $0x30] sm:$0xf]
        %v4313 = vld [vmem:[#allocation3 + $0x34] sm:$0xf]
        %v4314 = vld [vmem:[#allocation3 + $0x3c] sm:$0xf]
        %v4315 = vld [vmem:[#allocation3 + $0x40] sm:$0xf]
        %v4316 = vld [vmem:[#allocation3 + $0x48] sm:$0xf]
        %v4317 = vld [vmem:[#allocation3 + $0x4c] sm:$0xf]
        %v4318 = vld [vmem:[#allocation3 + $0x54] sm:$0xf]
        %v4319 = vld [vmem:[#allocation3 + $0x58] sm:$0xf]
        %v4320 = vld [vmem:[#allocation3 + $0x60] sm:$0xf]
        %v4321 = vld [vmem:[#allocation3 + $0x64] sm:$0xf]
        %v4322 = vld [vmem:[#allocation3 + $0x6c] sm:$0xf]
        %v4323 = vld [vmem:[#allocation3 + $0x70] sm:$0xf]
        %v4324 = vld [vmem:[#allocation3 + $0x78] sm:$0xf]
        %v4325 = vld [vmem:[#allocation3 + $0x7c] sm:$0xf]
        %v4326 = vld [vmem:[#allocation3 + $0x84] sm:$0xf]
        %v4327 = vld [vmem:[#allocation3 + $0x88] sm:$0xf]
        %v4328 = vld [vmem:[#allocation3 + $0x90] sm:$0xf]
        %v4329 = vld [vmem:[#allocation3 + $0x94] sm:$0xf]
        %v4330 = vld [vmem:[#allocation3 + $0x9c] sm:$0xf]
        %v4331 = vld [vmem:[#allocation3 + $0xa0] sm:$0xf]
        %v4332 = vld [vmem:[#allocation3 + $0xa8] sm:$0xf]
        %v4333 = vld [vmem:[#allocation3 + $0xac] sm:$0xf]
        %v4334 = vld [vmem:[#allocation3 + $0xb4] sm:$0xf]
        %v4335 = vld [vmem:[#allocation3 + $0xb8] sm:$0xf]
        %v4368 = vunpack.c.l.b16 %v4304
        %v4369 = vunpack.c.l.b16 %v4305
        %v4370 = vunpack.c.l.b16 %v4306
        %v4371 = vunpack.c.l.b16 %v4307
        %v4372 = vunpack.c.l.b16 %v4308
        %v4373 = vunpack.c.l.b16 %v4309
        %v4374 = vunpack.c.l.b16 %v4310
        %v4375 = vunpack.c.l.b16 %v4311
        %v4376 = vunpack.c.l.b16 %v4312
        %v4377 = vunpack.c.l.b16 %v4313
        %v4378 = vunpack.c.l.b16 %v4314
        %v4379 = vunpack.c.l.b16 %v4315
        %v4380 = vunpack.c.l.b16 %v4316
        %v4381 = vunpack.c.l.b16 %v4317
        %v4382 = vunpack.c.l.b16 %v4318
        %v4383 = vunpack.c.l.b16 %v4319
        %v4384 = vunpack.c.l.b16 %v4320
        %v4385 = vunpack.c.l.b16 %v4321
        %v4386 = vunpack.c.l.b16 %v4322
        %v4387 = vunpack.c.l.b16 %v4323
        %v4388 = vunpack.c.l.b16 %v4324
        %v4389 = vunpack.c.l.b16 %v4325
        %v4390 = vunpack.c.l.b16 %v4326
        %v4391 = vunpack.c.l.b16 %v4327
        %v4392 = vunpack.c.l.b16 %v4328
        %v4393 = vunpack.c.l.b16 %v4329
        %v4394 = vunpack.c.l.b16 %v4330
        %v4395 = vunpack.c.l.b16 %v4331
        %v4396 = vunpack.c.l.b16 %v4332
        %v4397 = vunpack.c.l.b16 %v4333
        %v4398 = vunpack.c.l.b16 %v4334
        %v4399 = vunpack.c.l.b16 %v4335
        %v4400 = vpack.c.b16 %v4369, %v4368
        %v4401 = vpack.c.b16 %v4371, %v4370
        %v4402 = vpack.c.b16 %v4373, %v4372
        %v4403 = vpack.c.b16 %v4375, %v4374
        %v4404 = vpack.c.b16 %v4377, %v4376
        %v4405 = vpack.c.b16 %v4379, %v4378
        %v4406 = vpack.c.b16 %v4381, %v4380
        %v4407 = vpack.c.b16 %v4383, %v4382
        %v4408 = vpack.c.b16 %v4385, %v4384
        %v4409 = vpack.c.b16 %v4387, %v4386
        %v4410 = vpack.c.b16 %v4389, %v4388
        %v4411 = vpack.c.b16 %v4391, %v4390
        %v4412 = vpack.c.b16 %v4393, %v4392
        %v4413 = vpack.c.b16 %v4395, %v4394
        %v4414 = vpack.c.b16 %v4397, %v4396
        %v4415 = vpack.c.b16 %v4399, %v4398
        %4432 = vst [vmem:[#allocation4] sm:$0xff] %v4400
        %4433 = vst [vmem:[#allocation4 + $0x48] sm:$0xff] %v4401
        %4434 = vst [vmem:[#allocation4 + $0x90] sm:$0xff] %v4402
        %4435 = vst [vmem:[#allocation4 + $0xd8] sm:$0xff] %v4403
        %4436 = vst [vmem:[#allocation4 + $0x120] sm:$0xff] %v4404
        %4437 = vst [vmem:[#allocation4 + $0x168] sm:$0xff] %v4405
        %4438 = vst [vmem:[#allocation4 + $0x1b0] sm:$0xff] %v4406
        %4439 = vst [vmem:[#allocation4 + $0x1f8] sm:$0xff] %v4407
        %4440 = vst [vmem:[#allocation4 + $0x240] sm:$0xff] %v4408
        %4441 = vst [vmem:[#allocation4 + $0x288] sm:$0xff] %v4409
        %4442 = vst [vmem:[#allocation4 + $0x2d0] sm:$0xff] %v4410
        %4443 = vst [vmem:[#allocation4 + $0x318] sm:$0xff] %v4411
        %4444 = vst [vmem:[#allocation4 + $0x360] sm:$0xff] %v4412
        %4445 = vst [vmem:[#allocation4 + $0x3a8] sm:$0xff] %v4413
        %4446 = vst [vmem:[#allocation4 + $0x3f0] sm:$0xff] %v4414
        %4447 = vst [vmem:[#allocation4 + $0x438] sm:$0xff] %v4415
        %v4448 = vld [vmem:[#allocation3] sm:$0xf]
        %v4449 = vld [vmem:[#allocation3 + $0x4] sm:$0xf]
        %v4450 = vld [vmem:[#allocation3 + $0x8] sm:$0x1]
        %v4451 = vld [vmem:[#allocation3 + $0xc] sm:$0xf]
        %v4452 = vld [vmem:[#allocation3 + $0x10] sm:$0xf]
        %v4453 = vld [vmem:[#allocation3 + $0x14] sm:$0x1]
        %v4454 = vld [vmem:[#allocation3 + $0x18] sm:$0xf]
        %v4455 = vld [vmem:[#allocation3 + $0x1c] sm:$0xf]
        %v4456 = vld [vmem:[#allocation3 + $0x20] sm:$0x1]
        %v4457 = vld [vmem:[#allocation3 + $0x24] sm:$0xf]
        %v4458 = vld [vmem:[#allocation3 + $0x28] sm:$0xf]
        %v4459 = vld [vmem:[#allocation3 + $0x2c] sm:$0x1]
        %v4460 = vld [vmem:[#allocation3 + $0x30] sm:$0xf]
        %v4461 = vld [vmem:[#allocation3 + $0x34] sm:$0xf]
        %v4462 = vld [vmem:[#allocation3 + $0x38] sm:$0x1]
        %v4463 = vld [vmem:[#allocation3 + $0x3c] sm:$0xf]
        %v4464 = vld [vmem:[#allocation3 + $0x40] sm:$0xf]
        %v4465 = vld [vmem:[#allocation3 + $0x44] sm:$0x1]
        %v4466 = vld [vmem:[#allocation3 + $0x48] sm:$0xf]
        %v4467 = vld [vmem:[#allocation3 + $0x4c] sm:$0xf]
        %v4468 = vld [vmem:[#allocation3 + $0x50] sm:$0x1]
        %v4469 = vld [vmem:[#allocation3 + $0x54] sm:$0xf]
        %v4470 = vld [vmem:[#allocation3 + $0x58] sm:$0xf]
        %v4471 = vld [vmem:[#allocation3 + $0x5c] sm:$0x1]
        %v4472 = vld [vmem:[#allocation3 + $0x60] sm:$0xf]
        %v4473 = vld [vmem:[#allocation3 + $0x64] sm:$0xf]
        %v4474 = vld [vmem:[#allocation3 + $0x68] sm:$0x1]
        %v4475 = vld [vmem:[#allocation3 + $0x6c] sm:$0xf]
        %v4476 = vld [vmem:[#allocation3 + $0x70] sm:$0xf]
        %v4477 = vld [vmem:[#allocation3 + $0x74] sm:$0x1]
        %v4478 = vld [vmem:[#allocation3 + $0x78] sm:$0xf]
        %v4479 = vld [vmem:[#allocation3 + $0x7c] sm:$0xf]
        %v4480 = vld [vmem:[#allocation3 + $0x80] sm:$0x1]
        %v4481 = vld [vmem:[#allocation3 + $0x84] sm:$0xf]
        %v4482 = vld [vmem:[#allocation3 + $0x88] sm:$0xf]
        %v4483 = vld [vmem:[#allocation3 + $0x8c] sm:$0x1]
        %v4484 = vld [vmem:[#allocation3 + $0x90] sm:$0xf]
        %v4485 = vld [vmem:[#allocation3 + $0x94] sm:$0xf]
        %v4486 = vld [vmem:[#allocation3 + $0x98] sm:$0x1]
        %v4487 = vld [vmem:[#allocation3 + $0x9c] sm:$0xf]
        %v4488 = vld [vmem:[#allocation3 + $0xa0] sm:$0xf]
        %v4489 = vld [vmem:[#allocation3 + $0xa4] sm:$0x1]
        %v4490 = vld [vmem:[#allocation3 + $0xa8] sm:$0xf]
        %v4491 = vld [vmem:[#allocation3 + $0xac] sm:$0xf]
        %v4492 = vld [vmem:[#allocation3 + $0xb0] sm:$0x1]
        %v4493 = vld [vmem:[#allocation3 + $0xb4] sm:$0xf]
        %v4494 = vld [vmem:[#allocation3 + $0xb8] sm:$0xf]
        %v4495 = vld [vmem:[#allocation3 + $0xbc] sm:$0x1]
        %v4497 = vshrl.u32 %v4448, 16
        %v4499 = vrot.slane %v4497, 4
        %v4500 = vshll.u32 %v4448, 16
        %v4502 = vrot.slane %v4500, 5
        %v4503 = vor.u32 %v4499, %v4502
        %v4504 = vrot.slane %v4503, 4
        %v4506 = vshll.u32 %v4449, 16
        %v4508 = vrot.slane %v4506, 5
        %v4509 = vsel %vm488, %v4504, %v4508
        %v4510 = vshrl.u32 %v4449, 16
        %v4512 = vrot.slane %v4510, 4
        %v4513 = vor.u32 %v4512, %v4508
        %v4514 = vrot.slane %v4513, 4
        %v4516 = vshll.u32 %v4450, 16
        %v4518 = vrot.slane %v4516, 5
        %v4519 = vsel %vm488, %v4514, %v4518
        %v4521 = vshrl.u32 %v4451, 16
        %v4523 = vrot.slane %v4521, 4
        %v4524 = vshll.u32 %v4451, 16
        %v4526 = vrot.slane %v4524, 5
        %v4527 = vor.u32 %v4523, %v4526
        %v4528 = vrot.slane %v4527, 4
        %v4530 = vshll.u32 %v4452, 16
        %v4532 = vrot.slane %v4530, 5
        %v4533 = vsel %vm488, %v4528, %v4532
        %v4534 = vshrl.u32 %v4452, 16
        %v4536 = vrot.slane %v4534, 4
        %v4537 = vor.u32 %v4536, %v4532
        %v4538 = vrot.slane %v4537, 4
        %v4540 = vshll.u32 %v4453, 16
        %v4542 = vrot.slane %v4540, 5
        %v4543 = vsel %vm488, %v4538, %v4542
        %v4545 = vshrl.u32 %v4454, 16
        %v4547 = vrot.slane %v4545, 4
        %v4548 = vshll.u32 %v4454, 16
        %v4550 = vrot.slane %v4548, 5
        %v4551 = vor.u32 %v4547, %v4550
        %v4552 = vrot.slane %v4551, 4
        %v4554 = vshll.u32 %v4455, 16
        %v4556 = vrot.slane %v4554, 5
        %v4557 = vsel %vm488, %v4552, %v4556
        %v4558 = vshrl.u32 %v4455, 16
        %v4560 = vrot.slane %v4558, 4
        %v4561 = vor.u32 %v4560, %v4556
        %v4562 = vrot.slane %v4561, 4
        %v4564 = vshll.u32 %v4456, 16
        %v4566 = vrot.slane %v4564, 5
        %v4567 = vsel %vm488, %v4562, %v4566
        %v4569 = vshrl.u32 %v4457, 16
        %v4571 = vrot.slane %v4569, 4
        %v4572 = vshll.u32 %v4457, 16
        %v4574 = vrot.slane %v4572, 5
        %v4575 = vor.u32 %v4571, %v4574
        %v4576 = vrot.slane %v4575, 4
        %v4578 = vshll.u32 %v4458, 16
        %v4580 = vrot.slane %v4578, 5
        %v4581 = vsel %vm488, %v4576, %v4580
        %v4582 = vshrl.u32 %v4458, 16
        %v4584 = vrot.slane %v4582, 4
        %v4585 = vor.u32 %v4584, %v4580
        %v4586 = vrot.slane %v4585, 4
        %v4588 = vshll.u32 %v4459, 16
        %v4590 = vrot.slane %v4588, 5
        %v4591 = vsel %vm488, %v4586, %v4590
        %v4593 = vshrl.u32 %v4460, 16
        %v4595 = vrot.slane %v4593, 4
        %v4596 = vshll.u32 %v4460, 16
        %v4598 = vrot.slane %v4596, 5
        %v4599 = vor.u32 %v4595, %v4598
        %v4600 = vrot.slane %v4599, 4
        %v4602 = vshll.u32 %v4461, 16
        %v4604 = vrot.slane %v4602, 5
        %v4605 = vsel %vm488, %v4600, %v4604
        %v4606 = vshrl.u32 %v4461, 16
        %v4608 = vrot.slane %v4606, 4
        %v4609 = vor.u32 %v4608, %v4604
        %v4610 = vrot.slane %v4609, 4
        %v4612 = vshll.u32 %v4462, 16
        %v4614 = vrot.slane %v4612, 5
        %v4615 = vsel %vm488, %v4610, %v4614
        %v4617 = vshrl.u32 %v4463, 16
        %v4619 = vrot.slane %v4617, 4
        %v4620 = vshll.u32 %v4463, 16
        %v4622 = vrot.slane %v4620, 5
        %v4623 = vor.u32 %v4619, %v4622
        %v4624 = vrot.slane %v4623, 4
        %v4626 = vshll.u32 %v4464, 16
        %v4628 = vrot.slane %v4626, 5
        %v4629 = vsel %vm488, %v4624, %v4628
        %v4630 = vshrl.u32 %v4464, 16
        %v4632 = vrot.slane %v4630, 4
        %v4633 = vor.u32 %v4632, %v4628
        %v4634 = vrot.slane %v4633, 4
        %v4636 = vshll.u32 %v4465, 16
        %v4638 = vrot.slane %v4636, 5
        %v4639 = vsel %vm488, %v4634, %v4638
        %v4641 = vshrl.u32 %v4466, 16
        %v4643 = vrot.slane %v4641, 4
        %v4644 = vshll.u32 %v4466, 16
        %v4646 = vrot.slane %v4644, 5
        %v4647 = vor.u32 %v4643, %v4646
        %v4648 = vrot.slane %v4647, 4
        %v4650 = vshll.u32 %v4467, 16
        %v4652 = vrot.slane %v4650, 5
        %v4653 = vsel %vm488, %v4648, %v4652
        %v4654 = vshrl.u32 %v4467, 16
        %v4656 = vrot.slane %v4654, 4
        %v4657 = vor.u32 %v4656, %v4652
        %v4658 = vrot.slane %v4657, 4
        %v4660 = vshll.u32 %v4468, 16
        %v4662 = vrot.slane %v4660, 5
        %v4663 = vsel %vm488, %v4658, %v4662
        %v4665 = vshrl.u32 %v4469, 16
        %v4667 = vrot.slane %v4665, 4
        %v4668 = vshll.u32 %v4469, 16
        %v4670 = vrot.slane %v4668, 5
        %v4671 = vor.u32 %v4667, %v4670
        %v4672 = vrot.slane %v4671, 4
        %v4674 = vshll.u32 %v4470, 16
        %v4676 = vrot.slane %v4674, 5
        %v4677 = vsel %vm488, %v4672, %v4676
        %v4678 = vshrl.u32 %v4470, 16
        %v4680 = vrot.slane %v4678, 4
        %v4681 = vor.u32 %v4680, %v4676
        %v4682 = vrot.slane %v4681, 4
        %v4684 = vshll.u32 %v4471, 16
        %v4686 = vrot.slane %v4684, 5
        %v4687 = vsel %vm488, %v4682, %v4686
        %v4689 = vshrl.u32 %v4472, 16
        %v4691 = vrot.slane %v4689, 4
        %v4692 = vshll.u32 %v4472, 16
        %v4694 = vrot.slane %v4692, 5
        %v4695 = vor.u32 %v4691, %v4694
        %v4696 = vrot.slane %v4695, 4
        %v4698 = vshll.u32 %v4473, 16
        %v4700 = vrot.slane %v4698, 5
        %v4701 = vsel %vm488, %v4696, %v4700
        %v4702 = vshrl.u32 %v4473, 16
        %v4704 = vrot.slane %v4702, 4
        %v4705 = vor.u32 %v4704, %v4700
        %v4706 = vrot.slane %v4705, 4
        %v4708 = vshll.u32 %v4474, 16
        %v4710 = vrot.slane %v4708, 5
        %v4711 = vsel %vm488, %v4706, %v4710
        %v4713 = vshrl.u32 %v4475, 16
        %v4715 = vrot.slane %v4713, 4
        %v4716 = vshll.u32 %v4475, 16
        %v4718 = vrot.slane %v4716, 5
        %v4719 = vor.u32 %v4715, %v4718
        %v4720 = vrot.slane %v4719, 4
        %v4722 = vshll.u32 %v4476, 16
        %v4724 = vrot.slane %v4722, 5
        %v4725 = vsel %vm488, %v4720, %v4724
        %v4726 = vshrl.u32 %v4476, 16
        %v4728 = vrot.slane %v4726, 4
        %v4729 = vor.u32 %v4728, %v4724
        %v4730 = vrot.slane %v4729, 4
        %v4732 = vshll.u32 %v4477, 16
        %v4734 = vrot.slane %v4732, 5
        %v4735 = vsel %vm488, %v4730, %v4734
        %v4737 = vshrl.u32 %v4478, 16
        %v4739 = vrot.slane %v4737, 4
        %v4740 = vshll.u32 %v4478, 16
        %v4742 = vrot.slane %v4740, 5
        %v4743 = vor.u32 %v4739, %v4742
        %v4744 = vrot.slane %v4743, 4
        %v4746 = vshll.u32 %v4479, 16
        %v4748 = vrot.slane %v4746, 5
        %v4749 = vsel %vm488, %v4744, %v4748
        %v4750 = vshrl.u32 %v4479, 16
        %v4752 = vrot.slane %v4750, 4
        %v4753 = vor.u32 %v4752, %v4748
        %v4754 = vrot.slane %v4753, 4
        %v4756 = vshll.u32 %v4480, 16
        %v4758 = vrot.slane %v4756, 5
        %v4759 = vsel %vm488, %v4754, %v4758
        %v4761 = vshrl.u32 %v4481, 16
        %v4763 = vrot.slane %v4761, 4
        %v4764 = vshll.u32 %v4481, 16
        %v4766 = vrot.slane %v4764, 5
        %v4767 = vor.u32 %v4763, %v4766
        %v4768 = vrot.slane %v4767, 4
        %v4770 = vshll.u32 %v4482, 16
        %v4772 = vrot.slane %v4770, 5
        %v4773 = vsel %vm488, %v4768, %v4772
        %v4774 = vshrl.u32 %v4482, 16
        %v4776 = vrot.slane %v4774, 4
        %v4777 = vor.u32 %v4776, %v4772
        %v4778 = vrot.slane %v4777, 4
        %v4780 = vshll.u32 %v4483, 16
        %v4782 = vrot.slane %v4780, 5
        %v4783 = vsel %vm488, %v4778, %v4782
        %v4785 = vshrl.u32 %v4484, 16
        %v4787 = vrot.slane %v4785, 4
        %v4788 = vshll.u32 %v4484, 16
        %v4790 = vrot.slane %v4788, 5
        %v4791 = vor.u32 %v4787, %v4790
        %v4792 = vrot.slane %v4791, 4
        %v4794 = vshll.u32 %v4485, 16
        %v4796 = vrot.slane %v4794, 5
        %v4797 = vsel %vm488, %v4792, %v4796
        %v4798 = vshrl.u32 %v4485, 16
        %v4800 = vrot.slane %v4798, 4
        %v4801 = vor.u32 %v4800, %v4796
        %v4802 = vrot.slane %v4801, 4
        %v4804 = vshll.u32 %v4486, 16
        %v4806 = vrot.slane %v4804, 5
        %v4807 = vsel %vm488, %v4802, %v4806
        %v4809 = vshrl.u32 %v4487, 16
        %v4811 = vrot.slane %v4809, 4
        %v4812 = vshll.u32 %v4487, 16
        %v4814 = vrot.slane %v4812, 5
        %v4815 = vor.u32 %v4811, %v4814
        %v4816 = vrot.slane %v4815, 4
        %v4818 = vshll.u32 %v4488, 16
        %v4820 = vrot.slane %v4818, 5
        %v4821 = vsel %vm488, %v4816, %v4820
        %v4822 = vshrl.u32 %v4488, 16
        %v4824 = vrot.slane %v4822, 4
        %v4825 = vor.u32 %v4824, %v4820
        %v4826 = vrot.slane %v4825, 4
        %v4828 = vshll.u32 %v4489, 16
        %v4830 = vrot.slane %v4828, 5
        %v4831 = vsel %vm488, %v4826, %v4830
        %v4833 = vshrl.u32 %v4490, 16
        %v4835 = vrot.slane %v4833, 4
        %v4836 = vshll.u32 %v4490, 16
        %v4838 = vrot.slane %v4836, 5
        %v4839 = vor.u32 %v4835, %v4838
        %v4840 = vrot.slane %v4839, 4
        %v4842 = vshll.u32 %v4491, 16
        %v4844 = vrot.slane %v4842, 5
        %v4845 = vsel %vm488, %v4840, %v4844
        %v4846 = vshrl.u32 %v4491, 16
        %v4848 = vrot.slane %v4846, 4
        %v4849 = vor.u32 %v4848, %v4844
        %v4850 = vrot.slane %v4849, 4
        %v4852 = vshll.u32 %v4492, 16
        %v4854 = vrot.slane %v4852, 5
        %v4855 = vsel %vm488, %v4850, %v4854
        %v4857 = vshrl.u32 %v4493, 16
        %v4859 = vrot.slane %v4857, 4
        %v4860 = vshll.u32 %v4493, 16
        %v4862 = vrot.slane %v4860, 5
        %v4863 = vor.u32 %v4859, %v4862
        %v4864 = vrot.slane %v4863, 4
        %v4866 = vshll.u32 %v4494, 16
        %v4868 = vrot.slane %v4866, 5
        %v4869 = vsel %vm488, %v4864, %v4868
        %v4870 = vshrl.u32 %v4494, 16
        %v4872 = vrot.slane %v4870, 4
        %v4873 = vor.u32 %v4872, %v4868
        %v4874 = vrot.slane %v4873, 4
        %v4876 = vshll.u32 %v4495, 16
        %v4878 = vrot.slane %v4876, 5
        %v4879 = vsel %vm488, %v4874, %v4878
        %v4880 = vunpack.c.l.b16 %v4509
        %v4881 = vunpack.c.l.b16 %v4519
        %v4882 = vunpack.c.l.b16 %v4533
        %v4883 = vunpack.c.l.b16 %v4543
        %v4884 = vunpack.c.l.b16 %v4557
        %v4885 = vunpack.c.l.b16 %v4567
        %v4886 = vunpack.c.l.b16 %v4581
        %v4887 = vunpack.c.l.b16 %v4591
        %v4888 = vunpack.c.l.b16 %v4605
        %v4889 = vunpack.c.l.b16 %v4615
        %v4890 = vunpack.c.l.b16 %v4629
        %v4891 = vunpack.c.l.b16 %v4639
        %v4892 = vunpack.c.l.b16 %v4653
        %v4893 = vunpack.c.l.b16 %v4663
        %v4894 = vunpack.c.l.b16 %v4677
        %v4895 = vunpack.c.l.b16 %v4687
        %v4896 = vunpack.c.l.b16 %v4701
        %v4897 = vunpack.c.l.b16 %v4711
        %v4898 = vunpack.c.l.b16 %v4725
        %v4899 = vunpack.c.l.b16 %v4735
        %v4900 = vunpack.c.l.b16 %v4749
        %v4901 = vunpack.c.l.b16 %v4759
        %v4902 = vunpack.c.l.b16 %v4773
        %v4903 = vunpack.c.l.b16 %v4783
        %v4904 = vunpack.c.l.b16 %v4797
        %v4905 = vunpack.c.l.b16 %v4807
        %v4906 = vunpack.c.l.b16 %v4821
        %v4907 = vunpack.c.l.b16 %v4831
        %v4908 = vunpack.c.l.b16 %v4845
        %v4909 = vunpack.c.l.b16 %v4855
        %v4910 = vunpack.c.l.b16 %v4869
        %v4911 = vunpack.c.l.b16 %v4879
        %v4912 = vpack.c.b16 %v4881, %v4880
        %v4913 = vpack.c.b16 %v4883, %v4882
        %v4914 = vpack.c.b16 %v4885, %v4884
        %v4915 = vpack.c.b16 %v4887, %v4886
        %v4916 = vpack.c.b16 %v4889, %v4888
        %v4917 = vpack.c.b16 %v4891, %v4890
        %v4918 = vpack.c.b16 %v4893, %v4892
        %v4919 = vpack.c.b16 %v4895, %v4894
        %v4920 = vpack.c.b16 %v4897, %v4896
        %v4921 = vpack.c.b16 %v4899, %v4898
        %v4922 = vpack.c.b16 %v4901, %v4900
        %v4923 = vpack.c.b16 %v4903, %v4902
        %v4924 = vpack.c.b16 %v4905, %v4904
        %v4925 = vpack.c.b16 %v4907, %v4906
        %v4926 = vpack.c.b16 %v4909, %v4908
        %v4927 = vpack.c.b16 %v4911, %v4910
        %4944 = vst [vmem:[#allocation4 + $0x8] sm:$0xff] %v4912
        %4945 = vst [vmem:[#allocation4 + $0x50] sm:$0xff] %v4913
        %4946 = vst [vmem:[#allocation4 + $0x98] sm:$0xff] %v4914
        %4947 = vst [vmem:[#allocation4 + $0xe0] sm:$0xff] %v4915
        %4948 = vst [vmem:[#allocation4 + $0x128] sm:$0xff] %v4916
        %4949 = vst [vmem:[#allocation4 + $0x170] sm:$0xff] %v4917
        %4950 = vst [vmem:[#allocation4 + $0x1b8] sm:$0xff] %v4918
        %4951 = vst [vmem:[#allocation4 + $0x200] sm:$0xff] %v4919
        %4952 = vst [vmem:[#allocation4 + $0x248] sm:$0xff] %v4920
        %4953 = vst [vmem:[#allocation4 + $0x290] sm:$0xff] %v4921
        %4954 = vst [vmem:[#allocation4 + $0x2d8] sm:$0xff] %v4922
        %4955 = vst [vmem:[#allocation4 + $0x320] sm:$0xff] %v4923
        %4956 = vst [vmem:[#allocation4 + $0x368] sm:$0xff] %v4924
        %4957 = vst [vmem:[#allocation4 + $0x3b0] sm:$0xff] %v4925
        %4958 = vst [vmem:[#allocation4 + $0x3f8] sm:$0xff] %v4926
        %4959 = vst [vmem:[#allocation4 + $0x440] sm:$0xff] %v4927
        %v4960 = vld [vmem:[#allocation3] sm:$0xe]
        %v4961 = vld [vmem:[#allocation3 + $0x4] sm:$0xf]
        %v4962 = vld [vmem:[#allocation3 + $0x8] sm:$0x1]
        %v4963 = vld [vmem:[#allocation3 + $0xc] sm:$0xe]
        %v4964 = vld [vmem:[#allocation3 + $0x10] sm:$0xf]
        %v4965 = vld [vmem:[#allocation3 + $0x14] sm:$0x1]
        %v4966 = vld [vmem:[#allocation3 + $0x18] sm:$0xe]
        %v4967 = vld [vmem:[#allocation3 + $0x1c] sm:$0xf]
        %v4968 = vld [vmem:[#allocation3 + $0x20] sm:$0x1]
        %v4969 = vld [vmem:[#allocation3 + $0x24] sm:$0xe]
        %v4970 = vld [vmem:[#allocation3 + $0x28] sm:$0xf]
        %v4971 = vld [vmem:[#allocation3 + $0x2c] sm:$0x1]
        %v4972 = vld [vmem:[#allocation3 + $0x30] sm:$0xe]
        %v4973 = vld [vmem:[#allocation3 + $0x34] sm:$0xf]
        %v4974 = vld [vmem:[#allocation3 + $0x38] sm:$0x1]
        %v4975 = vld [vmem:[#allocation3 + $0x3c] sm:$0xe]
        %v4976 = vld [vmem:[#allocation3 + $0x40] sm:$0xf]
        %v4977 = vld [vmem:[#allocation3 + $0x44] sm:$0x1]
        %v4978 = vld [vmem:[#allocation3 + $0x48] sm:$0xe]
        %v4979 = vld [vmem:[#allocation3 + $0x4c] sm:$0xf]
        %v4980 = vld [vmem:[#allocation3 + $0x50] sm:$0x1]
        %v4981 = vld [vmem:[#allocation3 + $0x54] sm:$0xe]
        %v4982 = vld [vmem:[#allocation3 + $0x58] sm:$0xf]
        %v4983 = vld [vmem:[#allocation3 + $0x5c] sm:$0x1]
        %v4984 = vld [vmem:[#allocation3 + $0x60] sm:$0xe]
        %v4985 = vld [vmem:[#allocation3 + $0x64] sm:$0xf]
        %v4986 = vld [vmem:[#allocation3 + $0x68] sm:$0x1]
        %v4987 = vld [vmem:[#allocation3 + $0x6c] sm:$0xe]
        %v4988 = vld [vmem:[#allocation3 + $0x70] sm:$0xf]
        %v4989 = vld [vmem:[#allocation3 + $0x74] sm:$0x1]
        %v4990 = vld [vmem:[#allocation3 + $0x78] sm:$0xe]
        %v4991 = vld [vmem:[#allocation3 + $0x7c] sm:$0xf]
        %v4992 = vld [vmem:[#allocation3 + $0x80] sm:$0x1]
        %v4993 = vld [vmem:[#allocation3 + $0x84] sm:$0xe]
        %v4994 = vld [vmem:[#allocation3 + $0x88] sm:$0xf]
        %v4995 = vld [vmem:[#allocation3 + $0x8c] sm:$0x1]
        %v4996 = vld [vmem:[#allocation3 + $0x90] sm:$0xe]
        %v4997 = vld [vmem:[#allocation3 + $0x94] sm:$0xf]
        %v4998 = vld [vmem:[#allocation3 + $0x98] sm:$0x1]
        %v4999 = vld [vmem:[#allocation3 + $0x9c] sm:$0xe]
        %v5000 = vld [vmem:[#allocation3 + $0xa0] sm:$0xf]
        %v5001 = vld [vmem:[#allocation3 + $0xa4] sm:$0x1]
        %v5002 = vld [vmem:[#allocation3 + $0xa8] sm:$0xe]
        %v5003 = vld [vmem:[#allocation3 + $0xac] sm:$0xf]
        %v5004 = vld [vmem:[#allocation3 + $0xb0] sm:$0x1]
        %v5005 = vld [vmem:[#allocation3 + $0xb4] sm:$0xe]
        %v5006 = vld [vmem:[#allocation3 + $0xb8] sm:$0xf]
        %v5007 = vld [vmem:[#allocation3 + $0xbc] sm:$0x1]
        %v5056 = vrot.slane %v4960, 5
        %v5057 = vrot.slane %v5056, 4
        %v5058 = vrot.slane %v4961, 5
        %v5059 = vsel %vm1084, %v5057, %v5058
        %v5060 = vrot.slane %v5058, 4
        %v5061 = vrot.slane %v4962, 5
        %v5062 = vsel %vm1084, %v5060, %v5061
        %v5063 = vrot.slane %v4963, 5
        %v5064 = vrot.slane %v5063, 4
        %v5065 = vrot.slane %v4964, 5
        %v5066 = vsel %vm1084, %v5064, %v5065
        %v5067 = vrot.slane %v5065, 4
        %v5068 = vrot.slane %v4965, 5
        %v5069 = vsel %vm1084, %v5067, %v5068
        %v5070 = vrot.slane %v4966, 5
        %v5071 = vrot.slane %v5070, 4
        %v5072 = vrot.slane %v4967, 5
        %v5073 = vsel %vm1084, %v5071, %v5072
        %v5074 = vrot.slane %v5072, 4
        %v5075 = vrot.slane %v4968, 5
        %v5076 = vsel %vm1084, %v5074, %v5075
        %v5077 = vrot.slane %v4969, 5
        %v5078 = vrot.slane %v5077, 4
        %v5079 = vrot.slane %v4970, 5
        %v5080 = vsel %vm1084, %v5078, %v5079
        %v5081 = vrot.slane %v5079, 4
        %v5082 = vrot.slane %v4971, 5
        %v5083 = vsel %vm1084, %v5081, %v5082
        %v5084 = vrot.slane %v4972, 5
        %v5085 = vrot.slane %v5084, 4
        %v5086 = vrot.slane %v4973, 5
        %v5087 = vsel %vm1084, %v5085, %v5086
        %v5088 = vrot.slane %v5086, 4
        %v5089 = vrot.slane %v4974, 5
        %v5090 = vsel %vm1084, %v5088, %v5089
        %v5091 = vrot.slane %v4975, 5
        %v5092 = vrot.slane %v5091, 4
        %v5093 = vrot.slane %v4976, 5
        %v5094 = vsel %vm1084, %v5092, %v5093
        %v5095 = vrot.slane %v5093, 4
        %v5096 = vrot.slane %v4977, 5
        %v5097 = vsel %vm1084, %v5095, %v5096
        %v5098 = vrot.slane %v4978, 5
        %v5099 = vrot.slane %v5098, 4
        %v5100 = vrot.slane %v4979, 5
        %v5101 = vsel %vm1084, %v5099, %v5100
        %v5102 = vrot.slane %v5100, 4
        %v5103 = vrot.slane %v4980, 5
        %v5104 = vsel %vm1084, %v5102, %v5103
        %v5105 = vrot.slane %v4981, 5
        %v5106 = vrot.slane %v5105, 4
        %v5107 = vrot.slane %v4982, 5
        %v5108 = vsel %vm1084, %v5106, %v5107
        %v5109 = vrot.slane %v5107, 4
        %v5110 = vrot.slane %v4983, 5
        %v5111 = vsel %vm1084, %v5109, %v5110
        %v5112 = vrot.slane %v4984, 5
        %v5113 = vrot.slane %v5112, 4
        %v5114 = vrot.slane %v4985, 5
        %v5115 = vsel %vm1084, %v5113, %v5114
        %v5116 = vrot.slane %v5114, 4
        %v5117 = vrot.slane %v4986, 5
        %v5118 = vsel %vm1084, %v5116, %v5117
        %v5119 = vrot.slane %v4987, 5
        %v5120 = vrot.slane %v5119, 4
        %v5121 = vrot.slane %v4988, 5
        %v5122 = vsel %vm1084, %v5120, %v5121
        %v5123 = vrot.slane %v5121, 4
        %v5124 = vrot.slane %v4989, 5
        %v5125 = vsel %vm1084, %v5123, %v5124
        %v5126 = vrot.slane %v4990, 5
        %v5127 = vrot.slane %v5126, 4
        %v5128 = vrot.slane %v4991, 5
        %v5129 = vsel %vm1084, %v5127, %v5128
        %v5130 = vrot.slane %v5128, 4
        %v5131 = vrot.slane %v4992, 5
        %v5132 = vsel %vm1084, %v5130, %v5131
        %v5133 = vrot.slane %v4993, 5
        %v5134 = vrot.slane %v5133, 4
        %v5135 = vrot.slane %v4994, 5
        %v5136 = vsel %vm1084, %v5134, %v5135
        %v5137 = vrot.slane %v5135, 4
        %v5138 = vrot.slane %v4995, 5
        %v5139 = vsel %vm1084, %v5137, %v5138
        %v5140 = vrot.slane %v4996, 5
        %v5141 = vrot.slane %v5140, 4
        %v5142 = vrot.slane %v4997, 5
        %v5143 = vsel %vm1084, %v5141, %v5142
        %v5144 = vrot.slane %v5142, 4
        %v5145 = vrot.slane %v4998, 5
        %v5146 = vsel %vm1084, %v5144, %v5145
        %v5147 = vrot.slane %v4999, 5
        %v5148 = vrot.slane %v5147, 4
        %v5149 = vrot.slane %v5000, 5
        %v5150 = vsel %vm1084, %v5148, %v5149
        %v5151 = vrot.slane %v5149, 4
        %v5152 = vrot.slane %v5001, 5
        %v5153 = vsel %vm1084, %v5151, %v5152
        %v5154 = vrot.slane %v5002, 5
        %v5155 = vrot.slane %v5154, 4
        %v5156 = vrot.slane %v5003, 5
        %v5157 = vsel %vm1084, %v5155, %v5156
        %v5158 = vrot.slane %v5156, 4
        %v5159 = vrot.slane %v5004, 5
        %v5160 = vsel %vm1084, %v5158, %v5159
        %v5161 = vrot.slane %v5005, 5
        %v5162 = vrot.slane %v5161, 4
        %v5163 = vrot.slane %v5006, 5
        %v5164 = vsel %vm1084, %v5162, %v5163
        %v5165 = vrot.slane %v5163, 4
        %v5166 = vrot.slane %v5007, 5
        %v5167 = vsel %vm1084, %v5165, %v5166
        %v5168 = vunpack.c.l.b16 %v5059
        %v5169 = vunpack.c.l.b16 %v5062
        %v5170 = vunpack.c.l.b16 %v5066
        %v5171 = vunpack.c.l.b16 %v5069
        %v5172 = vunpack.c.l.b16 %v5073
        %v5173 = vunpack.c.l.b16 %v5076
        %v5174 = vunpack.c.l.b16 %v5080
        %v5175 = vunpack.c.l.b16 %v5083
        %v5176 = vunpack.c.l.b16 %v5087
        %v5177 = vunpack.c.l.b16 %v5090
        %v5178 = vunpack.c.l.b16 %v5094
        %v5179 = vunpack.c.l.b16 %v5097
        %v5180 = vunpack.c.l.b16 %v5101
        %v5181 = vunpack.c.l.b16 %v5104
        %v5182 = vunpack.c.l.b16 %v5108
        %v5183 = vunpack.c.l.b16 %v5111
        %v5184 = vunpack.c.l.b16 %v5115
        %v5185 = vunpack.c.l.b16 %v5118
        %v5186 = vunpack.c.l.b16 %v5122
        %v5187 = vunpack.c.l.b16 %v5125
        %v5188 = vunpack.c.l.b16 %v5129
        %v5189 = vunpack.c.l.b16 %v5132
        %v5190 = vunpack.c.l.b16 %v5136
        %v5191 = vunpack.c.l.b16 %v5139
        %v5192 = vunpack.c.l.b16 %v5143
        %v5193 = vunpack.c.l.b16 %v5146
        %v5194 = vunpack.c.l.b16 %v5150
        %v5195 = vunpack.c.l.b16 %v5153
        %v5196 = vunpack.c.l.b16 %v5157
        %v5197 = vunpack.c.l.b16 %v5160
        %v5198 = vunpack.c.l.b16 %v5164
        %v5199 = vunpack.c.l.b16 %v5167
        %v5200 = vpack.c.b16 %v5169, %v5168
        %v5201 = vpack.c.b16 %v5171, %v5170
        %v5202 = vpack.c.b16 %v5173, %v5172
        %v5203 = vpack.c.b16 %v5175, %v5174
        %v5204 = vpack.c.b16 %v5177, %v5176
        %v5205 = vpack.c.b16 %v5179, %v5178
        %v5206 = vpack.c.b16 %v5181, %v5180
        %v5207 = vpack.c.b16 %v5183, %v5182
        %v5208 = vpack.c.b16 %v5185, %v5184
        %v5209 = vpack.c.b16 %v5187, %v5186
        %v5210 = vpack.c.b16 %v5189, %v5188
        %v5211 = vpack.c.b16 %v5191, %v5190
        %v5212 = vpack.c.b16 %v5193, %v5192
        %v5213 = vpack.c.b16 %v5195, %v5194
        %v5214 = vpack.c.b16 %v5197, %v5196
        %v5215 = vpack.c.b16 %v5199, %v5198
        %5232 = vst [vmem:[#allocation4 + $0x10] sm:$0xff] %v5200
        %5233 = vst [vmem:[#allocation4 + $0x58] sm:$0xff] %v5201
        %5234 = vst [vmem:[#allocation4 + $0xa0] sm:$0xff] %v5202
        %5235 = vst [vmem:[#allocation4 + $0xe8] sm:$0xff] %v5203
        %5236 = vst [vmem:[#allocation4 + $0x130] sm:$0xff] %v5204
        %5237 = vst [vmem:[#allocation4 + $0x178] sm:$0xff] %v5205
        %5238 = vst [vmem:[#allocation4 + $0x1c0] sm:$0xff] %v5206
        %5239 = vst [vmem:[#allocation4 + $0x208] sm:$0xff] %v5207
        %5240 = vst [vmem:[#allocation4 + $0x250] sm:$0xff] %v5208
        %5241 = vst [vmem:[#allocation4 + $0x298] sm:$0xff] %v5209
        %5242 = vst [vmem:[#allocation4 + $0x2e0] sm:$0xff] %v5210
        %5243 = vst [vmem:[#allocation4 + $0x328] sm:$0xff] %v5211
        %5244 = vst [vmem:[#allocation4 + $0x370] sm:$0xff] %v5212
        %5245 = vst [vmem:[#allocation4 + $0x3b8] sm:$0xff] %v5213
        %5246 = vst [vmem:[#allocation4 + $0x400] sm:$0xff] %v5214
        %5247 = vst [vmem:[#allocation4 + $0x448] sm:$0xff] %v5215
        %v5248 = vld [vmem:[%s4255] sm:$0xf]
        %v5249 = vld [vmem:[%s4255 + $0x4] sm:$0xf]
        %v5250 = vld [vmem:[%s4255 + $0xc] sm:$0xf]
        %v5251 = vld [vmem:[%s4255 + $0x10] sm:$0xf]
        %v5252 = vld [vmem:[%s4255 + $0x18] sm:$0xf]
        %v5253 = vld [vmem:[%s4255 + $0x1c] sm:$0xf]
        %v5254 = vld [vmem:[%s4255 + $0x24] sm:$0xf]
        %v5255 = vld [vmem:[%s4255 + $0x28] sm:$0xf]
        %v5256 = vld [vmem:[%s4255 + $0x30] sm:$0xf]
        %v5257 = vld [vmem:[%s4255 + $0x34] sm:$0xf]
        %v5258 = vld [vmem:[%s4255 + $0x3c] sm:$0xf]
        %v5259 = vld [vmem:[%s4255 + $0x40] sm:$0xf]
        %v5260 = vld [vmem:[%s4255 + $0x48] sm:$0xf]
        %v5261 = vld [vmem:[%s4255 + $0x4c] sm:$0xf]
        %v5262 = vld [vmem:[%s4255 + $0x54] sm:$0xf]
        %v5263 = vld [vmem:[%s4255 + $0x58] sm:$0xf]
        %v5264 = vld [vmem:[%s4255 + $0x60] sm:$0xf]
        %v5265 = vld [vmem:[%s4255 + $0x64] sm:$0xf]
        %v5266 = vld [vmem:[%s4255 + $0x6c] sm:$0xf]
        %v5267 = vld [vmem:[%s4255 + $0x70] sm:$0xf]
        %v5268 = vld [vmem:[%s4255 + $0x78] sm:$0xf]
        %v5269 = vld [vmem:[%s4255 + $0x7c] sm:$0xf]
        %v5270 = vld [vmem:[%s4255 + $0x84] sm:$0xf]
        %v5271 = vld [vmem:[%s4255 + $0x88] sm:$0xf]
        %v5272 = vld [vmem:[%s4255 + $0x90] sm:$0xf]
        %v5273 = vld [vmem:[%s4255 + $0x94] sm:$0xf]
        %v5274 = vld [vmem:[%s4255 + $0x9c] sm:$0xf]
        %v5275 = vld [vmem:[%s4255 + $0xa0] sm:$0xf]
        %v5276 = vld [vmem:[%s4255 + $0xa8] sm:$0xf]
        %v5277 = vld [vmem:[%s4255 + $0xac] sm:$0xf]
        %v5278 = vld [vmem:[%s4255 + $0xb4] sm:$0xf]
        %v5279 = vld [vmem:[%s4255 + $0xb8] sm:$0xf]
        %v5312 = vunpack.c.l.b16 %v5248
        %v5313 = vunpack.c.l.b16 %v5249
        %v5314 = vunpack.c.l.b16 %v5250
        %v5315 = vunpack.c.l.b16 %v5251
        %v5316 = vunpack.c.l.b16 %v5252
        %v5317 = vunpack.c.l.b16 %v5253
        %v5318 = vunpack.c.l.b16 %v5254
        %v5319 = vunpack.c.l.b16 %v5255
        %v5320 = vunpack.c.l.b16 %v5256
        %v5321 = vunpack.c.l.b16 %v5257
        %v5322 = vunpack.c.l.b16 %v5258
        %v5323 = vunpack.c.l.b16 %v5259
        %v5324 = vunpack.c.l.b16 %v5260
        %v5325 = vunpack.c.l.b16 %v5261
        %v5326 = vunpack.c.l.b16 %v5262
        %v5327 = vunpack.c.l.b16 %v5263
        %v5328 = vunpack.c.l.b16 %v5264
        %v5329 = vunpack.c.l.b16 %v5265
        %v5330 = vunpack.c.l.b16 %v5266
        %v5331 = vunpack.c.l.b16 %v5267
        %v5332 = vunpack.c.l.b16 %v5268
        %v5333 = vunpack.c.l.b16 %v5269
        %v5334 = vunpack.c.l.b16 %v5270
        %v5335 = vunpack.c.l.b16 %v5271
        %v5336 = vunpack.c.l.b16 %v5272
        %v5337 = vunpack.c.l.b16 %v5273
        %v5338 = vunpack.c.l.b16 %v5274
        %v5339 = vunpack.c.l.b16 %v5275
        %v5340 = vunpack.c.l.b16 %v5276
        %v5341 = vunpack.c.l.b16 %v5277
        %v5342 = vunpack.c.l.b16 %v5278
        %v5343 = vunpack.c.l.b16 %v5279
        %v5344 = vpack.c.b16 %v5313, %v5312
        %v5345 = vpack.c.b16 %v5315, %v5314
        %v5346 = vpack.c.b16 %v5317, %v5316
        %v5347 = vpack.c.b16 %v5319, %v5318
        %v5348 = vpack.c.b16 %v5321, %v5320
        %v5349 = vpack.c.b16 %v5323, %v5322
        %v5350 = vpack.c.b16 %v5325, %v5324
        %v5351 = vpack.c.b16 %v5327, %v5326
        %v5352 = vpack.c.b16 %v5329, %v5328
        %v5353 = vpack.c.b16 %v5331, %v5330
        %v5354 = vpack.c.b16 %v5333, %v5332
        %v5355 = vpack.c.b16 %v5335, %v5334
        %v5356 = vpack.c.b16 %v5337, %v5336
        %v5357 = vpack.c.b16 %v5339, %v5338
        %v5358 = vpack.c.b16 %v5341, %v5340
        %v5359 = vpack.c.b16 %v5343, %v5342
        %5376 = vst [vmem:[#allocation4 + $0x18] sm:$0xff] %v5344
        %5377 = vst [vmem:[#allocation4 + $0x60] sm:$0xff] %v5345
        %5378 = vst [vmem:[#allocation4 + $0xa8] sm:$0xff] %v5346
        %5379 = vst [vmem:[#allocation4 + $0xf0] sm:$0xff] %v5347
        %5380 = vst [vmem:[#allocation4 + $0x138] sm:$0xff] %v5348
        %5381 = vst [vmem:[#allocation4 + $0x180] sm:$0xff] %v5349
        %5382 = vst [vmem:[#allocation4 + $0x1c8] sm:$0xff] %v5350
        %5383 = vst [vmem:[#allocation4 + $0x210] sm:$0xff] %v5351
        %5384 = vst [vmem:[#allocation4 + $0x258] sm:$0xff] %v5352
        %5385 = vst [vmem:[#allocation4 + $0x2a0] sm:$0xff] %v5353
        %5386 = vst [vmem:[#allocation4 + $0x2e8] sm:$0xff] %v5354
        %5387 = vst [vmem:[#allocation4 + $0x330] sm:$0xff] %v5355
        %5388 = vst [vmem:[#allocation4 + $0x378] sm:$0xff] %v5356
        %5389 = vst [vmem:[#allocation4 + $0x3c0] sm:$0xff] %v5357
        %5390 = vst [vmem:[#allocation4 + $0x408] sm:$0xff] %v5358
        %5391 = vst [vmem:[#allocation4 + $0x450] sm:$0xff] %v5359
        %v5392 = vld [vmem:[%s4255] sm:$0xf]
        %v5393 = vld [vmem:[%s4255 + $0x4] sm:$0xf]
        %v5394 = vld [vmem:[%s4255 + $0x8] sm:$0x1]
        %v5395 = vld [vmem:[%s4255 + $0xc] sm:$0xf]
        %v5396 = vld [vmem:[%s4255 + $0x10] sm:$0xf]
        %v5397 = vld [vmem:[%s4255 + $0x14] sm:$0x1]
        %v5398 = vld [vmem:[%s4255 + $0x18] sm:$0xf]
        %v5399 = vld [vmem:[%s4255 + $0x1c] sm:$0xf]
        %v5400 = vld [vmem:[%s4255 + $0x20] sm:$0x1]
        %v5401 = vld [vmem:[%s4255 + $0x24] sm:$0xf]
        %v5402 = vld [vmem:[%s4255 + $0x28] sm:$0xf]
        %v5403 = vld [vmem:[%s4255 + $0x2c] sm:$0x1]
        %v5404 = vld [vmem:[%s4255 + $0x30] sm:$0xf]
        %v5405 = vld [vmem:[%s4255 + $0x34] sm:$0xf]
        %v5406 = vld [vmem:[%s4255 + $0x38] sm:$0x1]
        %v5407 = vld [vmem:[%s4255 + $0x3c] sm:$0xf]
        %v5408 = vld [vmem:[%s4255 + $0x40] sm:$0xf]
        %v5409 = vld [vmem:[%s4255 + $0x44] sm:$0x1]
        %v5410 = vld [vmem:[%s4255 + $0x48] sm:$0xf]
        %v5411 = vld [vmem:[%s4255 + $0x4c] sm:$0xf]
        %v5412 = vld [vmem:[%s4255 + $0x50] sm:$0x1]
        %v5413 = vld [vmem:[%s4255 + $0x54] sm:$0xf]
        %v5414 = vld [vmem:[%s4255 + $0x58] sm:$0xf]
        %v5415 = vld [vmem:[%s4255 + $0x5c] sm:$0x1]
        %v5416 = vld [vmem:[%s4255 + $0x60] sm:$0xf]
        %v5417 = vld [vmem:[%s4255 + $0x64] sm:$0xf]
        %v5418 = vld [vmem:[%s4255 + $0x68] sm:$0x1]
        %v5419 = vld [vmem:[%s4255 + $0x6c] sm:$0xf]
        %v5420 = vld [vmem:[%s4255 + $0x70] sm:$0xf]
        %v5421 = vld [vmem:[%s4255 + $0x74] sm:$0x1]
        %v5422 = vld [vmem:[%s4255 + $0x78] sm:$0xf]
        %v5423 = vld [vmem:[%s4255 + $0x7c] sm:$0xf]
        %v5424 = vld [vmem:[%s4255 + $0x80] sm:$0x1]
        %v5425 = vld [vmem:[%s4255 + $0x84] sm:$0xf]
        %v5426 = vld [vmem:[%s4255 + $0x88] sm:$0xf]
        %v5427 = vld [vmem:[%s4255 + $0x8c] sm:$0x1]
        %v5428 = vld [vmem:[%s4255 + $0x90] sm:$0xf]
        %v5429 = vld [vmem:[%s4255 + $0x94] sm:$0xf]
        %v5430 = vld [vmem:[%s4255 + $0x98] sm:$0x1]
        %v5431 = vld [vmem:[%s4255 + $0x9c] sm:$0xf]
        %v5432 = vld [vmem:[%s4255 + $0xa0] sm:$0xf]
        %v5433 = vld [vmem:[%s4255 + $0xa4] sm:$0x1]
        %v5434 = vld [vmem:[%s4255 + $0xa8] sm:$0xf]
        %v5435 = vld [vmem:[%s4255 + $0xac] sm:$0xf]
        %v5436 = vld [vmem:[%s4255 + $0xb0] sm:$0x1]
        %v5437 = vld [vmem:[%s4255 + $0xb4] sm:$0xf]
        %v5438 = vld [vmem:[%s4255 + $0xb8] sm:$0xf]
        %v5439 = vld [vmem:[%s4255 + $0xbc] sm:$0x1]
        %v5441 = vshrl.u32 %v5392, 16
        %v5443 = vrot.slane %v5441, 4
        %v5444 = vshll.u32 %v5392, 16
        %v5446 = vrot.slane %v5444, 5
        %v5447 = vor.u32 %v5443, %v5446
        %v5448 = vrot.slane %v5447, 4
        %v5450 = vshll.u32 %v5393, 16
        %v5452 = vrot.slane %v5450, 5
        %v5453 = vsel %vm488, %v5448, %v5452
        %v5454 = vshrl.u32 %v5393, 16
        %v5456 = vrot.slane %v5454, 4
        %v5457 = vor.u32 %v5456, %v5452
        %v5458 = vrot.slane %v5457, 4
        %v5460 = vshll.u32 %v5394, 16
        %v5462 = vrot.slane %v5460, 5
        %v5463 = vsel %vm488, %v5458, %v5462
        %v5465 = vshrl.u32 %v5395, 16
        %v5467 = vrot.slane %v5465, 4
        %v5468 = vshll.u32 %v5395, 16
        %v5470 = vrot.slane %v5468, 5
        %v5471 = vor.u32 %v5467, %v5470
        %v5472 = vrot.slane %v5471, 4
        %v5474 = vshll.u32 %v5396, 16
        %v5476 = vrot.slane %v5474, 5
        %v5477 = vsel %vm488, %v5472, %v5476
        %v5478 = vshrl.u32 %v5396, 16
        %v5480 = vrot.slane %v5478, 4
        %v5481 = vor.u32 %v5480, %v5476
        %v5482 = vrot.slane %v5481, 4
        %v5484 = vshll.u32 %v5397, 16
        %v5486 = vrot.slane %v5484, 5
        %v5487 = vsel %vm488, %v5482, %v5486
        %v5489 = vshrl.u32 %v5398, 16
        %v5491 = vrot.slane %v5489, 4
        %v5492 = vshll.u32 %v5398, 16
        %v5494 = vrot.slane %v5492, 5
        %v5495 = vor.u32 %v5491, %v5494
        %v5496 = vrot.slane %v5495, 4
        %v5498 = vshll.u32 %v5399, 16
        %v5500 = vrot.slane %v5498, 5
        %v5501 = vsel %vm488, %v5496, %v5500
        %v5502 = vshrl.u32 %v5399, 16
        %v5504 = vrot.slane %v5502, 4
        %v5505 = vor.u32 %v5504, %v5500
        %v5506 = vrot.slane %v5505, 4
        %v5508 = vshll.u32 %v5400, 16
        %v5510 = vrot.slane %v5508, 5
        %v5511 = vsel %vm488, %v5506, %v5510
        %v5513 = vshrl.u32 %v5401, 16
        %v5515 = vrot.slane %v5513, 4
        %v5516 = vshll.u32 %v5401, 16
        %v5518 = vrot.slane %v5516, 5
        %v5519 = vor.u32 %v5515, %v5518
        %v5520 = vrot.slane %v5519, 4
        %v5522 = vshll.u32 %v5402, 16
        %v5524 = vrot.slane %v5522, 5
        %v5525 = vsel %vm488, %v5520, %v5524
        %v5526 = vshrl.u32 %v5402, 16
        %v5528 = vrot.slane %v5526, 4
        %v5529 = vor.u32 %v5528, %v5524
        %v5530 = vrot.slane %v5529, 4
        %v5532 = vshll.u32 %v5403, 16
        %v5534 = vrot.slane %v5532, 5
        %v5535 = vsel %vm488, %v5530, %v5534
        %v5537 = vshrl.u32 %v5404, 16
        %v5539 = vrot.slane %v5537, 4
        %v5540 = vshll.u32 %v5404, 16
        %v5542 = vrot.slane %v5540, 5
        %v5543 = vor.u32 %v5539, %v5542
        %v5544 = vrot.slane %v5543, 4
        %v5546 = vshll.u32 %v5405, 16
        %v5548 = vrot.slane %v5546, 5
        %v5549 = vsel %vm488, %v5544, %v5548
        %v5550 = vshrl.u32 %v5405, 16
        %v5552 = vrot.slane %v5550, 4
        %v5553 = vor.u32 %v5552, %v5548
        %v5554 = vrot.slane %v5553, 4
        %v5556 = vshll.u32 %v5406, 16
        %v5558 = vrot.slane %v5556, 5
        %v5559 = vsel %vm488, %v5554, %v5558
        %v5561 = vshrl.u32 %v5407, 16
        %v5563 = vrot.slane %v5561, 4
        %v5564 = vshll.u32 %v5407, 16
        %v5566 = vrot.slane %v5564, 5
        %v5567 = vor.u32 %v5563, %v5566
        %v5568 = vrot.slane %v5567, 4
        %v5570 = vshll.u32 %v5408, 16
        %v5572 = vrot.slane %v5570, 5
        %v5573 = vsel %vm488, %v5568, %v5572
        %v5574 = vshrl.u32 %v5408, 16
        %v5576 = vrot.slane %v5574, 4
        %v5577 = vor.u32 %v5576, %v5572
        %v5578 = vrot.slane %v5577, 4
        %v5580 = vshll.u32 %v5409, 16
        %v5582 = vrot.slane %v5580, 5
        %v5583 = vsel %vm488, %v5578, %v5582
        %v5585 = vshrl.u32 %v5410, 16
        %v5587 = vrot.slane %v5585, 4
        %v5588 = vshll.u32 %v5410, 16
        %v5590 = vrot.slane %v5588, 5
        %v5591 = vor.u32 %v5587, %v5590
        %v5592 = vrot.slane %v5591, 4
        %v5594 = vshll.u32 %v5411, 16
        %v5596 = vrot.slane %v5594, 5
        %v5597 = vsel %vm488, %v5592, %v5596
        %v5598 = vshrl.u32 %v5411, 16
        %v5600 = vrot.slane %v5598, 4
        %v5601 = vor.u32 %v5600, %v5596
        %v5602 = vrot.slane %v5601, 4
        %v5604 = vshll.u32 %v5412, 16
        %v5606 = vrot.slane %v5604, 5
        %v5607 = vsel %vm488, %v5602, %v5606
        %v5609 = vshrl.u32 %v5413, 16
        %v5611 = vrot.slane %v5609, 4
        %v5612 = vshll.u32 %v5413, 16
        %v5614 = vrot.slane %v5612, 5
        %v5615 = vor.u32 %v5611, %v5614
        %v5616 = vrot.slane %v5615, 4
        %v5618 = vshll.u32 %v5414, 16
        %v5620 = vrot.slane %v5618, 5
        %v5621 = vsel %vm488, %v5616, %v5620
        %v5622 = vshrl.u32 %v5414, 16
        %v5624 = vrot.slane %v5622, 4
        %v5625 = vor.u32 %v5624, %v5620
        %v5626 = vrot.slane %v5625, 4
        %v5628 = vshll.u32 %v5415, 16
        %v5630 = vrot.slane %v5628, 5
        %v5631 = vsel %vm488, %v5626, %v5630
        %v5633 = vshrl.u32 %v5416, 16
        %v5635 = vrot.slane %v5633, 4
        %v5636 = vshll.u32 %v5416, 16
        %v5638 = vrot.slane %v5636, 5
        %v5639 = vor.u32 %v5635, %v5638
        %v5640 = vrot.slane %v5639, 4
        %v5642 = vshll.u32 %v5417, 16
        %v5644 = vrot.slane %v5642, 5
        %v5645 = vsel %vm488, %v5640, %v5644
        %v5646 = vshrl.u32 %v5417, 16
        %v5648 = vrot.slane %v5646, 4
        %v5649 = vor.u32 %v5648, %v5644
        %v5650 = vrot.slane %v5649, 4
        %v5652 = vshll.u32 %v5418, 16
        %v5654 = vrot.slane %v5652, 5
        %v5655 = vsel %vm488, %v5650, %v5654
        %v5657 = vshrl.u32 %v5419, 16
        %v5659 = vrot.slane %v5657, 4
        %v5660 = vshll.u32 %v5419, 16
        %v5662 = vrot.slane %v5660, 5
        %v5663 = vor.u32 %v5659, %v5662
        %v5664 = vrot.slane %v5663, 4
        %v5666 = vshll.u32 %v5420, 16
        %v5668 = vrot.slane %v5666, 5
        %v5669 = vsel %vm488, %v5664, %v5668
        %v5670 = vshrl.u32 %v5420, 16
        %v5672 = vrot.slane %v5670, 4
        %v5673 = vor.u32 %v5672, %v5668
        %v5674 = vrot.slane %v5673, 4
        %v5676 = vshll.u32 %v5421, 16
        %v5678 = vrot.slane %v5676, 5
        %v5679 = vsel %vm488, %v5674, %v5678
        %v5681 = vshrl.u32 %v5422, 16
        %v5683 = vrot.slane %v5681, 4
        %v5684 = vshll.u32 %v5422, 16
        %v5686 = vrot.slane %v5684, 5
        %v5687 = vor.u32 %v5683, %v5686
        %v5688 = vrot.slane %v5687, 4
        %v5690 = vshll.u32 %v5423, 16
        %v5692 = vrot.slane %v5690, 5
        %v5693 = vsel %vm488, %v5688, %v5692
        %v5694 = vshrl.u32 %v5423, 16
        %v5696 = vrot.slane %v5694, 4
        %v5697 = vor.u32 %v5696, %v5692
        %v5698 = vrot.slane %v5697, 4
        %v5700 = vshll.u32 %v5424, 16
        %v5702 = vrot.slane %v5700, 5
        %v5703 = vsel %vm488, %v5698, %v5702
        %v5705 = vshrl.u32 %v5425, 16
        %v5707 = vrot.slane %v5705, 4
        %v5708 = vshll.u32 %v5425, 16
        %v5710 = vrot.slane %v5708, 5
        %v5711 = vor.u32 %v5707, %v5710
        %v5712 = vrot.slane %v5711, 4
        %v5714 = vshll.u32 %v5426, 16
        %v5716 = vrot.slane %v5714, 5
        %v5717 = vsel %vm488, %v5712, %v5716
        %v5718 = vshrl.u32 %v5426, 16
        %v5720 = vrot.slane %v5718, 4
        %v5721 = vor.u32 %v5720, %v5716
        %v5722 = vrot.slane %v5721, 4
        %v5724 = vshll.u32 %v5427, 16
        %v5726 = vrot.slane %v5724, 5
        %v5727 = vsel %vm488, %v5722, %v5726
        %v5729 = vshrl.u32 %v5428, 16
        %v5731 = vrot.slane %v5729, 4
        %v5732 = vshll.u32 %v5428, 16
        %v5734 = vrot.slane %v5732, 5
        %v5735 = vor.u32 %v5731, %v5734
        %v5736 = vrot.slane %v5735, 4
        %v5738 = vshll.u32 %v5429, 16
        %v5740 = vrot.slane %v5738, 5
        %v5741 = vsel %vm488, %v5736, %v5740
        %v5742 = vshrl.u32 %v5429, 16
        %v5744 = vrot.slane %v5742, 4
        %v5745 = vor.u32 %v5744, %v5740
        %v5746 = vrot.slane %v5745, 4
        %v5748 = vshll.u32 %v5430, 16
        %v5750 = vrot.slane %v5748, 5
        %v5751 = vsel %vm488, %v5746, %v5750
        %v5753 = vshrl.u32 %v5431, 16
        %v5755 = vrot.slane %v5753, 4
        %v5756 = vshll.u32 %v5431, 16
        %v5758 = vrot.slane %v5756, 5
        %v5759 = vor.u32 %v5755, %v5758
        %v5760 = vrot.slane %v5759, 4
        %v5762 = vshll.u32 %v5432, 16
        %v5764 = vrot.slane %v5762, 5
        %v5765 = vsel %vm488, %v5760, %v5764
        %v5766 = vshrl.u32 %v5432, 16
        %v5768 = vrot.slane %v5766, 4
        %v5769 = vor.u32 %v5768, %v5764
        %v5770 = vrot.slane %v5769, 4
        %v5772 = vshll.u32 %v5433, 16
        %v5774 = vrot.slane %v5772, 5
        %v5775 = vsel %vm488, %v5770, %v5774
        %v5777 = vshrl.u32 %v5434, 16
        %v5779 = vrot.slane %v5777, 4
        %v5780 = vshll.u32 %v5434, 16
        %v5782 = vrot.slane %v5780, 5
        %v5783 = vor.u32 %v5779, %v5782
        %v5784 = vrot.slane %v5783, 4
        %v5786 = vshll.u32 %v5435, 16
        %v5788 = vrot.slane %v5786, 5
        %v5789 = vsel %vm488, %v5784, %v5788
        %v5790 = vshrl.u32 %v5435, 16
        %v5792 = vrot.slane %v5790, 4
        %v5793 = vor.u32 %v5792, %v5788
        %v5794 = vrot.slane %v5793, 4
        %v5796 = vshll.u32 %v5436, 16
        %v5798 = vrot.slane %v5796, 5
        %v5799 = vsel %vm488, %v5794, %v5798
        %v5801 = vshrl.u32 %v5437, 16
        %v5803 = vrot.slane %v5801, 4
        %v5804 = vshll.u32 %v5437, 16
        %v5806 = vrot.slane %v5804, 5
        %v5807 = vor.u32 %v5803, %v5806
        %v5808 = vrot.slane %v5807, 4
        %v5810 = vshll.u32 %v5438, 16
        %v5812 = vrot.slane %v5810, 5
        %v5813 = vsel %vm488, %v5808, %v5812
        %v5814 = vshrl.u32 %v5438, 16
        %v5816 = vrot.slane %v5814, 4
        %v5817 = vor.u32 %v5816, %v5812
        %v5818 = vrot.slane %v5817, 4
        %v5820 = vshll.u32 %v5439, 16
        %v5822 = vrot.slane %v5820, 5
        %v5823 = vsel %vm488, %v5818, %v5822
        %v5824 = vunpack.c.l.b16 %v5453
        %v5825 = vunpack.c.l.b16 %v5463
        %v5826 = vunpack.c.l.b16 %v5477
        %v5827 = vunpack.c.l.b16 %v5487
        %v5828 = vunpack.c.l.b16 %v5501
        %v5829 = vunpack.c.l.b16 %v5511
        %v5830 = vunpack.c.l.b16 %v5525
        %v5831 = vunpack.c.l.b16 %v5535
        %v5832 = vunpack.c.l.b16 %v5549
        %v5833 = vunpack.c.l.b16 %v5559
        %v5834 = vunpack.c.l.b16 %v5573
        %v5835 = vunpack.c.l.b16 %v5583
        %v5836 = vunpack.c.l.b16 %v5597
        %v5837 = vunpack.c.l.b16 %v5607
        %v5838 = vunpack.c.l.b16 %v5621
        %v5839 = vunpack.c.l.b16 %v5631
        %v5840 = vunpack.c.l.b16 %v5645
        %v5841 = vunpack.c.l.b16 %v5655
        %v5842 = vunpack.c.l.b16 %v5669
        %v5843 = vunpack.c.l.b16 %v5679
        %v5844 = vunpack.c.l.b16 %v5693
        %v5845 = vunpack.c.l.b16 %v5703
        %v5846 = vunpack.c.l.b16 %v5717
        %v5847 = vunpack.c.l.b16 %v5727
        %v5848 = vunpack.c.l.b16 %v5741
        %v5849 = vunpack.c.l.b16 %v5751
        %v5850 = vunpack.c.l.b16 %v5765
        %v5851 = vunpack.c.l.b16 %v5775
        %v5852 = vunpack.c.l.b16 %v5789
        %v5853 = vunpack.c.l.b16 %v5799
        %v5854 = vunpack.c.l.b16 %v5813
        %v5855 = vunpack.c.l.b16 %v5823
        %v5856 = vpack.c.b16 %v5825, %v5824
        %v5857 = vpack.c.b16 %v5827, %v5826
        %v5858 = vpack.c.b16 %v5829, %v5828
        %v5859 = vpack.c.b16 %v5831, %v5830
        %v5860 = vpack.c.b16 %v5833, %v5832
        %v5861 = vpack.c.b16 %v5835, %v5834
        %v5862 = vpack.c.b16 %v5837, %v5836
        %v5863 = vpack.c.b16 %v5839, %v5838
        %v5864 = vpack.c.b16 %v5841, %v5840
        %v5865 = vpack.c.b16 %v5843, %v5842
        %v5866 = vpack.c.b16 %v5845, %v5844
        %v5867 = vpack.c.b16 %v5847, %v5846
        %v5868 = vpack.c.b16 %v5849, %v5848
        %v5869 = vpack.c.b16 %v5851, %v5850
        %v5870 = vpack.c.b16 %v5853, %v5852
        %v5871 = vpack.c.b16 %v5855, %v5854
        %5888 = vst [vmem:[#allocation4 + $0x20] sm:$0xff] %v5856
        %5889 = vst [vmem:[#allocation4 + $0x68] sm:$0xff] %v5857
        %5890 = vst [vmem:[#allocation4 + $0xb0] sm:$0xff] %v5858
        %5891 = vst [vmem:[#allocation4 + $0xf8] sm:$0xff] %v5859
        %5892 = vst [vmem:[#allocation4 + $0x140] sm:$0xff] %v5860
        %5893 = vst [vmem:[#allocation4 + $0x188] sm:$0xff] %v5861
        %5894 = vst [vmem:[#allocation4 + $0x1d0] sm:$0xff] %v5862
        %5895 = vst [vmem:[#allocation4 + $0x218] sm:$0xff] %v5863
        %5896 = vst [vmem:[#allocation4 + $0x260] sm:$0xff] %v5864
        %5897 = vst [vmem:[#allocation4 + $0x2a8] sm:$0xff] %v5865
        %5898 = vst [vmem:[#allocation4 + $0x2f0] sm:$0xff] %v5866
        %5899 = vst [vmem:[#allocation4 + $0x338] sm:$0xff] %v5867
        %5900 = vst [vmem:[#allocation4 + $0x380] sm:$0xff] %v5868
        %5901 = vst [vmem:[#allocation4 + $0x3c8] sm:$0xff] %v5869
        %5902 = vst [vmem:[#allocation4 + $0x410] sm:$0xff] %v5870
        %5903 = vst [vmem:[#allocation4 + $0x458] sm:$0xff] %v5871
        %v5904 = vld [vmem:[%s4255] sm:$0xe]
        %v5905 = vld [vmem:[%s4255 + $0x4] sm:$0xf]
        %v5906 = vld [vmem:[%s4255 + $0x8] sm:$0x1]
        %v5907 = vld [vmem:[%s4255 + $0xc] sm:$0xe]
        %v5908 = vld [vmem:[%s4255 + $0x10] sm:$0xf]
        %v5909 = vld [vmem:[%s4255 + $0x14] sm:$0x1]
        %v5910 = vld [vmem:[%s4255 + $0x18] sm:$0xe]
        %v5911 = vld [vmem:[%s4255 + $0x1c] sm:$0xf]
        %v5912 = vld [vmem:[%s4255 + $0x20] sm:$0x1]
        %v5913 = vld [vmem:[%s4255 + $0x24] sm:$0xe]
        %v5914 = vld [vmem:[%s4255 + $0x28] sm:$0xf]
        %v5915 = vld [vmem:[%s4255 + $0x2c] sm:$0x1]
        %v5916 = vld [vmem:[%s4255 + $0x30] sm:$0xe]
        %v5917 = vld [vmem:[%s4255 + $0x34] sm:$0xf]
        %v5918 = vld [vmem:[%s4255 + $0x38] sm:$0x1]
        %v5919 = vld [vmem:[%s4255 + $0x3c] sm:$0xe]
        %v5920 = vld [vmem:[%s4255 + $0x40] sm:$0xf]
        %v5921 = vld [vmem:[%s4255 + $0x44] sm:$0x1]
        %v5922 = vld [vmem:[%s4255 + $0x48] sm:$0xe]
        %v5923 = vld [vmem:[%s4255 + $0x4c] sm:$0xf]
        %v5924 = vld [vmem:[%s4255 + $0x50] sm:$0x1]
        %v5925 = vld [vmem:[%s4255 + $0x54] sm:$0xe]
        %v5926 = vld [vmem:[%s4255 + $0x58] sm:$0xf]
        %v5927 = vld [vmem:[%s4255 + $0x5c] sm:$0x1]
        %v5928 = vld [vmem:[%s4255 + $0x60] sm:$0xe]
        %v5929 = vld [vmem:[%s4255 + $0x64] sm:$0xf]
        %v5930 = vld [vmem:[%s4255 + $0x68] sm:$0x1]
        %v5931 = vld [vmem:[%s4255 + $0x6c] sm:$0xe]
        %v5932 = vld [vmem:[%s4255 + $0x70] sm:$0xf]
        %v5933 = vld [vmem:[%s4255 + $0x74] sm:$0x1]
        %v5934 = vld [vmem:[%s4255 + $0x78] sm:$0xe]
        %v5935 = vld [vmem:[%s4255 + $0x7c] sm:$0xf]
        %v5936 = vld [vmem:[%s4255 + $0x80] sm:$0x1]
        %v5937 = vld [vmem:[%s4255 + $0x84] sm:$0xe]
        %v5938 = vld [vmem:[%s4255 + $0x88] sm:$0xf]
        %v5939 = vld [vmem:[%s4255 + $0x8c] sm:$0x1]
        %v5940 = vld [vmem:[%s4255 + $0x90] sm:$0xe]
        %v5941 = vld [vmem:[%s4255 + $0x94] sm:$0xf]
        %v5942 = vld [vmem:[%s4255 + $0x98] sm:$0x1]
        %v5943 = vld [vmem:[%s4255 + $0x9c] sm:$0xe]
        %v5944 = vld [vmem:[%s4255 + $0xa0] sm:$0xf]
        %v5945 = vld [vmem:[%s4255 + $0xa4] sm:$0x1]
        %v5946 = vld [vmem:[%s4255 + $0xa8] sm:$0xe]
        %v5947 = vld [vmem:[%s4255 + $0xac] sm:$0xf]
        %v5948 = vld [vmem:[%s4255 + $0xb0] sm:$0x1]
        %v5949 = vld [vmem:[%s4255 + $0xb4] sm:$0xe]
        %v5950 = vld [vmem:[%s4255 + $0xb8] sm:$0xf]
        %v5951 = vld [vmem:[%s4255 + $0xbc] sm:$0x1]
        %v6000 = vrot.slane %v5904, 5
        %v6001 = vrot.slane %v6000, 4
        %v6002 = vrot.slane %v5905, 5
        %v6003 = vsel %vm1084, %v6001, %v6002
        %v6004 = vrot.slane %v6002, 4
        %v6005 = vrot.slane %v5906, 5
        %v6006 = vsel %vm1084, %v6004, %v6005
        %v6007 = vrot.slane %v5907, 5
        %v6008 = vrot.slane %v6007, 4
        %v6009 = vrot.slane %v5908, 5
        %v6010 = vsel %vm1084, %v6008, %v6009
        %v6011 = vrot.slane %v6009, 4
        %v6012 = vrot.slane %v5909, 5
        %v6013 = vsel %vm1084, %v6011, %v6012
        %v6014 = vrot.slane %v5910, 5
        %v6015 = vrot.slane %v6014, 4
        %v6016 = vrot.slane %v5911, 5
        %v6017 = vsel %vm1084, %v6015, %v6016
        %v6018 = vrot.slane %v6016, 4
        %v6019 = vrot.slane %v5912, 5
        %v6020 = vsel %vm1084, %v6018, %v6019
        %v6021 = vrot.slane %v5913, 5
        %v6022 = vrot.slane %v6021, 4
        %v6023 = vrot.slane %v5914, 5
        %v6024 = vsel %vm1084, %v6022, %v6023
        %v6025 = vrot.slane %v6023, 4
        %v6026 = vrot.slane %v5915, 5
        %v6027 = vsel %vm1084, %v6025, %v6026
        %v6028 = vrot.slane %v5916, 5
        %v6029 = vrot.slane %v6028, 4
        %v6030 = vrot.slane %v5917, 5
        %v6031 = vsel %vm1084, %v6029, %v6030
        %v6032 = vrot.slane %v6030, 4
        %v6033 = vrot.slane %v5918, 5
        %v6034 = vsel %vm1084, %v6032, %v6033
        %v6035 = vrot.slane %v5919, 5
        %v6036 = vrot.slane %v6035, 4
        %v6037 = vrot.slane %v5920, 5
        %v6038 = vsel %vm1084, %v6036, %v6037
        %v6039 = vrot.slane %v6037, 4
        %v6040 = vrot.slane %v5921, 5
        %v6041 = vsel %vm1084, %v6039, %v6040
        %v6042 = vrot.slane %v5922, 5
        %v6043 = vrot.slane %v6042, 4
        %v6044 = vrot.slane %v5923, 5
        %v6045 = vsel %vm1084, %v6043, %v6044
        %v6046 = vrot.slane %v6044, 4
        %v6047 = vrot.slane %v5924, 5
        %v6048 = vsel %vm1084, %v6046, %v6047
        %v6049 = vrot.slane %v5925, 5
        %v6050 = vrot.slane %v6049, 4
        %v6051 = vrot.slane %v5926, 5
        %v6052 = vsel %vm1084, %v6050, %v6051
        %v6053 = vrot.slane %v6051, 4
        %v6054 = vrot.slane %v5927, 5
        %v6055 = vsel %vm1084, %v6053, %v6054
        %v6056 = vrot.slane %v5928, 5
        %v6057 = vrot.slane %v6056, 4
        %v6058 = vrot.slane %v5929, 5
        %v6059 = vsel %vm1084, %v6057, %v6058
        %v6060 = vrot.slane %v6058, 4
        %v6061 = vrot.slane %v5930, 5
        %v6062 = vsel %vm1084, %v6060, %v6061
        %v6063 = vrot.slane %v5931, 5
        %v6064 = vrot.slane %v6063, 4
        %v6065 = vrot.slane %v5932, 5
        %v6066 = vsel %vm1084, %v6064, %v6065
        %v6067 = vrot.slane %v6065, 4
        %v6068 = vrot.slane %v5933, 5
        %v6069 = vsel %vm1084, %v6067, %v6068
        %v6070 = vrot.slane %v5934, 5
        %v6071 = vrot.slane %v6070, 4
        %v6072 = vrot.slane %v5935, 5
        %v6073 = vsel %vm1084, %v6071, %v6072
        %v6074 = vrot.slane %v6072, 4
        %v6075 = vrot.slane %v5936, 5
        %v6076 = vsel %vm1084, %v6074, %v6075
        %v6077 = vrot.slane %v5937, 5
        %v6078 = vrot.slane %v6077, 4
        %v6079 = vrot.slane %v5938, 5
        %v6080 = vsel %vm1084, %v6078, %v6079
        %v6081 = vrot.slane %v6079, 4
        %v6082 = vrot.slane %v5939, 5
        %v6083 = vsel %vm1084, %v6081, %v6082
        %v6084 = vrot.slane %v5940, 5
        %v6085 = vrot.slane %v6084, 4
        %v6086 = vrot.slane %v5941, 5
        %v6087 = vsel %vm1084, %v6085, %v6086
        %v6088 = vrot.slane %v6086, 4
        %v6089 = vrot.slane %v5942, 5
        %v6090 = vsel %vm1084, %v6088, %v6089
        %v6091 = vrot.slane %v5943, 5
        %v6092 = vrot.slane %v6091, 4
        %v6093 = vrot.slane %v5944, 5
        %v6094 = vsel %vm1084, %v6092, %v6093
        %v6095 = vrot.slane %v6093, 4
        %v6096 = vrot.slane %v5945, 5
        %v6097 = vsel %vm1084, %v6095, %v6096
        %v6098 = vrot.slane %v5946, 5
        %v6099 = vrot.slane %v6098, 4
        %v6100 = vrot.slane %v5947, 5
        %v6101 = vsel %vm1084, %v6099, %v6100
        %v6102 = vrot.slane %v6100, 4
        %v6103 = vrot.slane %v5948, 5
        %v6104 = vsel %vm1084, %v6102, %v6103
        %v6105 = vrot.slane %v5949, 5
        %v6106 = vrot.slane %v6105, 4
        %v6107 = vrot.slane %v5950, 5
        %v6108 = vsel %vm1084, %v6106, %v6107
        %v6109 = vrot.slane %v6107, 4
        %v6110 = vrot.slane %v5951, 5
        %v6111 = vsel %vm1084, %v6109, %v6110
        %v6112 = vunpack.c.l.b16 %v6003
        %v6113 = vunpack.c.l.b16 %v6006
        %v6114 = vunpack.c.l.b16 %v6010
        %v6115 = vunpack.c.l.b16 %v6013
        %v6116 = vunpack.c.l.b16 %v6017
        %v6117 = vunpack.c.l.b16 %v6020
        %v6118 = vunpack.c.l.b16 %v6024
        %v6119 = vunpack.c.l.b16 %v6027
        %v6120 = vunpack.c.l.b16 %v6031
        %v6121 = vunpack.c.l.b16 %v6034
        %v6122 = vunpack.c.l.b16 %v6038
        %v6123 = vunpack.c.l.b16 %v6041
        %v6124 = vunpack.c.l.b16 %v6045
        %v6125 = vunpack.c.l.b16 %v6048
        %v6126 = vunpack.c.l.b16 %v6052
        %v6127 = vunpack.c.l.b16 %v6055
        %v6128 = vunpack.c.l.b16 %v6059
        %v6129 = vunpack.c.l.b16 %v6062
        %v6130 = vunpack.c.l.b16 %v6066
        %v6131 = vunpack.c.l.b16 %v6069
        %v6132 = vunpack.c.l.b16 %v6073
        %v6133 = vunpack.c.l.b16 %v6076
        %v6134 = vunpack.c.l.b16 %v6080
        %v6135 = vunpack.c.l.b16 %v6083
        %v6136 = vunpack.c.l.b16 %v6087
        %v6137 = vunpack.c.l.b16 %v6090
        %v6138 = vunpack.c.l.b16 %v6094
        %v6139 = vunpack.c.l.b16 %v6097
        %v6140 = vunpack.c.l.b16 %v6101
        %v6141 = vunpack.c.l.b16 %v6104
        %v6142 = vunpack.c.l.b16 %v6108
        %v6143 = vunpack.c.l.b16 %v6111
        %v6144 = vpack.c.b16 %v6113, %v6112
        %v6145 = vpack.c.b16 %v6115, %v6114
        %v6146 = vpack.c.b16 %v6117, %v6116
        %v6147 = vpack.c.b16 %v6119, %v6118
        %v6148 = vpack.c.b16 %v6121, %v6120
        %v6149 = vpack.c.b16 %v6123, %v6122
        %v6150 = vpack.c.b16 %v6125, %v6124
        %v6151 = vpack.c.b16 %v6127, %v6126
        %v6152 = vpack.c.b16 %v6129, %v6128
        %v6153 = vpack.c.b16 %v6131, %v6130
        %v6154 = vpack.c.b16 %v6133, %v6132
        %v6155 = vpack.c.b16 %v6135, %v6134
        %v6156 = vpack.c.b16 %v6137, %v6136
        %v6157 = vpack.c.b16 %v6139, %v6138
        %v6158 = vpack.c.b16 %v6141, %v6140
        %v6159 = vpack.c.b16 %v6143, %v6142
        %6176 = vst [vmem:[#allocation4 + $0x28] sm:$0xff] %v6144
        %6177 = vst [vmem:[#allocation4 + $0x70] sm:$0xff] %v6145
        %6178 = vst [vmem:[#allocation4 + $0xb8] sm:$0xff] %v6146
        %6179 = vst [vmem:[#allocation4 + $0x100] sm:$0xff] %v6147
        %6180 = vst [vmem:[#allocation4 + $0x148] sm:$0xff] %v6148
        %6181 = vst [vmem:[#allocation4 + $0x190] sm:$0xff] %v6149
        %6182 = vst [vmem:[#allocation4 + $0x1d8] sm:$0xff] %v6150
        %6183 = vst [vmem:[#allocation4 + $0x220] sm:$0xff] %v6151
        %6184 = vst [vmem:[#allocation4 + $0x268] sm:$0xff] %v6152
        %6185 = vst [vmem:[#allocation4 + $0x2b0] sm:$0xff] %v6153
        %6186 = vst [vmem:[#allocation4 + $0x2f8] sm:$0xff] %v6154
        %6187 = vst [vmem:[#allocation4 + $0x340] sm:$0xff] %v6155
        %6188 = vst [vmem:[#allocation4 + $0x388] sm:$0xff] %v6156
        %6189 = vst [vmem:[#allocation4 + $0x3d0] sm:$0xff] %v6157
        %6190 = vst [vmem:[#allocation4 + $0x418] sm:$0xff] %v6158
        %6191 = vst [vmem:[#allocation4 + $0x460] sm:$0xff] %v6159
        %s6192 = scalar_lea.vmem [#allocation3], 24
        %v6193 = vld [vmem:[%s6192] sm:$0xf]
        %v6194 = vld [vmem:[%s6192 + $0x4] sm:$0xf]
        %v6195 = vld [vmem:[%s6192 + $0xc] sm:$0xf]
        %v6196 = vld [vmem:[%s6192 + $0x10] sm:$0xf]
        %v6197 = vld [vmem:[%s6192 + $0x18] sm:$0xf]
        %v6198 = vld [vmem:[%s6192 + $0x1c] sm:$0xf]
        %v6199 = vld [vmem:[%s6192 + $0x24] sm:$0xf]
        %v6200 = vld [vmem:[%s6192 + $0x28] sm:$0xf]
        %v6201 = vld [vmem:[%s6192 + $0x30] sm:$0xf]
        %v6202 = vld [vmem:[%s6192 + $0x34] sm:$0xf]
        %v6203 = vld [vmem:[%s6192 + $0x3c] sm:$0xf]
        %v6204 = vld [vmem:[%s6192 + $0x40] sm:$0xf]
        %v6205 = vld [vmem:[%s6192 + $0x48] sm:$0xf]
        %v6206 = vld [vmem:[%s6192 + $0x4c] sm:$0xf]
        %v6207 = vld [vmem:[%s6192 + $0x54] sm:$0xf]
        %v6208 = vld [vmem:[%s6192 + $0x58] sm:$0xf]
        %v6209 = vld [vmem:[%s6192 + $0x60] sm:$0xf]
        %v6210 = vld [vmem:[%s6192 + $0x64] sm:$0xf]
        %v6211 = vld [vmem:[%s6192 + $0x6c] sm:$0xf]
        %v6212 = vld [vmem:[%s6192 + $0x70] sm:$0xf]
        %v6213 = vld [vmem:[%s6192 + $0x78] sm:$0xf]
        %v6214 = vld [vmem:[%s6192 + $0x7c] sm:$0xf]
        %v6215 = vld [vmem:[%s6192 + $0x84] sm:$0xf]
        %v6216 = vld [vmem:[%s6192 + $0x88] sm:$0xf]
        %v6217 = vld [vmem:[%s6192 + $0x90] sm:$0xf]
        %v6218 = vld [vmem:[%s6192 + $0x94] sm:$0xf]
        %v6219 = vld [vmem:[%s6192 + $0x9c] sm:$0xf]
        %v6220 = vld [vmem:[%s6192 + $0xa0] sm:$0xf]
        %v6221 = vld [vmem:[%s6192 + $0xa8] sm:$0xf]
        %v6222 = vld [vmem:[%s6192 + $0xac] sm:$0xf]
        %v6223 = vld [vmem:[%s6192 + $0xb4] sm:$0xf]
        %v6224 = vld [vmem:[%s6192 + $0xb8] sm:$0xf]
        %v6257 = vunpack.c.l.b16 %v6193
        %v6258 = vunpack.c.l.b16 %v6194
        %v6259 = vunpack.c.l.b16 %v6195
        %v6260 = vunpack.c.l.b16 %v6196
        %v6261 = vunpack.c.l.b16 %v6197
        %v6262 = vunpack.c.l.b16 %v6198
        %v6263 = vunpack.c.l.b16 %v6199
        %v6264 = vunpack.c.l.b16 %v6200
        %v6265 = vunpack.c.l.b16 %v6201
        %v6266 = vunpack.c.l.b16 %v6202
        %v6267 = vunpack.c.l.b16 %v6203
        %v6268 = vunpack.c.l.b16 %v6204
        %v6269 = vunpack.c.l.b16 %v6205
        %v6270 = vunpack.c.l.b16 %v6206
        %v6271 = vunpack.c.l.b16 %v6207
        %v6272 = vunpack.c.l.b16 %v6208
        %v6273 = vunpack.c.l.b16 %v6209
        %v6274 = vunpack.c.l.b16 %v6210
        %v6275 = vunpack.c.l.b16 %v6211
        %v6276 = vunpack.c.l.b16 %v6212
        %v6277 = vunpack.c.l.b16 %v6213
        %v6278 = vunpack.c.l.b16 %v6214
        %v6279 = vunpack.c.l.b16 %v6215
        %v6280 = vunpack.c.l.b16 %v6216
        %v6281 = vunpack.c.l.b16 %v6217
        %v6282 = vunpack.c.l.b16 %v6218
        %v6283 = vunpack.c.l.b16 %v6219
        %v6284 = vunpack.c.l.b16 %v6220
        %v6285 = vunpack.c.l.b16 %v6221
        %v6286 = vunpack.c.l.b16 %v6222
        %v6287 = vunpack.c.l.b16 %v6223
        %v6288 = vunpack.c.l.b16 %v6224
        %v6289 = vpack.c.b16 %v6258, %v6257
        %v6290 = vpack.c.b16 %v6260, %v6259
        %v6291 = vpack.c.b16 %v6262, %v6261
        %v6292 = vpack.c.b16 %v6264, %v6263
        %v6293 = vpack.c.b16 %v6266, %v6265
        %v6294 = vpack.c.b16 %v6268, %v6267
        %v6295 = vpack.c.b16 %v6270, %v6269
        %v6296 = vpack.c.b16 %v6272, %v6271
        %v6297 = vpack.c.b16 %v6274, %v6273
        %v6298 = vpack.c.b16 %v6276, %v6275
        %v6299 = vpack.c.b16 %v6278, %v6277
        %v6300 = vpack.c.b16 %v6280, %v6279
        %v6301 = vpack.c.b16 %v6282, %v6281
        %v6302 = vpack.c.b16 %v6284, %v6283
        %v6303 = vpack.c.b16 %v6286, %v6285
        %v6304 = vpack.c.b16 %v6288, %v6287
        %6321 = vst [vmem:[#allocation4 + $0x30] sm:$0xff] %v6289
        %6322 = vst [vmem:[#allocation4 + $0x78] sm:$0xff] %v6290
        %6323 = vst [vmem:[#allocation4 + $0xc0] sm:$0xff] %v6291
        %6324 = vst [vmem:[#allocation4 + $0x108] sm:$0xff] %v6292
        %6325 = vst [vmem:[#allocation4 + $0x150] sm:$0xff] %v6293
        %6326 = vst [vmem:[#allocation4 + $0x198] sm:$0xff] %v6294
        %6327 = vst [vmem:[#allocation4 + $0x1e0] sm:$0xff] %v6295
        %6328 = vst [vmem:[#allocation4 + $0x228] sm:$0xff] %v6296
        %6329 = vst [vmem:[#allocation4 + $0x270] sm:$0xff] %v6297
        %6330 = vst [vmem:[#allocation4 + $0x2b8] sm:$0xff] %v6298
        %6331 = vst [vmem:[#allocation4 + $0x300] sm:$0xff] %v6299
        %6332 = vst [vmem:[#allocation4 + $0x348] sm:$0xff] %v6300
        %6333 = vst [vmem:[#allocation4 + $0x390] sm:$0xff] %v6301
        %6334 = vst [vmem:[#allocation4 + $0x3d8] sm:$0xff] %v6302
        %6335 = vst [vmem:[#allocation4 + $0x420] sm:$0xff] %v6303
        %6336 = vst [vmem:[#allocation4 + $0x468] sm:$0xff] %v6304
        %v6337 = vld [vmem:[%s6192] sm:$0xf]
        %v6338 = vld [vmem:[%s6192 + $0x4] sm:$0xf]
        %v6339 = vld [vmem:[%s6192 + $0x8] sm:$0x1]
        %v6340 = vld [vmem:[%s6192 + $0xc] sm:$0xf]
        %v6341 = vld [vmem:[%s6192 + $0x10] sm:$0xf]
        %v6342 = vld [vmem:[%s6192 + $0x14] sm:$0x1]
        %v6343 = vld [vmem:[%s6192 + $0x18] sm:$0xf]
        %v6344 = vld [vmem:[%s6192 + $0x1c] sm:$0xf]
        %v6345 = vld [vmem:[%s6192 + $0x20] sm:$0x1]
        %v6346 = vld [vmem:[%s6192 + $0x24] sm:$0xf]
        %v6347 = vld [vmem:[%s6192 + $0x28] sm:$0xf]
        %v6348 = vld [vmem:[%s6192 + $0x2c] sm:$0x1]
        %v6349 = vld [vmem:[%s6192 + $0x30] sm:$0xf]
        %v6350 = vld [vmem:[%s6192 + $0x34] sm:$0xf]
        %v6351 = vld [vmem:[%s6192 + $0x38] sm:$0x1]
        %v6352 = vld [vmem:[%s6192 + $0x3c] sm:$0xf]
        %v6353 = vld [vmem:[%s6192 + $0x40] sm:$0xf]
        %v6354 = vld [vmem:[%s6192 + $0x44] sm:$0x1]
        %v6355 = vld [vmem:[%s6192 + $0x48] sm:$0xf]
        %v6356 = vld [vmem:[%s6192 + $0x4c] sm:$0xf]
        %v6357 = vld [vmem:[%s6192 + $0x50] sm:$0x1]
        %v6358 = vld [vmem:[%s6192 + $0x54] sm:$0xf]
        %v6359 = vld [vmem:[%s6192 + $0x58] sm:$0xf]
        %v6360 = vld [vmem:[%s6192 + $0x5c] sm:$0x1]
        %v6361 = vld [vmem:[%s6192 + $0x60] sm:$0xf]
        %v6362 = vld [vmem:[%s6192 + $0x64] sm:$0xf]
        %v6363 = vld [vmem:[%s6192 + $0x68] sm:$0x1]
        %v6364 = vld [vmem:[%s6192 + $0x6c] sm:$0xf]
        %v6365 = vld [vmem:[%s6192 + $0x70] sm:$0xf]
        %v6366 = vld [vmem:[%s6192 + $0x74] sm:$0x1]
        %v6367 = vld [vmem:[%s6192 + $0x78] sm:$0xf]
        %v6368 = vld [vmem:[%s6192 + $0x7c] sm:$0xf]
        %v6369 = vld [vmem:[%s6192 + $0x80] sm:$0x1]
        %v6370 = vld [vmem:[%s6192 + $0x84] sm:$0xf]
        %v6371 = vld [vmem:[%s6192 + $0x88] sm:$0xf]
        %v6372 = vld [vmem:[%s6192 + $0x8c] sm:$0x1]
        %v6373 = vld [vmem:[%s6192 + $0x90] sm:$0xf]
        %v6374 = vld [vmem:[%s6192 + $0x94] sm:$0xf]
        %v6375 = vld [vmem:[%s6192 + $0x98] sm:$0x1]
        %v6376 = vld [vmem:[%s6192 + $0x9c] sm:$0xf]
        %v6377 = vld [vmem:[%s6192 + $0xa0] sm:$0xf]
        %v6378 = vld [vmem:[%s6192 + $0xa4] sm:$0x1]
        %v6379 = vld [vmem:[%s6192 + $0xa8] sm:$0xf]
        %v6380 = vld [vmem:[%s6192 + $0xac] sm:$0xf]
        %v6381 = vld [vmem:[%s6192 + $0xb0] sm:$0x1]
        %v6382 = vld [vmem:[%s6192 + $0xb4] sm:$0xf]
        %v6383 = vld [vmem:[%s6192 + $0xb8] sm:$0xf]
        %v6384 = vld [vmem:[%s6192 + $0xbc] sm:$0x1]
        %v6386 = vshrl.u32 %v6337, 16
        %v6388 = vrot.slane %v6386, 4
        %v6389 = vshll.u32 %v6337, 16
        %v6391 = vrot.slane %v6389, 5
        %v6392 = vor.u32 %v6388, %v6391
        %v6393 = vrot.slane %v6392, 4
        %v6395 = vshll.u32 %v6338, 16
        %v6397 = vrot.slane %v6395, 5
        %v6398 = vsel %vm488, %v6393, %v6397
        %v6399 = vshrl.u32 %v6338, 16
        %v6401 = vrot.slane %v6399, 4
        %v6402 = vor.u32 %v6401, %v6397
        %v6403 = vrot.slane %v6402, 4
        %v6405 = vshll.u32 %v6339, 16
        %v6407 = vrot.slane %v6405, 5
        %v6408 = vsel %vm488, %v6403, %v6407
        %v6410 = vshrl.u32 %v6340, 16
        %v6412 = vrot.slane %v6410, 4
        %v6413 = vshll.u32 %v6340, 16
        %v6415 = vrot.slane %v6413, 5
        %v6416 = vor.u32 %v6412, %v6415
        %v6417 = vrot.slane %v6416, 4
        %v6419 = vshll.u32 %v6341, 16
        %v6421 = vrot.slane %v6419, 5
        %v6422 = vsel %vm488, %v6417, %v6421
        %v6423 = vshrl.u32 %v6341, 16
        %v6425 = vrot.slane %v6423, 4
        %v6426 = vor.u32 %v6425, %v6421
        %v6427 = vrot.slane %v6426, 4
        %v6429 = vshll.u32 %v6342, 16
        %v6431 = vrot.slane %v6429, 5
        %v6432 = vsel %vm488, %v6427, %v6431
        %v6434 = vshrl.u32 %v6343, 16
        %v6436 = vrot.slane %v6434, 4
        %v6437 = vshll.u32 %v6343, 16
        %v6439 = vrot.slane %v6437, 5
        %v6440 = vor.u32 %v6436, %v6439
        %v6441 = vrot.slane %v6440, 4
        %v6443 = vshll.u32 %v6344, 16
        %v6445 = vrot.slane %v6443, 5
        %v6446 = vsel %vm488, %v6441, %v6445
        %v6447 = vshrl.u32 %v6344, 16
        %v6449 = vrot.slane %v6447, 4
        %v6450 = vor.u32 %v6449, %v6445
        %v6451 = vrot.slane %v6450, 4
        %v6453 = vshll.u32 %v6345, 16
        %v6455 = vrot.slane %v6453, 5
        %v6456 = vsel %vm488, %v6451, %v6455
        %v6458 = vshrl.u32 %v6346, 16
        %v6460 = vrot.slane %v6458, 4
        %v6461 = vshll.u32 %v6346, 16
        %v6463 = vrot.slane %v6461, 5
        %v6464 = vor.u32 %v6460, %v6463
        %v6465 = vrot.slane %v6464, 4
        %v6467 = vshll.u32 %v6347, 16
        %v6469 = vrot.slane %v6467, 5
        %v6470 = vsel %vm488, %v6465, %v6469
        %v6471 = vshrl.u32 %v6347, 16
        %v6473 = vrot.slane %v6471, 4
        %v6474 = vor.u32 %v6473, %v6469
        %v6475 = vrot.slane %v6474, 4
        %v6477 = vshll.u32 %v6348, 16
        %v6479 = vrot.slane %v6477, 5
        %v6480 = vsel %vm488, %v6475, %v6479
        %v6482 = vshrl.u32 %v6349, 16
        %v6484 = vrot.slane %v6482, 4
        %v6485 = vshll.u32 %v6349, 16
        %v6487 = vrot.slane %v6485, 5
        %v6488 = vor.u32 %v6484, %v6487
        %v6489 = vrot.slane %v6488, 4
        %v6491 = vshll.u32 %v6350, 16
        %v6493 = vrot.slane %v6491, 5
        %v6494 = vsel %vm488, %v6489, %v6493
        %v6495 = vshrl.u32 %v6350, 16
        %v6497 = vrot.slane %v6495, 4
        %v6498 = vor.u32 %v6497, %v6493
        %v6499 = vrot.slane %v6498, 4
        %v6501 = vshll.u32 %v6351, 16
        %v6503 = vrot.slane %v6501, 5
        %v6504 = vsel %vm488, %v6499, %v6503
        %v6506 = vshrl.u32 %v6352, 16
        %v6508 = vrot.slane %v6506, 4
        %v6509 = vshll.u32 %v6352, 16
        %v6511 = vrot.slane %v6509, 5
        %v6512 = vor.u32 %v6508, %v6511
        %v6513 = vrot.slane %v6512, 4
        %v6515 = vshll.u32 %v6353, 16
        %v6517 = vrot.slane %v6515, 5
        %v6518 = vsel %vm488, %v6513, %v6517
        %v6519 = vshrl.u32 %v6353, 16
        %v6521 = vrot.slane %v6519, 4
        %v6522 = vor.u32 %v6521, %v6517
        %v6523 = vrot.slane %v6522, 4
        %v6525 = vshll.u32 %v6354, 16
        %v6527 = vrot.slane %v6525, 5
        %v6528 = vsel %vm488, %v6523, %v6527
        %v6530 = vshrl.u32 %v6355, 16
        %v6532 = vrot.slane %v6530, 4
        %v6533 = vshll.u32 %v6355, 16
        %v6535 = vrot.slane %v6533, 5
        %v6536 = vor.u32 %v6532, %v6535
        %v6537 = vrot.slane %v6536, 4
        %v6539 = vshll.u32 %v6356, 16
        %v6541 = vrot.slane %v6539, 5
        %v6542 = vsel %vm488, %v6537, %v6541
        %v6543 = vshrl.u32 %v6356, 16
        %v6545 = vrot.slane %v6543, 4
        %v6546 = vor.u32 %v6545, %v6541
        %v6547 = vrot.slane %v6546, 4
        %v6549 = vshll.u32 %v6357, 16
        %v6551 = vrot.slane %v6549, 5
        %v6552 = vsel %vm488, %v6547, %v6551
        %v6554 = vshrl.u32 %v6358, 16
        %v6556 = vrot.slane %v6554, 4
        %v6557 = vshll.u32 %v6358, 16
        %v6559 = vrot.slane %v6557, 5
        %v6560 = vor.u32 %v6556, %v6559
        %v6561 = vrot.slane %v6560, 4
        %v6563 = vshll.u32 %v6359, 16
        %v6565 = vrot.slane %v6563, 5
        %v6566 = vsel %vm488, %v6561, %v6565
        %v6567 = vshrl.u32 %v6359, 16
        %v6569 = vrot.slane %v6567, 4
        %v6570 = vor.u32 %v6569, %v6565
        %v6571 = vrot.slane %v6570, 4
        %v6573 = vshll.u32 %v6360, 16
        %v6575 = vrot.slane %v6573, 5
        %v6576 = vsel %vm488, %v6571, %v6575
        %v6578 = vshrl.u32 %v6361, 16
        %v6580 = vrot.slane %v6578, 4
        %v6581 = vshll.u32 %v6361, 16
        %v6583 = vrot.slane %v6581, 5
        %v6584 = vor.u32 %v6580, %v6583
        %v6585 = vrot.slane %v6584, 4
        %v6587 = vshll.u32 %v6362, 16
        %v6589 = vrot.slane %v6587, 5
        %v6590 = vsel %vm488, %v6585, %v6589
        %v6591 = vshrl.u32 %v6362, 16
        %v6593 = vrot.slane %v6591, 4
        %v6594 = vor.u32 %v6593, %v6589
        %v6595 = vrot.slane %v6594, 4
        %v6597 = vshll.u32 %v6363, 16
        %v6599 = vrot.slane %v6597, 5
        %v6600 = vsel %vm488, %v6595, %v6599
        %v6602 = vshrl.u32 %v6364, 16
        %v6604 = vrot.slane %v6602, 4
        %v6605 = vshll.u32 %v6364, 16
        %v6607 = vrot.slane %v6605, 5
        %v6608 = vor.u32 %v6604, %v6607
        %v6609 = vrot.slane %v6608, 4
        %v6611 = vshll.u32 %v6365, 16
        %v6613 = vrot.slane %v6611, 5
        %v6614 = vsel %vm488, %v6609, %v6613
        %v6615 = vshrl.u32 %v6365, 16
        %v6617 = vrot.slane %v6615, 4
        %v6618 = vor.u32 %v6617, %v6613
        %v6619 = vrot.slane %v6618, 4
        %v6621 = vshll.u32 %v6366, 16
        %v6623 = vrot.slane %v6621, 5
        %v6624 = vsel %vm488, %v6619, %v6623
        %v6626 = vshrl.u32 %v6367, 16
        %v6628 = vrot.slane %v6626, 4
        %v6629 = vshll.u32 %v6367, 16
        %v6631 = vrot.slane %v6629, 5
        %v6632 = vor.u32 %v6628, %v6631
        %v6633 = vrot.slane %v6632, 4
        %v6635 = vshll.u32 %v6368, 16
        %v6637 = vrot.slane %v6635, 5
        %v6638 = vsel %vm488, %v6633, %v6637
        %v6639 = vshrl.u32 %v6368, 16
        %v6641 = vrot.slane %v6639, 4
        %v6642 = vor.u32 %v6641, %v6637
        %v6643 = vrot.slane %v6642, 4
        %v6645 = vshll.u32 %v6369, 16
        %v6647 = vrot.slane %v6645, 5
        %v6648 = vsel %vm488, %v6643, %v6647
        %v6650 = vshrl.u32 %v6370, 16
        %v6652 = vrot.slane %v6650, 4
        %v6653 = vshll.u32 %v6370, 16
        %v6655 = vrot.slane %v6653, 5
        %v6656 = vor.u32 %v6652, %v6655
        %v6657 = vrot.slane %v6656, 4
        %v6659 = vshll.u32 %v6371, 16
        %v6661 = vrot.slane %v6659, 5
        %v6662 = vsel %vm488, %v6657, %v6661
        %v6663 = vshrl.u32 %v6371, 16
        %v6665 = vrot.slane %v6663, 4
        %v6666 = vor.u32 %v6665, %v6661
        %v6667 = vrot.slane %v6666, 4
        %v6669 = vshll.u32 %v6372, 16
        %v6671 = vrot.slane %v6669, 5
        %v6672 = vsel %vm488, %v6667, %v6671
        %v6674 = vshrl.u32 %v6373, 16
        %v6676 = vrot.slane %v6674, 4
        %v6677 = vshll.u32 %v6373, 16
        %v6679 = vrot.slane %v6677, 5
        %v6680 = vor.u32 %v6676, %v6679
        %v6681 = vrot.slane %v6680, 4
        %v6683 = vshll.u32 %v6374, 16
        %v6685 = vrot.slane %v6683, 5
        %v6686 = vsel %vm488, %v6681, %v6685
        %v6687 = vshrl.u32 %v6374, 16
        %v6689 = vrot.slane %v6687, 4
        %v6690 = vor.u32 %v6689, %v6685
        %v6691 = vrot.slane %v6690, 4
        %v6693 = vshll.u32 %v6375, 16
        %v6695 = vrot.slane %v6693, 5
        %v6696 = vsel %vm488, %v6691, %v6695
        %v6698 = vshrl.u32 %v6376, 16
        %v6700 = vrot.slane %v6698, 4
        %v6701 = vshll.u32 %v6376, 16
        %v6703 = vrot.slane %v6701, 5
        %v6704 = vor.u32 %v6700, %v6703
        %v6705 = vrot.slane %v6704, 4
        %v6707 = vshll.u32 %v6377, 16
        %v6709 = vrot.slane %v6707, 5
        %v6710 = vsel %vm488, %v6705, %v6709
        %v6711 = vshrl.u32 %v6377, 16
        %v6713 = vrot.slane %v6711, 4
        %v6714 = vor.u32 %v6713, %v6709
        %v6715 = vrot.slane %v6714, 4
        %v6717 = vshll.u32 %v6378, 16
        %v6719 = vrot.slane %v6717, 5
        %v6720 = vsel %vm488, %v6715, %v6719
        %v6722 = vshrl.u32 %v6379, 16
        %v6724 = vrot.slane %v6722, 4
        %v6725 = vshll.u32 %v6379, 16
        %v6727 = vrot.slane %v6725, 5
        %v6728 = vor.u32 %v6724, %v6727
        %v6729 = vrot.slane %v6728, 4
        %v6731 = vshll.u32 %v6380, 16
        %v6733 = vrot.slane %v6731, 5
        %v6734 = vsel %vm488, %v6729, %v6733
        %v6735 = vshrl.u32 %v6380, 16
        %v6737 = vrot.slane %v6735, 4
        %v6738 = vor.u32 %v6737, %v6733
        %v6739 = vrot.slane %v6738, 4
        %v6741 = vshll.u32 %v6381, 16
        %v6743 = vrot.slane %v6741, 5
        %v6744 = vsel %vm488, %v6739, %v6743
        %v6746 = vshrl.u32 %v6382, 16
        %v6748 = vrot.slane %v6746, 4
        %v6749 = vshll.u32 %v6382, 16
        %v6751 = vrot.slane %v6749, 5
        %v6752 = vor.u32 %v6748, %v6751
        %v6753 = vrot.slane %v6752, 4
        %v6755 = vshll.u32 %v6383, 16
        %v6757 = vrot.slane %v6755, 5
        %v6758 = vsel %vm488, %v6753, %v6757
        %v6759 = vshrl.u32 %v6383, 16
        %v6761 = vrot.slane %v6759, 4
        %v6762 = vor.u32 %v6761, %v6757
        %v6763 = vrot.slane %v6762, 4
        %v6765 = vshll.u32 %v6384, 16
        %v6767 = vrot.slane %v6765, 5
        %v6768 = vsel %vm488, %v6763, %v6767
        %v6769 = vunpack.c.l.b16 %v6398
        %v6770 = vunpack.c.l.b16 %v6408
        %v6771 = vunpack.c.l.b16 %v6422
        %v6772 = vunpack.c.l.b16 %v6432
        %v6773 = vunpack.c.l.b16 %v6446
        %v6774 = vunpack.c.l.b16 %v6456
        %v6775 = vunpack.c.l.b16 %v6470
        %v6776 = vunpack.c.l.b16 %v6480
        %v6777 = vunpack.c.l.b16 %v6494
        %v6778 = vunpack.c.l.b16 %v6504
        %v6779 = vunpack.c.l.b16 %v6518
        %v6780 = vunpack.c.l.b16 %v6528
        %v6781 = vunpack.c.l.b16 %v6542
        %v6782 = vunpack.c.l.b16 %v6552
        %v6783 = vunpack.c.l.b16 %v6566
        %v6784 = vunpack.c.l.b16 %v6576
        %v6785 = vunpack.c.l.b16 %v6590
        %v6786 = vunpack.c.l.b16 %v6600
        %v6787 = vunpack.c.l.b16 %v6614
        %v6788 = vunpack.c.l.b16 %v6624
        %v6789 = vunpack.c.l.b16 %v6638
        %v6790 = vunpack.c.l.b16 %v6648
        %v6791 = vunpack.c.l.b16 %v6662
        %v6792 = vunpack.c.l.b16 %v6672
        %v6793 = vunpack.c.l.b16 %v6686
        %v6794 = vunpack.c.l.b16 %v6696
        %v6795 = vunpack.c.l.b16 %v6710
        %v6796 = vunpack.c.l.b16 %v6720
        %v6797 = vunpack.c.l.b16 %v6734
        %v6798 = vunpack.c.l.b16 %v6744
        %v6799 = vunpack.c.l.b16 %v6758
        %v6800 = vunpack.c.l.b16 %v6768
        %v6801 = vpack.c.b16 %v6770, %v6769
        %v6802 = vpack.c.b16 %v6772, %v6771
        %v6803 = vpack.c.b16 %v6774, %v6773
        %v6804 = vpack.c.b16 %v6776, %v6775
        %v6805 = vpack.c.b16 %v6778, %v6777
        %v6806 = vpack.c.b16 %v6780, %v6779
        %v6807 = vpack.c.b16 %v6782, %v6781
        %v6808 = vpack.c.b16 %v6784, %v6783
        %v6809 = vpack.c.b16 %v6786, %v6785
        %v6810 = vpack.c.b16 %v6788, %v6787
        %v6811 = vpack.c.b16 %v6790, %v6789
        %v6812 = vpack.c.b16 %v6792, %v6791
        %v6813 = vpack.c.b16 %v6794, %v6793
        %v6814 = vpack.c.b16 %v6796, %v6795
        %v6815 = vpack.c.b16 %v6798, %v6797
        %v6816 = vpack.c.b16 %v6800, %v6799
        %6833 = vst [vmem:[#allocation4 + $0x38] sm:$0xff] %v6801
        %6834 = vst [vmem:[#allocation4 + $0x80] sm:$0xff] %v6802
        %6835 = vst [vmem:[#allocation4 + $0xc8] sm:$0xff] %v6803
        %6836 = vst [vmem:[#allocation4 + $0x110] sm:$0xff] %v6804
        %6837 = vst [vmem:[#allocation4 + $0x158] sm:$0xff] %v6805
        %6838 = vst [vmem:[#allocation4 + $0x1a0] sm:$0xff] %v6806
        %6839 = vst [vmem:[#allocation4 + $0x1e8] sm:$0xff] %v6807
        %6840 = vst [vmem:[#allocation4 + $0x230] sm:$0xff] %v6808
        %6841 = vst [vmem:[#allocation4 + $0x278] sm:$0xff] %v6809
        %6842 = vst [vmem:[#allocation4 + $0x2c0] sm:$0xff] %v6810
        %6843 = vst [vmem:[#allocation4 + $0x308] sm:$0xff] %v6811
        %6844 = vst [vmem:[#allocation4 + $0x350] sm:$0xff] %v6812
        %6845 = vst [vmem:[#allocation4 + $0x398] sm:$0xff] %v6813
        %6846 = vst [vmem:[#allocation4 + $0x3e0] sm:$0xff] %v6814
        %6847 = vst [vmem:[#allocation4 + $0x428] sm:$0xff] %v6815
        %6848 = vst [vmem:[#allocation4 + $0x470] sm:$0xff] %v6816
        %v6849 = vld [vmem:[%s6192] sm:$0xe]
        %v6850 = vld [vmem:[%s6192 + $0x4] sm:$0xf]
        %v6851 = vld [vmem:[%s6192 + $0x8] sm:$0x1]
        %v6852 = vld [vmem:[%s6192 + $0xc] sm:$0xe]
        %v6853 = vld [vmem:[%s6192 + $0x10] sm:$0xf]
        %v6854 = vld [vmem:[%s6192 + $0x14] sm:$0x1]
        %v6855 = vld [vmem:[%s6192 + $0x18] sm:$0xe]
        %v6856 = vld [vmem:[%s6192 + $0x1c] sm:$0xf]
        %v6857 = vld [vmem:[%s6192 + $0x20] sm:$0x1]
        %v6858 = vld [vmem:[%s6192 + $0x24] sm:$0xe]
        %v6859 = vld [vmem:[%s6192 + $0x28] sm:$0xf]
        %v6860 = vld [vmem:[%s6192 + $0x2c] sm:$0x1]
        %v6861 = vld [vmem:[%s6192 + $0x30] sm:$0xe]
        %v6862 = vld [vmem:[%s6192 + $0x34] sm:$0xf]
        %v6863 = vld [vmem:[%s6192 + $0x38] sm:$0x1]
        %v6864 = vld [vmem:[%s6192 + $0x3c] sm:$0xe]
        %v6865 = vld [vmem:[%s6192 + $0x40] sm:$0xf]
        %v6866 = vld [vmem:[%s6192 + $0x44] sm:$0x1]
        %v6867 = vld [vmem:[%s6192 + $0x48] sm:$0xe]
        %v6868 = vld [vmem:[%s6192 + $0x4c] sm:$0xf]
        %v6869 = vld [vmem:[%s6192 + $0x50] sm:$0x1]
        %v6870 = vld [vmem:[%s6192 + $0x54] sm:$0xe]
        %v6871 = vld [vmem:[%s6192 + $0x58] sm:$0xf]
        %v6872 = vld [vmem:[%s6192 + $0x5c] sm:$0x1]
        %v6873 = vld [vmem:[%s6192 + $0x60] sm:$0xe]
        %v6874 = vld [vmem:[%s6192 + $0x64] sm:$0xf]
        %v6875 = vld [vmem:[%s6192 + $0x68] sm:$0x1]
        %v6876 = vld [vmem:[%s6192 + $0x6c] sm:$0xe]
        %v6877 = vld [vmem:[%s6192 + $0x70] sm:$0xf]
        %v6878 = vld [vmem:[%s6192 + $0x74] sm:$0x1]
        %v6879 = vld [vmem:[%s6192 + $0x78] sm:$0xe]
        %v6880 = vld [vmem:[%s6192 + $0x7c] sm:$0xf]
        %v6881 = vld [vmem:[%s6192 + $0x80] sm:$0x1]
        %v6882 = vld [vmem:[%s6192 + $0x84] sm:$0xe]
        %v6883 = vld [vmem:[%s6192 + $0x88] sm:$0xf]
        %v6884 = vld [vmem:[%s6192 + $0x8c] sm:$0x1]
        %v6885 = vld [vmem:[%s6192 + $0x90] sm:$0xe]
        %v6886 = vld [vmem:[%s6192 + $0x94] sm:$0xf]
        %v6887 = vld [vmem:[%s6192 + $0x98] sm:$0x1]
        %v6888 = vld [vmem:[%s6192 + $0x9c] sm:$0xe]
        %v6889 = vld [vmem:[%s6192 + $0xa0] sm:$0xf]
        %v6890 = vld [vmem:[%s6192 + $0xa4] sm:$0x1]
        %v6891 = vld [vmem:[%s6192 + $0xa8] sm:$0xe]
        %v6892 = vld [vmem:[%s6192 + $0xac] sm:$0xf]
        %v6893 = vld [vmem:[%s6192 + $0xb0] sm:$0x1]
        %v6894 = vld [vmem:[%s6192 + $0xb4] sm:$0xe]
        %v6895 = vld [vmem:[%s6192 + $0xb8] sm:$0xf]
        %v6896 = vld [vmem:[%s6192 + $0xbc] sm:$0x1]
        %v6945 = vrot.slane %v6849, 5
        %v6946 = vrot.slane %v6945, 4
        %v6947 = vrot.slane %v6850, 5
        %v6948 = vsel %vm1084, %v6946, %v6947
        %v6949 = vrot.slane %v6947, 4
        %v6950 = vrot.slane %v6851, 5
        %v6951 = vsel %vm1084, %v6949, %v6950
        %v6952 = vrot.slane %v6852, 5
        %v6953 = vrot.slane %v6952, 4
        %v6954 = vrot.slane %v6853, 5
        %v6955 = vsel %vm1084, %v6953, %v6954
        %v6956 = vrot.slane %v6954, 4
        %v6957 = vrot.slane %v6854, 5
        %v6958 = vsel %vm1084, %v6956, %v6957
        %v6959 = vrot.slane %v6855, 5
        %v6960 = vrot.slane %v6959, 4
        %v6961 = vrot.slane %v6856, 5
        %v6962 = vsel %vm1084, %v6960, %v6961
        %v6963 = vrot.slane %v6961, 4
        %v6964 = vrot.slane %v6857, 5
        %v6965 = vsel %vm1084, %v6963, %v6964
        %v6966 = vrot.slane %v6858, 5
        %v6967 = vrot.slane %v6966, 4
        %v6968 = vrot.slane %v6859, 5
        %v6969 = vsel %vm1084, %v6967, %v6968
        %v6970 = vrot.slane %v6968, 4
        %v6971 = vrot.slane %v6860, 5
        %v6972 = vsel %vm1084, %v6970, %v6971
        %v6973 = vrot.slane %v6861, 5
        %v6974 = vrot.slane %v6973, 4
        %v6975 = vrot.slane %v6862, 5
        %v6976 = vsel %vm1084, %v6974, %v6975
        %v6977 = vrot.slane %v6975, 4
        %v6978 = vrot.slane %v6863, 5
        %v6979 = vsel %vm1084, %v6977, %v6978
        %v6980 = vrot.slane %v6864, 5
        %v6981 = vrot.slane %v6980, 4
        %v6982 = vrot.slane %v6865, 5
        %v6983 = vsel %vm1084, %v6981, %v6982
        %v6984 = vrot.slane %v6982, 4
        %v6985 = vrot.slane %v6866, 5
        %v6986 = vsel %vm1084, %v6984, %v6985
        %v6987 = vrot.slane %v6867, 5
        %v6988 = vrot.slane %v6987, 4
        %v6989 = vrot.slane %v6868, 5
        %v6990 = vsel %vm1084, %v6988, %v6989
        %v6991 = vrot.slane %v6989, 4
        %v6992 = vrot.slane %v6869, 5
        %v6993 = vsel %vm1084, %v6991, %v6992
        %v6994 = vrot.slane %v6870, 5
        %v6995 = vrot.slane %v6994, 4
        %v6996 = vrot.slane %v6871, 5
        %v6997 = vsel %vm1084, %v6995, %v6996
        %v6998 = vrot.slane %v6996, 4
        %v6999 = vrot.slane %v6872, 5
        %v7000 = vsel %vm1084, %v6998, %v6999
        %v7001 = vrot.slane %v6873, 5
        %v7002 = vrot.slane %v7001, 4
        %v7003 = vrot.slane %v6874, 5
        %v7004 = vsel %vm1084, %v7002, %v7003
        %v7005 = vrot.slane %v7003, 4
        %v7006 = vrot.slane %v6875, 5
        %v7007 = vsel %vm1084, %v7005, %v7006
        %v7008 = vrot.slane %v6876, 5
        %v7009 = vrot.slane %v7008, 4
        %v7010 = vrot.slane %v6877, 5
        %v7011 = vsel %vm1084, %v7009, %v7010
        %v7012 = vrot.slane %v7010, 4
        %v7013 = vrot.slane %v6878, 5
        %v7014 = vsel %vm1084, %v7012, %v7013
        %v7015 = vrot.slane %v6879, 5
        %v7016 = vrot.slane %v7015, 4
        %v7017 = vrot.slane %v6880, 5
        %v7018 = vsel %vm1084, %v7016, %v7017
        %v7019 = vrot.slane %v7017, 4
        %v7020 = vrot.slane %v6881, 5
        %v7021 = vsel %vm1084, %v7019, %v7020
        %v7022 = vrot.slane %v6882, 5
        %v7023 = vrot.slane %v7022, 4
        %v7024 = vrot.slane %v6883, 5
        %v7025 = vsel %vm1084, %v7023, %v7024
        %v7026 = vrot.slane %v7024, 4
        %v7027 = vrot.slane %v6884, 5
        %v7028 = vsel %vm1084, %v7026, %v7027
        %v7029 = vrot.slane %v6885, 5
        %v7030 = vrot.slane %v7029, 4
        %v7031 = vrot.slane %v6886, 5
        %v7032 = vsel %vm1084, %v7030, %v7031
        %v7033 = vrot.slane %v7031, 4
        %v7034 = vrot.slane %v6887, 5
        %v7035 = vsel %vm1084, %v7033, %v7034
        %v7036 = vrot.slane %v6888, 5
        %v7037 = vrot.slane %v7036, 4
        %v7038 = vrot.slane %v6889, 5
        %v7039 = vsel %vm1084, %v7037, %v7038
        %v7040 = vrot.slane %v7038, 4
        %v7041 = vrot.slane %v6890, 5
        %v7042 = vsel %vm1084, %v7040, %v7041
        %v7043 = vrot.slane %v6891, 5
        %v7044 = vrot.slane %v7043, 4
        %v7045 = vrot.slane %v6892, 5
        %v7046 = vsel %vm1084, %v7044, %v7045
        %v7047 = vrot.slane %v7045, 4
        %v7048 = vrot.slane %v6893, 5
        %v7049 = vsel %vm1084, %v7047, %v7048
        %v7050 = vrot.slane %v6894, 5
        %v7051 = vrot.slane %v7050, 4
        %v7052 = vrot.slane %v6895, 5
        %v7053 = vsel %vm1084, %v7051, %v7052
        %v7054 = vrot.slane %v7052, 4
        %v7055 = vrot.slane %v6896, 5
        %v7056 = vsel %vm1084, %v7054, %v7055
        %v7057 = vunpack.c.l.b16 %v6948
        %v7058 = vunpack.c.l.b16 %v6951
        %v7059 = vunpack.c.l.b16 %v6955
        %v7060 = vunpack.c.l.b16 %v6958
        %v7061 = vunpack.c.l.b16 %v6962
        %v7062 = vunpack.c.l.b16 %v6965
        %v7063 = vunpack.c.l.b16 %v6969
        %v7064 = vunpack.c.l.b16 %v6972
        %v7065 = vunpack.c.l.b16 %v6976
        %v7066 = vunpack.c.l.b16 %v6979
        %v7067 = vunpack.c.l.b16 %v6983
        %v7068 = vunpack.c.l.b16 %v6986
        %v7069 = vunpack.c.l.b16 %v6990
        %v7070 = vunpack.c.l.b16 %v6993
        %v7071 = vunpack.c.l.b16 %v6997
        %v7072 = vunpack.c.l.b16 %v7000
        %v7073 = vunpack.c.l.b16 %v7004
        %v7074 = vunpack.c.l.b16 %v7007
        %v7075 = vunpack.c.l.b16 %v7011
        %v7076 = vunpack.c.l.b16 %v7014
        %v7077 = vunpack.c.l.b16 %v7018
        %v7078 = vunpack.c.l.b16 %v7021
        %v7079 = vunpack.c.l.b16 %v7025
        %v7080 = vunpack.c.l.b16 %v7028
        %v7081 = vunpack.c.l.b16 %v7032
        %v7082 = vunpack.c.l.b16 %v7035
        %v7083 = vunpack.c.l.b16 %v7039
        %v7084 = vunpack.c.l.b16 %v7042
        %v7085 = vunpack.c.l.b16 %v7046
        %v7086 = vunpack.c.l.b16 %v7049
        %v7087 = vunpack.c.l.b16 %v7053
        %v7088 = vunpack.c.l.b16 %v7056
        %v7089 = vpack.c.b16 %v7058, %v7057
        %v7090 = vpack.c.b16 %v7060, %v7059
        %v7091 = vpack.c.b16 %v7062, %v7061
        %v7092 = vpack.c.b16 %v7064, %v7063
        %v7093 = vpack.c.b16 %v7066, %v7065
        %v7094 = vpack.c.b16 %v7068, %v7067
        %v7095 = vpack.c.b16 %v7070, %v7069
        %v7096 = vpack.c.b16 %v7072, %v7071
        %v7097 = vpack.c.b16 %v7074, %v7073
        %v7098 = vpack.c.b16 %v7076, %v7075
        %v7099 = vpack.c.b16 %v7078, %v7077
        %v7100 = vpack.c.b16 %v7080, %v7079
        %v7101 = vpack.c.b16 %v7082, %v7081
        %v7102 = vpack.c.b16 %v7084, %v7083
        %v7103 = vpack.c.b16 %v7086, %v7085
        %v7104 = vpack.c.b16 %v7088, %v7087
        %7121 = vst [vmem:[#allocation4 + $0x40] sm:$0xff] %v7089
        %7122 = vst [vmem:[#allocation4 + $0x88] sm:$0xff] %v7090
        %7123 = vst [vmem:[#allocation4 + $0xd0] sm:$0xff] %v7091
        %7124 = vst [vmem:[#allocation4 + $0x118] sm:$0xff] %v7092
        %7125 = vst [vmem:[#allocation4 + $0x160] sm:$0xff] %v7093
        %7126 = vst [vmem:[#allocation4 + $0x1a8] sm:$0xff] %v7094
        %7127 = vst [vmem:[#allocation4 + $0x1f0] sm:$0xff] %v7095
        %7128 = vst [vmem:[#allocation4 + $0x238] sm:$0xff] %v7096
        %7129 = vst [vmem:[#allocation4 + $0x280] sm:$0xff] %v7097
        %7130 = vst [vmem:[#allocation4 + $0x2c8] sm:$0xff] %v7098
        %7131 = vst [vmem:[#allocation4 + $0x310] sm:$0xff] %v7099
        %7132 = vst [vmem:[#allocation4 + $0x358] sm:$0xff] %v7100
        %7133 = vst [vmem:[#allocation4 + $0x3a0] sm:$0xff] %v7101
        %7134 = vst [vmem:[#allocation4 + $0x3e8] sm:$0xff] %v7102
        %7135 = vst [vmem:[#allocation4 + $0x430] sm:$0xff] %v7103
        %7136 = vst [vmem:[#allocation4 + $0x478] sm:$0xff] %v7104
        %v7137 = vld [vmem:[#allocation4] sm:$0xff]
        %v7138 = vld [vmem:[#allocation4 + $0x8] sm:$0xff]
        %v7139 = vld [vmem:[#allocation4 + $0x10] sm:$0xff]
        %v7140 = vld [vmem:[#allocation4 + $0x18] sm:$0xff]
        %v7141 = vld [vmem:[#allocation4 + $0x20] sm:$0xff]
        %v7142 = vld [vmem:[#allocation4 + $0x28] sm:$0xff]
        %v7143 = vld [vmem:[#allocation4 + $0x30] sm:$0xff]
        %v7144 = vld [vmem:[#allocation4 + $0x38] sm:$0xff]
        %v7145 = vld [vmem:[#allocation4 + $0x40] sm:$0xff]
        %v7146 = vld [vmem:[#allocation4 + $0x48] sm:$0xff]
        %v7147 = vld [vmem:[#allocation4 + $0x50] sm:$0xff]
        %v7148 = vld [vmem:[#allocation4 + $0x58] sm:$0xff]
        %v7149 = vld [vmem:[#allocation4 + $0x60] sm:$0xff]
        %v7150 = vld [vmem:[#allocation4 + $0x68] sm:$0xff]
        %v7151 = vld [vmem:[#allocation4 + $0x70] sm:$0xff]
        %v7152 = vld [vmem:[#allocation4 + $0x78] sm:$0xff]
        %v7153 = vld [vmem:[#allocation4 + $0x80] sm:$0xff]
        %v7154 = vld [vmem:[#allocation4 + $0x88] sm:$0xff]
        %v7155 = vld [vmem:[#allocation4 + $0x90] sm:$0xff]
        %v7156 = vld [vmem:[#allocation4 + $0x98] sm:$0xff]
        %v7157 = vld [vmem:[#allocation4 + $0xa0] sm:$0xff]
        %v7158 = vld [vmem:[#allocation4 + $0xa8] sm:$0xff]
        %v7159 = vld [vmem:[#allocation4 + $0xb0] sm:$0xff]
        %v7160 = vld [vmem:[#allocation4 + $0xb8] sm:$0xff]
        %v7161 = vld [vmem:[#allocation4 + $0xc0] sm:$0xff]
        %v7162 = vld [vmem:[#allocation4 + $0xc8] sm:$0xff]
        %v7163 = vld [vmem:[#allocation4 + $0xd0] sm:$0xff]
        %v7164 = vld [vmem:[#allocation4 + $0xd8] sm:$0xff]
        %v7165 = vld [vmem:[#allocation4 + $0xe0] sm:$0xff]
        %v7166 = vld [vmem:[#allocation4 + $0xe8] sm:$0xff]
        %v7167 = vld [vmem:[#allocation4 + $0xf0] sm:$0xff]
        %v7168 = vld [vmem:[#allocation4 + $0xf8] sm:$0xff]
        %v7169 = vld [vmem:[#allocation4 + $0x100] sm:$0xff]
        %v7170 = vld [vmem:[#allocation4 + $0x108] sm:$0xff]
        %v7171 = vld [vmem:[#allocation4 + $0x110] sm:$0xff]
        %v7172 = vld [vmem:[#allocation4 + $0x118] sm:$0xff]
        %v7173 = vld [vmem:[#allocation4 + $0x120] sm:$0xff]
        %v7174 = vld [vmem:[#allocation4 + $0x128] sm:$0xff]
        %v7175 = vld [vmem:[#allocation4 + $0x130] sm:$0xff]
        %v7176 = vld [vmem:[#allocation4 + $0x138] sm:$0xff]
        %v7177 = vld [vmem:[#allocation4 + $0x140] sm:$0xff]
        %v7178 = vld [vmem:[#allocation4 + $0x148] sm:$0xff]
        %v7179 = vld [vmem:[#allocation4 + $0x150] sm:$0xff]
        %v7180 = vld [vmem:[#allocation4 + $0x158] sm:$0xff]
        %v7181 = vld [vmem:[#allocation4 + $0x160] sm:$0xff]
        %v7182 = vld [vmem:[#allocation4 + $0x168] sm:$0xff]
        %v7183 = vld [vmem:[#allocation4 + $0x170] sm:$0xff]
        %v7184 = vld [vmem:[#allocation4 + $0x178] sm:$0xff]
        %v7185 = vld [vmem:[#allocation4 + $0x180] sm:$0xff]
        %v7186 = vld [vmem:[#allocation4 + $0x188] sm:$0xff]
        %v7187 = vld [vmem:[#allocation4 + $0x190] sm:$0xff]
        %v7188 = vld [vmem:[#allocation4 + $0x198] sm:$0xff]
        %v7189 = vld [vmem:[#allocation4 + $0x1a0] sm:$0xff]
        %v7190 = vld [vmem:[#allocation4 + $0x1a8] sm:$0xff]
        %v7191 = vld [vmem:[#allocation4 + $0x1b0] sm:$0xff]
        %v7192 = vld [vmem:[#allocation4 + $0x1b8] sm:$0xff]
        %v7193 = vld [vmem:[#allocation4 + $0x1c0] sm:$0xff]
        %v7194 = vld [vmem:[#allocation4 + $0x1c8] sm:$0xff]
        %v7195 = vld [vmem:[#allocation4 + $0x1d0] sm:$0xff]
        %v7196 = vld [vmem:[#allocation4 + $0x1d8] sm:$0xff]
        %v7197 = vld [vmem:[#allocation4 + $0x1e0] sm:$0xff]
        %v7198 = vld [vmem:[#allocation4 + $0x1e8] sm:$0xff]
        %v7199 = vld [vmem:[#allocation4 + $0x1f0] sm:$0xff]
        %v7200 = vld [vmem:[#allocation4 + $0x1f8] sm:$0xff]
        %v7201 = vld [vmem:[#allocation4 + $0x200] sm:$0xff]
        %v7202 = vld [vmem:[#allocation4 + $0x208] sm:$0xff]
        %v7203 = vld [vmem:[#allocation4 + $0x210] sm:$0xff]
        %v7204 = vld [vmem:[#allocation4 + $0x218] sm:$0xff]
        %v7205 = vld [vmem:[#allocation4 + $0x220] sm:$0xff]
        %v7206 = vld [vmem:[#allocation4 + $0x228] sm:$0xff]
        %v7207 = vld [vmem:[#allocation4 + $0x230] sm:$0xff]
        %v7208 = vld [vmem:[#allocation4 + $0x238] sm:$0xff]
        %v7209 = vld [vmem:[#allocation4 + $0x240] sm:$0xff]
        %v7210 = vld [vmem:[#allocation4 + $0x248] sm:$0xff]
        %v7211 = vld [vmem:[#allocation4 + $0x250] sm:$0xff]
        %v7212 = vld [vmem:[#allocation4 + $0x258] sm:$0xff]
        %v7213 = vld [vmem:[#allocation4 + $0x260] sm:$0xff]
        %v7214 = vld [vmem:[#allocation4 + $0x268] sm:$0xff]
        %v7215 = vld [vmem:[#allocation4 + $0x270] sm:$0xff]
        %v7216 = vld [vmem:[#allocation4 + $0x278] sm:$0xff]
        %v7217 = vld [vmem:[#allocation4 + $0x280] sm:$0xff]
        %v7218 = vld [vmem:[#allocation4 + $0x288] sm:$0xff]
        %v7219 = vld [vmem:[#allocation4 + $0x290] sm:$0xff]
        %v7220 = vld [vmem:[#allocation4 + $0x298] sm:$0xff]
        %v7221 = vld [vmem:[#allocation4 + $0x2a0] sm:$0xff]
        %v7222 = vld [vmem:[#allocation4 + $0x2a8] sm:$0xff]
        %v7223 = vld [vmem:[#allocation4 + $0x2b0] sm:$0xff]
        %v7224 = vld [vmem:[#allocation4 + $0x2b8] sm:$0xff]
        %v7225 = vld [vmem:[#allocation4 + $0x2c0] sm:$0xff]
        %v7226 = vld [vmem:[#allocation4 + $0x2c8] sm:$0xff]
        %v7227 = vld [vmem:[#allocation4 + $0x2d0] sm:$0xff]
        %v7228 = vld [vmem:[#allocation4 + $0x2d8] sm:$0xff]
        %v7229 = vld [vmem:[#allocation4 + $0x2e0] sm:$0xff]
        %v7230 = vld [vmem:[#allocation4 + $0x2e8] sm:$0xff]
        %v7231 = vld [vmem:[#allocation4 + $0x2f0] sm:$0xff]
        %v7232 = vld [vmem:[#allocation4 + $0x2f8] sm:$0xff]
        %v7233 = vld [vmem:[#allocation4 + $0x300] sm:$0xff]
        %v7234 = vld [vmem:[#allocation4 + $0x308] sm:$0xff]
        %v7235 = vld [vmem:[#allocation4 + $0x310] sm:$0xff]
        %v7236 = vld [vmem:[#allocation4 + $0x318] sm:$0xff]
        %v7237 = vld [vmem:[#allocation4 + $0x320] sm:$0xff]
        %v7238 = vld [vmem:[#allocation4 + $0x328] sm:$0xff]
        %v7239 = vld [vmem:[#allocation4 + $0x330] sm:$0xff]
        %v7240 = vld [vmem:[#allocation4 + $0x338] sm:$0xff]
        %v7241 = vld [vmem:[#allocation4 + $0x340] sm:$0xff]
        %v7242 = vld [vmem:[#allocation4 + $0x348] sm:$0xff]
        %v7243 = vld [vmem:[#allocation4 + $0x350] sm:$0xff]
        %v7244 = vld [vmem:[#allocation4 + $0x358] sm:$0xff]
        %v7245 = vld [vmem:[#allocation4 + $0x360] sm:$0xff]
        %v7246 = vld [vmem:[#allocation4 + $0x368] sm:$0xff]
        %v7247 = vld [vmem:[#allocation4 + $0x370] sm:$0xff]
        %v7248 = vld [vmem:[#allocation4 + $0x378] sm:$0xff]
        %v7249 = vld [vmem:[#allocation4 + $0x380] sm:$0xff]
        %v7250 = vld [vmem:[#allocation4 + $0x388] sm:$0xff]
        %v7251 = vld [vmem:[#allocation4 + $0x390] sm:$0xff]
        %v7252 = vld [vmem:[#allocation4 + $0x398] sm:$0xff]
        %v7253 = vld [vmem:[#allocation4 + $0x3a0] sm:$0xff]
        %v7254 = vld [vmem:[#allocation4 + $0x3a8] sm:$0xff]
        %v7255 = vld [vmem:[#allocation4 + $0x3b0] sm:$0xff]
        %v7256 = vld [vmem:[#allocation4 + $0x3b8] sm:$0xff]
        %v7257 = vld [vmem:[#allocation4 + $0x3c0] sm:$0xff]
        %v7258 = vld [vmem:[#allocation4 + $0x3c8] sm:$0xff]
        %v7259 = vld [vmem:[#allocation4 + $0x3d0] sm:$0xff]
        %v7260 = vld [vmem:[#allocation4 + $0x3d8] sm:$0xff]
        %v7261 = vld [vmem:[#allocation4 + $0x3e0] sm:$0xff]
        %v7262 = vld [vmem:[#allocation4 + $0x3e8] sm:$0xff]
        %v7263 = vld [vmem:[#allocation4 + $0x3f0] sm:$0xff]
        %v7264 = vld [vmem:[#allocation4 + $0x3f8] sm:$0xff]
        %v7265 = vld [vmem:[#allocation4 + $0x400] sm:$0xff]
        %v7266 = vld [vmem:[#allocation4 + $0x408] sm:$0xff]
        %v7267 = vld [vmem:[#allocation4 + $0x410] sm:$0xff]
        %v7268 = vld [vmem:[#allocation4 + $0x418] sm:$0xff]
        %v7269 = vld [vmem:[#allocation4 + $0x420] sm:$0xff]
        %v7270 = vld [vmem:[#allocation4 + $0x428] sm:$0xff]
        %v7271 = vld [vmem:[#allocation4 + $0x430] sm:$0xff]
        %v7272 = vld [vmem:[#allocation4 + $0x438] sm:$0xff]
        %v7273 = vld [vmem:[#allocation4 + $0x440] sm:$0xff]
        %v7274 = vld [vmem:[#allocation4 + $0x448] sm:$0xff]
        %v7275 = vld [vmem:[#allocation4 + $0x450] sm:$0xff]
        %v7276 = vld [vmem:[#allocation4 + $0x458] sm:$0xff]
        %v7277 = vld [vmem:[#allocation4 + $0x460] sm:$0xff]
        %v7278 = vld [vmem:[#allocation4 + $0x468] sm:$0xff]
        %v7279 = vld [vmem:[#allocation4 + $0x470] sm:$0xff]
        %v7280 = vld [vmem:[#allocation4 + $0x478] sm:$0xff]
        %v7281 = vld [vmem:[#allocation5] sm:$0xf]
        %v7282 = vld [vmem:[#allocation5 + $0x4] sm:$0xf]
        %v7283 = vld [vmem:[#allocation5 + $0x8] sm:$0xf]
        %v7284 = vld [vmem:[#allocation5 + $0xc] sm:$0xf]
        %v7285 = vld [vmem:[#allocation5 + $0x10] sm:$0xf]
        %v7286 = vld [vmem:[#allocation5 + $0x14] sm:$0xf]
        %v7287 = vld [vmem:[#allocation5 + $0x18] sm:$0xf]
        %v7288 = vld [vmem:[#allocation5 + $0x1c] sm:$0xf]
        %v7289 = vld [vmem:[#allocation5 + $0x20] sm:$0xf]
        %v7290 = vld [vmem:[#allocation5 + $0x24] sm:$0xf]
        %v7291 = vld [vmem:[#allocation5 + $0x28] sm:$0xf]
        %v7292 = vld [vmem:[#allocation5 + $0x2c] sm:$0xf]
        %v7293 = vld [vmem:[#allocation5 + $0x30] sm:$0xf]
        %v7294 = vld [vmem:[#allocation5 + $0x34] sm:$0xf]
        %v7295 = vld [vmem:[#allocation5 + $0x38] sm:$0xf]
        %v7296 = vld [vmem:[#allocation5 + $0x3c] sm:$0xf]
        %v7297 = vld [vmem:[#allocation5 + $0x40] sm:$0xf]
        %v7298 = vld [vmem:[#allocation5 + $0x44] sm:$0xf]
        %v7299 = vld [vmem:[#allocation5 + $0x48] sm:$0xf]
        %v7300 = vld [vmem:[#allocation5 + $0x4c] sm:$0xf]
        %v7301 = vld [vmem:[#allocation5 + $0x50] sm:$0xf]
        %v7302 = vld [vmem:[#allocation5 + $0x54] sm:$0xf]
        %v7303 = vld [vmem:[#allocation5 + $0x58] sm:$0xf]
        %v7304 = vld [vmem:[#allocation5 + $0x5c] sm:$0xf]
        %v7305 = vld [vmem:[#allocation5 + $0x60] sm:$0xf]
        %v7306 = vld [vmem:[#allocation5 + $0x64] sm:$0xf]
        %v7307 = vld [vmem:[#allocation5 + $0x68] sm:$0xf]
        %v7308 = vld [vmem:[#allocation5 + $0x6c] sm:$0xf]
        %v7309 = vld [vmem:[#allocation5 + $0x70] sm:$0xf]
        %v7310 = vld [vmem:[#allocation5 + $0x74] sm:$0xf]
        %v7311 = vld [vmem:[#allocation5 + $0x78] sm:$0xf]
        %v7312 = vld [vmem:[#allocation5 + $0x7c] sm:$0xf]
        %v7313 = vld [vmem:[#allocation5 + $0x80] sm:$0xf]
        %v7314 = vld [vmem:[#allocation5 + $0x84] sm:$0xf]
        %v7315 = vld [vmem:[#allocation5 + $0x88] sm:$0xf]
        %v7316 = vld [vmem:[#allocation5 + $0x8c] sm:$0xf]
        %v7317 = vld [vmem:[#allocation5 + $0x90] sm:$0xf]
        %v7318 = vld [vmem:[#allocation5 + $0x94] sm:$0xf]
        %v7319 = vld [vmem:[#allocation5 + $0x98] sm:$0xf]
        %v7320 = vld [vmem:[#allocation5 + $0x9c] sm:$0xf]
        %v7321 = vld [vmem:[#allocation5 + $0xa0] sm:$0xf]
        %v7322 = vld [vmem:[#allocation5 + $0xa4] sm:$0xf]
        %v7323 = vld [vmem:[#allocation5 + $0xa8] sm:$0xf]
        %v7324 = vld [vmem:[#allocation5 + $0xac] sm:$0xf]
        %v7325 = vld [vmem:[#allocation5 + $0xb0] sm:$0xf]
        %v7326 = vld [vmem:[#allocation5 + $0xb4] sm:$0xf]
        %v7327 = vld [vmem:[#allocation5 + $0xb8] sm:$0xf]
        %v7328 = vld [vmem:[#allocation5 + $0xbc] sm:$0xf]
        %v7329 = vld [vmem:[#allocation5 + $0xc0] sm:$0xf]
        %v7330 = vld [vmem:[#allocation5 + $0xc4] sm:$0xf]
        %v7331 = vld [vmem:[#allocation5 + $0xc8] sm:$0xf]
        %v7332 = vld [vmem:[#allocation5 + $0xcc] sm:$0xf]
        %v7333 = vld [vmem:[#allocation5 + $0xd0] sm:$0xf]
        %v7334 = vld [vmem:[#allocation5 + $0xd4] sm:$0xf]
        %v7335 = vld [vmem:[#allocation5 + $0xd8] sm:$0xf]
        %v7336 = vld [vmem:[#allocation5 + $0xdc] sm:$0xf]
        %v7337 = vld [vmem:[#allocation5 + $0xe0] sm:$0xf]
        %v7338 = vld [vmem:[#allocation5 + $0xe4] sm:$0xf]
        %v7339 = vld [vmem:[#allocation5 + $0xe8] sm:$0xf]
        %v7340 = vld [vmem:[#allocation5 + $0xec] sm:$0xf]
        %v7341 = vld [vmem:[#allocation5 + $0xf0] sm:$0xf]
        %v7342 = vld [vmem:[#allocation5 + $0xf4] sm:$0xf]
        %v7343 = vld [vmem:[#allocation5 + $0xf8] sm:$0xf]
        %v7344 = vld [vmem:[#allocation5 + $0xfc] sm:$0xf]
        %v7345 = vld [vmem:[#allocation5 + $0x100] sm:$0xf]
        %v7346 = vld [vmem:[#allocation5 + $0x104] sm:$0xf]
        %v7347 = vld [vmem:[#allocation5 + $0x108] sm:$0xf]
        %v7348 = vld [vmem:[#allocation5 + $0x10c] sm:$0xf]
        %v7349 = vld [vmem:[#allocation5 + $0x110] sm:$0xf]
        %v7350 = vld [vmem:[#allocation5 + $0x114] sm:$0xf]
        %v7351 = vld [vmem:[#allocation5 + $0x118] sm:$0xf]
        %v7352 = vld [vmem:[#allocation5 + $0x11c] sm:$0xf]
        %v7353 = vld [vmem:[#allocation5 + $0x120] sm:$0xf]
        %v7354 = vld [vmem:[#allocation5 + $0x124] sm:$0xf]
        %v7355 = vld [vmem:[#allocation5 + $0x128] sm:$0xf]
        %v7356 = vld [vmem:[#allocation5 + $0x12c] sm:$0xf]
        %v7357 = vld [vmem:[#allocation5 + $0x130] sm:$0xf]
        %v7358 = vld [vmem:[#allocation5 + $0x134] sm:$0xf]
        %v7359 = vld [vmem:[#allocation5 + $0x138] sm:$0xf]
        %v7360 = vld [vmem:[#allocation5 + $0x13c] sm:$0xf]
        %v7361 = vld [vmem:[#allocation5 + $0x140] sm:$0xf]
        %v7362 = vld [vmem:[#allocation5 + $0x144] sm:$0xf]
        %v7363 = vld [vmem:[#allocation5 + $0x148] sm:$0xf]
        %v7364 = vld [vmem:[#allocation5 + $0x14c] sm:$0xf]
        %v7365 = vld [vmem:[#allocation5 + $0x150] sm:$0xf]
        %v7366 = vld [vmem:[#allocation5 + $0x154] sm:$0xf]
        %v7367 = vld [vmem:[#allocation5 + $0x158] sm:$0xf]
        %v7368 = vld [vmem:[#allocation5 + $0x15c] sm:$0xf]
        %v7369 = vld [vmem:[#allocation5 + $0x160] sm:$0xf]
        %v7370 = vld [vmem:[#allocation5 + $0x164] sm:$0xf]
        %v7371 = vld [vmem:[#allocation5 + $0x168] sm:$0xf]
        %v7372 = vld [vmem:[#allocation5 + $0x16c] sm:$0xf]
        %v7373 = vld [vmem:[#allocation5 + $0x170] sm:$0xf]
        %v7374 = vld [vmem:[#allocation5 + $0x174] sm:$0xf]
        %v7375 = vld [vmem:[#allocation5 + $0x178] sm:$0xf]
        %v7376 = vld [vmem:[#allocation5 + $0x17c] sm:$0xf]
        %v7377 = vld [vmem:[#allocation5 + $0x180] sm:$0xf]
        %v7378 = vld [vmem:[#allocation5 + $0x184] sm:$0xf]
        %v7379 = vld [vmem:[#allocation5 + $0x188] sm:$0xf]
        %v7380 = vld [vmem:[#allocation5 + $0x18c] sm:$0xf]
        %v7381 = vld [vmem:[#allocation5 + $0x190] sm:$0xf]
        %v7382 = vld [vmem:[#allocation5 + $0x194] sm:$0xf]
        %v7383 = vld [vmem:[#allocation5 + $0x198] sm:$0xf]
        %v7384 = vld [vmem:[#allocation5 + $0x19c] sm:$0xf]
        %v7385 = vld [vmem:[#allocation5 + $0x1a0] sm:$0xf]
        %v7386 = vld [vmem:[#allocation5 + $0x1a4] sm:$0xf]
        %v7387 = vld [vmem:[#allocation5 + $0x1a8] sm:$0xf]
        %v7388 = vld [vmem:[#allocation5 + $0x1ac] sm:$0xf]
        %v7389 = vld [vmem:[#allocation5 + $0x1b0] sm:$0xf]
        %v7390 = vld [vmem:[#allocation5 + $0x1b4] sm:$0xf]
        %v7391 = vld [vmem:[#allocation5 + $0x1b8] sm:$0xf]
        %v7392 = vld [vmem:[#allocation5 + $0x1bc] sm:$0xf]
        %v7393 = vld [vmem:[#allocation5 + $0x1c0] sm:$0xf]
        %v7394 = vld [vmem:[#allocation5 + $0x1c4] sm:$0xf]
        %v7395 = vld [vmem:[#allocation5 + $0x1c8] sm:$0xf]
        %v7396 = vld [vmem:[#allocation5 + $0x1cc] sm:$0xf]
        %v7397 = vld [vmem:[#allocation5 + $0x1d0] sm:$0xf]
        %v7398 = vld [vmem:[#allocation5 + $0x1d4] sm:$0xf]
        %v7399 = vld [vmem:[#allocation5 + $0x1d8] sm:$0xf]
        %v7400 = vld [vmem:[#allocation5 + $0x1dc] sm:$0xf]
        %v7401 = vld [vmem:[#allocation5 + $0x1e0] sm:$0xf]
        %v7402 = vld [vmem:[#allocation5 + $0x1e4] sm:$0xf]
        %v7403 = vld [vmem:[#allocation5 + $0x1e8] sm:$0xf]
        %v7404 = vld [vmem:[#allocation5 + $0x1ec] sm:$0xf]
        %v7405 = vld [vmem:[#allocation5 + $0x1f0] sm:$0xf]
        %v7406 = vld [vmem:[#allocation5 + $0x1f4] sm:$0xf]
        %v7407 = vld [vmem:[#allocation5 + $0x1f8] sm:$0xf]
        %v7408 = vld [vmem:[#allocation5 + $0x1fc] sm:$0xf]
        %v7409 = vld [vmem:[#allocation5 + $0x200] sm:$0xf]
        %v7410 = vld [vmem:[#allocation5 + $0x204] sm:$0xf]
        %v7411 = vld [vmem:[#allocation5 + $0x208] sm:$0xf]
        %v7412 = vld [vmem:[#allocation5 + $0x20c] sm:$0xf]
        %v7413 = vld [vmem:[#allocation5 + $0x210] sm:$0xf]
        %v7414 = vld [vmem:[#allocation5 + $0x214] sm:$0xf]
        %v7415 = vld [vmem:[#allocation5 + $0x218] sm:$0xf]
        %v7416 = vld [vmem:[#allocation5 + $0x21c] sm:$0xf]
        %v7417 = vld [vmem:[#allocation5 + $0x220] sm:$0xf]
        %v7418 = vld [vmem:[#allocation5 + $0x224] sm:$0xf]
        %v7419 = vld [vmem:[#allocation5 + $0x228] sm:$0xf]
        %v7420 = vld [vmem:[#allocation5 + $0x22c] sm:$0xf]
        %v7421 = vld [vmem:[#allocation5 + $0x230] sm:$0xf]
        %v7422 = vld [vmem:[#allocation5 + $0x234] sm:$0xf]
        %v7423 = vld [vmem:[#allocation5 + $0x238] sm:$0xf]
        %v7424 = vld [vmem:[#allocation5 + $0x23c] sm:$0xf]
        %v7569 = vunpack.c.l.b16 %v7281
        %v7570 = vunpack.c.l.b16 %v7282
        %v7571 = vunpack.c.l.b16 %v7283
        %v7572 = vunpack.c.l.b16 %v7284
        %v7573 = vunpack.c.l.b16 %v7285
        %v7574 = vunpack.c.l.b16 %v7286
        %v7575 = vunpack.c.l.b16 %v7287
        %v7576 = vunpack.c.l.b16 %v7288
        %v7577 = vunpack.c.l.b16 %v7289
        %v7578 = vunpack.c.l.b16 %v7290
        %v7579 = vunpack.c.l.b16 %v7291
        %v7580 = vunpack.c.l.b16 %v7292
        %v7581 = vunpack.c.l.b16 %v7293
        %v7582 = vunpack.c.l.b16 %v7294
        %v7583 = vunpack.c.l.b16 %v7295
        %v7584 = vunpack.c.l.b16 %v7296
        %v7585 = vunpack.c.l.b16 %v7297
        %v7586 = vunpack.c.l.b16 %v7298
        %v7587 = vunpack.c.l.b16 %v7299
        %v7588 = vunpack.c.l.b16 %v7300
        %v7589 = vunpack.c.l.b16 %v7301
        %v7590 = vunpack.c.l.b16 %v7302
        %v7591 = vunpack.c.l.b16 %v7303
        %v7592 = vunpack.c.l.b16 %v7304
        %v7593 = vunpack.c.l.b16 %v7305
        %v7594 = vunpack.c.l.b16 %v7306
        %v7595 = vunpack.c.l.b16 %v7307
        %v7596 = vunpack.c.l.b16 %v7308
        %v7597 = vunpack.c.l.b16 %v7309
        %v7598 = vunpack.c.l.b16 %v7310
        %v7599 = vunpack.c.l.b16 %v7311
        %v7600 = vunpack.c.l.b16 %v7312
        %v7601 = vunpack.c.l.b16 %v7313
        %v7602 = vunpack.c.l.b16 %v7314
        %v7603 = vunpack.c.l.b16 %v7315
        %v7604 = vunpack.c.l.b16 %v7316
        %v7605 = vunpack.c.l.b16 %v7317
        %v7606 = vunpack.c.l.b16 %v7318
        %v7607 = vunpack.c.l.b16 %v7319
        %v7608 = vunpack.c.l.b16 %v7320
        %v7609 = vunpack.c.l.b16 %v7321
        %v7610 = vunpack.c.l.b16 %v7322
        %v7611 = vunpack.c.l.b16 %v7323
        %v7612 = vunpack.c.l.b16 %v7324
        %v7613 = vunpack.c.l.b16 %v7325
        %v7614 = vunpack.c.l.b16 %v7326
        %v7615 = vunpack.c.l.b16 %v7327
        %v7616 = vunpack.c.l.b16 %v7328
        %v7617 = vunpack.c.l.b16 %v7329
        %v7618 = vunpack.c.l.b16 %v7330
        %v7619 = vunpack.c.l.b16 %v7331
        %v7620 = vunpack.c.l.b16 %v7332
        %v7621 = vunpack.c.l.b16 %v7333
        %v7622 = vunpack.c.l.b16 %v7334
        %v7623 = vunpack.c.l.b16 %v7335
        %v7624 = vunpack.c.l.b16 %v7336
        %v7625 = vunpack.c.l.b16 %v7337
        %v7626 = vunpack.c.l.b16 %v7338
        %v7627 = vunpack.c.l.b16 %v7339
        %v7628 = vunpack.c.l.b16 %v7340
        %v7629 = vunpack.c.l.b16 %v7341
        %v7630 = vunpack.c.l.b16 %v7342
        %v7631 = vunpack.c.l.b16 %v7343
        %v7632 = vunpack.c.l.b16 %v7344
        %v7633 = vunpack.c.l.b16 %v7345
        %v7634 = vunpack.c.l.b16 %v7346
        %v7635 = vunpack.c.l.b16 %v7347
        %v7636 = vunpack.c.l.b16 %v7348
        %v7637 = vunpack.c.l.b16 %v7349
        %v7638 = vunpack.c.l.b16 %v7350
        %v7639 = vunpack.c.l.b16 %v7351
        %v7640 = vunpack.c.l.b16 %v7352
        %v7641 = vunpack.c.l.b16 %v7353
        %v7642 = vunpack.c.l.b16 %v7354
        %v7643 = vunpack.c.l.b16 %v7355
        %v7644 = vunpack.c.l.b16 %v7356
        %v7645 = vunpack.c.l.b16 %v7357
        %v7646 = vunpack.c.l.b16 %v7358
        %v7647 = vunpack.c.l.b16 %v7359
        %v7648 = vunpack.c.l.b16 %v7360
        %v7649 = vunpack.c.l.b16 %v7361
        %v7650 = vunpack.c.l.b16 %v7362
        %v7651 = vunpack.c.l.b16 %v7363
        %v7652 = vunpack.c.l.b16 %v7364
        %v7653 = vunpack.c.l.b16 %v7365
        %v7654 = vunpack.c.l.b16 %v7366
        %v7655 = vunpack.c.l.b16 %v7367
        %v7656 = vunpack.c.l.b16 %v7368
        %v7657 = vunpack.c.l.b16 %v7369
        %v7658 = vunpack.c.l.b16 %v7370
        %v7659 = vunpack.c.l.b16 %v7371
        %v7660 = vunpack.c.l.b16 %v7372
        %v7661 = vunpack.c.l.b16 %v7373
        %v7662 = vunpack.c.l.b16 %v7374
        %v7663 = vunpack.c.l.b16 %v7375
        %v7664 = vunpack.c.l.b16 %v7376
        %v7665 = vunpack.c.l.b16 %v7377
        %v7666 = vunpack.c.l.b16 %v7378
        %v7667 = vunpack.c.l.b16 %v7379
        %v7668 = vunpack.c.l.b16 %v7380
        %v7669 = vunpack.c.l.b16 %v7381
        %v7670 = vunpack.c.l.b16 %v7382
        %v7671 = vunpack.c.l.b16 %v7383
        %v7672 = vunpack.c.l.b16 %v7384
        %v7673 = vunpack.c.l.b16 %v7385
        %v7674 = vunpack.c.l.b16 %v7386
        %v7675 = vunpack.c.l.b16 %v7387
        %v7676 = vunpack.c.l.b16 %v7388
        %v7677 = vunpack.c.l.b16 %v7389
        %v7678 = vunpack.c.l.b16 %v7390
        %v7679 = vunpack.c.l.b16 %v7391
        %v7680 = vunpack.c.l.b16 %v7392
        %v7681 = vunpack.c.l.b16 %v7393
        %v7682 = vunpack.c.l.b16 %v7394
        %v7683 = vunpack.c.l.b16 %v7395
        %v7684 = vunpack.c.l.b16 %v7396
        %v7685 = vunpack.c.l.b16 %v7397
        %v7686 = vunpack.c.l.b16 %v7398
        %v7687 = vunpack.c.l.b16 %v7399
        %v7688 = vunpack.c.l.b16 %v7400
        %v7689 = vunpack.c.l.b16 %v7401
        %v7690 = vunpack.c.l.b16 %v7402
        %v7691 = vunpack.c.l.b16 %v7403
        %v7692 = vunpack.c.l.b16 %v7404
        %v7693 = vunpack.c.l.b16 %v7405
        %v7694 = vunpack.c.l.b16 %v7406
        %v7695 = vunpack.c.l.b16 %v7407
        %v7696 = vunpack.c.l.b16 %v7408
        %v7697 = vunpack.c.l.b16 %v7409
        %v7698 = vunpack.c.l.b16 %v7410
        %v7699 = vunpack.c.l.b16 %v7411
        %v7700 = vunpack.c.l.b16 %v7412
        %v7701 = vunpack.c.l.b16 %v7413
        %v7702 = vunpack.c.l.b16 %v7414
        %v7703 = vunpack.c.l.b16 %v7415
        %v7704 = vunpack.c.l.b16 %v7416
        %v7705 = vunpack.c.l.b16 %v7417
        %v7706 = vunpack.c.l.b16 %v7418
        %v7707 = vunpack.c.l.b16 %v7419
        %v7708 = vunpack.c.l.b16 %v7420
        %v7709 = vunpack.c.l.b16 %v7421
        %v7710 = vunpack.c.l.b16 %v7422
        %v7711 = vunpack.c.l.b16 %v7423
        %v7712 = vunpack.c.l.b16 %v7424
        %v7713 = vpack.c.b16 %v7570, %v7569
        %v7714 = vpack.c.b16 %v7572, %v7571
        %v7715 = vpack.c.b16 %v7574, %v7573
        %v7716 = vpack.c.b16 %v7576, %v7575
        %v7717 = vpack.c.b16 %v7578, %v7577
        %v7718 = vpack.c.b16 %v7580, %v7579
        %v7719 = vpack.c.b16 %v7582, %v7581
        %v7720 = vpack.c.b16 %v7584, %v7583
        %v7721 = vpack.c.b16 %v7586, %v7585
        %v7722 = vpack.c.b16 %v7588, %v7587
        %v7723 = vpack.c.b16 %v7590, %v7589
        %v7724 = vpack.c.b16 %v7592, %v7591
        %v7725 = vpack.c.b16 %v7594, %v7593
        %v7726 = vpack.c.b16 %v7596, %v7595
        %v7727 = vpack.c.b16 %v7598, %v7597
        %v7728 = vpack.c.b16 %v7600, %v7599
        %v7729 = vpack.c.b16 %v7602, %v7601
        %v7730 = vpack.c.b16 %v7604, %v7603
        %v7731 = vpack.c.b16 %v7606, %v7605
        %v7732 = vpack.c.b16 %v7608, %v7607
        %v7733 = vpack.c.b16 %v7610, %v7609
        %v7734 = vpack.c.b16 %v7612, %v7611
        %v7735 = vpack.c.b16 %v7614, %v7613
        %v7736 = vpack.c.b16 %v7616, %v7615
        %v7737 = vpack.c.b16 %v7618, %v7617
        %v7738 = vpack.c.b16 %v7620, %v7619
        %v7739 = vpack.c.b16 %v7622, %v7621
        %v7740 = vpack.c.b16 %v7624, %v7623
        %v7741 = vpack.c.b16 %v7626, %v7625
        %v7742 = vpack.c.b16 %v7628, %v7627
        %v7743 = vpack.c.b16 %v7630, %v7629
        %v7744 = vpack.c.b16 %v7632, %v7631
        %v7745 = vpack.c.b16 %v7634, %v7633
        %v7746 = vpack.c.b16 %v7636, %v7635
        %v7747 = vpack.c.b16 %v7638, %v7637
        %v7748 = vpack.c.b16 %v7640, %v7639
        %v7749 = vpack.c.b16 %v7642, %v7641
        %v7750 = vpack.c.b16 %v7644, %v7643
        %v7751 = vpack.c.b16 %v7646, %v7645
        %v7752 = vpack.c.b16 %v7648, %v7647
        %v7753 = vpack.c.b16 %v7650, %v7649
        %v7754 = vpack.c.b16 %v7652, %v7651
        %v7755 = vpack.c.b16 %v7654, %v7653
        %v7756 = vpack.c.b16 %v7656, %v7655
        %v7757 = vpack.c.b16 %v7658, %v7657
        %v7758 = vpack.c.b16 %v7660, %v7659
        %v7759 = vpack.c.b16 %v7662, %v7661
        %v7760 = vpack.c.b16 %v7664, %v7663
        %v7761 = vpack.c.b16 %v7666, %v7665
        %v7762 = vpack.c.b16 %v7668, %v7667
        %v7763 = vpack.c.b16 %v7670, %v7669
        %v7764 = vpack.c.b16 %v7672, %v7671
        %v7765 = vpack.c.b16 %v7674, %v7673
        %v7766 = vpack.c.b16 %v7676, %v7675
        %v7767 = vpack.c.b16 %v7678, %v7677
        %v7768 = vpack.c.b16 %v7680, %v7679
        %v7769 = vpack.c.b16 %v7682, %v7681
        %v7770 = vpack.c.b16 %v7684, %v7683
        %v7771 = vpack.c.b16 %v7686, %v7685
        %v7772 = vpack.c.b16 %v7688, %v7687
        %v7773 = vpack.c.b16 %v7690, %v7689
        %v7774 = vpack.c.b16 %v7692, %v7691
        %v7775 = vpack.c.b16 %v7694, %v7693
        %v7776 = vpack.c.b16 %v7696, %v7695
        %v7777 = vpack.c.b16 %v7698, %v7697
        %v7778 = vpack.c.b16 %v7700, %v7699
        %v7779 = vpack.c.b16 %v7702, %v7701
        %v7780 = vpack.c.b16 %v7704, %v7703
        %v7781 = vpack.c.b16 %v7706, %v7705
        %v7782 = vpack.c.b16 %v7708, %v7707
        %v7783 = vpack.c.b16 %v7710, %v7709
        %v7784 = vpack.c.b16 %v7712, %v7711
        %7857 = vmatprep.subr.bf16.mxu0 0
        %7858 = vmatpush1.bf16.msra.mxu0 %v7713
        %7859 = vmatprep.subr.bf16.mxu0 0
        %7860 = vmatpush1.bf16.msra.mxu0 %v7714
        %7861 = vmatprep.subr.bf16.mxu0 0
        %7862 = vmatpush1.bf16.msra.mxu0 %v7715
        %7863 = vmatprep.subr.bf16.mxu0 0
        %7864 = vmatpush1.bf16.msra.mxu0 %v7716
        %7865 = vmatprep.subr.bf16.mxu0 0
        %7866 = vmatpush1.bf16.msra.mxu0 %v7717
        %7867 = vmatprep.subr.bf16.mxu0 0
        %7868 = vmatpush1.bf16.msra.mxu0 %v7718
        %7869 = vmatprep.subr.bf16.mxu0 0
        %7870 = vmatpush1.bf16.msra.mxu0 %v7719
        %7871 = vmatprep.subr.bf16.mxu0 0
        %7872 = vmatpush1.bf16.msra.mxu0 %v7720
        %7873 = vmatprep.subr.bf16.mxu0 0
        %7874 = vmatpush1.bf16.msra.mxu0 %v7721
        %7875 = vmatprep.subr.bf16.mxu0 0
        %7876 = vmatpush1.bf16.msra.mxu0 %v7722
        %7877 = vmatprep.subr.bf16.mxu0 0
        %7878 = vmatpush1.bf16.msra.mxu0 %v7723
        %7879 = vmatprep.subr.bf16.mxu0 0
        %7880 = vmatpush1.bf16.msra.mxu0 %v7724
        %7881 = vmatprep.subr.bf16.mxu0 0
        %7882 = vmatpush1.bf16.msra.mxu0 %v7725
        %7883 = vmatprep.subr.bf16.mxu0 0
        %7884 = vmatpush1.bf16.msra.mxu0 %v7726
        %7885 = vmatprep.subr.bf16.mxu0 0
        %7886 = vmatpush1.bf16.msra.mxu0 %v7727
        %7887 = vmatprep.subr.bf16.mxu0 0
        %7888 = vmatpush1.bf16.msra.mxu0 %v7728
        %7889 = vmatprep.mubr.bf16.mxu0 %v7138
        %7890 = vmatmul.mubr.bf16.gmra.mrb[0].mxu0 %v7137
        %v7891 = vpop.f32.mrb[0].mxu0
        %v7892 = vadd.f32 0.0, %v7891
        %v7893 = vpop.f32.mrb[0].mxu0
        %v7894 = vpop.f32.mrb[0].mxu0
        %v7895 = vadd.f32 0.0, %v7894
        %v7896 = vpop.f32.mrb[0].mxu0
        %7897 = vmatprep.mubr.bf16.mxu0 %v7147
        %7898 = vmatmul.mubr.bf16.gmra.mrb[0].mxu0 %v7146
        %v7899 = vpop.f32.mrb[0].mxu0
        %v7900 = vadd.f32 0.0, %v7899
        %v7901 = vpop.f32.mrb[0].mxu0
        %v7902 = vpop.f32.mrb[0].mxu0
        %v7903 = vadd.f32 0.0, %v7902
        %v7904 = vpop.f32.mrb[0].mxu0
        %7905 = vmatprep.mubr.bf16.mxu0 %v7156
        %7906 = vmatmul.mubr.bf16.gmra.mrb[0].mxu0 %v7155
        %v7907 = vpop.f32.mrb[0].mxu0
        %v7908 = vadd.f32 0.0, %v7907
        %v7909 = vpop.f32.mrb[0].mxu0
        %v7910 = vpop.f32.mrb[0].mxu0
        %v7911 = vadd.f32 0.0, %v7910
        %v7912 = vpop.f32.mrb[0].mxu0
        %7913 = vmatprep.mubr.bf16.mxu0 %v7165
        %7914 = vmatmul.mubr.bf16.gmra.mrb[0].mxu0 %v7164
        %v7915 = vpop.f32.mrb[0].mxu0
        %v7916 = vadd.f32 0.0, %v7915
        %v7917 = vpop.f32.mrb[0].mxu0
        %v7918 = vpop.f32.mrb[0].mxu0
        %v7919 = vadd.f32 0.0, %v7918
        %v7920 = vpop.f32.mrb[0].mxu0
        %7921 = vmatprep.mubr.bf16.mxu0 %v7174
        %7922 = vmatmul.mubr.bf16.gmra.mrb[0].mxu0 %v7173
        %v7923 = vpop.f32.mrb[0].mxu0
        %v7924 = vadd.f32 0.0, %v7923
        %v7925 = vpop.f32.mrb[0].mxu0
        %v7926 = vpop.f32.mrb[0].mxu0
        %v7927 = vadd.f32 0.0, %v7926
        %v7928 = vpop.f32.mrb[0].mxu0
        %7929 = vmatprep.mubr.bf16.mxu0 %v7183
        %7930 = vmatmul.mubr.bf16.gmra.mrb[0].mxu0 %v7182
        %v7931 = vpop.f32.mrb[0].mxu0
        %v7932 = vadd.f32 0.0, %v7931
        %v7933 = vpop.f32.mrb[0].mxu0
        %v7934 = vpop.f32.mrb[0].mxu0
        %v7935 = vadd.f32 0.0, %v7934
        %v7936 = vpop.f32.mrb[0].mxu0
        %7937 = vmatprep.mubr.bf16.mxu0 %v7192
        %7938 = vmatmul.mubr.bf16.gmra.mrb[0].mxu0 %v7191
        %v7939 = vpop.f32.mrb[0].mxu0
        %v7940 = vadd.f32 0.0, %v7939
        %v7941 = vpop.f32.mrb[0].mxu0
        %v7942 = vpop.f32.mrb[0].mxu0
        %v7943 = vadd.f32 0.0, %v7942
        %v7944 = vpop.f32.mrb[0].mxu0
        %7945 = vmatprep.mubr.bf16.mxu0 %v7201
        %7946 = vmatmul.mubr.bf16.gmra.mrb[0].mxu0 %v7200
        %v7947 = vpop.f32.mrb[0].mxu0
        %v7948 = vadd.f32 0.0, %v7947
        %v7949 = vpop.f32.mrb[0].mxu0
        %v7950 = vpop.f32.mrb[0].mxu0
        %v7951 = vadd.f32 0.0, %v7950
        %v7952 = vpop.f32.mrb[0].mxu0
        %7953 = vmatprep.mubr.bf16.mxu0 %v7210
        %7954 = vmatmul.mubr.bf16.gmra.mrb[0].mxu0 %v7209
        %v7955 = vpop.f32.mrb[0].mxu0
        %v7956 = vadd.f32 0.0, %v7955
        %v7957 = vpop.f32.mrb[0].mxu0
        %v7958 = vpop.f32.mrb[0].mxu0
        %v7959 = vadd.f32 0.0, %v7958
        %v7960 = vpop.f32.mrb[0].mxu0
        %7961 = vmatprep.mubr.bf16.mxu0 %v7219
        %7962 = vmatmul.mubr.bf16.gmra.mrb[0].mxu0 %v7218
        %v7963 = vpop.f32.mrb[0].mxu0
        %v7964 = vadd.f32 0.0, %v7963
        %v7965 = vpop.f32.mrb[0].mxu0
        %v7966 = vpop.f32.mrb[0].mxu0
        %v7967 = vadd.f32 0.0, %v7966
        %v7968 = vpop.f32.mrb[0].mxu0
        %7969 = vmatprep.mubr.bf16.mxu0 %v7228
        %7970 = vmatmul.mubr.bf16.gmra.mrb[0].mxu0 %v7227
        %v7971 = vpop.f32.mrb[0].mxu0
        %v7972 = vadd.f32 0.0, %v7971
        %v7973 = vpop.f32.mrb[0].mxu0
        %v7974 = vpop.f32.mrb[0].mxu0
        %v7975 = vadd.f32 0.0, %v7974
        %v7976 = vpop.f32.mrb[0].mxu0
        %7977 = vmatprep.mubr.bf16.mxu0 %v7237
        %7978 = vmatmul.mubr.bf16.gmra.mrb[0].mxu0 %v7236
        %v7979 = vpop.f32.mrb[0].mxu0
        %v7980 = vadd.f32 0.0, %v7979
        %v7981 = vpop.f32.mrb[0].mxu0
        %v7982 = vpop.f32.mrb[0].mxu0
        %v7983 = vadd.f32 0.0, %v7982
        %v7984 = vpop.f32.mrb[0].mxu0
        %7985 = vmatprep.mubr.bf16.mxu0 %v7246
        %7986 = vmatmul.mubr.bf16.gmra.mrb[0].mxu0 %v7245
        %v7987 = vpop.f32.mrb[0].mxu0
        %v7988 = vadd.f32 0.0, %v7987
        %v7989 = vpop.f32.mrb[0].mxu0
        %v7990 = vpop.f32.mrb[0].mxu0
        %v7991 = vadd.f32 0.0, %v7990
        %v7992 = vpop.f32.mrb[0].mxu0
        %7993 = vmatprep.mubr.bf16.mxu0 %v7255
        %7994 = vmatmul.mubr.bf16.gmra.mrb[0].mxu0 %v7254
        %v7995 = vpop.f32.mrb[0].mxu0
        %v7996 = vadd.f32 0.0, %v7995
        %v7997 = vpop.f32.mrb[0].mxu0
        %v7998 = vpop.f32.mrb[0].mxu0
        %v7999 = vadd.f32 0.0, %v7998
        %v8000 = vpop.f32.mrb[0].mxu0
        %8001 = vmatprep.mubr.bf16.mxu0 %v7264
        %8002 = vmatmul.mubr.bf16.gmra.mrb[0].mxu0 %v7263
        %v8003 = vpop.f32.mrb[0].mxu0
        %v8004 = vadd.f32 0.0, %v8003
        %v8005 = vpop.f32.mrb[0].mxu0
        %v8006 = vpop.f32.mrb[0].mxu0
        %v8007 = vadd.f32 0.0, %v8006
        %v8008 = vpop.f32.mrb[0].mxu0
        %8009 = vmatprep.mubr.bf16.mxu0 %v7273
        %8010 = vmatmul.mubr.bf16.gmra.mrb[0].mxu0 %v7272
        %v8011 = vpop.f32.mrb[0].mxu0
        %v8012 = vadd.f32 0.0, %v8011
        %v8013 = vpop.f32.mrb[0].mxu0
        %v8014 = vpop.f32.mrb[0].mxu0
        %v8015 = vadd.f32 0.0, %v8014
        %v8016 = vpop.f32.mrb[0].mxu0
        %8017 = vdwg.mxu0
        %8018 = vmatprep.subr.bf16.mxu0 0
        %8019 = vmatpush1.bf16.msra.mxu0 %v7729
        %8020 = vmatprep.subr.bf16.mxu0 0
        %8021 = vmatpush1.bf16.msra.mxu0 %v7730
        %8022 = vmatprep.subr.bf16.mxu0 0
        %8023 = vmatpush1.bf16.msra.mxu0 %v7731
        %8024 = vmatprep.subr.bf16.mxu0 0
        %8025 = vmatpush1.bf16.msra.mxu0 %v7732
        %8026 = vmatprep.subr.bf16.mxu0 0
        %8027 = vmatpush1.bf16.msra.mxu0 %v7733
        %8028 = vmatprep.subr.bf16.mxu0 0
        %8029 = vmatpush1.bf16.msra.mxu0 %v7734
        %8030 = vmatprep.subr.bf16.mxu0 0
        %8031 = vmatpush1.bf16.msra.mxu0 %v7735
        %8032 = vmatprep.subr.bf16.mxu0 0
        %8033 = vmatpush1.bf16.msra.mxu0 %v7736
        %8034 = vmatprep.subr.bf16.mxu0 0
        %8035 = vmatpush1.bf16.msra.mxu0 %v7737
        %8036 = vmatprep.subr.bf16.mxu0 0
        %8037 = vmatpush1.bf16.msra.mxu0 %v7738
        %8038 = vmatprep.subr.bf16.mxu0 0
        %8039 = vmatpush1.bf16.msra.mxu0 %v7739
        %8040 = vmatprep.subr.bf16.mxu0 0
        %8041 = vmatpush1.bf16.msra.mxu0 %v7740
        %8042 = vmatprep.subr.bf16.mxu0 0
        %8043 = vmatpush1.bf16.msra.mxu0 %v7741
        %8044 = vmatprep.subr.bf16.mxu0 0
        %8045 = vmatpush1.bf16.msra.mxu0 %v7742
        %8046 = vmatprep.subr.bf16.mxu0 0
        %8047 = vmatpush1.bf16.msra.mxu0 %v7743
        %8048 = vmatprep.subr.bf16.mxu0 0
        %8049 = vmatpush1.bf16.msra.mxu0 %v7744
        %8050 = vmatprep.mubr.bf16.mxu0 %v7140
        %8051 = vmatmul.mubr.bf16.gmra.mrb[0].mxu0 %v7139
        %v8052 = vpop.f32.mrb[0].mxu0
        %v8053 = vadd.f32 %v7892, %v8052
        %v8054 = vpop.f32.mrb[0].mxu0
        %v8055 = vpop.f32.mrb[0].mxu0
        %v8056 = vadd.f32 %v7895, %v8055
        %v8057 = vpop.f32.mrb[0].mxu0
        %8058 = vmatprep.mubr.bf16.mxu0 %v7149
        %8059 = vmatmul.mubr.bf16.gmra.mrb[0].mxu0 %v7148
        %v8060 = vpop.f32.mrb[0].mxu0
        %v8061 = vadd.f32 %v7900, %v8060
        %v8062 = vpop.f32.mrb[0].mxu0
        %v8063 = vpop.f32.mrb[0].mxu0
        %v8064 = vadd.f32 %v7903, %v8063
        %v8065 = vpop.f32.mrb[0].mxu0
        %8066 = vmatprep.mubr.bf16.mxu0 %v7158
        %8067 = vmatmul.mubr.bf16.gmra.mrb[0].mxu0 %v7157
        %v8068 = vpop.f32.mrb[0].mxu0
        %v8069 = vadd.f32 %v7908, %v8068
        %v8070 = vpop.f32.mrb[0].mxu0
        %v8071 = vpop.f32.mrb[0].mxu0
        %v8072 = vadd.f32 %v7911, %v8071
        %v8073 = vpop.f32.mrb[0].mxu0
        %8074 = vmatprep.mubr.bf16.mxu0 %v7167
        %8075 = vmatmul.mubr.bf16.gmra.mrb[0].mxu0 %v7166
        %v8076 = vpop.f32.mrb[0].mxu0
        %v8077 = vadd.f32 %v7916, %v8076
        %v8078 = vpop.f32.mrb[0].mxu0
        %v8079 = vpop.f32.mrb[0].mxu0
        %v8080 = vadd.f32 %v7919, %v8079
        %v8081 = vpop.f32.mrb[0].mxu0
        %8082 = vmatprep.mubr.bf16.mxu0 %v7176
        %8083 = vmatmul.mubr.bf16.gmra.mrb[0].mxu0 %v7175
        %v8084 = vpop.f32.mrb[0].mxu0
        %v8085 = vadd.f32 %v7924, %v8084
        %v8086 = vpop.f32.mrb[0].mxu0
        %v8087 = vpop.f32.mrb[0].mxu0
        %v8088 = vadd.f32 %v7927, %v8087
        %v8089 = vpop.f32.mrb[0].mxu0
        %8090 = vmatprep.mubr.bf16.mxu0 %v7185
        %8091 = vmatmul.mubr.bf16.gmra.mrb[0].mxu0 %v7184
        %v8092 = vpop.f32.mrb[0].mxu0
        %v8093 = vadd.f32 %v7932, %v8092
        %v8094 = vpop.f32.mrb[0].mxu0
        %v8095 = vpop.f32.mrb[0].mxu0
        %v8096 = vadd.f32 %v7935, %v8095
        %v8097 = vpop.f32.mrb[0].mxu0
        %8098 = vmatprep.mubr.bf16.mxu0 %v7194
        %8099 = vmatmul.mubr.bf16.gmra.mrb[0].mxu0 %v7193
        %v8100 = vpop.f32.mrb[0].mxu0
        %v8101 = vadd.f32 %v7940, %v8100
        %v8102 = vpop.f32.mrb[0].mxu0
        %v8103 = vpop.f32.mrb[0].mxu0
        %v8104 = vadd.f32 %v7943, %v8103
        %v8105 = vpop.f32.mrb[0].mxu0
        %8106 = vmatprep.mubr.bf16.mxu0 %v7203
        %8107 = vmatmul.mubr.bf16.gmra.mrb[0].mxu0 %v7202
        %v8108 = vpop.f32.mrb[0].mxu0
        %v8109 = vadd.f32 %v7948, %v8108
        %v8110 = vpop.f32.mrb[0].mxu0
        %v8111 = vpop.f32.mrb[0].mxu0
        %v8112 = vadd.f32 %v7951, %v8111
        %v8113 = vpop.f32.mrb[0].mxu0
        %8114 = vmatprep.mubr.bf16.mxu0 %v7212
        %8115 = vmatmul.mubr.bf16.gmra.mrb[0].mxu0 %v7211
        %v8116 = vpop.f32.mrb[0].mxu0
        %v8117 = vadd.f32 %v7956, %v8116
        %v8118 = vpop.f32.mrb[0].mxu0
        %v8119 = vpop.f32.mrb[0].mxu0
        %v8120 = vadd.f32 %v7959, %v8119
        %v8121 = vpop.f32.mrb[0].mxu0
        %8122 = vmatprep.mubr.bf16.mxu0 %v7221
        %8123 = vmatmul.mubr.bf16.gmra.mrb[0].mxu0 %v7220
        %v8124 = vpop.f32.mrb[0].mxu0
        %v8125 = vadd.f32 %v7964, %v8124
        %v8126 = vpop.f32.mrb[0].mxu0
        %v8127 = vpop.f32.mrb[0].mxu0
        %v8128 = vadd.f32 %v7967, %v8127
        %v8129 = vpop.f32.mrb[0].mxu0
        %8130 = vmatprep.mubr.bf16.mxu0 %v7230
        %8131 = vmatmul.mubr.bf16.gmra.mrb[0].mxu0 %v7229
        %v8132 = vpop.f32.mrb[0].mxu0
        %v8133 = vadd.f32 %v7972, %v8132
        %v8134 = vpop.f32.mrb[0].mxu0
        %v8135 = vpop.f32.mrb[0].mxu0
        %v8136 = vadd.f32 %v7975, %v8135
        %v8137 = vpop.f32.mrb[0].mxu0
        %8138 = vmatprep.mubr.bf16.mxu0 %v7239
        %8139 = vmatmul.mubr.bf16.gmra.mrb[0].mxu0 %v7238
        %v8140 = vpop.f32.mrb[0].mxu0
        %v8141 = vadd.f32 %v7980, %v8140
        %v8142 = vpop.f32.mrb[0].mxu0
        %v8143 = vpop.f32.mrb[0].mxu0
        %v8144 = vadd.f32 %v7983, %v8143
        %v8145 = vpop.f32.mrb[0].mxu0
        %8146 = vmatprep.mubr.bf16.mxu0 %v7248
        %8147 = vmatmul.mubr.bf16.gmra.mrb[0].mxu0 %v7247
        %v8148 = vpop.f32.mrb[0].mxu0
        %v8149 = vadd.f32 %v7988, %v8148
        %v8150 = vpop.f32.mrb[0].mxu0
        %v8151 = vpop.f32.mrb[0].mxu0
        %v8152 = vadd.f32 %v7991, %v8151
        %v8153 = vpop.f32.mrb[0].mxu0
        %8154 = vmatprep.mubr.bf16.mxu0 %v7257
        %8155 = vmatmul.mubr.bf16.gmra.mrb[0].mxu0 %v7256
        %v8156 = vpop.f32.mrb[0].mxu0
        %v8157 = vadd.f32 %v7996, %v8156
        %v8158 = vpop.f32.mrb[0].mxu0
        %v8159 = vpop.f32.mrb[0].mxu0
        %v8160 = vadd.f32 %v7999, %v8159
        %v8161 = vpop.f32.mrb[0].mxu0
        %8162 = vmatprep.mubr.bf16.mxu0 %v7266
        %8163 = vmatmul.mubr.bf16.gmra.mrb[0].mxu0 %v7265
        %v8164 = vpop.f32.mrb[0].mxu0
        %v8165 = vadd.f32 %v8004, %v8164
        %v8166 = vpop.f32.mrb[0].mxu0
        %v8167 = vpop.f32.mrb[0].mxu0
        %v8168 = vadd.f32 %v8007, %v8167
        %v8169 = vpop.f32.mrb[0].mxu0
        %8170 = vmatprep.mubr.bf16.mxu0 %v7275
        %8171 = vmatmul.mubr.bf16.gmra.mrb[0].mxu0 %v7274
        %v8172 = vpop.f32.mrb[0].mxu0
        %v8173 = vadd.f32 %v8012, %v8172
        %v8174 = vpop.f32.mrb[0].mxu0
        %v8175 = vpop.f32.mrb[0].mxu0
        %v8176 = vadd.f32 %v8015, %v8175
        %v8177 = vpop.f32.mrb[0].mxu0
        %8178 = vdwg.mxu0
        %8179 = vmatprep.subr.bf16.mxu0 0
        %8180 = vmatpush1.bf16.msra.mxu0 %v7745
        %8181 = vmatprep.subr.bf16.mxu0 0
        %8182 = vmatpush1.bf16.msra.mxu0 %v7746
        %8183 = vmatprep.subr.bf16.mxu0 0
        %8184 = vmatpush1.bf16.msra.mxu0 %v7747
        %8185 = vmatprep.subr.bf16.mxu0 0
        %8186 = vmatpush1.bf16.msra.mxu0 %v7748
        %8187 = vmatprep.subr.bf16.mxu0 0
        %8188 = vmatpush1.bf16.msra.mxu0 %v7749
        %8189 = vmatprep.subr.bf16.mxu0 0
        %8190 = vmatpush1.bf16.msra.mxu0 %v7750
        %8191 = vmatprep.subr.bf16.mxu0 0
        %8192 = vmatpush1.bf16.msra.mxu0 %v7751
        %8193 = vmatprep.subr.bf16.mxu0 0
        %8194 = vmatpush1.bf16.msra.mxu0 %v7752
        %8195 = vmatprep.subr.bf16.mxu0 0
        %8196 = vmatpush1.bf16.msra.mxu0 %v7753
        %8197 = vmatprep.subr.bf16.mxu0 0
        %8198 = vmatpush1.bf16.msra.mxu0 %v7754
        %8199 = vmatprep.subr.bf16.mxu0 0
        %8200 = vmatpush1.bf16.msra.mxu0 %v7755
        %8201 = vmatprep.subr.bf16.mxu0 0
        %8202 = vmatpush1.bf16.msra.mxu0 %v7756
        %8203 = vmatprep.subr.bf16.mxu0 0
        %8204 = vmatpush1.bf16.msra.mxu0 %v7757
        %8205 = vmatprep.subr.bf16.mxu0 0
        %8206 = vmatpush1.bf16.msra.mxu0 %v7758
        %8207 = vmatprep.subr.bf16.mxu0 0
        %8208 = vmatpush1.bf16.msra.mxu0 %v7759
        %8209 = vmatprep.subr.bf16.mxu0 0
        %8210 = vmatpush1.bf16.msra.mxu0 %v7760
        %8211 = vmatprep.mubr.bf16.mxu0 %v7142
        %8212 = vmatmul.mubr.bf16.gmra.mrb[0].mxu0 %v7141
        %v8213 = vpop.f32.mrb[0].mxu0
        %v8214 = vadd.f32 %v8053, %v8213
        %v8215 = vpop.f32.mrb[0].mxu0
        %v8216 = vpop.f32.mrb[0].mxu0
        %v8217 = vadd.f32 %v8056, %v8216
        %v8218 = vpop.f32.mrb[0].mxu0
        %8219 = vmatprep.mubr.bf16.mxu0 %v7151
        %8220 = vmatmul.mubr.bf16.gmra.mrb[0].mxu0 %v7150
        %v8221 = vpop.f32.mrb[0].mxu0
        %v8222 = vadd.f32 %v8061, %v8221
        %v8223 = vpop.f32.mrb[0].mxu0
        %v8224 = vpop.f32.mrb[0].mxu0
        %v8225 = vadd.f32 %v8064, %v8224
        %v8226 = vpop.f32.mrb[0].mxu0
        %8227 = vmatprep.mubr.bf16.mxu0 %v7160
        %8228 = vmatmul.mubr.bf16.gmra.mrb[0].mxu0 %v7159
        %v8229 = vpop.f32.mrb[0].mxu0
        %v8230 = vadd.f32 %v8069, %v8229
        %v8231 = vpop.f32.mrb[0].mxu0
        %v8232 = vpop.f32.mrb[0].mxu0
        %v8233 = vadd.f32 %v8072, %v8232
        %v8234 = vpop.f32.mrb[0].mxu0
        %8235 = vmatprep.mubr.bf16.mxu0 %v7169
        %8236 = vmatmul.mubr.bf16.gmra.mrb[0].mxu0 %v7168
        %v8237 = vpop.f32.mrb[0].mxu0
        %v8238 = vadd.f32 %v8077, %v8237
        %v8239 = vpop.f32.mrb[0].mxu0
        %v8240 = vpop.f32.mrb[0].mxu0
        %v8241 = vadd.f32 %v8080, %v8240
        %v8242 = vpop.f32.mrb[0].mxu0
        %8243 = vmatprep.mubr.bf16.mxu0 %v7178
        %8244 = vmatmul.mubr.bf16.gmra.mrb[0].mxu0 %v7177
        %v8245 = vpop.f32.mrb[0].mxu0
        %v8246 = vadd.f32 %v8085, %v8245
        %v8247 = vpop.f32.mrb[0].mxu0
        %v8248 = vpop.f32.mrb[0].mxu0
        %v8249 = vadd.f32 %v8088, %v8248
        %v8250 = vpop.f32.mrb[0].mxu0
        %8251 = vmatprep.mubr.bf16.mxu0 %v7187
        %8252 = vmatmul.mubr.bf16.gmra.mrb[0].mxu0 %v7186
        %v8253 = vpop.f32.mrb[0].mxu0
        %v8254 = vadd.f32 %v8093, %v8253
        %v8255 = vpop.f32.mrb[0].mxu0
        %v8256 = vpop.f32.mrb[0].mxu0
        %v8257 = vadd.f32 %v8096, %v8256
        %v8258 = vpop.f32.mrb[0].mxu0
        %8259 = vmatprep.mubr.bf16.mxu0 %v7196
        %8260 = vmatmul.mubr.bf16.gmra.mrb[0].mxu0 %v7195
        %v8261 = vpop.f32.mrb[0].mxu0
        %v8262 = vadd.f32 %v8101, %v8261
        %v8263 = vpop.f32.mrb[0].mxu0
        %v8264 = vpop.f32.mrb[0].mxu0
        %v8265 = vadd.f32 %v8104, %v8264
        %v8266 = vpop.f32.mrb[0].mxu0
        %8267 = vmatprep.mubr.bf16.mxu0 %v7205
        %8268 = vmatmul.mubr.bf16.gmra.mrb[0].mxu0 %v7204
        %v8269 = vpop.f32.mrb[0].mxu0
        %v8270 = vadd.f32 %v8109, %v8269
        %v8271 = vpop.f32.mrb[0].mxu0
        %v8272 = vpop.f32.mrb[0].mxu0
        %v8273 = vadd.f32 %v8112, %v8272
        %v8274 = vpop.f32.mrb[0].mxu0
        %8275 = vmatprep.mubr.bf16.mxu0 %v7214
        %8276 = vmatmul.mubr.bf16.gmra.mrb[0].mxu0 %v7213
        %v8277 = vpop.f32.mrb[0].mxu0
        %v8278 = vadd.f32 %v8117, %v8277
        %v8279 = vpop.f32.mrb[0].mxu0
        %v8280 = vpop.f32.mrb[0].mxu0
        %v8281 = vadd.f32 %v8120, %v8280
        %v8282 = vpop.f32.mrb[0].mxu0
        %8283 = vmatprep.mubr.bf16.mxu0 %v7223
        %8284 = vmatmul.mubr.bf16.gmra.mrb[0].mxu0 %v7222
        %v8285 = vpop.f32.mrb[0].mxu0
        %v8286 = vadd.f32 %v8125, %v8285
        %v8287 = vpop.f32.mrb[0].mxu0
        %v8288 = vpop.f32.mrb[0].mxu0
        %v8289 = vadd.f32 %v8128, %v8288
        %v8290 = vpop.f32.mrb[0].mxu0
        %8291 = vmatprep.mubr.bf16.mxu0 %v7232
        %8292 = vmatmul.mubr.bf16.gmra.mrb[0].mxu0 %v7231
        %v8293 = vpop.f32.mrb[0].mxu0
        %v8294 = vadd.f32 %v8133, %v8293
        %v8295 = vpop.f32.mrb[0].mxu0
        %v8296 = vpop.f32.mrb[0].mxu0
        %v8297 = vadd.f32 %v8136, %v8296
        %v8298 = vpop.f32.mrb[0].mxu0
        %8299 = vmatprep.mubr.bf16.mxu0 %v7241
        %8300 = vmatmul.mubr.bf16.gmra.mrb[0].mxu0 %v7240
        %v8301 = vpop.f32.mrb[0].mxu0
        %v8302 = vadd.f32 %v8141, %v8301
        %v8303 = vpop.f32.mrb[0].mxu0
        %v8304 = vpop.f32.mrb[0].mxu0
        %v8305 = vadd.f32 %v8144, %v8304
        %v8306 = vpop.f32.mrb[0].mxu0
        %8307 = vmatprep.mubr.bf16.mxu0 %v7250
        %8308 = vmatmul.mubr.bf16.gmra.mrb[0].mxu0 %v7249
        %v8309 = vpop.f32.mrb[0].mxu0
        %v8310 = vadd.f32 %v8149, %v8309
        %v8311 = vpop.f32.mrb[0].mxu0
        %v8312 = vpop.f32.mrb[0].mxu0
        %v8313 = vadd.f32 %v8152, %v8312
        %v8314 = vpop.f32.mrb[0].mxu0
        %8315 = vmatprep.mubr.bf16.mxu0 %v7259
        %8316 = vmatmul.mubr.bf16.gmra.mrb[0].mxu0 %v7258
        %v8317 = vpop.f32.mrb[0].mxu0
        %v8318 = vadd.f32 %v8157, %v8317
        %v8319 = vpop.f32.mrb[0].mxu0
        %v8320 = vpop.f32.mrb[0].mxu0
        %v8321 = vadd.f32 %v8160, %v8320
        %v8322 = vpop.f32.mrb[0].mxu0
        %8323 = vmatprep.mubr.bf16.mxu0 %v7268
        %8324 = vmatmul.mubr.bf16.gmra.mrb[0].mxu0 %v7267
        %v8325 = vpop.f32.mrb[0].mxu0
        %v8326 = vadd.f32 %v8165, %v8325
        %v8327 = vpop.f32.mrb[0].mxu0
        %v8328 = vpop.f32.mrb[0].mxu0
        %v8329 = vadd.f32 %v8168, %v8328
        %v8330 = vpop.f32.mrb[0].mxu0
        %8331 = vmatprep.mubr.bf16.mxu0 %v7277
        %8332 = vmatmul.mubr.bf16.gmra.mrb[0].mxu0 %v7276
        %v8333 = vpop.f32.mrb[0].mxu0
        %v8334 = vadd.f32 %v8173, %v8333
        %v8335 = vpop.f32.mrb[0].mxu0
        %v8336 = vpop.f32.mrb[0].mxu0
        %v8337 = vadd.f32 %v8176, %v8336
        %v8338 = vpop.f32.mrb[0].mxu0
        %8339 = vdwg.mxu0
        %8340 = vmatprep.subr.bf16.mxu0 0
        %8341 = vmatpush1.bf16.msra.mxu0 %v7761
        %8342 = vmatprep.subr.bf16.mxu0 0
        %8343 = vmatpush1.bf16.msra.mxu0 %v7762
        %8344 = vmatprep.subr.bf16.mxu0 0
        %8345 = vmatpush1.bf16.msra.mxu0 %v7763
        %8346 = vmatprep.subr.bf16.mxu0 0
        %8347 = vmatpush1.bf16.msra.mxu0 %v7764
        %8348 = vmatprep.subr.bf16.mxu0 0
        %8349 = vmatpush1.bf16.msra.mxu0 %v7765
        %8350 = vmatprep.subr.bf16.mxu0 0
        %8351 = vmatpush1.bf16.msra.mxu0 %v7766
        %8352 = vmatprep.subr.bf16.mxu0 0
        %8353 = vmatpush1.bf16.msra.mxu0 %v7767
        %8354 = vmatprep.subr.bf16.mxu0 0
        %8355 = vmatpush1.bf16.msra.mxu0 %v7768
        %8356 = vmatprep.subr.bf16.mxu0 0
        %8357 = vmatpush1.bf16.msra.mxu0 %v7769
        %8358 = vmatprep.subr.bf16.mxu0 0
        %8359 = vmatpush1.bf16.msra.mxu0 %v7770
        %8360 = vmatprep.subr.bf16.mxu0 0
        %8361 = vmatpush1.bf16.msra.mxu0 %v7771
        %8362 = vmatprep.subr.bf16.mxu0 0
        %8363 = vmatpush1.bf16.msra.mxu0 %v7772
        %8364 = vmatprep.subr.bf16.mxu0 0
        %8365 = vmatpush1.bf16.msra.mxu0 %v7773
        %8366 = vmatprep.subr.bf16.mxu0 0
        %8367 = vmatpush1.bf16.msra.mxu0 %v7774
        %8368 = vmatprep.subr.bf16.mxu0 0
        %8369 = vmatpush1.bf16.msra.mxu0 %v7775
        %8370 = vmatprep.subr.bf16.mxu0 0
        %8371 = vmatpush1.bf16.msra.mxu0 %v7776
        %8372 = vmatprep.mubr.bf16.mxu0 %v7144
        %8373 = vmatmul.mubr.bf16.gmra.mrb[0].mxu0 %v7143
        %v8374 = vpop.f32.mrb[0].mxu0
        %v8375 = vadd.f32 %v8214, %v8374
        %v8376 = vpop.f32.mrb[0].mxu0
        %v8377 = vpop.f32.mrb[0].mxu0
        %v8378 = vadd.f32 %v8217, %v8377
        %v8379 = vpop.f32.mrb[0].mxu0
        %8380 = vmatprep.mubr.bf16.mxu0 %v7153
        %8381 = vmatmul.mubr.bf16.gmra.mrb[0].mxu0 %v7152
        %v8382 = vpop.f32.mrb[0].mxu0
        %v8383 = vadd.f32 %v8222, %v8382
        %v8384 = vpop.f32.mrb[0].mxu0
        %v8385 = vpop.f32.mrb[0].mxu0
        %v8386 = vadd.f32 %v8225, %v8385
        %v8387 = vpop.f32.mrb[0].mxu0
        %8388 = vmatprep.mubr.bf16.mxu0 %v7162
        %8389 = vmatmul.mubr.bf16.gmra.mrb[0].mxu0 %v7161
        %v8390 = vpop.f32.mrb[0].mxu0
        %v8391 = vadd.f32 %v8230, %v8390
        %v8392 = vpop.f32.mrb[0].mxu0
        %v8393 = vpop.f32.mrb[0].mxu0
        %v8394 = vadd.f32 %v8233, %v8393
        %v8395 = vpop.f32.mrb[0].mxu0
        %8396 = vmatprep.mubr.bf16.mxu0 %v7171
        %8397 = vmatmul.mubr.bf16.gmra.mrb[0].mxu0 %v7170
        %v8398 = vpop.f32.mrb[0].mxu0
        %v8399 = vadd.f32 %v8238, %v8398
        %v8400 = vpop.f32.mrb[0].mxu0
        %v8401 = vpop.f32.mrb[0].mxu0
        %v8402 = vadd.f32 %v8241, %v8401
        %v8403 = vpop.f32.mrb[0].mxu0
        %8404 = vmatprep.mubr.bf16.mxu0 %v7180
        %8405 = vmatmul.mubr.bf16.gmra.mrb[0].mxu0 %v7179
        %v8406 = vpop.f32.mrb[0].mxu0
        %v8407 = vadd.f32 %v8246, %v8406
        %v8408 = vpop.f32.mrb[0].mxu0
        %v8409 = vpop.f32.mrb[0].mxu0
        %v8410 = vadd.f32 %v8249, %v8409
        %v8411 = vpop.f32.mrb[0].mxu0
        %8412 = vmatprep.mubr.bf16.mxu0 %v7189
        %8413 = vmatmul.mubr.bf16.gmra.mrb[0].mxu0 %v7188
        %v8414 = vpop.f32.mrb[0].mxu0
        %v8415 = vadd.f32 %v8254, %v8414
        %v8416 = vpop.f32.mrb[0].mxu0
        %v8417 = vpop.f32.mrb[0].mxu0
        %v8418 = vadd.f32 %v8257, %v8417
        %v8419 = vpop.f32.mrb[0].mxu0
        %8420 = vmatprep.mubr.bf16.mxu0 %v7198
        %8421 = vmatmul.mubr.bf16.gmra.mrb[0].mxu0 %v7197
        %v8422 = vpop.f32.mrb[0].mxu0
        %v8423 = vadd.f32 %v8262, %v8422
        %v8424 = vpop.f32.mrb[0].mxu0
        %v8425 = vpop.f32.mrb[0].mxu0
        %v8426 = vadd.f32 %v8265, %v8425
        %v8427 = vpop.f32.mrb[0].mxu0
        %8428 = vmatprep.mubr.bf16.mxu0 %v7207
        %8429 = vmatmul.mubr.bf16.gmra.mrb[0].mxu0 %v7206
        %v8430 = vpop.f32.mrb[0].mxu0
        %v8431 = vadd.f32 %v8270, %v8430
        %v8432 = vpop.f32.mrb[0].mxu0
        %v8433 = vpop.f32.mrb[0].mxu0
        %v8434 = vadd.f32 %v8273, %v8433
        %v8435 = vpop.f32.mrb[0].mxu0
        %8436 = vmatprep.mubr.bf16.mxu0 %v7216
        %8437 = vmatmul.mubr.bf16.gmra.mrb[0].mxu0 %v7215
        %v8438 = vpop.f32.mrb[0].mxu0
        %v8439 = vadd.f32 %v8278, %v8438
        %v8440 = vpop.f32.mrb[0].mxu0
        %v8441 = vpop.f32.mrb[0].mxu0
        %v8442 = vadd.f32 %v8281, %v8441
        %v8443 = vpop.f32.mrb[0].mxu0
        %8444 = vmatprep.mubr.bf16.mxu0 %v7225
        %8445 = vmatmul.mubr.bf16.gmra.mrb[0].mxu0 %v7224
        %v8446 = vpop.f32.mrb[0].mxu0
        %v8447 = vadd.f32 %v8286, %v8446
        %v8448 = vpop.f32.mrb[0].mxu0
        %v8449 = vpop.f32.mrb[0].mxu0
        %v8450 = vadd.f32 %v8289, %v8449
        %v8451 = vpop.f32.mrb[0].mxu0
        %8452 = vmatprep.mubr.bf16.mxu0 %v7234
        %8453 = vmatmul.mubr.bf16.gmra.mrb[0].mxu0 %v7233
        %v8454 = vpop.f32.mrb[0].mxu0
        %v8455 = vadd.f32 %v8294, %v8454
        %v8456 = vpop.f32.mrb[0].mxu0
        %v8457 = vpop.f32.mrb[0].mxu0
        %v8458 = vadd.f32 %v8297, %v8457
        %v8459 = vpop.f32.mrb[0].mxu0
        %8460 = vmatprep.mubr.bf16.mxu0 %v7243
        %8461 = vmatmul.mubr.bf16.gmra.mrb[0].mxu0 %v7242
        %v8462 = vpop.f32.mrb[0].mxu0
        %v8463 = vadd.f32 %v8302, %v8462
        %v8464 = vpop.f32.mrb[0].mxu0
        %v8465 = vpop.f32.mrb[0].mxu0
        %v8466 = vadd.f32 %v8305, %v8465
        %v8467 = vpop.f32.mrb[0].mxu0
        %8468 = vmatprep.mubr.bf16.mxu0 %v7252
        %8469 = vmatmul.mubr.bf16.gmra.mrb[0].mxu0 %v7251
        %v8470 = vpop.f32.mrb[0].mxu0
        %v8471 = vadd.f32 %v8310, %v8470
        %v8472 = vpop.f32.mrb[0].mxu0
        %v8473 = vpop.f32.mrb[0].mxu0
        %v8474 = vadd.f32 %v8313, %v8473
        %v8475 = vpop.f32.mrb[0].mxu0
        %8476 = vmatprep.mubr.bf16.mxu0 %v7261
        %8477 = vmatmul.mubr.bf16.gmra.mrb[0].mxu0 %v7260
        %v8478 = vpop.f32.mrb[0].mxu0
        %v8479 = vadd.f32 %v8318, %v8478
        %v8480 = vpop.f32.mrb[0].mxu0
        %v8481 = vpop.f32.mrb[0].mxu0
        %v8482 = vadd.f32 %v8321, %v8481
        %v8483 = vpop.f32.mrb[0].mxu0
        %8484 = vmatprep.mubr.bf16.mxu0 %v7270
        %8485 = vmatmul.mubr.bf16.gmra.mrb[0].mxu0 %v7269
        %v8486 = vpop.f32.mrb[0].mxu0
        %v8487 = vadd.f32 %v8326, %v8486
        %v8488 = vpop.f32.mrb[0].mxu0
        %v8489 = vpop.f32.mrb[0].mxu0
        %v8490 = vadd.f32 %v8329, %v8489
        %v8491 = vpop.f32.mrb[0].mxu0
        %8492 = vmatprep.mubr.bf16.mxu0 %v7279
        %8493 = vmatmul.mubr.bf16.gmra.mrb[0].mxu0 %v7278
        %v8494 = vpop.f32.mrb[0].mxu0
        %v8495 = vadd.f32 %v8334, %v8494
        %v8496 = vpop.f32.mrb[0].mxu0
        %v8497 = vpop.f32.mrb[0].mxu0
        %v8498 = vadd.f32 %v8337, %v8497
        %v8499 = vpop.f32.mrb[0].mxu0
        %8500 = vdwg.mxu0
        %8501 = vmatprep.subr.bf16.mxu0 0
        %8502 = vmatpush1.bf16.msra.mxu0 %v7777
        %8503 = vmatprep.subr.bf16.mxu0 0
        %8504 = vmatpush1.bf16.msra.mxu0 %v7778
        %8505 = vmatprep.subr.bf16.mxu0 0
        %8506 = vmatpush1.bf16.msra.mxu0 %v7779
        %8507 = vmatprep.subr.bf16.mxu0 0
        %8508 = vmatpush1.bf16.msra.mxu0 %v7780
        %8509 = vmatprep.subr.bf16.mxu0 0
        %8510 = vmatpush1.bf16.msra.mxu0 %v7781
        %8511 = vmatprep.subr.bf16.mxu0 0
        %8512 = vmatpush1.bf16.msra.mxu0 %v7782
        %8513 = vmatprep.subr.bf16.mxu0 0
        %8514 = vmatpush1.bf16.msra.mxu0 %v7783
        %8515 = vmatprep.subr.bf16.mxu0 0
        %8516 = vmatpush1.bf16.msra.mxu0 %v7784
        %8517 = vmatprep.subr.bf16.mxu0 0
        %8518 = vmatpush1.bf16.msra.mxu0 0
        %8519 = vmatprep.subr.bf16.mxu0 0
        %8520 = vmatpush1.bf16.msra.mxu0 0
        %8521 = vmatprep.subr.bf16.mxu0 0
        %8522 = vmatpush1.bf16.msra.mxu0 0
        %8523 = vmatprep.subr.bf16.mxu0 0
        %8524 = vmatpush1.bf16.msra.mxu0 0
        %8525 = vmatprep.subr.bf16.mxu0 0
        %8526 = vmatpush1.bf16.msra.mxu0 0
        %8527 = vmatprep.subr.bf16.mxu0 0
        %8528 = vmatpush1.bf16.msra.mxu0 0
        %8529 = vmatprep.subr.bf16.mxu0 0
        %8530 = vmatpush1.bf16.msra.mxu0 0
        %8531 = vmatprep.subr.bf16.mxu0 0
        %8532 = vmatpush1.bf16.msra.mxu0 0
        %8533 = vmatprep.mubr.bf16.mxu0 0
        %8534 = vmatmul.mubr.bf16.gmra.mrb[0].mxu0 %v7145
        %v8535 = vpop.f32.mrb[0].mxu0
        %v8536 = vadd.f32 %v8375, %v8535
        %v8537 = vpop.f32.mrb[0].mxu0
        %v8538 = vpop.f32.mrb[0].mxu0
        %v8539 = vadd.f32 %v8378, %v8538
        %v8540 = vpop.f32.mrb[0].mxu0
        %8541 = vmatprep.mubr.bf16.mxu0 0
        %8542 = vmatmul.mubr.bf16.gmra.mrb[0].mxu0 %v7154
        %v8543 = vpop.f32.mrb[0].mxu0
        %v8544 = vadd.f32 %v8383, %v8543
        %v8545 = vpop.f32.mrb[0].mxu0
        %v8546 = vpop.f32.mrb[0].mxu0
        %v8547 = vadd.f32 %v8386, %v8546
        %v8548 = vpop.f32.mrb[0].mxu0
        %8549 = vmatprep.mubr.bf16.mxu0 0
        %8550 = vmatmul.mubr.bf16.gmra.mrb[0].mxu0 %v7163
        %v8551 = vpop.f32.mrb[0].mxu0
        %v8552 = vadd.f32 %v8391, %v8551
        %v8553 = vpop.f32.mrb[0].mxu0
        %v8554 = vpop.f32.mrb[0].mxu0
        %v8555 = vadd.f32 %v8394, %v8554
        %v8556 = vpop.f32.mrb[0].mxu0
        %8557 = vmatprep.mubr.bf16.mxu0 0
        %8558 = vmatmul.mubr.bf16.gmra.mrb[0].mxu0 %v7172
        %v8559 = vpop.f32.mrb[0].mxu0
        %v8560 = vadd.f32 %v8399, %v8559
        %v8561 = vpop.f32.mrb[0].mxu0
        %v8562 = vpop.f32.mrb[0].mxu0
        %v8563 = vadd.f32 %v8402, %v8562
        %v8564 = vpop.f32.mrb[0].mxu0
        %8565 = vmatprep.mubr.bf16.mxu0 0
        %8566 = vmatmul.mubr.bf16.gmra.mrb[0].mxu0 %v7181
        %v8567 = vpop.f32.mrb[0].mxu0
        %v8568 = vadd.f32 %v8407, %v8567
        %v8569 = vpop.f32.mrb[0].mxu0
        %v8570 = vpop.f32.mrb[0].mxu0
        %v8571 = vadd.f32 %v8410, %v8570
        %v8572 = vpop.f32.mrb[0].mxu0
        %8573 = vmatprep.mubr.bf16.mxu0 0
        %8574 = vmatmul.mubr.bf16.gmra.mrb[0].mxu0 %v7190
        %v8575 = vpop.f32.mrb[0].mxu0
        %v8576 = vadd.f32 %v8415, %v8575
        %v8577 = vpop.f32.mrb[0].mxu0
        %v8578 = vpop.f32.mrb[0].mxu0
        %v8579 = vadd.f32 %v8418, %v8578
        %v8580 = vpop.f32.mrb[0].mxu0
        %8581 = vmatprep.mubr.bf16.mxu0 0
        %8582 = vmatmul.mubr.bf16.gmra.mrb[0].mxu0 %v7199
        %v8583 = vpop.f32.mrb[0].mxu0
        %v8584 = vadd.f32 %v8423, %v8583
        %v8585 = vpop.f32.mrb[0].mxu0
        %v8586 = vpop.f32.mrb[0].mxu0
        %v8587 = vadd.f32 %v8426, %v8586
        %v8588 = vpop.f32.mrb[0].mxu0
        %8589 = vmatprep.mubr.bf16.mxu0 0
        %8590 = vmatmul.mubr.bf16.gmra.mrb[0].mxu0 %v7208
        %v8591 = vpop.f32.mrb[0].mxu0
        %v8592 = vadd.f32 %v8431, %v8591
        %v8593 = vpop.f32.mrb[0].mxu0
        %v8594 = vpop.f32.mrb[0].mxu0
        %v8595 = vadd.f32 %v8434, %v8594
        %v8596 = vpop.f32.mrb[0].mxu0
        %8597 = vmatprep.mubr.bf16.mxu0 0
        %8598 = vmatmul.mubr.bf16.gmra.mrb[0].mxu0 %v7217
        %v8599 = vpop.f32.mrb[0].mxu0
        %v8600 = vadd.f32 %v8439, %v8599
        %v8601 = vpop.f32.mrb[0].mxu0
        %v8602 = vpop.f32.mrb[0].mxu0
        %v8603 = vadd.f32 %v8442, %v8602
        %v8604 = vpop.f32.mrb[0].mxu0
        %8605 = vmatprep.mubr.bf16.mxu0 0
        %8606 = vmatmul.mubr.bf16.gmra.mrb[0].mxu0 %v7226
        %v8607 = vpop.f32.mrb[0].mxu0
        %v8608 = vadd.f32 %v8447, %v8607
        %v8609 = vpop.f32.mrb[0].mxu0
        %v8610 = vpop.f32.mrb[0].mxu0
        %v8611 = vadd.f32 %v8450, %v8610
        %v8612 = vpop.f32.mrb[0].mxu0
        %8613 = vmatprep.mubr.bf16.mxu0 0
        %8614 = vmatmul.mubr.bf16.gmra.mrb[0].mxu0 %v7235
        %v8615 = vpop.f32.mrb[0].mxu0
        %v8616 = vadd.f32 %v8455, %v8615
        %v8617 = vpop.f32.mrb[0].mxu0
        %v8618 = vpop.f32.mrb[0].mxu0
        %v8619 = vadd.f32 %v8458, %v8618
        %v8620 = vpop.f32.mrb[0].mxu0
        %8621 = vmatprep.mubr.bf16.mxu0 0
        %8622 = vmatmul.mubr.bf16.gmra.mrb[0].mxu0 %v7244
        %v8623 = vpop.f32.mrb[0].mxu0
        %v8624 = vadd.f32 %v8463, %v8623
        %v8625 = vpop.f32.mrb[0].mxu0
        %v8626 = vpop.f32.mrb[0].mxu0
        %v8627 = vadd.f32 %v8466, %v8626
        %v8628 = vpop.f32.mrb[0].mxu0
        %8629 = vmatprep.mubr.bf16.mxu0 0
        %8630 = vmatmul.mubr.bf16.gmra.mrb[0].mxu0 %v7253
        %v8631 = vpop.f32.mrb[0].mxu0
        %v8632 = vadd.f32 %v8471, %v8631
        %v8633 = vpop.f32.mrb[0].mxu0
        %v8634 = vpop.f32.mrb[0].mxu0
        %v8635 = vadd.f32 %v8474, %v8634
        %v8636 = vpop.f32.mrb[0].mxu0
        %8637 = vmatprep.mubr.bf16.mxu0 0
        %8638 = vmatmul.mubr.bf16.gmra.mrb[0].mxu0 %v7262
        %v8639 = vpop.f32.mrb[0].mxu0
        %v8640 = vadd.f32 %v8479, %v8639
        %v8641 = vpop.f32.mrb[0].mxu0
        %v8642 = vpop.f32.mrb[0].mxu0
        %v8643 = vadd.f32 %v8482, %v8642
        %v8644 = vpop.f32.mrb[0].mxu0
        %8645 = vmatprep.mubr.bf16.mxu0 0
        %8646 = vmatmul.mubr.bf16.gmra.mrb[0].mxu0 %v7271
        %v8647 = vpop.f32.mrb[0].mxu0
        %v8648 = vadd.f32 %v8487, %v8647
        %v8649 = vpop.f32.mrb[0].mxu0
        %v8650 = vpop.f32.mrb[0].mxu0
        %v8651 = vadd.f32 %v8490, %v8650
        %v8652 = vpop.f32.mrb[0].mxu0
        %8653 = vmatprep.mubr.bf16.mxu0 0
        %8654 = vmatmul.mubr.bf16.gmra.mrb[0].mxu0 %v7280
        %v8655 = vpop.f32.mrb[0].mxu0
        %v8656 = vadd.f32 %v8495, %v8655
        %v8657 = vpop.f32.mrb[0].mxu0
        %v8658 = vpop.f32.mrb[0].mxu0
        %v8659 = vadd.f32 %v8498, %v8658
        %v8660 = vpop.f32.mrb[0].mxu0
        %8661 = vdwg.mxu0
        %v8662 = vld [vmem:[%s5] sm:$0x1]
        %v8664 = vlaneseq
        %v8665 = vshrl.u32 %v8664, 7
        %v8666 = vsub.s32 0, %v8665
        %v8667 = vrot.slane %v8662, %v8666
        %v8669 = vmul.f32 %v8536, %v8667
        %v8670 = vmul.f32 %v8539, %v8667
        %v8671 = vmul.f32 %v8544, %v8667
        %v8672 = vmul.f32 %v8547, %v8667
        %v8673 = vmul.f32 %v8552, %v8667
        %v8674 = vmul.f32 %v8555, %v8667
        %v8675 = vmul.f32 %v8560, %v8667
        %v8676 = vmul.f32 %v8563, %v8667
        %v8677 = vmul.f32 %v8568, %v8667
        %v8678 = vmul.f32 %v8571, %v8667
        %v8679 = vmul.f32 %v8576, %v8667
        %v8680 = vmul.f32 %v8579, %v8667
        %v8681 = vmul.f32 %v8584, %v8667
        %v8682 = vmul.f32 %v8587, %v8667
        %v8683 = vmul.f32 %v8592, %v8667
        %v8684 = vmul.f32 %v8595, %v8667
        %v8685 = vmul.f32 %v8600, %v8667
        %v8686 = vmul.f32 %v8603, %v8667
        %v8687 = vmul.f32 %v8608, %v8667
        %v8688 = vmul.f32 %v8611, %v8667
        %v8689 = vmul.f32 %v8616, %v8667
        %v8690 = vmul.f32 %v8619, %v8667
        %v8691 = vmul.f32 %v8624, %v8667
        %v8692 = vmul.f32 %v8627, %v8667
        %v8693 = vmul.f32 %v8632, %v8667
        %v8694 = vmul.f32 %v8635, %v8667
        %v8695 = vmul.f32 %v8640, %v8667
        %v8696 = vmul.f32 %v8643, %v8667
        %v8697 = vmul.f32 %v8648, %v8667
        %v8698 = vmul.f32 %v8651, %v8667
        %v8699 = vmul.f32 %v8656, %v8667
        %v8700 = vmul.f32 %v8659, %v8667
        %v8701 = vld [vmem:[%s6] sm:$0x1]
        %v8703 = vlaneseq
        %v8704 = vshrl.u32 %v8703, 7
        %v8705 = vsub.s32 0, %v8704
        %v8706 = vrot.slane %v8701, %v8705
        %v8708 = vadd.f32 %v8669, %v8706
        %v8709 = vadd.f32 %v8670, %v8706
        %v8710 = vadd.f32 %v8671, %v8706
        %v8711 = vadd.f32 %v8672, %v8706
        %v8712 = vadd.f32 %v8673, %v8706
        %v8713 = vadd.f32 %v8674, %v8706
        %v8714 = vadd.f32 %v8675, %v8706
        %v8715 = vadd.f32 %v8676, %v8706
        %v8716 = vadd.f32 %v8677, %v8706
        %v8717 = vadd.f32 %v8678, %v8706
        %v8718 = vadd.f32 %v8679, %v8706
        %v8719 = vadd.f32 %v8680, %v8706
        %v8720 = vadd.f32 %v8681, %v8706
        %v8721 = vadd.f32 %v8682, %v8706
        %v8722 = vadd.f32 %v8683, %v8706
        %v8723 = vadd.f32 %v8684, %v8706
        %v8724 = vadd.f32 %v8685, %v8706
        %v8725 = vadd.f32 %v8686, %v8706
        %v8726 = vadd.f32 %v8687, %v8706
        %v8727 = vadd.f32 %v8688, %v8706
        %v8728 = vadd.f32 %v8689, %v8706
        %v8729 = vadd.f32 %v8690, %v8706
        %v8730 = vadd.f32 %v8691, %v8706
        %v8731 = vadd.f32 %v8692, %v8706
        %v8732 = vadd.f32 %v8693, %v8706
        %v8733 = vadd.f32 %v8694, %v8706
        %v8734 = vadd.f32 %v8695, %v8706
        %v8735 = vadd.f32 %v8696, %v8706
        %v8736 = vadd.f32 %v8697, %v8706
        %v8737 = vadd.f32 %v8698, %v8706
        %v8738 = vadd.f32 %v8699, %v8706
        %v8739 = vadd.f32 %v8700, %v8706
        %v8740 = vadd.f32 %v8708, %v3782
        %v8741 = vadd.f32 %v8709, %v3784
        %v8742 = vadd.f32 %v8710, %v3786
        %v8743 = vadd.f32 %v8711, %v3788
        %v8744 = vadd.f32 %v8712, %v3790
        %v8745 = vadd.f32 %v8713, %v3792
        %v8746 = vadd.f32 %v8714, %v3794
        %v8747 = vadd.f32 %v8715, %v3796
        %v8748 = vadd.f32 %v8716, %v3798
        %v8749 = vadd.f32 %v8717, %v3800
        %v8750 = vadd.f32 %v8718, %v3802
        %v8751 = vadd.f32 %v8719, %v3804
        %v8752 = vadd.f32 %v8720, %v3806
        %v8753 = vadd.f32 %v8721, %v3808
        %v8754 = vadd.f32 %v8722, %v3810
        %v8755 = vadd.f32 %v8723, %v3812
        %v8756 = vadd.f32 %v8724, %v3814
        %v8757 = vadd.f32 %v8725, %v3816
        %v8758 = vadd.f32 %v8726, %v3818
        %v8759 = vadd.f32 %v8727, %v3820
        %v8760 = vadd.f32 %v8728, %v3822
        %v8761 = vadd.f32 %v8729, %v3824
        %v8762 = vadd.f32 %v8730, %v3826
        %v8763 = vadd.f32 %v8731, %v3828
        %v8764 = vadd.f32 %v8732, %v3830
        %v8765 = vadd.f32 %v8733, %v3832
        %v8766 = vadd.f32 %v8734, %v3834
        %v8767 = vadd.f32 %v8735, %v3836
        %v8768 = vadd.f32 %v8736, %v3838
        %v8769 = vadd.f32 %v8737, %v3840
        %v8770 = vadd.f32 %v8738, %v3842
        %v8771 = vadd.f32 %v8739, %v3844
        %v8772 = vmax.f32 %v8740, 0.0
        %v8773 = vmax.f32 %v8741, 0.0
        %v8774 = vmax.f32 %v8742, 0.0
        %v8775 = vmax.f32 %v8743, 0.0
        %v8776 = vmax.f32 %v8744, 0.0
        %v8777 = vmax.f32 %v8745, 0.0
        %v8778 = vmax.f32 %v8746, 0.0
        %v8779 = vmax.f32 %v8747, 0.0
        %v8780 = vmax.f32 %v8748, 0.0
        %v8781 = vmax.f32 %v8749, 0.0
        %v8782 = vmax.f32 %v8750, 0.0
        %v8783 = vmax.f32 %v8751, 0.0
        %v8784 = vmax.f32 %v8752, 0.0
        %v8785 = vmax.f32 %v8753, 0.0
        %v8786 = vmax.f32 %v8754, 0.0
        %v8787 = vmax.f32 %v8755, 0.0
        %v8788 = vmax.f32 %v8756, 0.0
        %v8789 = vmax.f32 %v8757, 0.0
        %v8790 = vmax.f32 %v8758, 0.0
        %v8791 = vmax.f32 %v8759, 0.0
        %v8792 = vmax.f32 %v8760, 0.0
        %v8793 = vmax.f32 %v8761, 0.0
        %v8794 = vmax.f32 %v8762, 0.0
        %v8795 = vmax.f32 %v8763, 0.0
        %v8796 = vmax.f32 %v8764, 0.0
        %v8797 = vmax.f32 %v8765, 0.0
        %v8798 = vmax.f32 %v8766, 0.0
        %v8799 = vmax.f32 %v8767, 0.0
        %v8800 = vmax.f32 %v8768, 0.0
        %v8801 = vmax.f32 %v8769, 0.0
        %v8802 = vmax.f32 %v8770, 0.0
        %v8803 = vmax.f32 %v8771, 0.0
        %v8804 = vpack.c.bf16 %v8773, %v8772
        %v8805 = vpack.c.bf16 %v8775, %v8774
        %v8806 = vpack.c.bf16 %v8777, %v8776
        %v8807 = vpack.c.bf16 %v8779, %v8778
        %v8808 = vpack.c.bf16 %v8781, %v8780
        %v8809 = vpack.c.bf16 %v8783, %v8782
        %v8810 = vpack.c.bf16 %v8785, %v8784
        %v8811 = vpack.c.bf16 %v8787, %v8786
        %v8812 = vpack.c.bf16 %v8789, %v8788
        %v8813 = vpack.c.bf16 %v8791, %v8790
        %v8814 = vpack.c.bf16 %v8793, %v8792
        %v8815 = vpack.c.bf16 %v8795, %v8794
        %v8816 = vpack.c.bf16 %v8797, %v8796
        %v8817 = vpack.c.bf16 %v8799, %v8798
        %v8818 = vpack.c.bf16 %v8801, %v8800
        %v8819 = vpack.c.bf16 %v8803, %v8802
        %v8836 = vunpack.c.l.b16 %v8804
        %v8837 = vunpack.c.h.b16 %v8804
        %v8838 = vunpack.c.l.b16 %v8805
        %v8839 = vunpack.c.h.b16 %v8805
        %v8840 = vunpack.c.l.b16 %v8806
        %v8841 = vunpack.c.h.b16 %v8806
        %v8842 = vunpack.c.l.b16 %v8807
        %v8843 = vunpack.c.h.b16 %v8807
        %v8844 = vunpack.c.l.b16 %v8808
        %v8845 = vunpack.c.h.b16 %v8808
        %v8846 = vunpack.c.l.b16 %v8809
        %v8847 = vunpack.c.h.b16 %v8809
        %v8848 = vunpack.c.l.b16 %v8810
        %v8849 = vunpack.c.h.b16 %v8810
        %v8850 = vunpack.c.l.b16 %v8811
        %v8851 = vunpack.c.h.b16 %v8811
        %v8852 = vunpack.c.l.b16 %v8812
        %v8853 = vunpack.c.h.b16 %v8812
        %v8854 = vunpack.c.l.b16 %v8813
        %v8855 = vunpack.c.h.b16 %v8813
        %v8856 = vunpack.c.l.b16 %v8814
        %v8857 = vunpack.c.h.b16 %v8814
        %v8858 = vunpack.c.l.b16 %v8815
        %v8859 = vunpack.c.h.b16 %v8815
        %v8860 = vunpack.c.l.b16 %v8816
        %v8861 = vunpack.c.h.b16 %v8816
        %v8862 = vunpack.c.l.b16 %v8817
        %v8863 = vunpack.c.h.b16 %v8817
        %v8864 = vunpack.c.l.b16 %v8818
        %v8865 = vunpack.c.h.b16 %v8818
        %v8866 = vunpack.c.l.b16 %v8819
        %v8867 = vunpack.c.h.b16 %v8819
        %v8868 = vpack.c.b16 %v8836, %v8836
        %v8869 = vpack.c.b16 %v8837, %v8837
        %v8870 = vpack.c.b16 %v8838, %v8838
        %v8871 = vpack.c.b16 %v8839, %v8839
        %v8872 = vpack.c.b16 %v8840, %v8840
        %v8873 = vpack.c.b16 %v8841, %v8841
        %v8874 = vpack.c.b16 %v8842, %v8842
        %v8875 = vpack.c.b16 %v8843, %v8843
        %v8876 = vpack.c.b16 %v8844, %v8844
        %v8877 = vpack.c.b16 %v8845, %v8845
        %v8878 = vpack.c.b16 %v8846, %v8846
        %v8879 = vpack.c.b16 %v8847, %v8847
        %v8880 = vpack.c.b16 %v8848, %v8848
        %v8881 = vpack.c.b16 %v8849, %v8849
        %v8882 = vpack.c.b16 %v8850, %v8850
        %v8883 = vpack.c.b16 %v8851, %v8851
        %v8884 = vpack.c.b16 %v8852, %v8852
        %v8885 = vpack.c.b16 %v8853, %v8853
        %v8886 = vpack.c.b16 %v8854, %v8854
        %v8887 = vpack.c.b16 %v8855, %v8855
        %v8888 = vpack.c.b16 %v8856, %v8856
        %v8889 = vpack.c.b16 %v8857, %v8857
        %v8890 = vpack.c.b16 %v8858, %v8858
        %v8891 = vpack.c.b16 %v8859, %v8859
        %v8892 = vpack.c.b16 %v8860, %v8860
        %v8893 = vpack.c.b16 %v8861, %v8861
        %v8894 = vpack.c.b16 %v8862, %v8862
        %v8895 = vpack.c.b16 %v8863, %v8863
        %v8896 = vpack.c.b16 %v8864, %v8864
        %v8897 = vpack.c.b16 %v8865, %v8865
        %v8898 = vpack.c.b16 %v8866, %v8866
        %v8899 = vpack.c.b16 %v8867, %v8867
        %8932 = vst [vmem:[%s286] sm:$0xf] %v8868
        %8933 = vst [vmem:[%s286 + $0x4] sm:$0xf] %v8869
        %8934 = vst [vmem:[%s286 + $0x8] sm:$0xf] %v8870
        %8935 = vst [vmem:[%s286 + $0xc] sm:$0xf] %v8871
        %8936 = vst [vmem:[%s286 + $0x10] sm:$0xf] %v8872
        %8937 = vst [vmem:[%s286 + $0x14] sm:$0xf] %v8873
        %8938 = vst [vmem:[%s286 + $0x18] sm:$0xf] %v8874
        %8939 = vst [vmem:[%s286 + $0x1c] sm:$0xf] %v8875
        %8940 = vst [vmem:[%s286 + $0x20] sm:$0xf] %v8876
        %8941 = vst [vmem:[%s286 + $0x24] sm:$0xf] %v8877
        %8942 = vst [vmem:[%s286 + $0x28] sm:$0xf] %v8878
        %8943 = vst [vmem:[%s286 + $0x2c] sm:$0xf] %v8879
        %8944 = vst [vmem:[%s286 + $0x30] sm:$0xf] %v8880
        %8945 = vst [vmem:[%s286 + $0x34] sm:$0xf] %v8881
        %8946 = vst [vmem:[%s286 + $0x38] sm:$0xf] %v8882
        %8947 = vst [vmem:[%s286 + $0x3c] sm:$0xf] %v8883
        %8948 = vst [vmem:[%s286 + $0x40] sm:$0xf] %v8884
        %8949 = vst [vmem:[%s286 + $0x44] sm:$0xf] %v8885
        %8950 = vst [vmem:[%s286 + $0x48] sm:$0xf] %v8886
        %8951 = vst [vmem:[%s286 + $0x4c] sm:$0xf] %v8887
        %8952 = vst [vmem:[%s286 + $0x50] sm:$0xf] %v8888
        %8953 = vst [vmem:[%s286 + $0x54] sm:$0xf] %v8889
        %8954 = vst [vmem:[%s286 + $0x58] sm:$0xf] %v8890
        %8955 = vst [vmem:[%s286 + $0x5c] sm:$0xf] %v8891
        %8956 = vst [vmem:[%s286 + $0x60] sm:$0xf] %v8892
        %8957 = vst [vmem:[%s286 + $0x64] sm:$0xf] %v8893
        %8958 = vst [vmem:[%s286 + $0x68] sm:$0xf] %v8894
        %8959 = vst [vmem:[%s286 + $0x6c] sm:$0xf] %v8895
        %8960 = vst [vmem:[%s286 + $0x70] sm:$0xf] %v8896
        %8961 = vst [vmem:[%s286 + $0x74] sm:$0xf] %v8897
        %8962 = vst [vmem:[%s286 + $0x78] sm:$0xf] %v8898
        %8963 = vst [vmem:[%s286 + $0x7c] sm:$0xf] %v8899
        %s8964 = sand.u32 %s182, 1
        %s8965 = scalar_lea.sflag [#allocation7], %s8964
        %s8966 = sand.u32 %s182, 1
        %s8967 = smul.addr %s8966, 128
        %s8968 = scalar_lea.vmem [#allocation8], %s8967
        // Predicated region
        $region53: #{tpu_custom_call.1} parent=47 // pred_check
          %p8969 = pneg %p192
        $region54: #{tpu_custom_call.1} parent=47 // pred_check_branch
          %8971 = sbr.rel (%p8969) target = $region56
        $region55: #{tpu_custom_call.1} parent=47 // pred_region
          %s8973 = ssub.s32 2048, 2048
          %8974 = vsyncadd %s8965, %s8973
          %s8975 = smul.addr %s22, 32
          %s8976 = smul.addr %s8975, 64
          %s8977 = scalar_lea.hbm %s7, %s8976
          %s8978 = sshll.u32 %s8968, 4
          %s8979 = int_to_ptr.vmem [resolvable:$true] %s8978
          %8984 = dma.vmem_to_hbm [thread:$0]  %s8979, 2048, %s8977, %s8965, 64, 64, 4
        $region56: #{tpu_custom_call.1} parent=47 // pred_fallthru
          _
      $region48: #{tpu_custom_call.1} parent=5 // pred_fallthru
        _
      %p8985 = scmp.le.s32.totalorder 2, %s17
      // Predicated region
      $region57: #{tpu_custom_call.1} parent=5 // pred_check
        %p8986 = pneg %p8985
      $region58: #{tpu_custom_call.1} parent=5 // pred_check_branch
        %8988 = sbr.rel (%p8986) target = $region60
      $region59: #{tpu_custom_call.1} parent=5 // pred_region
        %s8989 = ssub.s32 %s17, 2
        // Predicated region
        $region61: #{tpu_custom_call.1} parent=59 // pred_check
          %p8990 = pneg %p198
        $region62: #{tpu_custom_call.1} parent=59 // pred_check_branch
          %8992 = sbr.rel (%p8990) target = $region64
        $region63: #{tpu_custom_call.1} parent=59 // pred_region
          %s8993 = sand.u32 %s183, 1
          %s8994 = scalar_lea.sflag [#allocation7], %s8993
          %s8995 = sand.u32 %s183, 1
          %s8996 = smul.addr %s8995, 128
          %s8997 = scalar_lea.vmem [#allocation8], %s8996
          %8998 = dma.done %s8994, 2048
        $region64: #{tpu_custom_call.1} parent=59 // pred_fallthru
          _
      $region60: #{tpu_custom_call.1} parent=5 // pred_fallthru
        _
    $region6: #{tpu_custom_call.1} parent=1 // loop_footer
      %s21 = sadd.s32 1, %s17
    $region7: #{tpu_custom_call.1} parent=1 // loop_footer_branch
      %16 = sbr.rel target = $region3
    $region8: #{tpu_custom_call.1} parent=1 // loop_exit
      _
    %8999 = vsyncpa [#allocation6], 1
    %s9000 = scalar_lea.sflag [#allocation6], 1
    %9001 = vsyncpa %s9000, 1
    %9002 = vsyncpa [#allocation7], 1
    %s9003 = scalar_lea.sflag [#allocation7], 1
    %9004 = vsyncpa %s9003, 1

</llo_original>
